<compile_context>
chip_gen: v7x
topology: tpu7x:2x2x1
jax: 0.10.0
libtpu: 0.0.40
codegen_flags: <defaults>
</compile_context>

<pallas_src>
import functools

import jax
import jax.numpy as jnp
import numpy as np
from jax import lax
from jax.experimental import pallas as pl
from jax.experimental.pallas import tpu as pltpu


# ----------------------------------------------------------------------------
# Fused kernel: per batch-block MLP encode + ridge-regression normal equations
# ----------------------------------------------------------------------------
def _fused_kernel(feats_ref, labels_ref, w1_ref, b1_ref, w2_ref, b2_ref,
                  gvec_pred_ref, ata_ref, aty_ref, gvec_scr,
                  *, block_b, t_pad, baselearn_len, pred_len, compute_dtype):
    cdt = compute_dtype

    # --- MLP on the whole flattened slab: (Bt * Tpad, F) -> (Bt * Tpad, G) ---
    feats = feats_ref[...].astype(cdt)               # (Bt*Tpad, F)
    w1 = w1_ref[...].astype(cdt)                     # (F, H1)
    w2 = w2_ref[...].astype(cdt)                     # (H1, G)
    b1 = b1_ref[...]                                 # (1, H1)  f32
    b2 = b2_ref[...]                                 # (1, G)   f32

    h = jnp.dot(feats, w1, preferred_element_type=jnp.float32) + b1
    h = jnp.maximum(h, 0.0)                          # ReLU
    g = jnp.dot(h.astype(cdt), w2, preferred_element_type=jnp.float32) + b2
    g = jnp.maximum(g, 0.0)                          # ReLU (dropout = identity)
    gvec_scr[...] = g                                # (Bt*Tpad, G) f32

    # contract over the time (row) axis of both operands -> no transpose
    dims = (((0,), (0,)), ((), ()))

    # --- per-example normal equations (G^T G and G^T Y) -----------------------
    @pl.loop(0, block_b)
    def _(b):
        row0 = pl.multiple_of(b * t_pad, 8)          # t_pad is a multiple of 8
        base = gvec_scr[pl.ds(row0, baselearn_len), :]        # (M, G)
        pred_start = row0 + baselearn_len
        if baselearn_len % 8 == 0:                   # static, trace-time check
            pred_start = pl.multiple_of(pred_start, 8)
        pred = gvec_scr[pl.ds(pred_start, pred_len), :]       # (H+1, G)

        base_c = base.astype(cdt)
        lab_c = labels_ref[b].astype(cdt)            # (M, O)

        ata_ref[b] = lax.dot_general(base_c, base_c, dims,
                                     preferred_element_type=jnp.float32)
        aty_ref[b] = lax.dot_general(base_c, lab_c, dims,
                                     preferred_element_type=jnp.float32)
        gvec_pred_ref[b] = pred                      # f32


def _pick_block(batch, max_block):
    """Largest divisor of `batch` <= max_block, preferring grid length >= 2
    (v7x has 2 TensorCores; a 1-step grid leaves one idle)."""
    divs = [d for d in range(1, batch + 1) if batch % d == 0 and d <= max_block]
    multi = [d for d in divs if batch // d >= 2]
    return max(multi) if multi else max(divs)


# ----------------------------------------------------------------------------
# Wrapper
# ----------------------------------------------------------------------------
def meta_mlp_encoder_forward(x, params, *, state_dim, control_dim, output_dim,
                             baselearn_len, future_horizon, base_reg,
                             compute_dtype=jnp.float32, max_block=64):
    """x: (B, baselearn_len + 1 + future_horizon, state_dim+control_dim+output_dim).

    `compute_dtype=jnp.bfloat16` runs the MXU matmuls in bf16 with f32
    accumulation (recommended for v6e/v7x); the ridge solve stays in f32.
    """
    B, T, D = x.shape
    feat_dim = state_dim + control_dim
    assert D == feat_dim + output_dim
    assert T == baselearn_len + 1 + future_horizon

    # MLP_withoutFC with exactly two Linear+ReLU layers (as in the demo config).
    # TODO(synk): generalize to arbitrary hidden_sizes depth.
    w1, b1, w2, b2 = params
    G = w2.shape[1]
    Hp1 = future_horizon + 1
    Tp = ((T + 7) // 8) * 8                          # sublane-aligned rows/batch

    Bt = _pick_block(B, max_block)                   # batch block per grid step
    grid = (B // Bt,)

    # Pre-slice / pad in XLA (cheap glue): a (B*Tpad, F) feature slab so the
    # kernel's MLP matmul is a single 2-D dot, plus the base-learn labels.
    feats = jnp.pad(x[:, :, :feat_dim], ((0, 0), (0, Tp - T), (0, 0)))
    feats_flat = feats.reshape(B * Tp, feat_dim)
    labels_base = x[:, :baselearn_len, feat_dim:]    # (B, M, O)

    kernel = functools.partial(
        _fused_kernel, block_b=Bt, t_pad=Tp, baselearn_len=baselearn_len,
        pred_len=Hp1, compute_dtype=compute_dtype)

    gvec_pred, ata_raw, aty = pl.pallas_call(
        kernel,
        out_shape=(
            jax.ShapeDtypeStruct((B, Hp1, G), jnp.float32),
            jax.ShapeDtypeStruct((B, G, G), jnp.float32),
            jax.ShapeDtypeStruct((B, G, output_dim), jnp.float32),
        ),
        grid=grid,
        in_specs=[
            pl.BlockSpec((Bt * Tp, feat_dim), lambda i: (i, 0)),
            pl.BlockSpec((Bt, baselearn_len, output_dim), lambda i: (i, 0, 0)),
            pl.BlockSpec(w1.shape, lambda i: (0, 0)),
            pl.BlockSpec(b1.shape, lambda i: (0, 0)),
            pl.BlockSpec(w2.shape, lambda i: (0, 0)),
            pl.BlockSpec(b2.shape, lambda i: (0, 0)),
        ],
        out_specs=(
            pl.BlockSpec((Bt, Hp1, G), lambda i: (i, 0, 0)),
            pl.BlockSpec((Bt, G, G), lambda i: (i, 0, 0)),
            pl.BlockSpec((Bt, G, output_dim), lambda i: (i, 0, 0)),
        ),
        scratch_shapes=[pltpu.VMEM((Bt * Tp, G), jnp.float32)],
        compiler_params=pltpu.CompilerParams(
            dimension_semantics=("parallel",)),
    )(feats_flat, labels_base, w1, b1, w2, b2)

    # --- tiny batched SPD ridge solve + final contraction: XLA glue ----------
    # TODO(synk): fuse the (G x G) Cholesky solve + final contraction into the
    # kernel if this glue ever shows up in profiles.
    ata = ata_raw + base_reg * jnp.eye(G, dtype=jnp.float32)     # hoisted +reg*I
    L = jnp.linalg.cholesky(ata)                                  # (B, G, G)
    z = lax.linalg.triangular_solve(L, aty, left_side=True, lower=True)
    W = lax.linalg.triangular_solve(L, z, left_side=True, lower=True,
                                    transpose_a=True)             # (B, G, O)
    batch_coeff = jnp.transpose(W, (0, 2, 1))                     # (B, O, G)

    out = jnp.einsum('bog,btg->bto', batch_coeff, gvec_pred)      # (B, H+1, O)
    coeff_predict = jnp.broadcast_to(
        batch_coeff[:, None, :, :], (B, Hp1, output_dim, G))
    return out, coeff_predict, gvec_pred[..., None]


# ----------------------------------------------------------------------------
# Pure-JAX reference for a correctness check
# ----------------------------------------------------------------------------
def _reference(x, params, *, state_dim, control_dim, output_dim,
               baselearn_len, future_horizon, base_reg):
    feat_dim = state_dim + control_dim
    w1, b1, w2, b2 = params

    def mlp(z):
        h = jnp.maximum(z @ w1 + b1, 0.0)
        return jnp.maximum(h @ w2 + b2, 0.0)

    x_base = x[:, :x.shape[1] - future_horizon - 1, :]
    gvec_base = mlp(x_base[:, :, :feat_dim])
    labels = x_base[:, :, feat_dim:]
    G = gvec_base.shape[-1]
    ata = jnp.einsum('bmg,bmh->bgh', gvec_base, gvec_base) \
        + base_reg * jnp.eye(G, dtype=jnp.float32)
    aty = jnp.einsum('bmg,bmo->bgo', gvec_base, labels)
    W = jnp.linalg.solve(ata, aty)                  # (B, G, O)
    coeff = jnp.transpose(W, (0, 2, 1))             # (B, O, G)
    x_pred = x[:, -future_horizon - 1:, :]
    gvec_pred = mlp(x_pred[:, :, :feat_dim])
    out = jnp.einsum('bog,btg->bto', coeff, gvec_pred)
    return out


if __name__ == "__main__":
    # Consistent precision for the reference / glue comparison.
    jax.config.update("jax_default_matmul_precision", "highest")

    # Small but MXU/lane-friendly shapes: last hidden (gvec dim) = 128.
    state_dim, control_dim, output_dim = 4, 2, 3
    baselearn_len, future_horizon = 8, 4
    hidden_sizes = [128, 128]
    base_reg = 0.1
    B = 64
    T = baselearn_len + 1 + future_horizon
    D = state_dim + control_dim + output_dim
    feat_dim = state_dim + control_dim

    key = jax.random.PRNGKey(0)
    kx, kw1, kb1, kw2, kb2 = jax.random.split(key, 5)

    x = jax.random.normal(kx, (B, T, D), dtype=jnp.float32)

    # Deterministic synthetic MLP_withoutFC parameters (Linear->ReLU x2).
    w1 = 0.1 * jax.random.normal(kw1, (feat_dim, hidden_sizes[0]), jnp.float32)
    b1 = 0.1 * jax.random.normal(kb1, (1, hidden_sizes[0]), jnp.float32)
    w2 = 0.1 * jax.random.normal(kw2, (hidden_sizes[0], hidden_sizes[1]), jnp.float32)
    b2 = 0.1 * jax.random.normal(kb2, (1, hidden_sizes[1]), jnp.float32)
    params = (w1, b1, w2, b2)

    out, coeff_predict, gvec_pred = meta_mlp_encoder_forward(
        x, params,
        state_dim=state_dim, control_dim=control_dim, output_dim=output_dim,
        baselearn_len=baselearn_len, future_horizon=future_horizon,
        base_reg=base_reg)
    jax.block_until_ready((out, coeff_predict, gvec_pred))

    # Shape checks (match the PyTorch module's documented outputs).
    assert out.shape == (B, future_horizon + 1, output_dim)
    assert coeff_predict.shape == (B, future_horizon + 1, output_dim, hidden_sizes[-1])
    assert gvec_pred.shape == (B, future_horizon + 1, hidden_sizes[-1], 1)

    ref = _reference(
        x, params,
        state_dim=state_dim, control_dim=control_dim, output_dim=output_dim,
        baselearn_len=baselearn_len, future_horizon=future_horizon,
        base_reg=base_reg)
    np.testing.assert_allclose(np.asarray(out), np.asarray(ref),
                               rtol=1e-3, atol=1e-3)

    # bf16 compute path (v6e/v7x MXU lever) — loose tolerance smoke check.
    out_bf16, _, _ = meta_mlp_encoder_forward(
        x, params,
        state_dim=state_dim, control_dim=control_dim, output_dim=output_dim,
        baselearn_len=baselearn_len, future_horizon=future_horizon,
        base_reg=base_reg, compute_dtype=jnp.bfloat16)
    jax.block_until_ready(out_bf16)
    np.testing.assert_allclose(np.asarray(out_bf16), np.asarray(ref),
                               rtol=0.25, atol=0.25)

    print("KERNEL_OK")
</pallas_src>

<mosaic_0001>
module attributes {stable_mosaic.version = 11 : i64} {
  func.func @_fused_kernel(%arg0: i32, %arg1: memref<512x6xf32, #tpu.memory_space<vmem>>, %arg2: memref<32x8x3xf32, #tpu.memory_space<vmem>>, %arg3: memref<6x128xf32, #tpu.memory_space<vmem>>, %arg4: memref<1x128xf32, #tpu.memory_space<vmem>>, %arg5: memref<128x128xf32, #tpu.memory_space<vmem>>, %arg6: memref<1x128xf32, #tpu.memory_space<vmem>>, %arg7: memref<32x5x128xf32, #tpu.memory_space<vmem>>, %arg8: memref<32x128x128xf32, #tpu.memory_space<vmem>>, %arg9: memref<32x128x3xf32, #tpu.memory_space<vmem>>, %arg10: memref<512x128xf32, #tpu.memory_space<vmem>>) attributes {dimension_semantics = [#tpu.dimension_semantics<parallel>], iteration_bounds = array<i64: 2>, scalar_prefetch = 0 : i64, scratch_operands = 1 : i64, tpu.core_type = #tpu.core_type<tc>, window_params = [{transform_indices = @transform_0, window_bounds = array<i64: 512, 6>}, {transform_indices = @transform_1, window_bounds = array<i64: 32, 8, 3>}, {pipeline_mode = #tpu.pipeline_mode<synchronous>, transform_indices = @transform_2, window_bounds = array<i64: 6, 128>}, {pipeline_mode = #tpu.pipeline_mode<synchronous>, transform_indices = @transform_3, window_bounds = array<i64: 1, 128>}, {pipeline_mode = #tpu.pipeline_mode<synchronous>, transform_indices = @transform_4, window_bounds = array<i64: 128, 128>}, {pipeline_mode = #tpu.pipeline_mode<synchronous>, transform_indices = @transform_5, window_bounds = array<i64: 1, 128>}, {transform_indices = @transform_6, window_bounds = array<i64: 32, 5, 128>}, {transform_indices = @transform_7, window_bounds = array<i64: 32, 128, 128>}, {transform_indices = @transform_8, window_bounds = array<i64: 32, 128, 3>}]} {
    %c0 = arith.constant 0 : index
    %c0_0 = arith.constant 0 : index
    %0 = vector.load %arg1[%c0, %c0_0] : memref<512x6xf32, #tpu.memory_space<vmem>>, vector<512x6xf32>
    %c0_1 = arith.constant 0 : index
    %c0_2 = arith.constant 0 : index
    %1 = vector.load %arg3[%c0_1, %c0_2] : memref<6x128xf32, #tpu.memory_space<vmem>>, vector<6x128xf32>
    %c0_3 = arith.constant 0 : index
    %c0_4 = arith.constant 0 : index
    %2 = vector.load %arg5[%c0_3, %c0_4] : memref<128x128xf32, #tpu.memory_space<vmem>>, vector<128x128xf32>
    %c0_5 = arith.constant 0 : index
    %c0_6 = arith.constant 0 : index
    %3 = vector.load %arg4[%c0_5, %c0_6] : memref<1x128xf32, #tpu.memory_space<vmem>>, vector<1x128xf32>
    %c0_7 = arith.constant 0 : index
    %c0_8 = arith.constant 0 : index
    %4 = vector.load %arg6[%c0_7, %c0_8] : memref<1x128xf32, #tpu.memory_space<vmem>>, vector<1x128xf32>
    %cst = arith.constant dense<0.000000e+00> : vector<512x128xf32>
    %5 = tpu.matmul %0, %1, %cst {dimension_numbers = #tpu.dot_dimension_numbers<[1], [0], [0], [1], [0, 0, 1, 1], [], []>, precision = #tpu.contract_precision<fp32>} : vector<512x6xf32>, vector<6x128xf32>, vector<512x128xf32> -> vector<512x128xf32>
    %6 = vector.broadcast %3 : vector<1x128xf32> to vector<512x128xf32>
    %7 = arith.addf %5, %6 : vector<512x128xf32>
    %cst_9 = arith.constant 0.000000e+00 : f32
    %8 = vector.broadcast %cst_9 : f32 to vector<512x128xf32>
    %9 = arith.maximumf %7, %8 : vector<512x128xf32>
    %cst_10 = arith.constant dense<0.000000e+00> : vector<512x128xf32>
    %10 = tpu.matmul %9, %2, %cst_10 {dimension_numbers = #tpu.dot_dimension_numbers<[1], [0], [0], [1], [0, 0, 1, 1], [], []>, precision = #tpu.contract_precision<fp32>} : vector<512x128xf32>, vector<128x128xf32>, vector<512x128xf32> -> vector<512x128xf32>
    %11 = vector.broadcast %4 : vector<1x128xf32> to vector<512x128xf32>
    %12 = arith.addf %10, %11 : vector<512x128xf32>
    %cst_11 = arith.constant 0.000000e+00 : f32
    %13 = vector.broadcast %cst_11 : f32 to vector<512x128xf32>
    %14 = arith.maximumf %12, %13 : vector<512x128xf32>
    %c0_12 = arith.constant 0 : index
    %c0_13 = arith.constant 0 : index
    %15 = vector.load %arg10[%c0_12, %c0_13] : memref<512x128xf32, #tpu.memory_space<vmem>>, vector<512x128xf32>
    tpu.vector_store %arg10[%c0_12, %c0_13], %14 {strides = array<i32>} : memref<512x128xf32, #tpu.memory_space<vmem>>, vector<512x128xf32>,
    %c0_i32 = arith.constant 0 : i32
    %c32_i32 = arith.constant 32 : i32
    %16 = arith.addi %c0_i32, %c32_i32 : i32
    %c1_i32 = arith.constant 1 : i32
    scf.for %arg11 = %c0_i32 to %16 step %c1_i32  : i32 {
      %c1_i32_15 = arith.constant 1 : i32
      %17 = arith.muli %arg11, %c1_i32_15 : i32
      %c0_i32_16 = arith.constant 0 : i32
      %18 = arith.addi %c0_i32_16, %17 : i32
      %c16_i32 = arith.constant 16 : i32
      %19 = arith.muli %18, %c16_i32 : i32
      %20 = tpu.assume_multiple %19, 8 : i32
      %21 = arith.index_cast %20 : i32 to index
      %c0_17 = arith.constant 0 : index
      %22 = vector.load %arg10[%21, %c0_17] : memref<512x128xf32, #tpu.memory_space<vmem>>, vector<8x128xf32>
      %c8_i32 = arith.constant 8 : i32
      %23 = arith.addi %20, %c8_i32 : i32
      %24 = tpu.assume_multiple %23, 8 : i32
      %25 = arith.index_cast %24 : i32 to index
      %c0_18 = arith.constant 0 : index
      %26 = vector.load %arg10[%25, %c0_18] : memref<512x128xf32, #tpu.memory_space<vmem>>, vector<5x128xf32>
      %27 = arith.index_cast %18 : i32 to index
      %c0_19 = arith.constant 0 : index
      %c0_20 = arith.constant 0 : index
      %28 = vector.load %arg2[%27, %c0_19, %c0_20] : memref<32x8x3xf32, #tpu.memory_space<vmem>>, vector<1x8x3xf32>
      %29 = vector.shape_cast %28 : vector<1x8x3xf32> to vector<8x3xf32>
      %cst_21 = arith.constant dense<0.000000e+00> : vector<128x128xf32>
      %30 = tpu.matmul %22, %22, %cst_21 {dimension_numbers = #tpu.dot_dimension_numbers<[0], [0], [1], [1], [0, 1, 1, 1], [], []>, precision = #tpu.contract_precision<fp32>} : vector<8x128xf32>, vector<8x128xf32>, vector<128x128xf32> -> vector<128x128xf32>
      %31 = arith.index_cast %18 : i32 to index
      %c0_22 = arith.constant 0 : index
      %c0_23 = arith.constant 0 : index
      %32 = vector.load %arg8[%31, %c0_22, %c0_23] : memref<32x128x128xf32, #tpu.memory_space<vmem>>, vector<1x128x128xf32>
      %33 = vector.shape_cast %32 : vector<1x128x128xf32> to vector<128x128xf32>
      %34 = vector.shape_cast %30 : vector<128x128xf32> to vector<1x128x128xf32>
      tpu.vector_store %arg8[%31, %c0_22, %c0_23], %34 {strides = array<i32>} : memref<32x128x128xf32, #tpu.memory_space<vmem>>, vector<1x128x128xf32>,
      %cst_24 = arith.constant dense<0.000000e+00> : vector<128x3xf32>
      %35 = tpu.matmul %22, %29, %cst_24 {dimension_numbers = #tpu.dot_dimension_numbers<[0], [0], [1], [1], [0, 1, 1, 1], [], []>, precision = #tpu.contract_precision<fp32>} : vector<8x128xf32>, vector<8x3xf32>, vector<128x3xf32> -> vector<128x3xf32>
      %36 = arith.index_cast %18 : i32 to index
      %c0_25 = arith.constant 0 : index
      %c0_26 = arith.constant 0 : index
      %37 = vector.load %arg9[%36, %c0_25, %c0_26] : memref<32x128x3xf32, #tpu.memory_space<vmem>>, vector<1x128x3xf32>
      %38 = vector.shape_cast %37 : vector<1x128x3xf32> to vector<128x3xf32>
      %39 = vector.shape_cast %35 : vector<128x3xf32> to vector<1x128x3xf32>
      tpu.vector_store %arg9[%36, %c0_25, %c0_26], %39 {strides = array<i32>} : memref<32x128x3xf32, #tpu.memory_space<vmem>>, vector<1x128x3xf32>,
      %40 = arith.index_cast %18 : i32 to index
      %c0_27 = arith.constant 0 : index
      %c0_28 = arith.constant 0 : index
      %41 = vector.load %arg7[%40, %c0_27, %c0_28] : memref<32x5x128xf32, #tpu.memory_space<vmem>>, vector<1x5x128xf32>
      %42 = vector.shape_cast %41 : vector<1x5x128xf32> to vector<5x128xf32>
      %43 = vector.shape_cast %26 : vector<5x128xf32> to vector<1x5x128xf32>
      tpu.vector_store %arg7[%40, %c0_27, %c0_28], %43 {strides = array<i32>} : memref<32x5x128xf32, #tpu.memory_space<vmem>>, vector<1x5x128xf32>,
    }
    %c32_i32_14 = arith.constant 32 : i32
    return
  }
  func.func @transform_0(%arg0: i32) -> (i32, i32) {
    %c0_i32 = arith.constant 0 : i32
    %c0_i32_0 = arith.constant 0 : i32
    return %arg0, %c0_i32 : i32, i32
  }
  func.func @transform_1(%arg0: i32) -> (i32, i32, i32) {
    %c0_i32 = arith.constant 0 : i32
    %c0_i32_0 = arith.constant 0 : i32
    %c0_i32_1 = arith.constant 0 : i32
    return %arg0, %c0_i32, %c0_i32_0 : i32, i32, i32
  }
  func.func @transform_2(%arg0: i32) -> (i32, i32) {
    %c0_i32 = arith.constant 0 : i32
    %c0_i32_0 = arith.constant 0 : i32
    %c0_i32_1 = arith.constant 0 : i32
    return %c0_i32, %c0_i32_0 : i32, i32
  }
  func.func @transform_3(%arg0: i32) -> (i32, i32) {
    %c0_i32 = arith.constant 0 : i32
    %c0_i32_0 = arith.constant 0 : i32
    %c0_i32_1 = arith.constant 0 : i32
    return %c0_i32, %c0_i32_0 : i32, i32
  }
  func.func @transform_4(%arg0: i32) -> (i32, i32) {
    %c0_i32 = arith.constant 0 : i32
    %c0_i32_0 = arith.constant 0 : i32
    %c0_i32_1 = arith.constant 0 : i32
    return %c0_i32, %c0_i32_0 : i32, i32
  }
  func.func @transform_5(%arg0: i32) -> (i32, i32) {
    %c0_i32 = arith.constant 0 : i32
    %c0_i32_0 = arith.constant 0 : i32
    %c0_i32_1 = arith.constant 0 : i32
    return %c0_i32, %c0_i32_0 : i32, i32
  }
  func.func @transform_6(%arg0: i32) -> (i32, i32, i32) {
    %c0_i32 = arith.constant 0 : i32
    %c0_i32_0 = arith.constant 0 : i32
    %c0_i32_1 = arith.constant 0 : i32
    return %arg0, %c0_i32, %c0_i32_0 : i32, i32, i32
  }
  func.func @transform_7(%arg0: i32) -> (i32, i32, i32) {
    %c0_i32 = arith.constant 0 : i32
    %c0_i32_0 = arith.constant 0 : i32
    %c0_i32_1 = arith.constant 0 : i32
    return %arg0, %c0_i32, %c0_i32_0 : i32, i32, i32
  }
  func.func @transform_8(%arg0: i32) -> (i32, i32, i32) {
    %c0_i32 = arith.constant 0 : i32
    %c0_i32_0 = arith.constant 0 : i32
    %c0_i32_1 = arith.constant 0 : i32
    return %arg0, %c0_i32, %c0_i32_0 : i32, i32, i32
  }
}

</mosaic_0001>

<llo_original>
// kernel: tpu_custom_call.1
$region0: #{tpu_custom_call.1}
  #allocation0 [shape = 'u32[]', space=smem, size = 0x4, offset = 0x4, fixed_abs, tag = 'smem constant byte address 0x4 - core index']
  #allocation1 [shape = 'u32[144,128]{1,0:T(1,128)}', space=vmem, size = 0x12000, scoped, tag = 'internal scratch']
  #allocation2 [shape = 'f32[512,128]{1,0:T(8,128)}', space=vmem, size = 0x40000, scoped, tag = 'scratch operand']
  %s0 = inlined_call_operand.vmem [shape: f32[1024,6], index: 0, kind: input, shape index: {}]
  %s1 = inlined_call_operand.vmem [shape: f32[64,8,3], index: 1, kind: input, shape index: {}]
  %s2 = inlined_call_operand.hbm [shape: f32[6,128], index: 2, kind: input, shape index: {}]
  %s3 = inlined_call_operand.hbm [shape: f32[1,128], index: 3, kind: input, shape index: {}]
  %s4 = inlined_call_operand.hbm [shape: f32[128,128], index: 4, kind: input, shape index: {}]
  %s5 = inlined_call_operand.hbm [shape: f32[1,128], index: 5, kind: input, shape index: {}]
  %s6 = inlined_call_operand.vmem [shape: f32[64,5,128], index: 6, kind: output, shape index: {0}]
  %s7 = inlined_call_operand.hbm [shape: f32[64,128,128], index: 7, kind: output, shape index: {1}]
  %s8 = inlined_call_operand.vmem [shape: f32[64,128,3], index: 8, kind: output, shape index: {2}]
  %9 = xla_tuple %s6, %s7, %s8
  %s10 = sld [smem:[#allocation0]]
  $region96: #{tpu_custom_call.1} parent=0
    _
  %s12 = ssub.s32 1, %s10
  %s13 = scalar_select 0, %s12, %s10
  $region1: #{tpu_custom_call.1} parent=0
    #allocation3 [shape = 'u8[4096]{0}', space=vmem, size = 0x1000, scoped, tag = 'input window, operand 2, single buffered']
    #allocation4 [shape = 's32[2]{0}', space=sflag, size = 0x8, scoped, tag = 'scoped memory for tpu_custom_call.1']
    #allocation5 [shape = 's32[2]{0}', space=sflag, size = 0x8, scoped, tag = 'scoped memory for tpu_custom_call.1']
    #allocation6 [shape = 'u8[512]{0}', space=vmem, size = 0x400, scoped, tag = 'input window, operand 3, single buffered']
    #allocation7 [shape = 's32[1]{0}', space=sflag, size = 0x4, scoped, tag = 'scoped memory for tpu_custom_call.1']
    #allocation8 [shape = 'u8[65536]{0}', space=vmem, size = 0x10000, scoped, tag = 'input window, operand 4, single buffered']
    #allocation9 [shape = 'u8[512]{0}', space=vmem, size = 0x400, scoped, tag = 'input window, operand 5, single buffered']
    #allocation10 [shape = 's32[1]{0}', space=sflag, size = 0x4, scoped, tag = 'scoped memory for tpu_custom_call.1']
    #allocation11 [shape = 'u8[4194304]{0}', space=vmem, size = 0x400000, scoped, tag = 'output window, operand 1']
    %14 = vsyncpa [#allocation4], 0
    %15 = vsyncpa [#allocation7], 0
    %16 = vsyncpa [#allocation10], 0
    %17 = vsyncpa [#allocation5], 0
    %s18 = scalar_lea.sflag [#allocation5], 1
    %19 = vsyncpa %s18, 0
    loop: start=0, step=1, limit=4
    $region2: #{tpu_custom_call.1} parent=1 // loop_pre_header
      _
    $region3: #{tpu_custom_call.1} parent=1 // loop_header
      %s21 = sphi 0, %s25
      %p22 = scmp.ge.s32.totalorder %s21, 4
      %s31 = sphi 0, %s33
      %s34 = sphi 0, %s31
      %s35 = sphi 0, %s34
      %s51 = sphi 0, %s35
      %s57 = sphi 0, %s59
      %s60 = sphi 0, %s57
      %s61 = sphi 0, %s60
      %s77 = sphi 0, %s61
      %s81 = sphi 0, %s81
      %s83 = sphi 0, %s81
      %s84 = sphi 0, %s83
      %s98 = sphi 0, %s84
      %s102 = sphi 0, %s102
      %s104 = sphi 0, %s102
      %s105 = sphi 0, %s104
      %s119 = sphi 0, %s105
      %s123 = sphi 0, %s123
      %s125 = sphi 0, %s123
      %s126 = sphi 0, %s125
      %s140 = sphi 0, %s126
      %s144 = sphi 0, %s144
      %s146 = sphi 0, %s144
      %s147 = sphi 0, %s146
      %s161 = sphi 0, %s147
      %s167 = sphi 0, %s169
      %s170 = sphi 0, %s167
      %s171 = sphi 0, %s170
      %s187 = sphi 0, %s171
      %s193 = sphi 0, %s195
      %s196 = sphi 0, %s193
      %s197 = sphi 0, %s196
      %s213 = sphi 0, %s197
      %s219 = sphi 0, %s221
      %s222 = sphi 0, %s219
      %s223 = sphi 0, %s222
      %s239 = sphi 0, %s223
    $region4: #{tpu_custom_call.1} parent=1 // loop_header_branch
      %24 = sbr.rel (%p22) target = $region8
    $region5: #{tpu_custom_call.1} parent=1 // loop_body
      %s26 = ssub.s32 %s21, 1
      %s27 = ssub.s32 %s21, 2
      %s28 = sadd.s32 %s21, 1
      %s29 = ssub.s32 %s21, %s28
      %p30 = scmp.eq.s32.totalorder %s29, 0
      %s32 = sadd.s32 %s31, 1
      %s33 = scalar_select %p30, %s31, %s32
      %p36 = pneg %p30
      %p37 = scmp.eq.s32.totalorder %s21, 1
      %p38 = por %p36, %p37
      %p39 = scmp.ne.s32.totalorder %s31, %s34
      %p40 = scmp.eq.s32.totalorder %s21, 0
      %p41 = por %p39, %p40
      %p42 = scmp.ne.s32.totalorder %s31, %s34
      %p43 = scmp.eq.s32.totalorder %s26, 1
      %p44 = por %p42, %p43
      %p45 = scmp.ne.s32.totalorder %s34, %s35
      %p46 = scmp.eq.s32.totalorder %s26, 0
      %p47 = por %p45, %p46
      %p48 = scmp.ne.s32.totalorder %s34, %s35
      %p49 = scmp.eq.s32.totalorder %s27, 1
      %p50 = por %p48, %p49
      %p52 = scmp.ne.s32.totalorder %s35, %s51
      %p53 = scmp.eq.s32.totalorder %s27, 0
      %p54 = por %p52, %p53
      %s55 = ssub.s32 %s21, %s28
      %p56 = scmp.eq.s32.totalorder %s55, 0
      %s58 = sadd.s32 %s57, 1
      %s59 = scalar_select %p56, %s57, %s58
      %p62 = pneg %p56
      %p63 = scmp.eq.s32.totalorder %s21, 1
      %p64 = por %p62, %p63
      %p65 = scmp.ne.s32.totalorder %s57, %s60
      %p66 = scmp.eq.s32.totalorder %s21, 0
      %p67 = por %p65, %p66
      %p68 = scmp.ne.s32.totalorder %s57, %s60
      %p69 = scmp.eq.s32.totalorder %s26, 1
      %p70 = por %p68, %p69
      %p71 = scmp.ne.s32.totalorder %s60, %s61
      %p72 = scmp.eq.s32.totalorder %s26, 0
      %p73 = por %p71, %p72
      %p74 = scmp.ne.s32.totalorder %s60, %s61
      %p75 = scmp.eq.s32.totalorder %s27, 1
      %p76 = por %p74, %p75
      %p78 = scmp.ne.s32.totalorder %s61, %s77
      %p79 = scmp.eq.s32.totalorder %s27, 0
      %p80 = por %p78, %p79
      %s82 = sadd.s32 %s81, 1
      %p85 = scmp.eq.s32.totalorder %s21, 1
      %p86 = scmp.ne.s32.totalorder %s81, %s83
      %p87 = scmp.eq.s32.totalorder %s21, 0
      %p88 = por %p86, %p87
      %p89 = scmp.ne.s32.totalorder %s81, %s83
      %p90 = scmp.eq.s32.totalorder %s26, 1
      %p91 = por %p89, %p90
      %p92 = scmp.ne.s32.totalorder %s83, %s84
      %p93 = scmp.eq.s32.totalorder %s26, 0
      %p94 = por %p92, %p93
      %p95 = scmp.ne.s32.totalorder %s83, %s84
      %p96 = scmp.eq.s32.totalorder %s27, 1
      %p97 = por %p95, %p96
      %p99 = scmp.ne.s32.totalorder %s84, %s98
      %p100 = scmp.eq.s32.totalorder %s27, 0
      %p101 = por %p99, %p100
      %s103 = sadd.s32 %s102, 1
      %p106 = scmp.eq.s32.totalorder %s21, 1
      %p107 = scmp.ne.s32.totalorder %s102, %s104
      %p108 = scmp.eq.s32.totalorder %s21, 0
      %p109 = por %p107, %p108
      %p110 = scmp.ne.s32.totalorder %s102, %s104
      %p111 = scmp.eq.s32.totalorder %s26, 1
      %p112 = por %p110, %p111
      %p113 = scmp.ne.s32.totalorder %s104, %s105
      %p114 = scmp.eq.s32.totalorder %s26, 0
      %p115 = por %p113, %p114
      %p116 = scmp.ne.s32.totalorder %s104, %s105
      %p117 = scmp.eq.s32.totalorder %s27, 1
      %p118 = por %p116, %p117
      %p120 = scmp.ne.s32.totalorder %s105, %s119
      %p121 = scmp.eq.s32.totalorder %s27, 0
      %p122 = por %p120, %p121
      %s124 = sadd.s32 %s123, 1
      %p127 = scmp.eq.s32.totalorder %s21, 1
      %p128 = scmp.ne.s32.totalorder %s123, %s125
      %p129 = scmp.eq.s32.totalorder %s21, 0
      %p130 = por %p128, %p129
      %p131 = scmp.ne.s32.totalorder %s123, %s125
      %p132 = scmp.eq.s32.totalorder %s26, 1
      %p133 = por %p131, %p132
      %p134 = scmp.ne.s32.totalorder %s125, %s126
      %p135 = scmp.eq.s32.totalorder %s26, 0
      %p136 = por %p134, %p135
      %p137 = scmp.ne.s32.totalorder %s125, %s126
      %p138 = scmp.eq.s32.totalorder %s27, 1
      %p139 = por %p137, %p138
      %p141 = scmp.ne.s32.totalorder %s126, %s140
      %p142 = scmp.eq.s32.totalorder %s27, 0
      %p143 = por %p141, %p142
      %s145 = sadd.s32 %s144, 1
      %p148 = scmp.eq.s32.totalorder %s21, 1
      %p149 = scmp.ne.s32.totalorder %s144, %s146
      %p150 = scmp.eq.s32.totalorder %s21, 0
      %p151 = por %p149, %p150
      %p152 = scmp.ne.s32.totalorder %s144, %s146
      %p153 = scmp.eq.s32.totalorder %s26, 1
      %p154 = por %p152, %p153
      %p155 = scmp.ne.s32.totalorder %s146, %s147
      %p156 = scmp.eq.s32.totalorder %s26, 0
      %p157 = por %p155, %p156
      %p158 = scmp.ne.s32.totalorder %s146, %s147
      %p159 = scmp.eq.s32.totalorder %s27, 1
      %p160 = por %p158, %p159
      %p162 = scmp.ne.s32.totalorder %s147, %s161
      %p163 = scmp.eq.s32.totalorder %s27, 0
      %p164 = por %p162, %p163
      %s165 = ssub.s32 %s21, %s28
      %p166 = scmp.eq.s32.totalorder %s165, 0
      %s168 = sadd.s32 %s167, 1
      %s169 = scalar_select %p166, %s167, %s168
      %p172 = pneg %p166
      %p173 = scmp.eq.s32.totalorder %s21, 1
      %p174 = por %p172, %p173
      %p175 = scmp.ne.s32.totalorder %s167, %s170
      %p176 = scmp.eq.s32.totalorder %s21, 0
      %p177 = por %p175, %p176
      %p178 = scmp.ne.s32.totalorder %s167, %s170
      %p179 = scmp.eq.s32.totalorder %s26, 1
      %p180 = por %p178, %p179
      %p181 = scmp.ne.s32.totalorder %s170, %s171
      %p182 = scmp.eq.s32.totalorder %s26, 0
      %p183 = por %p181, %p182
      %p184 = scmp.ne.s32.totalorder %s170, %s171
      %p185 = scmp.eq.s32.totalorder %s27, 1
      %p186 = por %p184, %p185
      %p188 = scmp.ne.s32.totalorder %s171, %s187
      %p189 = scmp.eq.s32.totalorder %s27, 0
      %p190 = por %p188, %p189
      %s191 = ssub.s32 %s21, %s28
      %p192 = scmp.eq.s32.totalorder %s191, 0
      %s194 = sadd.s32 %s193, 1
      %s195 = scalar_select %p192, %s193, %s194
      %p198 = pneg %p192
      %p199 = scmp.eq.s32.totalorder %s21, 1
      %p200 = por %p198, %p199
      %p201 = scmp.ne.s32.totalorder %s193, %s196
      %p202 = scmp.eq.s32.totalorder %s21, 0
      %p203 = por %p201, %p202
      %p204 = scmp.ne.s32.totalorder %s193, %s196
      %p205 = scmp.eq.s32.totalorder %s26, 1
      %p206 = por %p204, %p205
      %p207 = scmp.ne.s32.totalorder %s196, %s197
      %p208 = scmp.eq.s32.totalorder %s26, 0
      %p209 = por %p207, %p208
      %p210 = scmp.ne.s32.totalorder %s196, %s197
      %p211 = scmp.eq.s32.totalorder %s27, 1
      %p212 = por %p210, %p211
      %p214 = scmp.ne.s32.totalorder %s197, %s213
      %p215 = scmp.eq.s32.totalorder %s27, 0
      %p216 = por %p214, %p215
      %s217 = ssub.s32 %s21, %s28
      %p218 = scmp.eq.s32.totalorder %s217, 0
      %s220 = sadd.s32 %s219, 1
      %s221 = scalar_select %p218, %s219, %s220
      %p224 = pneg %p218
      %p225 = scmp.eq.s32.totalorder %s21, 1
      %p226 = por %p224, %p225
      %p227 = scmp.ne.s32.totalorder %s219, %s222
      %p228 = scmp.eq.s32.totalorder %s21, 0
      %p229 = por %p227, %p228
      %p230 = scmp.ne.s32.totalorder %s219, %s222
      %p231 = scmp.eq.s32.totalorder %s26, 1
      %p232 = por %p230, %p231
      %p233 = scmp.ne.s32.totalorder %s222, %s223
      %p234 = scmp.eq.s32.totalorder %s26, 0
      %p235 = por %p233, %p234
      %p236 = scmp.ne.s32.totalorder %s222, %s223
      %p237 = scmp.eq.s32.totalorder %s27, 1
      %p238 = por %p236, %p237
      %p240 = scmp.ne.s32.totalorder %s223, %s239
      %p241 = scmp.eq.s32.totalorder %s27, 0
      %p242 = por %p240, %p241
      %p243 = scmp.le.s32.totalorder 1, %s21
      %p244 = scmp.lt.s32.totalorder %s21, 3
      %p245 = pnand %p243, %p244
      %p246 = pneg %p245
      // Predicated region
      $region9: #{tpu_custom_call.1} parent=5 // pred_check
        _
      $region10: #{tpu_custom_call.1} parent=5 // pred_check_branch
        %248 = sbr.rel (%p245) target = $region12
      $region11: #{tpu_custom_call.1} parent=5 // pred_region
        %s249 = ssub.s32 %s21, 1
        // Predicated region
        $region13: #{tpu_custom_call.1} parent=11 // pred_check
          %p250 = pneg %p94
        $region14: #{tpu_custom_call.1} parent=11 // pred_check_branch
          %252 = sbr.rel (%p250) target = $region16
        $region15: #{tpu_custom_call.1} parent=11 // pred_region
          %s254 = ssub.s32 128, 128
          %255 = vsyncadd [#allocation4], %s254
          %s257 = sshll.u32 [#allocation3], 4
          %s258 = int_to_ptr.vmem [resolvable:$true] %s257
          %260 = dma.hbm_to_vmem [thread:$0]  %s2, 128, %s258, [#allocation4]
        $region16: #{tpu_custom_call.1} parent=11 // pred_fallthru
          _
        // Predicated region
        $region17: #{tpu_custom_call.1} parent=11 // pred_check
          %p261 = pneg %p115
        $region18: #{tpu_custom_call.1} parent=11 // pred_check_branch
          %263 = sbr.rel (%p261) target = $region20
        $region19: #{tpu_custom_call.1} parent=11 // pred_region
          %s265 = ssub.s32 16, 16
          %266 = vsyncadd [#allocation7], %s265
          %s268 = sshll.u32 [#allocation6], 4
          %s269 = int_to_ptr.vmem [resolvable:$true] %s268
          %271 = dma.hbm_to_vmem [thread:$0]  %s3, 16, %s269, [#allocation7]
        $region20: #{tpu_custom_call.1} parent=11 // pred_fallthru
          _
        // Predicated region
        $region21: #{tpu_custom_call.1} parent=11 // pred_check
          %p272 = pneg %p136
        $region22: #{tpu_custom_call.1} parent=11 // pred_check_branch
          %274 = sbr.rel (%p272) target = $region24
        $region23: #{tpu_custom_call.1} parent=11 // pred_region
          %s276 = ssub.s32 2048, 2048
          %277 = vsyncadd [#allocation7], %s276
          %s278 = sshll.u32 [#allocation8], 4
          %s279 = int_to_ptr.vmem [resolvable:$true] %s278
          %284 = dma.hbm_to_vmem [thread:$0]  %s4, 2048, %s279, [#allocation7], 128, 128, 8
        $region24: #{tpu_custom_call.1} parent=11 // pred_fallthru
          _
        // Predicated region
        $region25: #{tpu_custom_call.1} parent=11 // pred_check
          %p285 = pneg %p157
        $region26: #{tpu_custom_call.1} parent=11 // pred_check_branch
          %287 = sbr.rel (%p285) target = $region28
        $region27: #{tpu_custom_call.1} parent=11 // pred_region
          %s289 = ssub.s32 16, 16
          %290 = vsyncadd [#allocation10], %s289
          %s292 = sshll.u32 [#allocation9], 4
          %s293 = int_to_ptr.vmem [resolvable:$true] %s292
          %295 = dma.hbm_to_vmem [thread:$0]  %s5, 16, %s293, [#allocation10]
        $region28: #{tpu_custom_call.1} parent=11 // pred_fallthru
          _
      $region12: #{tpu_custom_call.1} parent=5 // pred_fallthru
        _
      %p296 = scmp.lt.s32.totalorder %s21, 2
      // Predicated region
      $region29: #{tpu_custom_call.1} parent=5 // pred_check
        %p297 = pneg %p296
      $region30: #{tpu_custom_call.1} parent=5 // pred_check_branch
        %299 = sbr.rel (%p297) target = $region32
      $region31: #{tpu_custom_call.1} parent=5 // pred_region
        // Predicated region
        $region33: #{tpu_custom_call.1} parent=31 // pred_check
          %p300 = pneg %p41
        $region34: #{tpu_custom_call.1} parent=31 // pred_check_branch
          %302 = sbr.rel (%p300) target = $region36
        $region35: #{tpu_custom_call.1} parent=31 // pred_region
          %s303 = smul.u32 64, %s21
          %p304 = scmp.lt.s32.totalorder %s303, 127
          %s305 = scalar_select %p304, %s303, 127
          %s306 = smul.addr %s305, 8
          %s307 = scalar_lea.vmem %s0, %s306
          %s308 = smul.u32 64, %s21
        $region36: #{tpu_custom_call.1} parent=31 // pred_fallthru
          _
        // Predicated region
        $region37: #{tpu_custom_call.1} parent=31 // pred_check
          %p309 = pneg %p67
        $region38: #{tpu_custom_call.1} parent=31 // pred_check_branch
          %311 = sbr.rel (%p309) target = $region40
        $region39: #{tpu_custom_call.1} parent=31 // pred_region
          %s312 = smul.u32 32, %s21
          %p313 = scmp.lt.s32.totalorder %s312, 63
          %s314 = scalar_select %p313, %s312, 63
          %s315 = smul.addr %s314, 8
          %s316 = scalar_lea.vmem %s1, %s315
          %s317 = smul.u32 32, %s21
        $region40: #{tpu_custom_call.1} parent=31 // pred_fallthru
          _
      $region32: #{tpu_custom_call.1} parent=5 // pred_fallthru
        _
      %p318 = scmp.le.s32.totalorder 1, %s21
      %p319 = scmp.lt.s32.totalorder %s21, 3
      %p320 = pnand %p318, %p319
      %p321 = pneg %p320
      // Predicated region
      $region41: #{tpu_custom_call.1} parent=5 // pred_check
        _
      $region42: #{tpu_custom_call.1} parent=5 // pred_check_branch
        %323 = sbr.rel (%p320) target = $region44
      $region43: #{tpu_custom_call.1} parent=5 // pred_region
        %s324 = ssub.s32 %s21, 1
        // Predicated region
        $region45: #{tpu_custom_call.1} parent=43 // pred_check
          %p325 = pneg %p94
        $region46: #{tpu_custom_call.1} parent=43 // pred_check_branch
          %327 = sbr.rel (%p325) target = $region48
        $region47: #{tpu_custom_call.1} parent=43 // pred_region
          %328 = dma.done [#allocation4], 128
        $region48: #{tpu_custom_call.1} parent=43 // pred_fallthru
          _
        // Predicated region
        $region49: #{tpu_custom_call.1} parent=43 // pred_check
          %p329 = pneg %p115
        $region50: #{tpu_custom_call.1} parent=43 // pred_check_branch
          %331 = sbr.rel (%p329) target = $region52
        $region51: #{tpu_custom_call.1} parent=43 // pred_region
          %332 = dma.done [#allocation7], 16
        $region52: #{tpu_custom_call.1} parent=43 // pred_fallthru
          _
        // Predicated region
        $region53: #{tpu_custom_call.1} parent=43 // pred_check
          %p333 = pneg %p136
        $region54: #{tpu_custom_call.1} parent=43 // pred_check_branch
          %335 = sbr.rel (%p333) target = $region56
        $region55: #{tpu_custom_call.1} parent=43 // pred_region
          %336 = dma.done [#allocation7], 2048
        $region56: #{tpu_custom_call.1} parent=43 // pred_fallthru
          _
        // Predicated region
        $region57: #{tpu_custom_call.1} parent=43 // pred_check
          %p337 = pneg %p157
        $region58: #{tpu_custom_call.1} parent=43 // pred_check_branch
          %339 = sbr.rel (%p337) target = $region60
        $region59: #{tpu_custom_call.1} parent=43 // pred_region
          %340 = dma.done [#allocation10], 16
        $region60: #{tpu_custom_call.1} parent=43 // pred_fallthru
          _
        %s341 = smul.u32 64, %s26
        %p342 = scmp.lt.s32.totalorder %s341, 127
        %s343 = scalar_select %p342, %s341, 127
        %s344 = smul.addr %s343, 8
        %s345 = scalar_lea.vmem %s0, %s344
        %p346 = pneg %p47
        %p347 = pneg %p44
        %s348 = smul.u32 32, %s26
        %p349 = scmp.lt.s32.totalorder %s348, 63
        %s350 = scalar_select %p349, %s348, 63
        %s351 = smul.addr %s350, 8
        %s352 = scalar_lea.vmem %s1, %s351
        %p353 = pneg %p73
        %p354 = pneg %p70
        %p355 = pneg %p94
        %p356 = pneg %p91
        %p357 = pneg %p115
        %p358 = pneg %p112
        %p359 = pneg %p136
        %p360 = pneg %p133
        %p361 = pneg %p157
        %p362 = pneg %p154
        %p363 = pneg %p183
        %p364 = pneg %p180
        %s365 = smul.u32 32, %s26
        %p366 = scmp.lt.s32.totalorder %s365, 63
        %s367 = scalar_select %p366, %s365, 63
        %s368 = smul.addr %s367, 8
        %s369 = scalar_lea.vmem %s6, %s368
        %p370 = pneg %p209
        %p371 = pneg %p206
        %s372 = sand.u32 %s196, 1
        %s373 = scalar_lea.sflag [#allocation5], %s372
        %s374 = sand.u32 %s196, 1
        %s375 = smul.addr %s374, 4096
        %s376 = scalar_lea.vmem [#allocation11], %s375
        %p377 = pneg %p235
        %p378 = pneg %p232
        %s379 = smul.u32 32, %s26
        %p380 = scmp.lt.s32.totalorder %s379, 63
        %s381 = scalar_select %p380, %s379, 63
        %s382 = smul.addr %s381, 16
        %s383 = smul.addr %s382, 8
        %s384 = scalar_lea.vmem %s8, %s383
        %s385 = smul.u32 64, %s26
        %p386 = scmp.lt.s32.totalorder %s385, 127
        %s387 = scalar_select %p386, %s385, 127
        %s388 = smul.addr %s387, 8
        %s389 = scalar_lea.vmem %s0, %s388
        %s390 = smul.u32 64, %s26
        %s391 = smul.u32 32, %s26
        %p392 = scmp.lt.s32.totalorder %s391, 63
        %s393 = scalar_select %p392, %s391, 63
        %s394 = smul.addr %s393, 8
        %s395 = scalar_lea.vmem %s1, %s394
        %s396 = smul.u32 32, %s26
        %s397 = smul.u32 32, %s26
        %p398 = scmp.lt.s32.totalorder %s397, 63
        %s399 = scalar_select %p398, %s397, 63
        %s400 = smul.addr %s399, 8
        %s401 = scalar_lea.vmem %s6, %s400
        %s402 = smul.u32 32, %s26
        %s403 = smul.u32 32, %s26
        %s404 = smul.u32 32, %s26
        %p405 = scmp.lt.s32.totalorder %s404, 63
        %s406 = scalar_select %p405, %s404, 63
        %s407 = smul.addr %s406, 16
        %s408 = smul.addr %s407, 8
        %s409 = scalar_lea.vmem %s8, %s408
        %s410 = smul.u32 32, %s26
        %v411 = vld [vmem:[%s389] sm:$0xff]
        %v412 = vld [vmem:[%s389 + $0x8] sm:$0xff]
        %v413 = vld [vmem:[%s389 + $0x10] sm:$0xff]
        %v414 = vld [vmem:[%s389 + $0x18] sm:$0xff]
        %v415 = vld [vmem:[%s389 + $0x20] sm:$0xff]
        %v416 = vld [vmem:[%s389 + $0x28] sm:$0xff]
        %v417 = vld [vmem:[%s389 + $0x30] sm:$0xff]
        %v418 = vld [vmem:[%s389 + $0x38] sm:$0xff]
        %v419 = vld [vmem:[%s389 + $0x40] sm:$0xff]
        %v420 = vld [vmem:[%s389 + $0x48] sm:$0xff]
        %v421 = vld [vmem:[%s389 + $0x50] sm:$0xff]
        %v422 = vld [vmem:[%s389 + $0x58] sm:$0xff]
        %v423 = vld [vmem:[%s389 + $0x60] sm:$0xff]
        %v424 = vld [vmem:[%s389 + $0x68] sm:$0xff]
        %v425 = vld [vmem:[%s389 + $0x70] sm:$0xff]
        %v426 = vld [vmem:[%s389 + $0x78] sm:$0xff]
        %v427 = vld [vmem:[%s389 + $0x80] sm:$0xff]
        %v428 = vld [vmem:[%s389 + $0x88] sm:$0xff]
        %v429 = vld [vmem:[%s389 + $0x90] sm:$0xff]
        %v430 = vld [vmem:[%s389 + $0x98] sm:$0xff]
        %v431 = vld [vmem:[%s389 + $0xa0] sm:$0xff]
        %v432 = vld [vmem:[%s389 + $0xa8] sm:$0xff]
        %v433 = vld [vmem:[%s389 + $0xb0] sm:$0xff]
        %v434 = vld [vmem:[%s389 + $0xb8] sm:$0xff]
        %v435 = vld [vmem:[%s389 + $0xc0] sm:$0xff]
        %v436 = vld [vmem:[%s389 + $0xc8] sm:$0xff]
        %v437 = vld [vmem:[%s389 + $0xd0] sm:$0xff]
        %v438 = vld [vmem:[%s389 + $0xd8] sm:$0xff]
        %v439 = vld [vmem:[%s389 + $0xe0] sm:$0xff]
        %v440 = vld [vmem:[%s389 + $0xe8] sm:$0xff]
        %v441 = vld [vmem:[%s389 + $0xf0] sm:$0xff]
        %v442 = vld [vmem:[%s389 + $0xf8] sm:$0xff]
        %v443 = vld [vmem:[%s389 + $0x100] sm:$0xff]
        %v444 = vld [vmem:[%s389 + $0x108] sm:$0xff]
        %v445 = vld [vmem:[%s389 + $0x110] sm:$0xff]
        %v446 = vld [vmem:[%s389 + $0x118] sm:$0xff]
        %v447 = vld [vmem:[%s389 + $0x120] sm:$0xff]
        %v448 = vld [vmem:[%s389 + $0x128] sm:$0xff]
        %v449 = vld [vmem:[%s389 + $0x130] sm:$0xff]
        %v450 = vld [vmem:[%s389 + $0x138] sm:$0xff]
        %v451 = vld [vmem:[%s389 + $0x140] sm:$0xff]
        %v452 = vld [vmem:[%s389 + $0x148] sm:$0xff]
        %v453 = vld [vmem:[%s389 + $0x150] sm:$0xff]
        %v454 = vld [vmem:[%s389 + $0x158] sm:$0xff]
        %v455 = vld [vmem:[%s389 + $0x160] sm:$0xff]
        %v456 = vld [vmem:[%s389 + $0x168] sm:$0xff]
        %v457 = vld [vmem:[%s389 + $0x170] sm:$0xff]
        %v458 = vld [vmem:[%s389 + $0x178] sm:$0xff]
        %v459 = vld [vmem:[%s389 + $0x180] sm:$0xff]
        %v460 = vld [vmem:[%s389 + $0x188] sm:$0xff]
        %v461 = vld [vmem:[%s389 + $0x190] sm:$0xff]
        %v462 = vld [vmem:[%s389 + $0x198] sm:$0xff]
        %v463 = vld [vmem:[%s389 + $0x1a0] sm:$0xff]
        %v464 = vld [vmem:[%s389 + $0x1a8] sm:$0xff]
        %v465 = vld [vmem:[%s389 + $0x1b0] sm:$0xff]
        %v466 = vld [vmem:[%s389 + $0x1b8] sm:$0xff]
        %v467 = vld [vmem:[%s389 + $0x1c0] sm:$0xff]
        %v468 = vld [vmem:[%s389 + $0x1c8] sm:$0xff]
        %v469 = vld [vmem:[%s389 + $0x1d0] sm:$0xff]
        %v470 = vld [vmem:[%s389 + $0x1d8] sm:$0xff]
        %v471 = vld [vmem:[%s389 + $0x1e0] sm:$0xff]
        %v472 = vld [vmem:[%s389 + $0x1e8] sm:$0xff]
        %v473 = vld [vmem:[%s389 + $0x1f0] sm:$0xff]
        %v474 = vld [vmem:[%s389 + $0x1f8] sm:$0xff]
        %v475 = vld [vmem:[#allocation3] sm:$0x3f]
        %v476 = vld [vmem:[#allocation8] sm:$0xff]
        %v477 = vld [vmem:[#allocation8 + $0x8] sm:$0xff]
        %v478 = vld [vmem:[#allocation8 + $0x10] sm:$0xff]
        %v479 = vld [vmem:[#allocation8 + $0x18] sm:$0xff]
        %v480 = vld [vmem:[#allocation8 + $0x20] sm:$0xff]
        %v481 = vld [vmem:[#allocation8 + $0x28] sm:$0xff]
        %v482 = vld [vmem:[#allocation8 + $0x30] sm:$0xff]
        %v483 = vld [vmem:[#allocation8 + $0x38] sm:$0xff]
        %v484 = vld [vmem:[#allocation8 + $0x40] sm:$0xff]
        %v485 = vld [vmem:[#allocation8 + $0x48] sm:$0xff]
        %v486 = vld [vmem:[#allocation8 + $0x50] sm:$0xff]
        %v487 = vld [vmem:[#allocation8 + $0x58] sm:$0xff]
        %v488 = vld [vmem:[#allocation8 + $0x60] sm:$0xff]
        %v489 = vld [vmem:[#allocation8 + $0x68] sm:$0xff]
        %v490 = vld [vmem:[#allocation8 + $0x70] sm:$0xff]
        %v491 = vld [vmem:[#allocation8 + $0x78] sm:$0xff]
        %v492 = vld [vmem:[#allocation6] sm:$0x1]
        %v493 = vld [vmem:[#allocation9] sm:$0x1]
        %v495 = vlaneseq
        %v496 = vshrl.u32 %v495, 7
        %v497 = vsub.s32 0, %v496
        %v498 = vrot.slane %v492, %v497
        %vm500 = vcmask 48128
        %v502 = vsel %vm500, %v411, 0
        %v505 = vsel %vm500, %v412, 0
        %v508 = vsel %vm500, %v413, 0
        %v511 = vsel %vm500, %v414, 0
        %v514 = vsel %vm500, %v415, 0
        %v517 = vsel %vm500, %v416, 0
        %v520 = vsel %vm500, %v417, 0
        %v523 = vsel %vm500, %v418, 0
        %v526 = vsel %vm500, %v419, 0
        %v529 = vsel %vm500, %v420, 0
        %v532 = vsel %vm500, %v421, 0
        %v535 = vsel %vm500, %v422, 0
        %v538 = vsel %vm500, %v423, 0
        %v541 = vsel %vm500, %v424, 0
        %v544 = vsel %vm500, %v425, 0
        %v547 = vsel %vm500, %v426, 0
        %v550 = vsel %vm500, %v427, 0
        %v553 = vsel %vm500, %v428, 0
        %v556 = vsel %vm500, %v429, 0
        %v559 = vsel %vm500, %v430, 0
        %v562 = vsel %vm500, %v431, 0
        %v565 = vsel %vm500, %v432, 0
        %v568 = vsel %vm500, %v433, 0
        %v571 = vsel %vm500, %v434, 0
        %v574 = vsel %vm500, %v435, 0
        %v577 = vsel %vm500, %v436, 0
        %v580 = vsel %vm500, %v437, 0
        %v583 = vsel %vm500, %v438, 0
        %v586 = vsel %vm500, %v439, 0
        %v589 = vsel %vm500, %v440, 0
        %v592 = vsel %vm500, %v441, 0
        %v595 = vsel %vm500, %v442, 0
        %v598 = vsel %vm500, %v443, 0
        %v601 = vsel %vm500, %v444, 0
        %v604 = vsel %vm500, %v445, 0
        %v607 = vsel %vm500, %v446, 0
        %v610 = vsel %vm500, %v447, 0
        %v613 = vsel %vm500, %v448, 0
        %v616 = vsel %vm500, %v449, 0
        %v619 = vsel %vm500, %v450, 0
        %v622 = vsel %vm500, %v451, 0
        %v625 = vsel %vm500, %v452, 0
        %v628 = vsel %vm500, %v453, 0
        %v631 = vsel %vm500, %v454, 0
        %v634 = vsel %vm500, %v455, 0
        %v637 = vsel %vm500, %v456, 0
        %v640 = vsel %vm500, %v457, 0
        %v643 = vsel %vm500, %v458, 0
        %v646 = vsel %vm500, %v459, 0
        %v649 = vsel %vm500, %v460, 0
        %v652 = vsel %vm500, %v461, 0
        %v655 = vsel %vm500, %v462, 0
        %v658 = vsel %vm500, %v463, 0
        %v661 = vsel %vm500, %v464, 0
        %v664 = vsel %vm500, %v465, 0
        %v667 = vsel %vm500, %v466, 0
        %v670 = vsel %vm500, %v467, 0
        %v673 = vsel %vm500, %v468, 0
        %v676 = vsel %vm500, %v469, 0
        %v679 = vsel %vm500, %v470, 0
        %v682 = vsel %vm500, %v471, 0
        %v685 = vsel %vm500, %v472, 0
        %v688 = vsel %vm500, %v473, 0
        %v691 = vsel %vm500, %v474, 0
        %vm693 = vcmask 1045504
        %v695 = vsel %vm693, %v475, 0
        %697 = vmatprep.subr.mxu0 0.0
        %v698 = vand.u32 %v695, 4294901760
        %699 = vmatpush1.msra.mxu0 %v698
        %700 = vmatprep.subr.mxu0 0.0
        %701 = vmatpush1.msra.mxu0 0.0
        %702 = vmatprep.subr.mxu0 0.0
        %703 = vmatpush1.msra.mxu0 0.0
        %704 = vmatprep.subr.mxu0 0.0
        %705 = vmatpush1.msra.mxu0 0.0
        %706 = vmatprep.subr.mxu0 0.0
        %707 = vmatpush1.msra.mxu0 0.0
        %708 = vmatprep.subr.mxu0 0.0
        %709 = vmatpush1.msra.mxu0 0.0
        %710 = vmatprep.subr.mxu0 0.0
        %711 = vmatpush1.msra.mxu0 0.0
        %712 = vmatprep.subr.mxu0 0.0
        %713 = vmatpush1.msra.mxu0 0.0
        %714 = vmatprep.subr.mxu0 0.0
        %715 = vmatpush1.msra.mxu0 0.0
        %716 = vmatprep.subr.mxu0 0.0
        %717 = vmatpush1.msra.mxu0 0.0
        %718 = vmatprep.subr.mxu0 0.0
        %719 = vmatpush1.msra.mxu0 0.0
        %720 = vmatprep.subr.mxu0 0.0
        %721 = vmatpush1.msra.mxu0 0.0
        %722 = vmatprep.subr.mxu0 0.0
        %723 = vmatpush1.msra.mxu0 0.0
        %724 = vmatprep.subr.mxu0 0.0
        %725 = vmatpush1.msra.mxu0 0.0
        %726 = vmatprep.subr.mxu0 0.0
        %727 = vmatpush1.msra.mxu0 0.0
        %728 = vmatprep.subr.mxu0 0.0
        %729 = vmatpush1.msra.mxu0 0.0
        %730 = vmatprep.subr.mxu0 0.0
        %731 = vmatpush1.msra.mxu0 0.0
        %732 = vmatprep.subr.mxu0 0.0
        %733 = vmatpush1.msra.mxu0 0.0
        %734 = vmatprep.subr.mxu0 0.0
        %735 = vmatpush1.msra.mxu0 0.0
        %736 = vmatprep.subr.mxu0 0.0
        %737 = vmatpush1.msra.mxu0 0.0
        %738 = vmatprep.subr.mxu0 0.0
        %739 = vmatpush1.msra.mxu0 0.0
        %740 = vmatprep.subr.mxu0 0.0
        %741 = vmatpush1.msra.mxu0 0.0
        %742 = vmatprep.subr.mxu0 0.0
        %743 = vmatpush1.msra.mxu0 0.0
        %744 = vmatprep.subr.mxu0 0.0
        %745 = vmatpush1.msra.mxu0 0.0
        %746 = vmatprep.subr.mxu0 0.0
        %747 = vmatpush1.msra.mxu0 0.0
        %748 = vmatprep.subr.mxu0 0.0
        %749 = vmatpush1.msra.mxu0 0.0
        %750 = vmatprep.subr.mxu0 0.0
        %751 = vmatpush1.msra.mxu0 0.0
        %752 = vmatprep.subr.mxu0 0.0
        %753 = vmatpush1.msra.mxu0 0.0
        %754 = vmatprep.subr.mxu0 0.0
        %755 = vmatpush1.msra.mxu0 0.0
        %756 = vmatprep.subr.mxu0 0.0
        %757 = vmatpush1.msra.mxu0 0.0
        %758 = vmatprep.subr.mxu0 0.0
        %759 = vmatpush1.msra.mxu0 0.0
        %760 = vmatprep.subr.mxu0 0.0
        %761 = vmatpush1.msra.mxu0 0.0
        %762 = vmatprep.mubr.f32.mxu0 0.0
        %v763 = vand.u32 %v502, 4294901760
        %v764 = vsub.f32 %v502, %v763
        %v765 = vand.u32 %v764, 4294901760
        %v766 = vsub.f32 %v764, %v765
        %v767 = vand.u32 %v766, 4294901760
        %768 = vmatmul.mubr.f32.gmra.mrb[0].mxu0 %v767
        %v769 = vpop.f32.mrb[0].mxu0
        %v770 = vadd.f32 %v498, %v769
        %v771 = vpop.f32.mrb[0].mxu0
        %772 = vmatprep.mubr.f32.mxu0 0.0
        %v773 = vand.u32 %v505, 4294901760
        %v774 = vsub.f32 %v505, %v773
        %v775 = vand.u32 %v774, 4294901760
        %v776 = vsub.f32 %v774, %v775
        %v777 = vand.u32 %v776, 4294901760
        %778 = vmatmul.mubr.f32.gmra.mrb[0].mxu0 %v777
        %v779 = vpop.f32.mrb[0].mxu0
        %v780 = vadd.f32 %v498, %v779
        %v781 = vpop.f32.mrb[0].mxu0
        %782 = vmatprep.mubr.f32.mxu0 0.0
        %v783 = vand.u32 %v508, 4294901760
        %v784 = vsub.f32 %v508, %v783
        %v785 = vand.u32 %v784, 4294901760
        %v786 = vsub.f32 %v784, %v785
        %v787 = vand.u32 %v786, 4294901760
        %788 = vmatmul.mubr.f32.gmra.mrb[0].mxu0 %v787
        %v789 = vpop.f32.mrb[0].mxu0
        %v790 = vadd.f32 %v498, %v789
        %v791 = vpop.f32.mrb[0].mxu0
        %792 = vmatprep.mubr.f32.mxu0 0.0
        %v793 = vand.u32 %v511, 4294901760
        %v794 = vsub.f32 %v511, %v793
        %v795 = vand.u32 %v794, 4294901760
        %v796 = vsub.f32 %v794, %v795
        %v797 = vand.u32 %v796, 4294901760
        %798 = vmatmul.mubr.f32.gmra.mrb[0].mxu0 %v797
        %v799 = vpop.f32.mrb[0].mxu0
        %v800 = vadd.f32 %v498, %v799
        %v801 = vpop.f32.mrb[0].mxu0
        %802 = vmatprep.mubr.f32.mxu0 0.0
        %v803 = vand.u32 %v514, 4294901760
        %v804 = vsub.f32 %v514, %v803
        %v805 = vand.u32 %v804, 4294901760
        %v806 = vsub.f32 %v804, %v805
        %v807 = vand.u32 %v806, 4294901760
        %808 = vmatmul.mubr.f32.gmra.mrb[0].mxu0 %v807
        %v809 = vpop.f32.mrb[0].mxu0
        %v810 = vadd.f32 %v498, %v809
        %v811 = vpop.f32.mrb[0].mxu0
        %812 = vmatprep.mubr.f32.mxu0 0.0
        %v813 = vand.u32 %v517, 4294901760
        %v814 = vsub.f32 %v517, %v813
        %v815 = vand.u32 %v814, 4294901760
        %v816 = vsub.f32 %v814, %v815
        %v817 = vand.u32 %v816, 4294901760
        %818 = vmatmul.mubr.f32.gmra.mrb[0].mxu0 %v817
        %v819 = vpop.f32.mrb[0].mxu0
        %v820 = vadd.f32 %v498, %v819
        %v821 = vpop.f32.mrb[0].mxu0
        %822 = vmatprep.mubr.f32.mxu0 0.0
        %v823 = vand.u32 %v520, 4294901760
        %v824 = vsub.f32 %v520, %v823
        %v825 = vand.u32 %v824, 4294901760
        %v826 = vsub.f32 %v824, %v825
        %v827 = vand.u32 %v826, 4294901760
        %828 = vmatmul.mubr.f32.gmra.mrb[0].mxu0 %v827
        %v829 = vpop.f32.mrb[0].mxu0
        %v830 = vadd.f32 %v498, %v829
        %v831 = vpop.f32.mrb[0].mxu0
        %832 = vmatprep.mubr.f32.mxu0 0.0
        %v833 = vand.u32 %v523, 4294901760
        %v834 = vsub.f32 %v523, %v833
        %v835 = vand.u32 %v834, 4294901760
        %v836 = vsub.f32 %v834, %v835
        %v837 = vand.u32 %v836, 4294901760
        %838 = vmatmul.mubr.f32.gmra.mrb[0].mxu0 %v837
        %v839 = vpop.f32.mrb[0].mxu0
        %v840 = vadd.f32 %v498, %v839
        %v841 = vpop.f32.mrb[0].mxu0
        %842 = vmatprep.mubr.f32.mxu0 0.0
        %v843 = vand.u32 %v526, 4294901760
        %v844 = vsub.f32 %v526, %v843
        %v845 = vand.u32 %v844, 4294901760
        %v846 = vsub.f32 %v844, %v845
        %v847 = vand.u32 %v846, 4294901760
        %848 = vmatmul.mubr.f32.gmra.mrb[0].mxu0 %v847
        %v849 = vpop.f32.mrb[0].mxu0
        %v850 = vadd.f32 %v498, %v849
        %v851 = vpop.f32.mrb[0].mxu0
        %852 = vmatprep.mubr.f32.mxu0 0.0
        %v853 = vand.u32 %v529, 4294901760
        %v854 = vsub.f32 %v529, %v853
        %v855 = vand.u32 %v854, 4294901760
        %v856 = vsub.f32 %v854, %v855
        %v857 = vand.u32 %v856, 4294901760
        %858 = vmatmul.mubr.f32.gmra.mrb[0].mxu0 %v857
        %v859 = vpop.f32.mrb[0].mxu0
        %v860 = vadd.f32 %v498, %v859
        %v861 = vpop.f32.mrb[0].mxu0
        %862 = vmatprep.mubr.f32.mxu0 0.0
        %v863 = vand.u32 %v532, 4294901760
        %v864 = vsub.f32 %v532, %v863
        %v865 = vand.u32 %v864, 4294901760
        %v866 = vsub.f32 %v864, %v865
        %v867 = vand.u32 %v866, 4294901760
        %868 = vmatmul.mubr.f32.gmra.mrb[0].mxu0 %v867
        %v869 = vpop.f32.mrb[0].mxu0
        %v870 = vadd.f32 %v498, %v869
        %v871 = vpop.f32.mrb[0].mxu0
        %872 = vmatprep.mubr.f32.mxu0 0.0
        %v873 = vand.u32 %v535, 4294901760
        %v874 = vsub.f32 %v535, %v873
        %v875 = vand.u32 %v874, 4294901760
        %v876 = vsub.f32 %v874, %v875
        %v877 = vand.u32 %v876, 4294901760
        %878 = vmatmul.mubr.f32.gmra.mrb[0].mxu0 %v877
        %v879 = vpop.f32.mrb[0].mxu0
        %v880 = vadd.f32 %v498, %v879
        %v881 = vpop.f32.mrb[0].mxu0
        %882 = vmatprep.mubr.f32.mxu0 0.0
        %v883 = vand.u32 %v538, 4294901760
        %v884 = vsub.f32 %v538, %v883
        %v885 = vand.u32 %v884, 4294901760
        %v886 = vsub.f32 %v884, %v885
        %v887 = vand.u32 %v886, 4294901760
        %888 = vmatmul.mubr.f32.gmra.mrb[0].mxu0 %v887
        %v889 = vpop.f32.mrb[0].mxu0
        %v890 = vadd.f32 %v498, %v889
        %v891 = vpop.f32.mrb[0].mxu0
        %892 = vmatprep.mubr.f32.mxu0 0.0
        %v893 = vand.u32 %v541, 4294901760
        %v894 = vsub.f32 %v541, %v893
        %v895 = vand.u32 %v894, 4294901760
        %v896 = vsub.f32 %v894, %v895
        %v897 = vand.u32 %v896, 4294901760
        %898 = vmatmul.mubr.f32.gmra.mrb[0].mxu0 %v897
        %v899 = vpop.f32.mrb[0].mxu0
        %v900 = vadd.f32 %v498, %v899
        %v901 = vpop.f32.mrb[0].mxu0
        %902 = vmatprep.mubr.f32.mxu0 0.0
        %v903 = vand.u32 %v544, 4294901760
        %v904 = vsub.f32 %v544, %v903
        %v905 = vand.u32 %v904, 4294901760
        %v906 = vsub.f32 %v904, %v905
        %v907 = vand.u32 %v906, 4294901760
        %908 = vmatmul.mubr.f32.gmra.mrb[0].mxu0 %v907
        %v909 = vpop.f32.mrb[0].mxu0
        %v910 = vadd.f32 %v498, %v909
        %v911 = vpop.f32.mrb[0].mxu0
        %912 = vmatprep.mubr.f32.mxu0 0.0
        %v913 = vand.u32 %v547, 4294901760
        %v914 = vsub.f32 %v547, %v913
        %v915 = vand.u32 %v914, 4294901760
        %v916 = vsub.f32 %v914, %v915
        %v917 = vand.u32 %v916, 4294901760
        %918 = vmatmul.mubr.f32.gmra.mrb[0].mxu0 %v917
        %v919 = vpop.f32.mrb[0].mxu0
        %v920 = vadd.f32 %v498, %v919
        %v921 = vpop.f32.mrb[0].mxu0
        %922 = vmatprep.mubr.f32.mxu0 0.0
        %v923 = vand.u32 %v550, 4294901760
        %v924 = vsub.f32 %v550, %v923
        %v925 = vand.u32 %v924, 4294901760
        %v926 = vsub.f32 %v924, %v925
        %v927 = vand.u32 %v926, 4294901760
        %928 = vmatmul.mubr.f32.gmra.mrb[0].mxu0 %v927
        %v929 = vpop.f32.mrb[0].mxu0
        %v930 = vadd.f32 %v498, %v929
        %v931 = vpop.f32.mrb[0].mxu0
        %932 = vmatprep.mubr.f32.mxu0 0.0
        %v933 = vand.u32 %v553, 4294901760
        %v934 = vsub.f32 %v553, %v933
        %v935 = vand.u32 %v934, 4294901760
        %v936 = vsub.f32 %v934, %v935
        %v937 = vand.u32 %v936, 4294901760
        %938 = vmatmul.mubr.f32.gmra.mrb[0].mxu0 %v937
        %v939 = vpop.f32.mrb[0].mxu0
        %v940 = vadd.f32 %v498, %v939
        %v941 = vpop.f32.mrb[0].mxu0
        %942 = vmatprep.mubr.f32.mxu0 0.0
        %v943 = vand.u32 %v556, 4294901760
        %v944 = vsub.f32 %v556, %v943
        %v945 = vand.u32 %v944, 4294901760
        %v946 = vsub.f32 %v944, %v945
        %v947 = vand.u32 %v946, 4294901760
        %948 = vmatmul.mubr.f32.gmra.mrb[0].mxu0 %v947
        %v949 = vpop.f32.mrb[0].mxu0
        %v950 = vadd.f32 %v498, %v949
        %v951 = vpop.f32.mrb[0].mxu0
        %952 = vmatprep.mubr.f32.mxu0 0.0
        %v953 = vand.u32 %v559, 4294901760
        %v954 = vsub.f32 %v559, %v953
        %v955 = vand.u32 %v954, 4294901760
        %v956 = vsub.f32 %v954, %v955
        %v957 = vand.u32 %v956, 4294901760
        %958 = vmatmul.mubr.f32.gmra.mrb[0].mxu0 %v957
        %v959 = vpop.f32.mrb[0].mxu0
        %v960 = vadd.f32 %v498, %v959
        %v961 = vpop.f32.mrb[0].mxu0
        %962 = vmatprep.mubr.f32.mxu0 0.0
        %v963 = vand.u32 %v562, 4294901760
        %v964 = vsub.f32 %v562, %v963
        %v965 = vand.u32 %v964, 4294901760
        %v966 = vsub.f32 %v964, %v965
        %v967 = vand.u32 %v966, 4294901760
        %968 = vmatmul.mubr.f32.gmra.mrb[0].mxu0 %v967
        %v969 = vpop.f32.mrb[0].mxu0
        %v970 = vadd.f32 %v498, %v969
        %v971 = vpop.f32.mrb[0].mxu0
        %972 = vmatprep.mubr.f32.mxu0 0.0
        %v973 = vand.u32 %v565, 4294901760
        %v974 = vsub.f32 %v565, %v973
        %v975 = vand.u32 %v974, 4294901760
        %v976 = vsub.f32 %v974, %v975
        %v977 = vand.u32 %v976, 4294901760
        %978 = vmatmul.mubr.f32.gmra.mrb[0].mxu0 %v977
        %v979 = vpop.f32.mrb[0].mxu0
        %v980 = vadd.f32 %v498, %v979
        %v981 = vpop.f32.mrb[0].mxu0
        %982 = vmatprep.mubr.f32.mxu0 0.0
        %v983 = vand.u32 %v568, 4294901760
        %v984 = vsub.f32 %v568, %v983
        %v985 = vand.u32 %v984, 4294901760
        %v986 = vsub.f32 %v984, %v985
        %v987 = vand.u32 %v986, 4294901760
        %988 = vmatmul.mubr.f32.gmra.mrb[0].mxu0 %v987
        %v989 = vpop.f32.mrb[0].mxu0
        %v990 = vadd.f32 %v498, %v989
        %v991 = vpop.f32.mrb[0].mxu0
        %992 = vmatprep.mubr.f32.mxu0 0.0
        %v993 = vand.u32 %v571, 4294901760
        %v994 = vsub.f32 %v571, %v993
        %v995 = vand.u32 %v994, 4294901760
        %v996 = vsub.f32 %v994, %v995
        %v997 = vand.u32 %v996, 4294901760
        %998 = vmatmul.mubr.f32.gmra.mrb[0].mxu0 %v997
        %v999 = vpop.f32.mrb[0].mxu0
        %v1000 = vadd.f32 %v498, %v999
        %v1001 = vpop.f32.mrb[0].mxu0
        %1002 = vmatprep.mubr.f32.mxu0 0.0
        %v1003 = vand.u32 %v574, 4294901760
        %v1004 = vsub.f32 %v574, %v1003
        %v1005 = vand.u32 %v1004, 4294901760
        %v1006 = vsub.f32 %v1004, %v1005
        %v1007 = vand.u32 %v1006, 4294901760
        %1008 = vmatmul.mubr.f32.gmra.mrb[0].mxu0 %v1007
        %v1009 = vpop.f32.mrb[0].mxu0
        %v1010 = vadd.f32 %v498, %v1009
        %v1011 = vpop.f32.mrb[0].mxu0
        %1012 = vmatprep.mubr.f32.mxu0 0.0
        %v1013 = vand.u32 %v577, 4294901760
        %v1014 = vsub.f32 %v577, %v1013
        %v1015 = vand.u32 %v1014, 4294901760
        %v1016 = vsub.f32 %v1014, %v1015
        %v1017 = vand.u32 %v1016, 4294901760
        %1018 = vmatmul.mubr.f32.gmra.mrb[0].mxu0 %v1017
        %v1019 = vpop.f32.mrb[0].mxu0
        %v1020 = vadd.f32 %v498, %v1019
        %v1021 = vpop.f32.mrb[0].mxu0
        %1022 = vmatprep.mubr.f32.mxu0 0.0
        %v1023 = vand.u32 %v580, 4294901760
        %v1024 = vsub.f32 %v580, %v1023
        %v1025 = vand.u32 %v1024, 4294901760
        %v1026 = vsub.f32 %v1024, %v1025
        %v1027 = vand.u32 %v1026, 4294901760
        %1028 = vmatmul.mubr.f32.gmra.mrb[0].mxu0 %v1027
        %v1029 = vpop.f32.mrb[0].mxu0
        %v1030 = vadd.f32 %v498, %v1029
        %v1031 = vpop.f32.mrb[0].mxu0
        %1032 = vmatprep.mubr.f32.mxu0 0.0
        %v1033 = vand.u32 %v583, 4294901760
        %v1034 = vsub.f32 %v583, %v1033
        %v1035 = vand.u32 %v1034, 4294901760
        %v1036 = vsub.f32 %v1034, %v1035
        %v1037 = vand.u32 %v1036, 4294901760
        %1038 = vmatmul.mubr.f32.gmra.mrb[0].mxu0 %v1037
        %v1039 = vpop.f32.mrb[0].mxu0
        %v1040 = vadd.f32 %v498, %v1039
        %v1041 = vpop.f32.mrb[0].mxu0
        %1042 = vmatprep.mubr.f32.mxu0 0.0
        %v1043 = vand.u32 %v586, 4294901760
        %v1044 = vsub.f32 %v586, %v1043
        %v1045 = vand.u32 %v1044, 4294901760
        %v1046 = vsub.f32 %v1044, %v1045
        %v1047 = vand.u32 %v1046, 4294901760
        %1048 = vmatmul.mubr.f32.gmra.mrb[0].mxu0 %v1047
        %v1049 = vpop.f32.mrb[0].mxu0
        %v1050 = vadd.f32 %v498, %v1049
        %v1051 = vpop.f32.mrb[0].mxu0
        %1052 = vmatprep.mubr.f32.mxu0 0.0
        %v1053 = vand.u32 %v589, 4294901760
        %v1054 = vsub.f32 %v589, %v1053
        %v1055 = vand.u32 %v1054, 4294901760
        %v1056 = vsub.f32 %v1054, %v1055
        %v1057 = vand.u32 %v1056, 4294901760
        %1058 = vmatmul.mubr.f32.gmra.mrb[0].mxu0 %v1057
        %v1059 = vpop.f32.mrb[0].mxu0
        %v1060 = vadd.f32 %v498, %v1059
        %v1061 = vpop.f32.mrb[0].mxu0
        %1062 = vmatprep.mubr.f32.mxu0 0.0
        %v1063 = vand.u32 %v592, 4294901760
        %v1064 = vsub.f32 %v592, %v1063
        %v1065 = vand.u32 %v1064, 4294901760
        %v1066 = vsub.f32 %v1064, %v1065
        %v1067 = vand.u32 %v1066, 4294901760
        %1068 = vmatmul.mubr.f32.gmra.mrb[0].mxu0 %v1067
        %v1069 = vpop.f32.mrb[0].mxu0
        %v1070 = vadd.f32 %v498, %v1069
        %v1071 = vpop.f32.mrb[0].mxu0
        %1072 = vmatprep.mubr.f32.mxu0 0.0
        %v1073 = vand.u32 %v595, 4294901760
        %v1074 = vsub.f32 %v595, %v1073
        %v1075 = vand.u32 %v1074, 4294901760
        %v1076 = vsub.f32 %v1074, %v1075
        %v1077 = vand.u32 %v1076, 4294901760
        %1078 = vmatmul.mubr.f32.gmra.mrb[0].mxu0 %v1077
        %v1079 = vpop.f32.mrb[0].mxu0
        %v1080 = vadd.f32 %v498, %v1079
        %v1081 = vpop.f32.mrb[0].mxu0
        %1082 = vmatprep.mubr.f32.mxu0 0.0
        %v1083 = vand.u32 %v598, 4294901760
        %v1084 = vsub.f32 %v598, %v1083
        %v1085 = vand.u32 %v1084, 4294901760
        %v1086 = vsub.f32 %v1084, %v1085
        %v1087 = vand.u32 %v1086, 4294901760
        %1088 = vmatmul.mubr.f32.gmra.mrb[0].mxu0 %v1087
        %v1089 = vpop.f32.mrb[0].mxu0
        %v1090 = vadd.f32 %v498, %v1089
        %v1091 = vpop.f32.mrb[0].mxu0
        %1092 = vmatprep.mubr.f32.mxu0 0.0
        %v1093 = vand.u32 %v601, 4294901760
        %v1094 = vsub.f32 %v601, %v1093
        %v1095 = vand.u32 %v1094, 4294901760
        %v1096 = vsub.f32 %v1094, %v1095
        %v1097 = vand.u32 %v1096, 4294901760
        %1098 = vmatmul.mubr.f32.gmra.mrb[0].mxu0 %v1097
        %v1099 = vpop.f32.mrb[0].mxu0
        %v1100 = vadd.f32 %v498, %v1099
        %v1101 = vpop.f32.mrb[0].mxu0
        %1102 = vmatprep.mubr.f32.mxu0 0.0
        %v1103 = vand.u32 %v604, 4294901760
        %v1104 = vsub.f32 %v604, %v1103
        %v1105 = vand.u32 %v1104, 4294901760
        %v1106 = vsub.f32 %v1104, %v1105
        %v1107 = vand.u32 %v1106, 4294901760
        %1108 = vmatmul.mubr.f32.gmra.mrb[0].mxu0 %v1107
        %v1109 = vpop.f32.mrb[0].mxu0
        %v1110 = vadd.f32 %v498, %v1109
        %v1111 = vpop.f32.mrb[0].mxu0
        %1112 = vmatprep.mubr.f32.mxu0 0.0
        %v1113 = vand.u32 %v607, 4294901760
        %v1114 = vsub.f32 %v607, %v1113
        %v1115 = vand.u32 %v1114, 4294901760
        %v1116 = vsub.f32 %v1114, %v1115
        %v1117 = vand.u32 %v1116, 4294901760
        %1118 = vmatmul.mubr.f32.gmra.mrb[0].mxu0 %v1117
        %v1119 = vpop.f32.mrb[0].mxu0
        %v1120 = vadd.f32 %v498, %v1119
        %v1121 = vpop.f32.mrb[0].mxu0
        %1122 = vmatprep.mubr.f32.mxu0 0.0
        %v1123 = vand.u32 %v610, 4294901760
        %v1124 = vsub.f32 %v610, %v1123
        %v1125 = vand.u32 %v1124, 4294901760
        %v1126 = vsub.f32 %v1124, %v1125
        %v1127 = vand.u32 %v1126, 4294901760
        %1128 = vmatmul.mubr.f32.gmra.mrb[0].mxu0 %v1127
        %v1129 = vpop.f32.mrb[0].mxu0
        %v1130 = vadd.f32 %v498, %v1129
        %v1131 = vpop.f32.mrb[0].mxu0
        %1132 = vmatprep.mubr.f32.mxu0 0.0
        %v1133 = vand.u32 %v613, 4294901760
        %v1134 = vsub.f32 %v613, %v1133
        %v1135 = vand.u32 %v1134, 4294901760
        %v1136 = vsub.f32 %v1134, %v1135
        %v1137 = vand.u32 %v1136, 4294901760
        %1138 = vmatmul.mubr.f32.gmra.mrb[0].mxu0 %v1137
        %v1139 = vpop.f32.mrb[0].mxu0
        %v1140 = vadd.f32 %v498, %v1139
        %v1141 = vpop.f32.mrb[0].mxu0
        %1142 = vmatprep.mubr.f32.mxu0 0.0
        %v1143 = vand.u32 %v616, 4294901760
        %v1144 = vsub.f32 %v616, %v1143
        %v1145 = vand.u32 %v1144, 4294901760
        %v1146 = vsub.f32 %v1144, %v1145
        %v1147 = vand.u32 %v1146, 4294901760
        %1148 = vmatmul.mubr.f32.gmra.mrb[0].mxu0 %v1147
        %v1149 = vpop.f32.mrb[0].mxu0
        %v1150 = vadd.f32 %v498, %v1149
        %v1151 = vpop.f32.mrb[0].mxu0
        %1152 = vmatprep.mubr.f32.mxu0 0.0
        %v1153 = vand.u32 %v619, 4294901760
        %v1154 = vsub.f32 %v619, %v1153
        %v1155 = vand.u32 %v1154, 4294901760
        %v1156 = vsub.f32 %v1154, %v1155
        %v1157 = vand.u32 %v1156, 4294901760
        %1158 = vmatmul.mubr.f32.gmra.mrb[0].mxu0 %v1157
        %v1159 = vpop.f32.mrb[0].mxu0
        %v1160 = vadd.f32 %v498, %v1159
        %v1161 = vpop.f32.mrb[0].mxu0
        %1162 = vmatprep.mubr.f32.mxu0 0.0
        %v1163 = vand.u32 %v622, 4294901760
        %v1164 = vsub.f32 %v622, %v1163
        %v1165 = vand.u32 %v1164, 4294901760
        %v1166 = vsub.f32 %v1164, %v1165
        %v1167 = vand.u32 %v1166, 4294901760
        %1168 = vmatmul.mubr.f32.gmra.mrb[0].mxu0 %v1167
        %v1169 = vpop.f32.mrb[0].mxu0
        %v1170 = vadd.f32 %v498, %v1169
        %v1171 = vpop.f32.mrb[0].mxu0
        %1172 = vmatprep.mubr.f32.mxu0 0.0
        %v1173 = vand.u32 %v625, 4294901760
        %v1174 = vsub.f32 %v625, %v1173
        %v1175 = vand.u32 %v1174, 4294901760
        %v1176 = vsub.f32 %v1174, %v1175
        %v1177 = vand.u32 %v1176, 4294901760
        %1178 = vmatmul.mubr.f32.gmra.mrb[0].mxu0 %v1177
        %v1179 = vpop.f32.mrb[0].mxu0
        %v1180 = vadd.f32 %v498, %v1179
        %v1181 = vpop.f32.mrb[0].mxu0
        %1182 = vmatprep.mubr.f32.mxu0 0.0
        %v1183 = vand.u32 %v628, 4294901760
        %v1184 = vsub.f32 %v628, %v1183
        %v1185 = vand.u32 %v1184, 4294901760
        %v1186 = vsub.f32 %v1184, %v1185
        %v1187 = vand.u32 %v1186, 4294901760
        %1188 = vmatmul.mubr.f32.gmra.mrb[0].mxu0 %v1187
        %v1189 = vpop.f32.mrb[0].mxu0
        %v1190 = vadd.f32 %v498, %v1189
        %v1191 = vpop.f32.mrb[0].mxu0
        %1192 = vmatprep.mubr.f32.mxu0 0.0
        %v1193 = vand.u32 %v631, 4294901760
        %v1194 = vsub.f32 %v631, %v1193
        %v1195 = vand.u32 %v1194, 4294901760
        %v1196 = vsub.f32 %v1194, %v1195
        %v1197 = vand.u32 %v1196, 4294901760
        %1198 = vmatmul.mubr.f32.gmra.mrb[0].mxu0 %v1197
        %v1199 = vpop.f32.mrb[0].mxu0
        %v1200 = vadd.f32 %v498, %v1199
        %v1201 = vpop.f32.mrb[0].mxu0
        %1202 = vmatprep.mubr.f32.mxu0 0.0
        %v1203 = vand.u32 %v634, 4294901760
        %v1204 = vsub.f32 %v634, %v1203
        %v1205 = vand.u32 %v1204, 4294901760
        %v1206 = vsub.f32 %v1204, %v1205
        %v1207 = vand.u32 %v1206, 4294901760
        %1208 = vmatmul.mubr.f32.gmra.mrb[0].mxu0 %v1207
        %v1209 = vpop.f32.mrb[0].mxu0
        %v1210 = vadd.f32 %v498, %v1209
        %v1211 = vpop.f32.mrb[0].mxu0
        %1212 = vmatprep.mubr.f32.mxu0 0.0
        %v1213 = vand.u32 %v637, 4294901760
        %v1214 = vsub.f32 %v637, %v1213
        %v1215 = vand.u32 %v1214, 4294901760
        %v1216 = vsub.f32 %v1214, %v1215
        %v1217 = vand.u32 %v1216, 4294901760
        %1218 = vmatmul.mubr.f32.gmra.mrb[0].mxu0 %v1217
        %v1219 = vpop.f32.mrb[0].mxu0
        %v1220 = vadd.f32 %v498, %v1219
        %v1221 = vpop.f32.mrb[0].mxu0
        %1222 = vmatprep.mubr.f32.mxu0 0.0
        %v1223 = vand.u32 %v640, 4294901760
        %v1224 = vsub.f32 %v640, %v1223
        %v1225 = vand.u32 %v1224, 4294901760
        %v1226 = vsub.f32 %v1224, %v1225
        %v1227 = vand.u32 %v1226, 4294901760
        %1228 = vmatmul.mubr.f32.gmra.mrb[0].mxu0 %v1227
        %v1229 = vpop.f32.mrb[0].mxu0
        %v1230 = vadd.f32 %v498, %v1229
        %v1231 = vpop.f32.mrb[0].mxu0
        %1232 = vmatprep.mubr.f32.mxu0 0.0
        %v1233 = vand.u32 %v643, 4294901760
        %v1234 = vsub.f32 %v643, %v1233
        %v1235 = vand.u32 %v1234, 4294901760
        %v1236 = vsub.f32 %v1234, %v1235
        %v1237 = vand.u32 %v1236, 4294901760
        %1238 = vmatmul.mubr.f32.gmra.mrb[0].mxu0 %v1237
        %v1239 = vpop.f32.mrb[0].mxu0
        %v1240 = vadd.f32 %v498, %v1239
        %v1241 = vpop.f32.mrb[0].mxu0
        %1242 = vmatprep.mubr.f32.mxu0 0.0
        %v1243 = vand.u32 %v646, 4294901760
        %v1244 = vsub.f32 %v646, %v1243
        %v1245 = vand.u32 %v1244, 4294901760
        %v1246 = vsub.f32 %v1244, %v1245
        %v1247 = vand.u32 %v1246, 4294901760
        %1248 = vmatmul.mubr.f32.gmra.mrb[0].mxu0 %v1247
        %v1249 = vpop.f32.mrb[0].mxu0
        %v1250 = vadd.f32 %v498, %v1249
        %v1251 = vpop.f32.mrb[0].mxu0
        %1252 = vmatprep.mubr.f32.mxu0 0.0
        %v1253 = vand.u32 %v649, 4294901760
        %v1254 = vsub.f32 %v649, %v1253
        %v1255 = vand.u32 %v1254, 4294901760
        %v1256 = vsub.f32 %v1254, %v1255
        %v1257 = vand.u32 %v1256, 4294901760
        %1258 = vmatmul.mubr.f32.gmra.mrb[0].mxu0 %v1257
        %v1259 = vpop.f32.mrb[0].mxu0
        %v1260 = vadd.f32 %v498, %v1259
        %v1261 = vpop.f32.mrb[0].mxu0
        %1262 = vmatprep.mubr.f32.mxu0 0.0
        %v1263 = vand.u32 %v652, 4294901760
        %v1264 = vsub.f32 %v652, %v1263
        %v1265 = vand.u32 %v1264, 4294901760
        %v1266 = vsub.f32 %v1264, %v1265
        %v1267 = vand.u32 %v1266, 4294901760
        %1268 = vmatmul.mubr.f32.gmra.mrb[0].mxu0 %v1267
        %v1269 = vpop.f32.mrb[0].mxu0
        %v1270 = vadd.f32 %v498, %v1269
        %v1271 = vpop.f32.mrb[0].mxu0
        %1272 = vmatprep.mubr.f32.mxu0 0.0
        %v1273 = vand.u32 %v655, 4294901760
        %v1274 = vsub.f32 %v655, %v1273
        %v1275 = vand.u32 %v1274, 4294901760
        %v1276 = vsub.f32 %v1274, %v1275
        %v1277 = vand.u32 %v1276, 4294901760
        %1278 = vmatmul.mubr.f32.gmra.mrb[0].mxu0 %v1277
        %v1279 = vpop.f32.mrb[0].mxu0
        %v1280 = vadd.f32 %v498, %v1279
        %v1281 = vpop.f32.mrb[0].mxu0
        %1282 = vmatprep.mubr.f32.mxu0 0.0
        %v1283 = vand.u32 %v658, 4294901760
        %v1284 = vsub.f32 %v658, %v1283
        %v1285 = vand.u32 %v1284, 4294901760
        %v1286 = vsub.f32 %v1284, %v1285
        %v1287 = vand.u32 %v1286, 4294901760
        %1288 = vmatmul.mubr.f32.gmra.mrb[0].mxu0 %v1287
        %v1289 = vpop.f32.mrb[0].mxu0
        %v1290 = vadd.f32 %v498, %v1289
        %v1291 = vpop.f32.mrb[0].mxu0
        %1292 = vmatprep.mubr.f32.mxu0 0.0
        %v1293 = vand.u32 %v661, 4294901760
        %v1294 = vsub.f32 %v661, %v1293
        %v1295 = vand.u32 %v1294, 4294901760
        %v1296 = vsub.f32 %v1294, %v1295
        %v1297 = vand.u32 %v1296, 4294901760
        %1298 = vmatmul.mubr.f32.gmra.mrb[0].mxu0 %v1297
        %v1299 = vpop.f32.mrb[0].mxu0
        %v1300 = vadd.f32 %v498, %v1299
        %v1301 = vpop.f32.mrb[0].mxu0
        %1302 = vmatprep.mubr.f32.mxu0 0.0
        %v1303 = vand.u32 %v664, 4294901760
        %v1304 = vsub.f32 %v664, %v1303
        %v1305 = vand.u32 %v1304, 4294901760
        %v1306 = vsub.f32 %v1304, %v1305
        %v1307 = vand.u32 %v1306, 4294901760
        %1308 = vmatmul.mubr.f32.gmra.mrb[0].mxu0 %v1307
        %v1309 = vpop.f32.mrb[0].mxu0
        %v1310 = vadd.f32 %v498, %v1309
        %v1311 = vpop.f32.mrb[0].mxu0
        %1312 = vmatprep.mubr.f32.mxu0 0.0
        %v1313 = vand.u32 %v667, 4294901760
        %v1314 = vsub.f32 %v667, %v1313
        %v1315 = vand.u32 %v1314, 4294901760
        %v1316 = vsub.f32 %v1314, %v1315
        %v1317 = vand.u32 %v1316, 4294901760
        %1318 = vmatmul.mubr.f32.gmra.mrb[0].mxu0 %v1317
        %v1319 = vpop.f32.mrb[0].mxu0
        %v1320 = vadd.f32 %v498, %v1319
        %v1321 = vpop.f32.mrb[0].mxu0
        %1322 = vmatprep.mubr.f32.mxu0 0.0
        %v1323 = vand.u32 %v670, 4294901760
        %v1324 = vsub.f32 %v670, %v1323
        %v1325 = vand.u32 %v1324, 4294901760
        %v1326 = vsub.f32 %v1324, %v1325
        %v1327 = vand.u32 %v1326, 4294901760
        %1328 = vmatmul.mubr.f32.gmra.mrb[0].mxu0 %v1327
        %v1329 = vpop.f32.mrb[0].mxu0
        %v1330 = vadd.f32 %v498, %v1329
        %v1331 = vpop.f32.mrb[0].mxu0
        %1332 = vmatprep.mubr.f32.mxu0 0.0
        %v1333 = vand.u32 %v673, 4294901760
        %v1334 = vsub.f32 %v673, %v1333
        %v1335 = vand.u32 %v1334, 4294901760
        %v1336 = vsub.f32 %v1334, %v1335
        %v1337 = vand.u32 %v1336, 4294901760
        %1338 = vmatmul.mubr.f32.gmra.mrb[0].mxu0 %v1337
        %v1339 = vpop.f32.mrb[0].mxu0
        %v1340 = vadd.f32 %v498, %v1339
        %v1341 = vpop.f32.mrb[0].mxu0
        %1342 = vmatprep.mubr.f32.mxu0 0.0
        %v1343 = vand.u32 %v676, 4294901760
        %v1344 = vsub.f32 %v676, %v1343
        %v1345 = vand.u32 %v1344, 4294901760
        %v1346 = vsub.f32 %v1344, %v1345
        %v1347 = vand.u32 %v1346, 4294901760
        %1348 = vmatmul.mubr.f32.gmra.mrb[0].mxu0 %v1347
        %v1349 = vpop.f32.mrb[0].mxu0
        %v1350 = vadd.f32 %v498, %v1349
        %v1351 = vpop.f32.mrb[0].mxu0
        %1352 = vmatprep.mubr.f32.mxu0 0.0
        %v1353 = vand.u32 %v679, 4294901760
        %v1354 = vsub.f32 %v679, %v1353
        %v1355 = vand.u32 %v1354, 4294901760
        %v1356 = vsub.f32 %v1354, %v1355
        %v1357 = vand.u32 %v1356, 4294901760
        %1358 = vmatmul.mubr.f32.gmra.mrb[0].mxu0 %v1357
        %v1359 = vpop.f32.mrb[0].mxu0
        %v1360 = vadd.f32 %v498, %v1359
        %v1361 = vpop.f32.mrb[0].mxu0
        %1362 = vmatprep.mubr.f32.mxu0 0.0
        %v1363 = vand.u32 %v682, 4294901760
        %v1364 = vsub.f32 %v682, %v1363
        %v1365 = vand.u32 %v1364, 4294901760
        %v1366 = vsub.f32 %v1364, %v1365
        %v1367 = vand.u32 %v1366, 4294901760
        %1368 = vmatmul.mubr.f32.gmra.mrb[0].mxu0 %v1367
        %v1369 = vpop.f32.mrb[0].mxu0
        %v1370 = vadd.f32 %v498, %v1369
        %v1371 = vpop.f32.mrb[0].mxu0
        %1372 = vmatprep.mubr.f32.mxu0 0.0
        %v1373 = vand.u32 %v685, 4294901760
        %v1374 = vsub.f32 %v685, %v1373
        %v1375 = vand.u32 %v1374, 4294901760
        %v1376 = vsub.f32 %v1374, %v1375
        %v1377 = vand.u32 %v1376, 4294901760
        %1378 = vmatmul.mubr.f32.gmra.mrb[0].mxu0 %v1377
        %v1379 = vpop.f32.mrb[0].mxu0
        %v1380 = vadd.f32 %v498, %v1379
        %v1381 = vpop.f32.mrb[0].mxu0
        %1382 = vmatprep.mubr.f32.mxu0 0.0
        %v1383 = vand.u32 %v688, 4294901760
        %v1384 = vsub.f32 %v688, %v1383
        %v1385 = vand.u32 %v1384, 4294901760
        %v1386 = vsub.f32 %v1384, %v1385
        %v1387 = vand.u32 %v1386, 4294901760
        %1388 = vmatmul.mubr.f32.gmra.mrb[0].mxu0 %v1387
        %v1389 = vpop.f32.mrb[0].mxu0
        %v1390 = vadd.f32 %v498, %v1389
        %v1391 = vpop.f32.mrb[0].mxu0
        %1392 = vmatprep.mubr.f32.mxu0 0.0
        %v1393 = vand.u32 %v691, 4294901760
        %v1394 = vsub.f32 %v691, %v1393
        %v1395 = vand.u32 %v1394, 4294901760
        %v1396 = vsub.f32 %v1394, %v1395
        %v1397 = vand.u32 %v1396, 4294901760
        %1398 = vmatmul.mubr.f32.gmra.mrb[0].mxu0 %v1397
        %v1399 = vpop.f32.mrb[0].mxu0
        %v1400 = vadd.f32 %v498, %v1399
        %v1401 = vpop.f32.mrb[0].mxu0
        %1402 = vdwg.mxu0
        %1403 = vmatprep.subr.mxu0 0.0
        %v1404 = vand.u32 %v695, 4294901760
        %v1405 = vsub.f32 %v695, %v1404
        %v1406 = vand.u32 %v1405, 4294901760
        %v1407 = vsub.f32 %v1405, %v1406
        %v1408 = vand.u32 %v1407, 4294901760
        %1409 = vmatpush1.msra.mxu0 %v1408
        %1410 = vmatprep.subr.mxu0 0.0
        %1411 = vmatpush1.msra.mxu0 0.0
        %1412 = vmatprep.subr.mxu0 0.0
        %1413 = vmatpush1.msra.mxu0 0.0
        %1414 = vmatprep.subr.mxu0 0.0
        %1415 = vmatpush1.msra.mxu0 0.0
        %1416 = vmatprep.subr.mxu0 0.0
        %1417 = vmatpush1.msra.mxu0 0.0
        %1418 = vmatprep.subr.mxu0 0.0
        %1419 = vmatpush1.msra.mxu0 0.0
        %1420 = vmatprep.subr.mxu0 0.0
        %1421 = vmatpush1.msra.mxu0 0.0
        %1422 = vmatprep.subr.mxu0 0.0
        %1423 = vmatpush1.msra.mxu0 0.0
        %1424 = vmatprep.subr.mxu0 0.0
        %1425 = vmatpush1.msra.mxu0 0.0
        %1426 = vmatprep.subr.mxu0 0.0
        %1427 = vmatpush1.msra.mxu0 0.0
        %1428 = vmatprep.subr.mxu0 0.0
        %1429 = vmatpush1.msra.mxu0 0.0
        %1430 = vmatprep.subr.mxu0 0.0
        %1431 = vmatpush1.msra.mxu0 0.0
        %1432 = vmatprep.subr.mxu0 0.0
        %1433 = vmatpush1.msra.mxu0 0.0
        %1434 = vmatprep.subr.mxu0 0.0
        %1435 = vmatpush1.msra.mxu0 0.0
        %1436 = vmatprep.subr.mxu0 0.0
        %1437 = vmatpush1.msra.mxu0 0.0
        %1438 = vmatprep.subr.mxu0 0.0
        %1439 = vmatpush1.msra.mxu0 0.0
        %1440 = vmatprep.subr.mxu0 0.0
        %1441 = vmatpush1.msra.mxu0 0.0
        %1442 = vmatprep.subr.mxu0 0.0
        %1443 = vmatpush1.msra.mxu0 0.0
        %1444 = vmatprep.subr.mxu0 0.0
        %1445 = vmatpush1.msra.mxu0 0.0
        %1446 = vmatprep.subr.mxu0 0.0
        %1447 = vmatpush1.msra.mxu0 0.0
        %1448 = vmatprep.subr.mxu0 0.0
        %1449 = vmatpush1.msra.mxu0 0.0
        %1450 = vmatprep.subr.mxu0 0.0
        %1451 = vmatpush1.msra.mxu0 0.0
        %1452 = vmatprep.subr.mxu0 0.0
        %1453 = vmatpush1.msra.mxu0 0.0
        %1454 = vmatprep.subr.mxu0 0.0
        %1455 = vmatpush1.msra.mxu0 0.0
        %1456 = vmatprep.subr.mxu0 0.0
        %1457 = vmatpush1.msra.mxu0 0.0
        %1458 = vmatprep.subr.mxu0 0.0
        %1459 = vmatpush1.msra.mxu0 0.0
        %1460 = vmatprep.subr.mxu0 0.0
        %1461 = vmatpush1.msra.mxu0 0.0
        %1462 = vmatprep.subr.mxu0 0.0
        %1463 = vmatpush1.msra.mxu0 0.0
        %1464 = vmatprep.subr.mxu0 0.0
        %1465 = vmatpush1.msra.mxu0 0.0
        %1466 = vmatprep.subr.mxu0 0.0
        %1467 = vmatpush1.msra.mxu0 0.0
        %1468 = vmatprep.subr.mxu0 0.0
        %1469 = vmatpush1.msra.mxu0 0.0
        %1470 = vmatprep.subr.mxu0 0.0
        %1471 = vmatpush1.msra.mxu0 0.0
        %1472 = vmatprep.mubr.f32.mxu0 0.0
        %v1473 = vand.u32 %v502, 4294901760
        %1474 = vmatmul.mubr.f32.gmra.mrb[0].mxu0 %v1473
        %v1475 = vpop.f32.mrb[0].mxu0
        %v1476 = vadd.f32 %v770, %v1475
        %v1477 = vpop.f32.mrb[0].mxu0
        %1478 = vmatprep.mubr.f32.mxu0 0.0
        %v1479 = vand.u32 %v505, 4294901760
        %1480 = vmatmul.mubr.f32.gmra.mrb[0].mxu0 %v1479
        %v1481 = vpop.f32.mrb[0].mxu0
        %v1482 = vadd.f32 %v780, %v1481
        %v1483 = vpop.f32.mrb[0].mxu0
        %1484 = vmatprep.mubr.f32.mxu0 0.0
        %v1485 = vand.u32 %v508, 4294901760
        %1486 = vmatmul.mubr.f32.gmra.mrb[0].mxu0 %v1485
        %v1487 = vpop.f32.mrb[0].mxu0
        %v1488 = vadd.f32 %v790, %v1487
        %v1489 = vpop.f32.mrb[0].mxu0
        %1490 = vmatprep.mubr.f32.mxu0 0.0
        %v1491 = vand.u32 %v511, 4294901760
        %1492 = vmatmul.mubr.f32.gmra.mrb[0].mxu0 %v1491
        %v1493 = vpop.f32.mrb[0].mxu0
        %v1494 = vadd.f32 %v800, %v1493
        %v1495 = vpop.f32.mrb[0].mxu0
        %1496 = vmatprep.mubr.f32.mxu0 0.0
        %v1497 = vand.u32 %v514, 4294901760
        %1498 = vmatmul.mubr.f32.gmra.mrb[0].mxu0 %v1497
        %v1499 = vpop.f32.mrb[0].mxu0
        %v1500 = vadd.f32 %v810, %v1499
        %v1501 = vpop.f32.mrb[0].mxu0
        %1502 = vmatprep.mubr.f32.mxu0 0.0
        %v1503 = vand.u32 %v517, 4294901760
        %1504 = vmatmul.mubr.f32.gmra.mrb[0].mxu0 %v1503
        %v1505 = vpop.f32.mrb[0].mxu0
        %v1506 = vadd.f32 %v820, %v1505
        %v1507 = vpop.f32.mrb[0].mxu0
        %1508 = vmatprep.mubr.f32.mxu0 0.0
        %v1509 = vand.u32 %v520, 4294901760
        %1510 = vmatmul.mubr.f32.gmra.mrb[0].mxu0 %v1509
        %v1511 = vpop.f32.mrb[0].mxu0
        %v1512 = vadd.f32 %v830, %v1511
        %v1513 = vpop.f32.mrb[0].mxu0
        %1514 = vmatprep.mubr.f32.mxu0 0.0
        %v1515 = vand.u32 %v523, 4294901760
        %1516 = vmatmul.mubr.f32.gmra.mrb[0].mxu0 %v1515
        %v1517 = vpop.f32.mrb[0].mxu0
        %v1518 = vadd.f32 %v840, %v1517
        %v1519 = vpop.f32.mrb[0].mxu0
        %1520 = vmatprep.mubr.f32.mxu0 0.0
        %v1521 = vand.u32 %v526, 4294901760
        %1522 = vmatmul.mubr.f32.gmra.mrb[0].mxu0 %v1521
        %v1523 = vpop.f32.mrb[0].mxu0
        %v1524 = vadd.f32 %v850, %v1523
        %v1525 = vpop.f32.mrb[0].mxu0
        %1526 = vmatprep.mubr.f32.mxu0 0.0
        %v1527 = vand.u32 %v529, 4294901760
        %1528 = vmatmul.mubr.f32.gmra.mrb[0].mxu0 %v1527
        %v1529 = vpop.f32.mrb[0].mxu0
        %v1530 = vadd.f32 %v860, %v1529
        %v1531 = vpop.f32.mrb[0].mxu0
        %1532 = vmatprep.mubr.f32.mxu0 0.0
        %v1533 = vand.u32 %v532, 4294901760
        %1534 = vmatmul.mubr.f32.gmra.mrb[0].mxu0 %v1533
        %v1535 = vpop.f32.mrb[0].mxu0
        %v1536 = vadd.f32 %v870, %v1535
        %v1537 = vpop.f32.mrb[0].mxu0
        %1538 = vmatprep.mubr.f32.mxu0 0.0
        %v1539 = vand.u32 %v535, 4294901760
        %1540 = vmatmul.mubr.f32.gmra.mrb[0].mxu0 %v1539
        %v1541 = vpop.f32.mrb[0].mxu0
        %v1542 = vadd.f32 %v880, %v1541
        %v1543 = vpop.f32.mrb[0].mxu0
        %1544 = vmatprep.mubr.f32.mxu0 0.0
        %v1545 = vand.u32 %v538, 4294901760
        %1546 = vmatmul.mubr.f32.gmra.mrb[0].mxu0 %v1545
        %v1547 = vpop.f32.mrb[0].mxu0
        %v1548 = vadd.f32 %v890, %v1547
        %v1549 = vpop.f32.mrb[0].mxu0
        %1550 = vmatprep.mubr.f32.mxu0 0.0
        %v1551 = vand.u32 %v541, 4294901760
        %1552 = vmatmul.mubr.f32.gmra.mrb[0].mxu0 %v1551
        %v1553 = vpop.f32.mrb[0].mxu0
        %v1554 = vadd.f32 %v900, %v1553
        %v1555 = vpop.f32.mrb[0].mxu0
        %1556 = vmatprep.mubr.f32.mxu0 0.0
        %v1557 = vand.u32 %v544, 4294901760
        %1558 = vmatmul.mubr.f32.gmra.mrb[0].mxu0 %v1557
        %v1559 = vpop.f32.mrb[0].mxu0
        %v1560 = vadd.f32 %v910, %v1559
        %v1561 = vpop.f32.mrb[0].mxu0
        %1562 = vmatprep.mubr.f32.mxu0 0.0
        %v1563 = vand.u32 %v547, 4294901760
        %1564 = vmatmul.mubr.f32.gmra.mrb[0].mxu0 %v1563
        %v1565 = vpop.f32.mrb[0].mxu0
        %v1566 = vadd.f32 %v920, %v1565
        %v1567 = vpop.f32.mrb[0].mxu0
        %1568 = vmatprep.mubr.f32.mxu0 0.0
        %v1569 = vand.u32 %v550, 4294901760
        %1570 = vmatmul.mubr.f32.gmra.mrb[0].mxu0 %v1569
        %v1571 = vpop.f32.mrb[0].mxu0
        %v1572 = vadd.f32 %v930, %v1571
        %v1573 = vpop.f32.mrb[0].mxu0
        %1574 = vmatprep.mubr.f32.mxu0 0.0
        %v1575 = vand.u32 %v553, 4294901760
        %1576 = vmatmul.mubr.f32.gmra.mrb[0].mxu0 %v1575
        %v1577 = vpop.f32.mrb[0].mxu0
        %v1578 = vadd.f32 %v940, %v1577
        %v1579 = vpop.f32.mrb[0].mxu0
        %1580 = vmatprep.mubr.f32.mxu0 0.0
        %v1581 = vand.u32 %v556, 4294901760
        %1582 = vmatmul.mubr.f32.gmra.mrb[0].mxu0 %v1581
        %v1583 = vpop.f32.mrb[0].mxu0
        %v1584 = vadd.f32 %v950, %v1583
        %v1585 = vpop.f32.mrb[0].mxu0
        %1586 = vmatprep.mubr.f32.mxu0 0.0
        %v1587 = vand.u32 %v559, 4294901760
        %1588 = vmatmul.mubr.f32.gmra.mrb[0].mxu0 %v1587
        %v1589 = vpop.f32.mrb[0].mxu0
        %v1590 = vadd.f32 %v960, %v1589
        %v1591 = vpop.f32.mrb[0].mxu0
        %1592 = vmatprep.mubr.f32.mxu0 0.0
        %v1593 = vand.u32 %v562, 4294901760
        %1594 = vmatmul.mubr.f32.gmra.mrb[0].mxu0 %v1593
        %v1595 = vpop.f32.mrb[0].mxu0
        %v1596 = vadd.f32 %v970, %v1595
        %v1597 = vpop.f32.mrb[0].mxu0
        %1598 = vmatprep.mubr.f32.mxu0 0.0
        %v1599 = vand.u32 %v565, 4294901760
        %1600 = vmatmul.mubr.f32.gmra.mrb[0].mxu0 %v1599
        %v1601 = vpop.f32.mrb[0].mxu0
        %v1602 = vadd.f32 %v980, %v1601
        %v1603 = vpop.f32.mrb[0].mxu0
        %1604 = vmatprep.mubr.f32.mxu0 0.0
        %v1605 = vand.u32 %v568, 4294901760
        %1606 = vmatmul.mubr.f32.gmra.mrb[0].mxu0 %v1605
        %v1607 = vpop.f32.mrb[0].mxu0
        %v1608 = vadd.f32 %v990, %v1607
        %v1609 = vpop.f32.mrb[0].mxu0
        %1610 = vmatprep.mubr.f32.mxu0 0.0
        %v1611 = vand.u32 %v571, 4294901760
        %1612 = vmatmul.mubr.f32.gmra.mrb[0].mxu0 %v1611
        %v1613 = vpop.f32.mrb[0].mxu0
        %v1614 = vadd.f32 %v1000, %v1613
        %v1615 = vpop.f32.mrb[0].mxu0
        %1616 = vmatprep.mubr.f32.mxu0 0.0
        %v1617 = vand.u32 %v574, 4294901760
        %1618 = vmatmul.mubr.f32.gmra.mrb[0].mxu0 %v1617
        %v1619 = vpop.f32.mrb[0].mxu0
        %v1620 = vadd.f32 %v1010, %v1619
        %v1621 = vpop.f32.mrb[0].mxu0
        %1622 = vmatprep.mubr.f32.mxu0 0.0
        %v1623 = vand.u32 %v577, 4294901760
        %1624 = vmatmul.mubr.f32.gmra.mrb[0].mxu0 %v1623
        %v1625 = vpop.f32.mrb[0].mxu0
        %v1626 = vadd.f32 %v1020, %v1625
        %v1627 = vpop.f32.mrb[0].mxu0
        %1628 = vmatprep.mubr.f32.mxu0 0.0
        %v1629 = vand.u32 %v580, 4294901760
        %1630 = vmatmul.mubr.f32.gmra.mrb[0].mxu0 %v1629
        %v1631 = vpop.f32.mrb[0].mxu0
        %v1632 = vadd.f32 %v1030, %v1631
        %v1633 = vpop.f32.mrb[0].mxu0
        %1634 = vmatprep.mubr.f32.mxu0 0.0
        %v1635 = vand.u32 %v583, 4294901760
        %1636 = vmatmul.mubr.f32.gmra.mrb[0].mxu0 %v1635
        %v1637 = vpop.f32.mrb[0].mxu0
        %v1638 = vadd.f32 %v1040, %v1637
        %v1639 = vpop.f32.mrb[0].mxu0
        %1640 = vmatprep.mubr.f32.mxu0 0.0
        %v1641 = vand.u32 %v586, 4294901760
        %1642 = vmatmul.mubr.f32.gmra.mrb[0].mxu0 %v1641
        %v1643 = vpop.f32.mrb[0].mxu0
        %v1644 = vadd.f32 %v1050, %v1643
        %v1645 = vpop.f32.mrb[0].mxu0
        %1646 = vmatprep.mubr.f32.mxu0 0.0
        %v1647 = vand.u32 %v589, 4294901760
        %1648 = vmatmul.mubr.f32.gmra.mrb[0].mxu0 %v1647
        %v1649 = vpop.f32.mrb[0].mxu0
        %v1650 = vadd.f32 %v1060, %v1649
        %v1651 = vpop.f32.mrb[0].mxu0
        %1652 = vmatprep.mubr.f32.mxu0 0.0
        %v1653 = vand.u32 %v592, 4294901760
        %1654 = vmatmul.mubr.f32.gmra.mrb[0].mxu0 %v1653
        %v1655 = vpop.f32.mrb[0].mxu0
        %v1656 = vadd.f32 %v1070, %v1655
        %v1657 = vpop.f32.mrb[0].mxu0
        %1658 = vmatprep.mubr.f32.mxu0 0.0
        %v1659 = vand.u32 %v595, 4294901760
        %1660 = vmatmul.mubr.f32.gmra.mrb[0].mxu0 %v1659
        %v1661 = vpop.f32.mrb[0].mxu0
        %v1662 = vadd.f32 %v1080, %v1661
        %v1663 = vpop.f32.mrb[0].mxu0
        %1664 = vmatprep.mubr.f32.mxu0 0.0
        %v1665 = vand.u32 %v598, 4294901760
        %1666 = vmatmul.mubr.f32.gmra.mrb[0].mxu0 %v1665
        %v1667 = vpop.f32.mrb[0].mxu0
        %v1668 = vadd.f32 %v1090, %v1667
        %v1669 = vpop.f32.mrb[0].mxu0
        %1670 = vmatprep.mubr.f32.mxu0 0.0
        %v1671 = vand.u32 %v601, 4294901760
        %1672 = vmatmul.mubr.f32.gmra.mrb[0].mxu0 %v1671
        %v1673 = vpop.f32.mrb[0].mxu0
        %v1674 = vadd.f32 %v1100, %v1673
        %v1675 = vpop.f32.mrb[0].mxu0
        %1676 = vmatprep.mubr.f32.mxu0 0.0
        %v1677 = vand.u32 %v604, 4294901760
        %1678 = vmatmul.mubr.f32.gmra.mrb[0].mxu0 %v1677
        %v1679 = vpop.f32.mrb[0].mxu0
        %v1680 = vadd.f32 %v1110, %v1679
        %v1681 = vpop.f32.mrb[0].mxu0
        %1682 = vmatprep.mubr.f32.mxu0 0.0
        %v1683 = vand.u32 %v607, 4294901760
        %1684 = vmatmul.mubr.f32.gmra.mrb[0].mxu0 %v1683
        %v1685 = vpop.f32.mrb[0].mxu0
        %v1686 = vadd.f32 %v1120, %v1685
        %v1687 = vpop.f32.mrb[0].mxu0
        %1688 = vmatprep.mubr.f32.mxu0 0.0
        %v1689 = vand.u32 %v610, 4294901760
        %1690 = vmatmul.mubr.f32.gmra.mrb[0].mxu0 %v1689
        %v1691 = vpop.f32.mrb[0].mxu0
        %v1692 = vadd.f32 %v1130, %v1691
        %v1693 = vpop.f32.mrb[0].mxu0
        %1694 = vmatprep.mubr.f32.mxu0 0.0
        %v1695 = vand.u32 %v613, 4294901760
        %1696 = vmatmul.mubr.f32.gmra.mrb[0].mxu0 %v1695
        %v1697 = vpop.f32.mrb[0].mxu0
        %v1698 = vadd.f32 %v1140, %v1697
        %v1699 = vpop.f32.mrb[0].mxu0
        %1700 = vmatprep.mubr.f32.mxu0 0.0
        %v1701 = vand.u32 %v616, 4294901760
        %1702 = vmatmul.mubr.f32.gmra.mrb[0].mxu0 %v1701
        %v1703 = vpop.f32.mrb[0].mxu0
        %v1704 = vadd.f32 %v1150, %v1703
        %v1705 = vpop.f32.mrb[0].mxu0
        %1706 = vmatprep.mubr.f32.mxu0 0.0
        %v1707 = vand.u32 %v619, 4294901760
        %1708 = vmatmul.mubr.f32.gmra.mrb[0].mxu0 %v1707
        %v1709 = vpop.f32.mrb[0].mxu0
        %v1710 = vadd.f32 %v1160, %v1709
        %v1711 = vpop.f32.mrb[0].mxu0
        %1712 = vmatprep.mubr.f32.mxu0 0.0
        %v1713 = vand.u32 %v622, 4294901760
        %1714 = vmatmul.mubr.f32.gmra.mrb[0].mxu0 %v1713
        %v1715 = vpop.f32.mrb[0].mxu0
        %v1716 = vadd.f32 %v1170, %v1715
        %v1717 = vpop.f32.mrb[0].mxu0
        %1718 = vmatprep.mubr.f32.mxu0 0.0
        %v1719 = vand.u32 %v625, 4294901760
        %1720 = vmatmul.mubr.f32.gmra.mrb[0].mxu0 %v1719
        %v1721 = vpop.f32.mrb[0].mxu0
        %v1722 = vadd.f32 %v1180, %v1721
        %v1723 = vpop.f32.mrb[0].mxu0
        %1724 = vmatprep.mubr.f32.mxu0 0.0
        %v1725 = vand.u32 %v628, 4294901760
        %1726 = vmatmul.mubr.f32.gmra.mrb[0].mxu0 %v1725
        %v1727 = vpop.f32.mrb[0].mxu0
        %v1728 = vadd.f32 %v1190, %v1727
        %v1729 = vpop.f32.mrb[0].mxu0
        %1730 = vmatprep.mubr.f32.mxu0 0.0
        %v1731 = vand.u32 %v631, 4294901760
        %1732 = vmatmul.mubr.f32.gmra.mrb[0].mxu0 %v1731
        %v1733 = vpop.f32.mrb[0].mxu0
        %v1734 = vadd.f32 %v1200, %v1733
        %v1735 = vpop.f32.mrb[0].mxu0
        %1736 = vmatprep.mubr.f32.mxu0 0.0
        %v1737 = vand.u32 %v634, 4294901760
        %1738 = vmatmul.mubr.f32.gmra.mrb[0].mxu0 %v1737
        %v1739 = vpop.f32.mrb[0].mxu0
        %v1740 = vadd.f32 %v1210, %v1739
        %v1741 = vpop.f32.mrb[0].mxu0
        %1742 = vmatprep.mubr.f32.mxu0 0.0
        %v1743 = vand.u32 %v637, 4294901760
        %1744 = vmatmul.mubr.f32.gmra.mrb[0].mxu0 %v1743
        %v1745 = vpop.f32.mrb[0].mxu0
        %v1746 = vadd.f32 %v1220, %v1745
        %v1747 = vpop.f32.mrb[0].mxu0
        %1748 = vmatprep.mubr.f32.mxu0 0.0
        %v1749 = vand.u32 %v640, 4294901760
        %1750 = vmatmul.mubr.f32.gmra.mrb[0].mxu0 %v1749
        %v1751 = vpop.f32.mrb[0].mxu0
        %v1752 = vadd.f32 %v1230, %v1751
        %v1753 = vpop.f32.mrb[0].mxu0
        %1754 = vmatprep.mubr.f32.mxu0 0.0
        %v1755 = vand.u32 %v643, 4294901760
        %1756 = vmatmul.mubr.f32.gmra.mrb[0].mxu0 %v1755
        %v1757 = vpop.f32.mrb[0].mxu0
        %v1758 = vadd.f32 %v1240, %v1757
        %v1759 = vpop.f32.mrb[0].mxu0
        %1760 = vmatprep.mubr.f32.mxu0 0.0
        %v1761 = vand.u32 %v646, 4294901760
        %1762 = vmatmul.mubr.f32.gmra.mrb[0].mxu0 %v1761
        %v1763 = vpop.f32.mrb[0].mxu0
        %v1764 = vadd.f32 %v1250, %v1763
        %v1765 = vpop.f32.mrb[0].mxu0
        %1766 = vmatprep.mubr.f32.mxu0 0.0
        %v1767 = vand.u32 %v649, 4294901760
        %1768 = vmatmul.mubr.f32.gmra.mrb[0].mxu0 %v1767
        %v1769 = vpop.f32.mrb[0].mxu0
        %v1770 = vadd.f32 %v1260, %v1769
        %v1771 = vpop.f32.mrb[0].mxu0
        %1772 = vmatprep.mubr.f32.mxu0 0.0
        %v1773 = vand.u32 %v652, 4294901760
        %1774 = vmatmul.mubr.f32.gmra.mrb[0].mxu0 %v1773
        %v1775 = vpop.f32.mrb[0].mxu0
        %v1776 = vadd.f32 %v1270, %v1775
        %v1777 = vpop.f32.mrb[0].mxu0
        %1778 = vmatprep.mubr.f32.mxu0 0.0
        %v1779 = vand.u32 %v655, 4294901760
        %1780 = vmatmul.mubr.f32.gmra.mrb[0].mxu0 %v1779
        %v1781 = vpop.f32.mrb[0].mxu0
        %v1782 = vadd.f32 %v1280, %v1781
        %v1783 = vpop.f32.mrb[0].mxu0
        %1784 = vmatprep.mubr.f32.mxu0 0.0
        %v1785 = vand.u32 %v658, 4294901760
        %1786 = vmatmul.mubr.f32.gmra.mrb[0].mxu0 %v1785
        %v1787 = vpop.f32.mrb[0].mxu0
        %v1788 = vadd.f32 %v1290, %v1787
        %v1789 = vpop.f32.mrb[0].mxu0
        %1790 = vmatprep.mubr.f32.mxu0 0.0
        %v1791 = vand.u32 %v661, 4294901760
        %1792 = vmatmul.mubr.f32.gmra.mrb[0].mxu0 %v1791
        %v1793 = vpop.f32.mrb[0].mxu0
        %v1794 = vadd.f32 %v1300, %v1793
        %v1795 = vpop.f32.mrb[0].mxu0
        %1796 = vmatprep.mubr.f32.mxu0 0.0
        %v1797 = vand.u32 %v664, 4294901760
        %1798 = vmatmul.mubr.f32.gmra.mrb[0].mxu0 %v1797
        %v1799 = vpop.f32.mrb[0].mxu0
        %v1800 = vadd.f32 %v1310, %v1799
        %v1801 = vpop.f32.mrb[0].mxu0
        %1802 = vmatprep.mubr.f32.mxu0 0.0
        %v1803 = vand.u32 %v667, 4294901760
        %1804 = vmatmul.mubr.f32.gmra.mrb[0].mxu0 %v1803
        %v1805 = vpop.f32.mrb[0].mxu0
        %v1806 = vadd.f32 %v1320, %v1805
        %v1807 = vpop.f32.mrb[0].mxu0
        %1808 = vmatprep.mubr.f32.mxu0 0.0
        %v1809 = vand.u32 %v670, 4294901760
        %1810 = vmatmul.mubr.f32.gmra.mrb[0].mxu0 %v1809
        %v1811 = vpop.f32.mrb[0].mxu0
        %v1812 = vadd.f32 %v1330, %v1811
        %v1813 = vpop.f32.mrb[0].mxu0
        %1814 = vmatprep.mubr.f32.mxu0 0.0
        %v1815 = vand.u32 %v673, 4294901760
        %1816 = vmatmul.mubr.f32.gmra.mrb[0].mxu0 %v1815
        %v1817 = vpop.f32.mrb[0].mxu0
        %v1818 = vadd.f32 %v1340, %v1817
        %v1819 = vpop.f32.mrb[0].mxu0
        %1820 = vmatprep.mubr.f32.mxu0 0.0
        %v1821 = vand.u32 %v676, 4294901760
        %1822 = vmatmul.mubr.f32.gmra.mrb[0].mxu0 %v1821
        %v1823 = vpop.f32.mrb[0].mxu0
        %v1824 = vadd.f32 %v1350, %v1823
        %v1825 = vpop.f32.mrb[0].mxu0
        %1826 = vmatprep.mubr.f32.mxu0 0.0
        %v1827 = vand.u32 %v679, 4294901760
        %1828 = vmatmul.mubr.f32.gmra.mrb[0].mxu0 %v1827
        %v1829 = vpop.f32.mrb[0].mxu0
        %v1830 = vadd.f32 %v1360, %v1829
        %v1831 = vpop.f32.mrb[0].mxu0
        %1832 = vmatprep.mubr.f32.mxu0 0.0
        %v1833 = vand.u32 %v682, 4294901760
        %1834 = vmatmul.mubr.f32.gmra.mrb[0].mxu0 %v1833
        %v1835 = vpop.f32.mrb[0].mxu0
        %v1836 = vadd.f32 %v1370, %v1835
        %v1837 = vpop.f32.mrb[0].mxu0
        %1838 = vmatprep.mubr.f32.mxu0 0.0
        %v1839 = vand.u32 %v685, 4294901760
        %1840 = vmatmul.mubr.f32.gmra.mrb[0].mxu0 %v1839
        %v1841 = vpop.f32.mrb[0].mxu0
        %v1842 = vadd.f32 %v1380, %v1841
        %v1843 = vpop.f32.mrb[0].mxu0
        %1844 = vmatprep.mubr.f32.mxu0 0.0
        %v1845 = vand.u32 %v688, 4294901760
        %1846 = vmatmul.mubr.f32.gmra.mrb[0].mxu0 %v1845
        %v1847 = vpop.f32.mrb[0].mxu0
        %v1848 = vadd.f32 %v1390, %v1847
        %v1849 = vpop.f32.mrb[0].mxu0
        %1850 = vmatprep.mubr.f32.mxu0 0.0
        %v1851 = vand.u32 %v691, 4294901760
        %1852 = vmatmul.mubr.f32.gmra.mrb[0].mxu0 %v1851
        %v1853 = vpop.f32.mrb[0].mxu0
        %v1854 = vadd.f32 %v1400, %v1853
        %v1855 = vpop.f32.mrb[0].mxu0
        %1856 = vdwg.mxu0
        %1857 = vmatprep.subr.mxu0 0.0
        %v1858 = vand.u32 %v695, 4294901760
        %v1859 = vsub.f32 %v695, %v1858
        %1860 = vmatpush1.msra.mxu0 %v1859
        %1861 = vmatprep.subr.mxu0 0.0
        %1862 = vmatpush1.msra.mxu0 0.0
        %1863 = vmatprep.subr.mxu0 0.0
        %1864 = vmatpush1.msra.mxu0 0.0
        %1865 = vmatprep.subr.mxu0 0.0
        %1866 = vmatpush1.msra.mxu0 0.0
        %1867 = vmatprep.subr.mxu0 0.0
        %1868 = vmatpush1.msra.mxu0 0.0
        %1869 = vmatprep.subr.mxu0 0.0
        %1870 = vmatpush1.msra.mxu0 0.0
        %1871 = vmatprep.subr.mxu0 0.0
        %1872 = vmatpush1.msra.mxu0 0.0
        %1873 = vmatprep.subr.mxu0 0.0
        %1874 = vmatpush1.msra.mxu0 0.0
        %1875 = vmatprep.subr.mxu0 0.0
        %1876 = vmatpush1.msra.mxu0 0.0
        %1877 = vmatprep.subr.mxu0 0.0
        %1878 = vmatpush1.msra.mxu0 0.0
        %1879 = vmatprep.subr.mxu0 0.0
        %1880 = vmatpush1.msra.mxu0 0.0
        %1881 = vmatprep.subr.mxu0 0.0
        %1882 = vmatpush1.msra.mxu0 0.0
        %1883 = vmatprep.subr.mxu0 0.0
        %1884 = vmatpush1.msra.mxu0 0.0
        %1885 = vmatprep.subr.mxu0 0.0
        %1886 = vmatpush1.msra.mxu0 0.0
        %1887 = vmatprep.subr.mxu0 0.0
        %1888 = vmatpush1.msra.mxu0 0.0
        %1889 = vmatprep.subr.mxu0 0.0
        %1890 = vmatpush1.msra.mxu0 0.0
        %1891 = vmatprep.subr.mxu0 0.0
        %1892 = vmatpush1.msra.mxu0 0.0
        %1893 = vmatprep.subr.mxu0 0.0
        %1894 = vmatpush1.msra.mxu0 0.0
        %1895 = vmatprep.subr.mxu0 0.0
        %1896 = vmatpush1.msra.mxu0 0.0
        %1897 = vmatprep.subr.mxu0 0.0
        %1898 = vmatpush1.msra.mxu0 0.0
        %1899 = vmatprep.subr.mxu0 0.0
        %1900 = vmatpush1.msra.mxu0 0.0
        %1901 = vmatprep.subr.mxu0 0.0
        %1902 = vmatpush1.msra.mxu0 0.0
        %1903 = vmatprep.subr.mxu0 0.0
        %1904 = vmatpush1.msra.mxu0 0.0
        %1905 = vmatprep.subr.mxu0 0.0
        %1906 = vmatpush1.msra.mxu0 0.0
        %1907 = vmatprep.subr.mxu0 0.0
        %1908 = vmatpush1.msra.mxu0 0.0
        %1909 = vmatprep.subr.mxu0 0.0
        %1910 = vmatpush1.msra.mxu0 0.0
        %1911 = vmatprep.subr.mxu0 0.0
        %1912 = vmatpush1.msra.mxu0 0.0
        %1913 = vmatprep.subr.mxu0 0.0
        %1914 = vmatpush1.msra.mxu0 0.0
        %1915 = vmatprep.subr.mxu0 0.0
        %1916 = vmatpush1.msra.mxu0 0.0
        %1917 = vmatprep.subr.mxu0 0.0
        %1918 = vmatpush1.msra.mxu0 0.0
        %1919 = vmatprep.subr.mxu0 0.0
        %1920 = vmatpush1.msra.mxu0 0.0
        %1921 = vmatprep.subr.mxu0 0.0
        %1922 = vmatpush1.msra.mxu0 0.0
        %1923 = vmatprep.mubr.f32.mxu0 0.0
        %v1924 = vand.u32 %v502, 4294901760
        %v1925 = vsub.f32 %v502, %v1924
        %1926 = vmatmul.mubr.f32.gmra.mrb[0].mxu0 %v1925
        %v1927 = vpop.f32.mrb[0].mxu0
        %v1928 = vadd.f32 %v1476, %v1927
        %v1929 = vpop.f32.mrb[0].mxu0
        %1930 = vmatprep.mubr.f32.mxu0 0.0
        %v1931 = vand.u32 %v505, 4294901760
        %v1932 = vsub.f32 %v505, %v1931
        %1933 = vmatmul.mubr.f32.gmra.mrb[0].mxu0 %v1932
        %v1934 = vpop.f32.mrb[0].mxu0
        %v1935 = vadd.f32 %v1482, %v1934
        %v1936 = vpop.f32.mrb[0].mxu0
        %1937 = vmatprep.mubr.f32.mxu0 0.0
        %v1938 = vand.u32 %v508, 4294901760
        %v1939 = vsub.f32 %v508, %v1938
        %1940 = vmatmul.mubr.f32.gmra.mrb[0].mxu0 %v1939
        %v1941 = vpop.f32.mrb[0].mxu0
        %v1942 = vadd.f32 %v1488, %v1941
        %v1943 = vpop.f32.mrb[0].mxu0
        %1944 = vmatprep.mubr.f32.mxu0 0.0
        %v1945 = vand.u32 %v511, 4294901760
        %v1946 = vsub.f32 %v511, %v1945
        %1947 = vmatmul.mubr.f32.gmra.mrb[0].mxu0 %v1946
        %v1948 = vpop.f32.mrb[0].mxu0
        %v1949 = vadd.f32 %v1494, %v1948
        %v1950 = vpop.f32.mrb[0].mxu0
        %1951 = vmatprep.mubr.f32.mxu0 0.0
        %v1952 = vand.u32 %v514, 4294901760
        %v1953 = vsub.f32 %v514, %v1952
        %1954 = vmatmul.mubr.f32.gmra.mrb[0].mxu0 %v1953
        %v1955 = vpop.f32.mrb[0].mxu0
        %v1956 = vadd.f32 %v1500, %v1955
        %v1957 = vpop.f32.mrb[0].mxu0
        %1958 = vmatprep.mubr.f32.mxu0 0.0
        %v1959 = vand.u32 %v517, 4294901760
        %v1960 = vsub.f32 %v517, %v1959
        %1961 = vmatmul.mubr.f32.gmra.mrb[0].mxu0 %v1960
        %v1962 = vpop.f32.mrb[0].mxu0
        %v1963 = vadd.f32 %v1506, %v1962
        %v1964 = vpop.f32.mrb[0].mxu0
        %1965 = vmatprep.mubr.f32.mxu0 0.0
        %v1966 = vand.u32 %v520, 4294901760
        %v1967 = vsub.f32 %v520, %v1966
        %1968 = vmatmul.mubr.f32.gmra.mrb[0].mxu0 %v1967
        %v1969 = vpop.f32.mrb[0].mxu0
        %v1970 = vadd.f32 %v1512, %v1969
        %v1971 = vpop.f32.mrb[0].mxu0
        %1972 = vmatprep.mubr.f32.mxu0 0.0
        %v1973 = vand.u32 %v523, 4294901760
        %v1974 = vsub.f32 %v523, %v1973
        %1975 = vmatmul.mubr.f32.gmra.mrb[0].mxu0 %v1974
        %v1976 = vpop.f32.mrb[0].mxu0
        %v1977 = vadd.f32 %v1518, %v1976
        %v1978 = vpop.f32.mrb[0].mxu0
        %1979 = vmatprep.mubr.f32.mxu0 0.0
        %v1980 = vand.u32 %v526, 4294901760
        %v1981 = vsub.f32 %v526, %v1980
        %1982 = vmatmul.mubr.f32.gmra.mrb[0].mxu0 %v1981
        %v1983 = vpop.f32.mrb[0].mxu0
        %v1984 = vadd.f32 %v1524, %v1983
        %v1985 = vpop.f32.mrb[0].mxu0
        %1986 = vmatprep.mubr.f32.mxu0 0.0
        %v1987 = vand.u32 %v529, 4294901760
        %v1988 = vsub.f32 %v529, %v1987
        %1989 = vmatmul.mubr.f32.gmra.mrb[0].mxu0 %v1988
        %v1990 = vpop.f32.mrb[0].mxu0
        %v1991 = vadd.f32 %v1530, %v1990
        %v1992 = vpop.f32.mrb[0].mxu0
        %1993 = vmatprep.mubr.f32.mxu0 0.0
        %v1994 = vand.u32 %v532, 4294901760
        %v1995 = vsub.f32 %v532, %v1994
        %1996 = vmatmul.mubr.f32.gmra.mrb[0].mxu0 %v1995
        %v1997 = vpop.f32.mrb[0].mxu0
        %v1998 = vadd.f32 %v1536, %v1997
        %v1999 = vpop.f32.mrb[0].mxu0
        %2000 = vmatprep.mubr.f32.mxu0 0.0
        %v2001 = vand.u32 %v535, 4294901760
        %v2002 = vsub.f32 %v535, %v2001
        %2003 = vmatmul.mubr.f32.gmra.mrb[0].mxu0 %v2002
        %v2004 = vpop.f32.mrb[0].mxu0
        %v2005 = vadd.f32 %v1542, %v2004
        %v2006 = vpop.f32.mrb[0].mxu0
        %2007 = vmatprep.mubr.f32.mxu0 0.0
        %v2008 = vand.u32 %v538, 4294901760
        %v2009 = vsub.f32 %v538, %v2008
        %2010 = vmatmul.mubr.f32.gmra.mrb[0].mxu0 %v2009
        %v2011 = vpop.f32.mrb[0].mxu0
        %v2012 = vadd.f32 %v1548, %v2011
        %v2013 = vpop.f32.mrb[0].mxu0
        %2014 = vmatprep.mubr.f32.mxu0 0.0
        %v2015 = vand.u32 %v541, 4294901760
        %v2016 = vsub.f32 %v541, %v2015
        %2017 = vmatmul.mubr.f32.gmra.mrb[0].mxu0 %v2016
        %v2018 = vpop.f32.mrb[0].mxu0
        %v2019 = vadd.f32 %v1554, %v2018
        %v2020 = vpop.f32.mrb[0].mxu0
        %2021 = vmatprep.mubr.f32.mxu0 0.0
        %v2022 = vand.u32 %v544, 4294901760
        %v2023 = vsub.f32 %v544, %v2022
        %2024 = vmatmul.mubr.f32.gmra.mrb[0].mxu0 %v2023
        %v2025 = vpop.f32.mrb[0].mxu0
        %v2026 = vadd.f32 %v1560, %v2025
        %v2027 = vpop.f32.mrb[0].mxu0
        %2028 = vmatprep.mubr.f32.mxu0 0.0
        %v2029 = vand.u32 %v547, 4294901760
        %v2030 = vsub.f32 %v547, %v2029
        %2031 = vmatmul.mubr.f32.gmra.mrb[0].mxu0 %v2030
        %v2032 = vpop.f32.mrb[0].mxu0
        %v2033 = vadd.f32 %v1566, %v2032
        %v2034 = vpop.f32.mrb[0].mxu0
        %2035 = vmatprep.mubr.f32.mxu0 0.0
        %v2036 = vand.u32 %v550, 4294901760
        %v2037 = vsub.f32 %v550, %v2036
        %2038 = vmatmul.mubr.f32.gmra.mrb[0].mxu0 %v2037
        %v2039 = vpop.f32.mrb[0].mxu0
        %v2040 = vadd.f32 %v1572, %v2039
        %v2041 = vpop.f32.mrb[0].mxu0
        %2042 = vmatprep.mubr.f32.mxu0 0.0
        %v2043 = vand.u32 %v553, 4294901760
        %v2044 = vsub.f32 %v553, %v2043
        %2045 = vmatmul.mubr.f32.gmra.mrb[0].mxu0 %v2044
        %v2046 = vpop.f32.mrb[0].mxu0
        %v2047 = vadd.f32 %v1578, %v2046
        %v2048 = vpop.f32.mrb[0].mxu0
        %2049 = vmatprep.mubr.f32.mxu0 0.0
        %v2050 = vand.u32 %v556, 4294901760
        %v2051 = vsub.f32 %v556, %v2050
        %2052 = vmatmul.mubr.f32.gmra.mrb[0].mxu0 %v2051
        %v2053 = vpop.f32.mrb[0].mxu0
        %v2054 = vadd.f32 %v1584, %v2053
        %v2055 = vpop.f32.mrb[0].mxu0
        %2056 = vmatprep.mubr.f32.mxu0 0.0
        %v2057 = vand.u32 %v559, 4294901760
        %v2058 = vsub.f32 %v559, %v2057
        %2059 = vmatmul.mubr.f32.gmra.mrb[0].mxu0 %v2058
        %v2060 = vpop.f32.mrb[0].mxu0
        %v2061 = vadd.f32 %v1590, %v2060
        %v2062 = vpop.f32.mrb[0].mxu0
        %2063 = vmatprep.mubr.f32.mxu0 0.0
        %v2064 = vand.u32 %v562, 4294901760
        %v2065 = vsub.f32 %v562, %v2064
        %2066 = vmatmul.mubr.f32.gmra.mrb[0].mxu0 %v2065
        %v2067 = vpop.f32.mrb[0].mxu0
        %v2068 = vadd.f32 %v1596, %v2067
        %v2069 = vpop.f32.mrb[0].mxu0
        %2070 = vmatprep.mubr.f32.mxu0 0.0
        %v2071 = vand.u32 %v565, 4294901760
        %v2072 = vsub.f32 %v565, %v2071
        %2073 = vmatmul.mubr.f32.gmra.mrb[0].mxu0 %v2072
        %v2074 = vpop.f32.mrb[0].mxu0
        %v2075 = vadd.f32 %v1602, %v2074
        %v2076 = vpop.f32.mrb[0].mxu0
        %2077 = vmatprep.mubr.f32.mxu0 0.0
        %v2078 = vand.u32 %v568, 4294901760
        %v2079 = vsub.f32 %v568, %v2078
        %2080 = vmatmul.mubr.f32.gmra.mrb[0].mxu0 %v2079
        %v2081 = vpop.f32.mrb[0].mxu0
        %v2082 = vadd.f32 %v1608, %v2081
        %v2083 = vpop.f32.mrb[0].mxu0
        %2084 = vmatprep.mubr.f32.mxu0 0.0
        %v2085 = vand.u32 %v571, 4294901760
        %v2086 = vsub.f32 %v571, %v2085
        %2087 = vmatmul.mubr.f32.gmra.mrb[0].mxu0 %v2086
        %v2088 = vpop.f32.mrb[0].mxu0
        %v2089 = vadd.f32 %v1614, %v2088
        %v2090 = vpop.f32.mrb[0].mxu0
        %2091 = vmatprep.mubr.f32.mxu0 0.0
        %v2092 = vand.u32 %v574, 4294901760
        %v2093 = vsub.f32 %v574, %v2092
        %2094 = vmatmul.mubr.f32.gmra.mrb[0].mxu0 %v2093
        %v2095 = vpop.f32.mrb[0].mxu0
        %v2096 = vadd.f32 %v1620, %v2095
        %v2097 = vpop.f32.mrb[0].mxu0
        %2098 = vmatprep.mubr.f32.mxu0 0.0
        %v2099 = vand.u32 %v577, 4294901760
        %v2100 = vsub.f32 %v577, %v2099
        %2101 = vmatmul.mubr.f32.gmra.mrb[0].mxu0 %v2100
        %v2102 = vpop.f32.mrb[0].mxu0
        %v2103 = vadd.f32 %v1626, %v2102
        %v2104 = vpop.f32.mrb[0].mxu0
        %2105 = vmatprep.mubr.f32.mxu0 0.0
        %v2106 = vand.u32 %v580, 4294901760
        %v2107 = vsub.f32 %v580, %v2106
        %2108 = vmatmul.mubr.f32.gmra.mrb[0].mxu0 %v2107
        %v2109 = vpop.f32.mrb[0].mxu0
        %v2110 = vadd.f32 %v1632, %v2109
        %v2111 = vpop.f32.mrb[0].mxu0
        %2112 = vmatprep.mubr.f32.mxu0 0.0
        %v2113 = vand.u32 %v583, 4294901760
        %v2114 = vsub.f32 %v583, %v2113
        %2115 = vmatmul.mubr.f32.gmra.mrb[0].mxu0 %v2114
        %v2116 = vpop.f32.mrb[0].mxu0
        %v2117 = vadd.f32 %v1638, %v2116
        %v2118 = vpop.f32.mrb[0].mxu0
        %2119 = vmatprep.mubr.f32.mxu0 0.0
        %v2120 = vand.u32 %v586, 4294901760
        %v2121 = vsub.f32 %v586, %v2120
        %2122 = vmatmul.mubr.f32.gmra.mrb[0].mxu0 %v2121
        %v2123 = vpop.f32.mrb[0].mxu0
        %v2124 = vadd.f32 %v1644, %v2123
        %v2125 = vpop.f32.mrb[0].mxu0
        %2126 = vmatprep.mubr.f32.mxu0 0.0
        %v2127 = vand.u32 %v589, 4294901760
        %v2128 = vsub.f32 %v589, %v2127
        %2129 = vmatmul.mubr.f32.gmra.mrb[0].mxu0 %v2128
        %v2130 = vpop.f32.mrb[0].mxu0
        %v2131 = vadd.f32 %v1650, %v2130
        %v2132 = vpop.f32.mrb[0].mxu0
        %2133 = vmatprep.mubr.f32.mxu0 0.0
        %v2134 = vand.u32 %v592, 4294901760
        %v2135 = vsub.f32 %v592, %v2134
        %2136 = vmatmul.mubr.f32.gmra.mrb[0].mxu0 %v2135
        %v2137 = vpop.f32.mrb[0].mxu0
        %v2138 = vadd.f32 %v1656, %v2137
        %v2139 = vpop.f32.mrb[0].mxu0
        %2140 = vmatprep.mubr.f32.mxu0 0.0
        %v2141 = vand.u32 %v595, 4294901760
        %v2142 = vsub.f32 %v595, %v2141
        %2143 = vmatmul.mubr.f32.gmra.mrb[0].mxu0 %v2142
        %v2144 = vpop.f32.mrb[0].mxu0
        %v2145 = vadd.f32 %v1662, %v2144
        %v2146 = vpop.f32.mrb[0].mxu0
        %2147 = vmatprep.mubr.f32.mxu0 0.0
        %v2148 = vand.u32 %v598, 4294901760
        %v2149 = vsub.f32 %v598, %v2148
        %2150 = vmatmul.mubr.f32.gmra.mrb[0].mxu0 %v2149
        %v2151 = vpop.f32.mrb[0].mxu0
        %v2152 = vadd.f32 %v1668, %v2151
        %v2153 = vpop.f32.mrb[0].mxu0
        %2154 = vmatprep.mubr.f32.mxu0 0.0
        %v2155 = vand.u32 %v601, 4294901760
        %v2156 = vsub.f32 %v601, %v2155
        %2157 = vmatmul.mubr.f32.gmra.mrb[0].mxu0 %v2156
        %v2158 = vpop.f32.mrb[0].mxu0
        %v2159 = vadd.f32 %v1674, %v2158
        %v2160 = vpop.f32.mrb[0].mxu0
        %2161 = vmatprep.mubr.f32.mxu0 0.0
        %v2162 = vand.u32 %v604, 4294901760
        %v2163 = vsub.f32 %v604, %v2162
        %2164 = vmatmul.mubr.f32.gmra.mrb[0].mxu0 %v2163
        %v2165 = vpop.f32.mrb[0].mxu0
        %v2166 = vadd.f32 %v1680, %v2165
        %v2167 = vpop.f32.mrb[0].mxu0
        %2168 = vmatprep.mubr.f32.mxu0 0.0
        %v2169 = vand.u32 %v607, 4294901760
        %v2170 = vsub.f32 %v607, %v2169
        %2171 = vmatmul.mubr.f32.gmra.mrb[0].mxu0 %v2170
        %v2172 = vpop.f32.mrb[0].mxu0
        %v2173 = vadd.f32 %v1686, %v2172
        %v2174 = vpop.f32.mrb[0].mxu0
        %2175 = vmatprep.mubr.f32.mxu0 0.0
        %v2176 = vand.u32 %v610, 4294901760
        %v2177 = vsub.f32 %v610, %v2176
        %2178 = vmatmul.mubr.f32.gmra.mrb[0].mxu0 %v2177
        %v2179 = vpop.f32.mrb[0].mxu0
        %v2180 = vadd.f32 %v1692, %v2179
        %v2181 = vpop.f32.mrb[0].mxu0
        %2182 = vmatprep.mubr.f32.mxu0 0.0
        %v2183 = vand.u32 %v613, 4294901760
        %v2184 = vsub.f32 %v613, %v2183
        %2185 = vmatmul.mubr.f32.gmra.mrb[0].mxu0 %v2184
        %v2186 = vpop.f32.mrb[0].mxu0
        %v2187 = vadd.f32 %v1698, %v2186
        %v2188 = vpop.f32.mrb[0].mxu0
        %2189 = vmatprep.mubr.f32.mxu0 0.0
        %v2190 = vand.u32 %v616, 4294901760
        %v2191 = vsub.f32 %v616, %v2190
        %2192 = vmatmul.mubr.f32.gmra.mrb[0].mxu0 %v2191
        %v2193 = vpop.f32.mrb[0].mxu0
        %v2194 = vadd.f32 %v1704, %v2193
        %v2195 = vpop.f32.mrb[0].mxu0
        %2196 = vmatprep.mubr.f32.mxu0 0.0
        %v2197 = vand.u32 %v619, 4294901760
        %v2198 = vsub.f32 %v619, %v2197
        %2199 = vmatmul.mubr.f32.gmra.mrb[0].mxu0 %v2198
        %v2200 = vpop.f32.mrb[0].mxu0
        %v2201 = vadd.f32 %v1710, %v2200
        %v2202 = vpop.f32.mrb[0].mxu0
        %2203 = vmatprep.mubr.f32.mxu0 0.0
        %v2204 = vand.u32 %v622, 4294901760
        %v2205 = vsub.f32 %v622, %v2204
        %2206 = vmatmul.mubr.f32.gmra.mrb[0].mxu0 %v2205
        %v2207 = vpop.f32.mrb[0].mxu0
        %v2208 = vadd.f32 %v1716, %v2207
        %v2209 = vpop.f32.mrb[0].mxu0
        %2210 = vmatprep.mubr.f32.mxu0 0.0
        %v2211 = vand.u32 %v625, 4294901760
        %v2212 = vsub.f32 %v625, %v2211
        %2213 = vmatmul.mubr.f32.gmra.mrb[0].mxu0 %v2212
        %v2214 = vpop.f32.mrb[0].mxu0
        %v2215 = vadd.f32 %v1722, %v2214
        %v2216 = vpop.f32.mrb[0].mxu0
        %2217 = vmatprep.mubr.f32.mxu0 0.0
        %v2218 = vand.u32 %v628, 4294901760
        %v2219 = vsub.f32 %v628, %v2218
        %2220 = vmatmul.mubr.f32.gmra.mrb[0].mxu0 %v2219
        %v2221 = vpop.f32.mrb[0].mxu0
        %v2222 = vadd.f32 %v1728, %v2221
        %v2223 = vpop.f32.mrb[0].mxu0
        %2224 = vmatprep.mubr.f32.mxu0 0.0
        %v2225 = vand.u32 %v631, 4294901760
        %v2226 = vsub.f32 %v631, %v2225
        %2227 = vmatmul.mubr.f32.gmra.mrb[0].mxu0 %v2226
        %v2228 = vpop.f32.mrb[0].mxu0
        %v2229 = vadd.f32 %v1734, %v2228
        %v2230 = vpop.f32.mrb[0].mxu0
        %2231 = vmatprep.mubr.f32.mxu0 0.0
        %v2232 = vand.u32 %v634, 4294901760
        %v2233 = vsub.f32 %v634, %v2232
        %2234 = vmatmul.mubr.f32.gmra.mrb[0].mxu0 %v2233
        %v2235 = vpop.f32.mrb[0].mxu0
        %v2236 = vadd.f32 %v1740, %v2235
        %v2237 = vpop.f32.mrb[0].mxu0
        %2238 = vmatprep.mubr.f32.mxu0 0.0
        %v2239 = vand.u32 %v637, 4294901760
        %v2240 = vsub.f32 %v637, %v2239
        %2241 = vmatmul.mubr.f32.gmra.mrb[0].mxu0 %v2240
        %v2242 = vpop.f32.mrb[0].mxu0
        %v2243 = vadd.f32 %v1746, %v2242
        %v2244 = vpop.f32.mrb[0].mxu0
        %2245 = vmatprep.mubr.f32.mxu0 0.0
        %v2246 = vand.u32 %v640, 4294901760
        %v2247 = vsub.f32 %v640, %v2246
        %2248 = vmatmul.mubr.f32.gmra.mrb[0].mxu0 %v2247
        %v2249 = vpop.f32.mrb[0].mxu0
        %v2250 = vadd.f32 %v1752, %v2249
        %v2251 = vpop.f32.mrb[0].mxu0
        %2252 = vmatprep.mubr.f32.mxu0 0.0
        %v2253 = vand.u32 %v643, 4294901760
        %v2254 = vsub.f32 %v643, %v2253
        %2255 = vmatmul.mubr.f32.gmra.mrb[0].mxu0 %v2254
        %v2256 = vpop.f32.mrb[0].mxu0
        %v2257 = vadd.f32 %v1758, %v2256
        %v2258 = vpop.f32.mrb[0].mxu0
        %2259 = vmatprep.mubr.f32.mxu0 0.0
        %v2260 = vand.u32 %v646, 4294901760
        %v2261 = vsub.f32 %v646, %v2260
        %2262 = vmatmul.mubr.f32.gmra.mrb[0].mxu0 %v2261
        %v2263 = vpop.f32.mrb[0].mxu0
        %v2264 = vadd.f32 %v1764, %v2263
        %v2265 = vpop.f32.mrb[0].mxu0
        %2266 = vmatprep.mubr.f32.mxu0 0.0
        %v2267 = vand.u32 %v649, 4294901760
        %v2268 = vsub.f32 %v649, %v2267
        %2269 = vmatmul.mubr.f32.gmra.mrb[0].mxu0 %v2268
        %v2270 = vpop.f32.mrb[0].mxu0
        %v2271 = vadd.f32 %v1770, %v2270
        %v2272 = vpop.f32.mrb[0].mxu0
        %2273 = vmatprep.mubr.f32.mxu0 0.0
        %v2274 = vand.u32 %v652, 4294901760
        %v2275 = vsub.f32 %v652, %v2274
        %2276 = vmatmul.mubr.f32.gmra.mrb[0].mxu0 %v2275
        %v2277 = vpop.f32.mrb[0].mxu0
        %v2278 = vadd.f32 %v1776, %v2277
        %v2279 = vpop.f32.mrb[0].mxu0
        %2280 = vmatprep.mubr.f32.mxu0 0.0
        %v2281 = vand.u32 %v655, 4294901760
        %v2282 = vsub.f32 %v655, %v2281
        %2283 = vmatmul.mubr.f32.gmra.mrb[0].mxu0 %v2282
        %v2284 = vpop.f32.mrb[0].mxu0
        %v2285 = vadd.f32 %v1782, %v2284
        %v2286 = vpop.f32.mrb[0].mxu0
        %2287 = vmatprep.mubr.f32.mxu0 0.0
        %v2288 = vand.u32 %v658, 4294901760
        %v2289 = vsub.f32 %v658, %v2288
        %2290 = vmatmul.mubr.f32.gmra.mrb[0].mxu0 %v2289
        %v2291 = vpop.f32.mrb[0].mxu0
        %v2292 = vadd.f32 %v1788, %v2291
        %v2293 = vpop.f32.mrb[0].mxu0
        %2294 = vmatprep.mubr.f32.mxu0 0.0
        %v2295 = vand.u32 %v661, 4294901760
        %v2296 = vsub.f32 %v661, %v2295
        %2297 = vmatmul.mubr.f32.gmra.mrb[0].mxu0 %v2296
        %v2298 = vpop.f32.mrb[0].mxu0
        %v2299 = vadd.f32 %v1794, %v2298
        %v2300 = vpop.f32.mrb[0].mxu0
        %2301 = vmatprep.mubr.f32.mxu0 0.0
        %v2302 = vand.u32 %v664, 4294901760
        %v2303 = vsub.f32 %v664, %v2302
        %2304 = vmatmul.mubr.f32.gmra.mrb[0].mxu0 %v2303
        %v2305 = vpop.f32.mrb[0].mxu0
        %v2306 = vadd.f32 %v1800, %v2305
        %v2307 = vpop.f32.mrb[0].mxu0
        %2308 = vmatprep.mubr.f32.mxu0 0.0
        %v2309 = vand.u32 %v667, 4294901760
        %v2310 = vsub.f32 %v667, %v2309
        %2311 = vmatmul.mubr.f32.gmra.mrb[0].mxu0 %v2310
        %v2312 = vpop.f32.mrb[0].mxu0
        %v2313 = vadd.f32 %v1806, %v2312
        %v2314 = vpop.f32.mrb[0].mxu0
        %2315 = vmatprep.mubr.f32.mxu0 0.0
        %v2316 = vand.u32 %v670, 4294901760
        %v2317 = vsub.f32 %v670, %v2316
        %2318 = vmatmul.mubr.f32.gmra.mrb[0].mxu0 %v2317
        %v2319 = vpop.f32.mrb[0].mxu0
        %v2320 = vadd.f32 %v1812, %v2319
        %v2321 = vpop.f32.mrb[0].mxu0
        %2322 = vmatprep.mubr.f32.mxu0 0.0
        %v2323 = vand.u32 %v673, 4294901760
        %v2324 = vsub.f32 %v673, %v2323
        %2325 = vmatmul.mubr.f32.gmra.mrb[0].mxu0 %v2324
        %v2326 = vpop.f32.mrb[0].mxu0
        %v2327 = vadd.f32 %v1818, %v2326
        %v2328 = vpop.f32.mrb[0].mxu0
        %2329 = vmatprep.mubr.f32.mxu0 0.0
        %v2330 = vand.u32 %v676, 4294901760
        %v2331 = vsub.f32 %v676, %v2330
        %2332 = vmatmul.mubr.f32.gmra.mrb[0].mxu0 %v2331
        %v2333 = vpop.f32.mrb[0].mxu0
        %v2334 = vadd.f32 %v1824, %v2333
        %v2335 = vpop.f32.mrb[0].mxu0
        %2336 = vmatprep.mubr.f32.mxu0 0.0
        %v2337 = vand.u32 %v679, 4294901760
        %v2338 = vsub.f32 %v679, %v2337
        %2339 = vmatmul.mubr.f32.gmra.mrb[0].mxu0 %v2338
        %v2340 = vpop.f32.mrb[0].mxu0
        %v2341 = vadd.f32 %v1830, %v2340
        %v2342 = vpop.f32.mrb[0].mxu0
        %2343 = vmatprep.mubr.f32.mxu0 0.0
        %v2344 = vand.u32 %v682, 4294901760
        %v2345 = vsub.f32 %v682, %v2344
        %2346 = vmatmul.mubr.f32.gmra.mrb[0].mxu0 %v2345
        %v2347 = vpop.f32.mrb[0].mxu0
        %v2348 = vadd.f32 %v1836, %v2347
        %v2349 = vpop.f32.mrb[0].mxu0
        %2350 = vmatprep.mubr.f32.mxu0 0.0
        %v2351 = vand.u32 %v685, 4294901760
        %v2352 = vsub.f32 %v685, %v2351
        %2353 = vmatmul.mubr.f32.gmra.mrb[0].mxu0 %v2352
        %v2354 = vpop.f32.mrb[0].mxu0
        %v2355 = vadd.f32 %v1842, %v2354
        %v2356 = vpop.f32.mrb[0].mxu0
        %2357 = vmatprep.mubr.f32.mxu0 0.0
        %v2358 = vand.u32 %v688, 4294901760
        %v2359 = vsub.f32 %v688, %v2358
        %2360 = vmatmul.mubr.f32.gmra.mrb[0].mxu0 %v2359
        %v2361 = vpop.f32.mrb[0].mxu0
        %v2362 = vadd.f32 %v1848, %v2361
        %v2363 = vpop.f32.mrb[0].mxu0
        %2364 = vmatprep.mubr.f32.mxu0 0.0
        %v2365 = vand.u32 %v691, 4294901760
        %v2366 = vsub.f32 %v691, %v2365
        %2367 = vmatmul.mubr.f32.gmra.mrb[0].mxu0 %v2366
        %v2368 = vpop.f32.mrb[0].mxu0
        %v2369 = vadd.f32 %v1854, %v2368
        %v2370 = vpop.f32.mrb[0].mxu0
        %2371 = vdwg.mxu0
        %2372 = vmatprep.subr.mxu0 0.0
        %v2373 = vand.u32 %v695, 4294901760
        %2374 = vmatpush1.msra.mxu0 %v2373
        %2375 = vmatprep.subr.mxu0 0.0
        %2376 = vmatpush1.msra.mxu0 0.0
        %2377 = vmatprep.subr.mxu0 0.0
        %2378 = vmatpush1.msra.mxu0 0.0
        %2379 = vmatprep.subr.mxu0 0.0
        %2380 = vmatpush1.msra.mxu0 0.0
        %2381 = vmatprep.subr.mxu0 0.0
        %2382 = vmatpush1.msra.mxu0 0.0
        %2383 = vmatprep.subr.mxu0 0.0
        %2384 = vmatpush1.msra.mxu0 0.0
        %2385 = vmatprep.subr.mxu0 0.0
        %2386 = vmatpush1.msra.mxu0 0.0
        %2387 = vmatprep.subr.mxu0 0.0
        %2388 = vmatpush1.msra.mxu0 0.0
        %2389 = vmatprep.subr.mxu0 0.0
        %2390 = vmatpush1.msra.mxu0 0.0
        %2391 = vmatprep.subr.mxu0 0.0
        %2392 = vmatpush1.msra.mxu0 0.0
        %2393 = vmatprep.subr.mxu0 0.0
        %2394 = vmatpush1.msra.mxu0 0.0
        %2395 = vmatprep.subr.mxu0 0.0
        %2396 = vmatpush1.msra.mxu0 0.0
        %2397 = vmatprep.subr.mxu0 0.0
        %2398 = vmatpush1.msra.mxu0 0.0
        %2399 = vmatprep.subr.mxu0 0.0
        %2400 = vmatpush1.msra.mxu0 0.0
        %2401 = vmatprep.subr.mxu0 0.0
        %2402 = vmatpush1.msra.mxu0 0.0
        %2403 = vmatprep.subr.mxu0 0.0
        %2404 = vmatpush1.msra.mxu0 0.0
        %2405 = vmatprep.subr.mxu0 0.0
        %2406 = vmatpush1.msra.mxu0 0.0
        %2407 = vmatprep.subr.mxu0 0.0
        %2408 = vmatpush1.msra.mxu0 0.0
        %2409 = vmatprep.subr.mxu0 0.0
        %2410 = vmatpush1.msra.mxu0 0.0
        %2411 = vmatprep.subr.mxu0 0.0
        %2412 = vmatpush1.msra.mxu0 0.0
        %2413 = vmatprep.subr.mxu0 0.0
        %2414 = vmatpush1.msra.mxu0 0.0
        %2415 = vmatprep.subr.mxu0 0.0
        %2416 = vmatpush1.msra.mxu0 0.0
        %2417 = vmatprep.subr.mxu0 0.0
        %2418 = vmatpush1.msra.mxu0 0.0
        %2419 = vmatprep.subr.mxu0 0.0
        %2420 = vmatpush1.msra.mxu0 0.0
        %2421 = vmatprep.subr.mxu0 0.0
        %2422 = vmatpush1.msra.mxu0 0.0
        %2423 = vmatprep.subr.mxu0 0.0
        %2424 = vmatpush1.msra.mxu0 0.0
        %2425 = vmatprep.subr.mxu0 0.0
        %2426 = vmatpush1.msra.mxu0 0.0
        %2427 = vmatprep.subr.mxu0 0.0
        %2428 = vmatpush1.msra.mxu0 0.0
        %2429 = vmatprep.subr.mxu0 0.0
        %2430 = vmatpush1.msra.mxu0 0.0
        %2431 = vmatprep.subr.mxu0 0.0
        %2432 = vmatpush1.msra.mxu0 0.0
        %2433 = vmatprep.subr.mxu0 0.0
        %2434 = vmatpush1.msra.mxu0 0.0
        %2435 = vmatprep.subr.mxu0 0.0
        %2436 = vmatpush1.msra.mxu0 0.0
        %2437 = vmatprep.mubr.f32.mxu0 0.0
        %v2438 = vand.u32 %v502, 4294901760
        %v2439 = vsub.f32 %v502, %v2438
        %v2440 = vand.u32 %v2439, 4294901760
        %2441 = vmatmul.mubr.f32.gmra.mrb[0].mxu0 %v2440
        %v2442 = vpop.f32.mrb[0].mxu0
        %v2443 = vadd.f32 %v1928, %v2442
        %v2444 = vpop.f32.mrb[0].mxu0
        %2445 = vmatprep.mubr.f32.mxu0 0.0
        %v2446 = vand.u32 %v505, 4294901760
        %v2447 = vsub.f32 %v505, %v2446
        %v2448 = vand.u32 %v2447, 4294901760
        %2449 = vmatmul.mubr.f32.gmra.mrb[0].mxu0 %v2448
        %v2450 = vpop.f32.mrb[0].mxu0
        %v2451 = vadd.f32 %v1935, %v2450
        %v2452 = vpop.f32.mrb[0].mxu0
        %2453 = vmatprep.mubr.f32.mxu0 0.0
        %v2454 = vand.u32 %v508, 4294901760
        %v2455 = vsub.f32 %v508, %v2454
        %v2456 = vand.u32 %v2455, 4294901760
        %2457 = vmatmul.mubr.f32.gmra.mrb[0].mxu0 %v2456
        %v2458 = vpop.f32.mrb[0].mxu0
        %v2459 = vadd.f32 %v1942, %v2458
        %v2460 = vpop.f32.mrb[0].mxu0
        %2461 = vmatprep.mubr.f32.mxu0 0.0
        %v2462 = vand.u32 %v511, 4294901760
        %v2463 = vsub.f32 %v511, %v2462
        %v2464 = vand.u32 %v2463, 4294901760
        %2465 = vmatmul.mubr.f32.gmra.mrb[0].mxu0 %v2464
        %v2466 = vpop.f32.mrb[0].mxu0
        %v2467 = vadd.f32 %v1949, %v2466
        %v2468 = vpop.f32.mrb[0].mxu0
        %2469 = vmatprep.mubr.f32.mxu0 0.0
        %v2470 = vand.u32 %v514, 4294901760
        %v2471 = vsub.f32 %v514, %v2470
        %v2472 = vand.u32 %v2471, 4294901760
        %2473 = vmatmul.mubr.f32.gmra.mrb[0].mxu0 %v2472
        %v2474 = vpop.f32.mrb[0].mxu0
        %v2475 = vadd.f32 %v1956, %v2474
        %v2476 = vpop.f32.mrb[0].mxu0
        %2477 = vmatprep.mubr.f32.mxu0 0.0
        %v2478 = vand.u32 %v517, 4294901760
        %v2479 = vsub.f32 %v517, %v2478
        %v2480 = vand.u32 %v2479, 4294901760
        %2481 = vmatmul.mubr.f32.gmra.mrb[0].mxu0 %v2480
        %v2482 = vpop.f32.mrb[0].mxu0
        %v2483 = vadd.f32 %v1963, %v2482
        %v2484 = vpop.f32.mrb[0].mxu0
        %2485 = vmatprep.mubr.f32.mxu0 0.0
        %v2486 = vand.u32 %v520, 4294901760
        %v2487 = vsub.f32 %v520, %v2486
        %v2488 = vand.u32 %v2487, 4294901760
        %2489 = vmatmul.mubr.f32.gmra.mrb[0].mxu0 %v2488
        %v2490 = vpop.f32.mrb[0].mxu0
        %v2491 = vadd.f32 %v1970, %v2490
        %v2492 = vpop.f32.mrb[0].mxu0
        %2493 = vmatprep.mubr.f32.mxu0 0.0
        %v2494 = vand.u32 %v523, 4294901760
        %v2495 = vsub.f32 %v523, %v2494
        %v2496 = vand.u32 %v2495, 4294901760
        %2497 = vmatmul.mubr.f32.gmra.mrb[0].mxu0 %v2496
        %v2498 = vpop.f32.mrb[0].mxu0
        %v2499 = vadd.f32 %v1977, %v2498
        %v2500 = vpop.f32.mrb[0].mxu0
        %2501 = vmatprep.mubr.f32.mxu0 0.0
        %v2502 = vand.u32 %v526, 4294901760
        %v2503 = vsub.f32 %v526, %v2502
        %v2504 = vand.u32 %v2503, 4294901760
        %2505 = vmatmul.mubr.f32.gmra.mrb[0].mxu0 %v2504
        %v2506 = vpop.f32.mrb[0].mxu0
        %v2507 = vadd.f32 %v1984, %v2506
        %v2508 = vpop.f32.mrb[0].mxu0
        %2509 = vmatprep.mubr.f32.mxu0 0.0
        %v2510 = vand.u32 %v529, 4294901760
        %v2511 = vsub.f32 %v529, %v2510
        %v2512 = vand.u32 %v2511, 4294901760
        %2513 = vmatmul.mubr.f32.gmra.mrb[0].mxu0 %v2512
        %v2514 = vpop.f32.mrb[0].mxu0
        %v2515 = vadd.f32 %v1991, %v2514
        %v2516 = vpop.f32.mrb[0].mxu0
        %2517 = vmatprep.mubr.f32.mxu0 0.0
        %v2518 = vand.u32 %v532, 4294901760
        %v2519 = vsub.f32 %v532, %v2518
        %v2520 = vand.u32 %v2519, 4294901760
        %2521 = vmatmul.mubr.f32.gmra.mrb[0].mxu0 %v2520
        %v2522 = vpop.f32.mrb[0].mxu0
        %v2523 = vadd.f32 %v1998, %v2522
        %v2524 = vpop.f32.mrb[0].mxu0
        %2525 = vmatprep.mubr.f32.mxu0 0.0
        %v2526 = vand.u32 %v535, 4294901760
        %v2527 = vsub.f32 %v535, %v2526
        %v2528 = vand.u32 %v2527, 4294901760
        %2529 = vmatmul.mubr.f32.gmra.mrb[0].mxu0 %v2528
        %v2530 = vpop.f32.mrb[0].mxu0
        %v2531 = vadd.f32 %v2005, %v2530
        %v2532 = vpop.f32.mrb[0].mxu0
        %2533 = vmatprep.mubr.f32.mxu0 0.0
        %v2534 = vand.u32 %v538, 4294901760
        %v2535 = vsub.f32 %v538, %v2534
        %v2536 = vand.u32 %v2535, 4294901760
        %2537 = vmatmul.mubr.f32.gmra.mrb[0].mxu0 %v2536
        %v2538 = vpop.f32.mrb[0].mxu0
        %v2539 = vadd.f32 %v2012, %v2538
        %v2540 = vpop.f32.mrb[0].mxu0
        %2541 = vmatprep.mubr.f32.mxu0 0.0
        %v2542 = vand.u32 %v541, 4294901760
        %v2543 = vsub.f32 %v541, %v2542
        %v2544 = vand.u32 %v2543, 4294901760
        %2545 = vmatmul.mubr.f32.gmra.mrb[0].mxu0 %v2544
        %v2546 = vpop.f32.mrb[0].mxu0
        %v2547 = vadd.f32 %v2019, %v2546
        %v2548 = vpop.f32.mrb[0].mxu0
        %2549 = vmatprep.mubr.f32.mxu0 0.0
        %v2550 = vand.u32 %v544, 4294901760
        %v2551 = vsub.f32 %v544, %v2550
        %v2552 = vand.u32 %v2551, 4294901760
        %2553 = vmatmul.mubr.f32.gmra.mrb[0].mxu0 %v2552
        %v2554 = vpop.f32.mrb[0].mxu0
        %v2555 = vadd.f32 %v2026, %v2554
        %v2556 = vpop.f32.mrb[0].mxu0
        %2557 = vmatprep.mubr.f32.mxu0 0.0
        %v2558 = vand.u32 %v547, 4294901760
        %v2559 = vsub.f32 %v547, %v2558
        %v2560 = vand.u32 %v2559, 4294901760
        %2561 = vmatmul.mubr.f32.gmra.mrb[0].mxu0 %v2560
        %v2562 = vpop.f32.mrb[0].mxu0
        %v2563 = vadd.f32 %v2033, %v2562
        %v2564 = vpop.f32.mrb[0].mxu0
        %2565 = vmatprep.mubr.f32.mxu0 0.0
        %v2566 = vand.u32 %v550, 4294901760
        %v2567 = vsub.f32 %v550, %v2566
        %v2568 = vand.u32 %v2567, 4294901760
        %2569 = vmatmul.mubr.f32.gmra.mrb[0].mxu0 %v2568
        %v2570 = vpop.f32.mrb[0].mxu0
        %v2571 = vadd.f32 %v2040, %v2570
        %v2572 = vpop.f32.mrb[0].mxu0
        %2573 = vmatprep.mubr.f32.mxu0 0.0
        %v2574 = vand.u32 %v553, 4294901760
        %v2575 = vsub.f32 %v553, %v2574
        %v2576 = vand.u32 %v2575, 4294901760
        %2577 = vmatmul.mubr.f32.gmra.mrb[0].mxu0 %v2576
        %v2578 = vpop.f32.mrb[0].mxu0
        %v2579 = vadd.f32 %v2047, %v2578
        %v2580 = vpop.f32.mrb[0].mxu0
        %2581 = vmatprep.mubr.f32.mxu0 0.0
        %v2582 = vand.u32 %v556, 4294901760
        %v2583 = vsub.f32 %v556, %v2582
        %v2584 = vand.u32 %v2583, 4294901760
        %2585 = vmatmul.mubr.f32.gmra.mrb[0].mxu0 %v2584
        %v2586 = vpop.f32.mrb[0].mxu0
        %v2587 = vadd.f32 %v2054, %v2586
        %v2588 = vpop.f32.mrb[0].mxu0
        %2589 = vmatprep.mubr.f32.mxu0 0.0
        %v2590 = vand.u32 %v559, 4294901760
        %v2591 = vsub.f32 %v559, %v2590
        %v2592 = vand.u32 %v2591, 4294901760
        %2593 = vmatmul.mubr.f32.gmra.mrb[0].mxu0 %v2592
        %v2594 = vpop.f32.mrb[0].mxu0
        %v2595 = vadd.f32 %v2061, %v2594
        %v2596 = vpop.f32.mrb[0].mxu0
        %2597 = vmatprep.mubr.f32.mxu0 0.0
        %v2598 = vand.u32 %v562, 4294901760
        %v2599 = vsub.f32 %v562, %v2598
        %v2600 = vand.u32 %v2599, 4294901760
        %2601 = vmatmul.mubr.f32.gmra.mrb[0].mxu0 %v2600
        %v2602 = vpop.f32.mrb[0].mxu0
        %v2603 = vadd.f32 %v2068, %v2602
        %v2604 = vpop.f32.mrb[0].mxu0
        %2605 = vmatprep.mubr.f32.mxu0 0.0
        %v2606 = vand.u32 %v565, 4294901760
        %v2607 = vsub.f32 %v565, %v2606
        %v2608 = vand.u32 %v2607, 4294901760
        %2609 = vmatmul.mubr.f32.gmra.mrb[0].mxu0 %v2608
        %v2610 = vpop.f32.mrb[0].mxu0
        %v2611 = vadd.f32 %v2075, %v2610
        %v2612 = vpop.f32.mrb[0].mxu0
        %2613 = vmatprep.mubr.f32.mxu0 0.0
        %v2614 = vand.u32 %v568, 4294901760
        %v2615 = vsub.f32 %v568, %v2614
        %v2616 = vand.u32 %v2615, 4294901760
        %2617 = vmatmul.mubr.f32.gmra.mrb[0].mxu0 %v2616
        %v2618 = vpop.f32.mrb[0].mxu0
        %v2619 = vadd.f32 %v2082, %v2618
        %v2620 = vpop.f32.mrb[0].mxu0
        %2621 = vmatprep.mubr.f32.mxu0 0.0
        %v2622 = vand.u32 %v571, 4294901760
        %v2623 = vsub.f32 %v571, %v2622
        %v2624 = vand.u32 %v2623, 4294901760
        %2625 = vmatmul.mubr.f32.gmra.mrb[0].mxu0 %v2624
        %v2626 = vpop.f32.mrb[0].mxu0
        %v2627 = vadd.f32 %v2089, %v2626
        %v2628 = vpop.f32.mrb[0].mxu0
        %2629 = vmatprep.mubr.f32.mxu0 0.0
        %v2630 = vand.u32 %v574, 4294901760
        %v2631 = vsub.f32 %v574, %v2630
        %v2632 = vand.u32 %v2631, 4294901760
        %2633 = vmatmul.mubr.f32.gmra.mrb[0].mxu0 %v2632
        %v2634 = vpop.f32.mrb[0].mxu0
        %v2635 = vadd.f32 %v2096, %v2634
        %v2636 = vpop.f32.mrb[0].mxu0
        %2637 = vmatprep.mubr.f32.mxu0 0.0
        %v2638 = vand.u32 %v577, 4294901760
        %v2639 = vsub.f32 %v577, %v2638
        %v2640 = vand.u32 %v2639, 4294901760
        %2641 = vmatmul.mubr.f32.gmra.mrb[0].mxu0 %v2640
        %v2642 = vpop.f32.mrb[0].mxu0
        %v2643 = vadd.f32 %v2103, %v2642
        %v2644 = vpop.f32.mrb[0].mxu0
        %2645 = vmatprep.mubr.f32.mxu0 0.0
        %v2646 = vand.u32 %v580, 4294901760
        %v2647 = vsub.f32 %v580, %v2646
        %v2648 = vand.u32 %v2647, 4294901760
        %2649 = vmatmul.mubr.f32.gmra.mrb[0].mxu0 %v2648
        %v2650 = vpop.f32.mrb[0].mxu0
        %v2651 = vadd.f32 %v2110, %v2650
        %v2652 = vpop.f32.mrb[0].mxu0
        %2653 = vmatprep.mubr.f32.mxu0 0.0
        %v2654 = vand.u32 %v583, 4294901760
        %v2655 = vsub.f32 %v583, %v2654
        %v2656 = vand.u32 %v2655, 4294901760
        %2657 = vmatmul.mubr.f32.gmra.mrb[0].mxu0 %v2656
        %v2658 = vpop.f32.mrb[0].mxu0
        %v2659 = vadd.f32 %v2117, %v2658
        %v2660 = vpop.f32.mrb[0].mxu0
        %2661 = vmatprep.mubr.f32.mxu0 0.0
        %v2662 = vand.u32 %v586, 4294901760
        %v2663 = vsub.f32 %v586, %v2662
        %v2664 = vand.u32 %v2663, 4294901760
        %2665 = vmatmul.mubr.f32.gmra.mrb[0].mxu0 %v2664
        %v2666 = vpop.f32.mrb[0].mxu0
        %v2667 = vadd.f32 %v2124, %v2666
        %v2668 = vpop.f32.mrb[0].mxu0
        %2669 = vmatprep.mubr.f32.mxu0 0.0
        %v2670 = vand.u32 %v589, 4294901760
        %v2671 = vsub.f32 %v589, %v2670
        %v2672 = vand.u32 %v2671, 4294901760
        %2673 = vmatmul.mubr.f32.gmra.mrb[0].mxu0 %v2672
        %v2674 = vpop.f32.mrb[0].mxu0
        %v2675 = vadd.f32 %v2131, %v2674
        %v2676 = vpop.f32.mrb[0].mxu0
        %2677 = vmatprep.mubr.f32.mxu0 0.0
        %v2678 = vand.u32 %v592, 4294901760
        %v2679 = vsub.f32 %v592, %v2678
        %v2680 = vand.u32 %v2679, 4294901760
        %2681 = vmatmul.mubr.f32.gmra.mrb[0].mxu0 %v2680
        %v2682 = vpop.f32.mrb[0].mxu0
        %v2683 = vadd.f32 %v2138, %v2682
        %v2684 = vpop.f32.mrb[0].mxu0
        %2685 = vmatprep.mubr.f32.mxu0 0.0
        %v2686 = vand.u32 %v595, 4294901760
        %v2687 = vsub.f32 %v595, %v2686
        %v2688 = vand.u32 %v2687, 4294901760
        %2689 = vmatmul.mubr.f32.gmra.mrb[0].mxu0 %v2688
        %v2690 = vpop.f32.mrb[0].mxu0
        %v2691 = vadd.f32 %v2145, %v2690
        %v2692 = vpop.f32.mrb[0].mxu0
        %2693 = vmatprep.mubr.f32.mxu0 0.0
        %v2694 = vand.u32 %v598, 4294901760
        %v2695 = vsub.f32 %v598, %v2694
        %v2696 = vand.u32 %v2695, 4294901760
        %2697 = vmatmul.mubr.f32.gmra.mrb[0].mxu0 %v2696
        %v2698 = vpop.f32.mrb[0].mxu0
        %v2699 = vadd.f32 %v2152, %v2698
        %v2700 = vpop.f32.mrb[0].mxu0
        %2701 = vmatprep.mubr.f32.mxu0 0.0
        %v2702 = vand.u32 %v601, 4294901760
        %v2703 = vsub.f32 %v601, %v2702
        %v2704 = vand.u32 %v2703, 4294901760
        %2705 = vmatmul.mubr.f32.gmra.mrb[0].mxu0 %v2704
        %v2706 = vpop.f32.mrb[0].mxu0
        %v2707 = vadd.f32 %v2159, %v2706
        %v2708 = vpop.f32.mrb[0].mxu0
        %2709 = vmatprep.mubr.f32.mxu0 0.0
        %v2710 = vand.u32 %v604, 4294901760
        %v2711 = vsub.f32 %v604, %v2710
        %v2712 = vand.u32 %v2711, 4294901760
        %2713 = vmatmul.mubr.f32.gmra.mrb[0].mxu0 %v2712
        %v2714 = vpop.f32.mrb[0].mxu0
        %v2715 = vadd.f32 %v2166, %v2714
        %v2716 = vpop.f32.mrb[0].mxu0
        %2717 = vmatprep.mubr.f32.mxu0 0.0
        %v2718 = vand.u32 %v607, 4294901760
        %v2719 = vsub.f32 %v607, %v2718
        %v2720 = vand.u32 %v2719, 4294901760
        %2721 = vmatmul.mubr.f32.gmra.mrb[0].mxu0 %v2720
        %v2722 = vpop.f32.mrb[0].mxu0
        %v2723 = vadd.f32 %v2173, %v2722
        %v2724 = vpop.f32.mrb[0].mxu0
        %2725 = vmatprep.mubr.f32.mxu0 0.0
        %v2726 = vand.u32 %v610, 4294901760
        %v2727 = vsub.f32 %v610, %v2726
        %v2728 = vand.u32 %v2727, 4294901760
        %2729 = vmatmul.mubr.f32.gmra.mrb[0].mxu0 %v2728
        %v2730 = vpop.f32.mrb[0].mxu0
        %v2731 = vadd.f32 %v2180, %v2730
        %v2732 = vpop.f32.mrb[0].mxu0
        %2733 = vmatprep.mubr.f32.mxu0 0.0
        %v2734 = vand.u32 %v613, 4294901760
        %v2735 = vsub.f32 %v613, %v2734
        %v2736 = vand.u32 %v2735, 4294901760
        %2737 = vmatmul.mubr.f32.gmra.mrb[0].mxu0 %v2736
        %v2738 = vpop.f32.mrb[0].mxu0
        %v2739 = vadd.f32 %v2187, %v2738
        %v2740 = vpop.f32.mrb[0].mxu0
        %2741 = vmatprep.mubr.f32.mxu0 0.0
        %v2742 = vand.u32 %v616, 4294901760
        %v2743 = vsub.f32 %v616, %v2742
        %v2744 = vand.u32 %v2743, 4294901760
        %2745 = vmatmul.mubr.f32.gmra.mrb[0].mxu0 %v2744
        %v2746 = vpop.f32.mrb[0].mxu0
        %v2747 = vadd.f32 %v2194, %v2746
        %v2748 = vpop.f32.mrb[0].mxu0
        %2749 = vmatprep.mubr.f32.mxu0 0.0
        %v2750 = vand.u32 %v619, 4294901760
        %v2751 = vsub.f32 %v619, %v2750
        %v2752 = vand.u32 %v2751, 4294901760
        %2753 = vmatmul.mubr.f32.gmra.mrb[0].mxu0 %v2752
        %v2754 = vpop.f32.mrb[0].mxu0
        %v2755 = vadd.f32 %v2201, %v2754
        %v2756 = vpop.f32.mrb[0].mxu0
        %2757 = vmatprep.mubr.f32.mxu0 0.0
        %v2758 = vand.u32 %v622, 4294901760
        %v2759 = vsub.f32 %v622, %v2758
        %v2760 = vand.u32 %v2759, 4294901760
        %2761 = vmatmul.mubr.f32.gmra.mrb[0].mxu0 %v2760
        %v2762 = vpop.f32.mrb[0].mxu0
        %v2763 = vadd.f32 %v2208, %v2762
        %v2764 = vpop.f32.mrb[0].mxu0
        %2765 = vmatprep.mubr.f32.mxu0 0.0
        %v2766 = vand.u32 %v625, 4294901760
        %v2767 = vsub.f32 %v625, %v2766
        %v2768 = vand.u32 %v2767, 4294901760
        %2769 = vmatmul.mubr.f32.gmra.mrb[0].mxu0 %v2768
        %v2770 = vpop.f32.mrb[0].mxu0
        %v2771 = vadd.f32 %v2215, %v2770
        %v2772 = vpop.f32.mrb[0].mxu0
        %2773 = vmatprep.mubr.f32.mxu0 0.0
        %v2774 = vand.u32 %v628, 4294901760
        %v2775 = vsub.f32 %v628, %v2774
        %v2776 = vand.u32 %v2775, 4294901760
        %2777 = vmatmul.mubr.f32.gmra.mrb[0].mxu0 %v2776
        %v2778 = vpop.f32.mrb[0].mxu0
        %v2779 = vadd.f32 %v2222, %v2778
        %v2780 = vpop.f32.mrb[0].mxu0
        %2781 = vmatprep.mubr.f32.mxu0 0.0
        %v2782 = vand.u32 %v631, 4294901760
        %v2783 = vsub.f32 %v631, %v2782
        %v2784 = vand.u32 %v2783, 4294901760
        %2785 = vmatmul.mubr.f32.gmra.mrb[0].mxu0 %v2784
        %v2786 = vpop.f32.mrb[0].mxu0
        %v2787 = vadd.f32 %v2229, %v2786
        %v2788 = vpop.f32.mrb[0].mxu0
        %2789 = vmatprep.mubr.f32.mxu0 0.0
        %v2790 = vand.u32 %v634, 4294901760
        %v2791 = vsub.f32 %v634, %v2790
        %v2792 = vand.u32 %v2791, 4294901760
        %2793 = vmatmul.mubr.f32.gmra.mrb[0].mxu0 %v2792
        %v2794 = vpop.f32.mrb[0].mxu0
        %v2795 = vadd.f32 %v2236, %v2794
        %v2796 = vpop.f32.mrb[0].mxu0
        %2797 = vmatprep.mubr.f32.mxu0 0.0
        %v2798 = vand.u32 %v637, 4294901760
        %v2799 = vsub.f32 %v637, %v2798
        %v2800 = vand.u32 %v2799, 4294901760
        %2801 = vmatmul.mubr.f32.gmra.mrb[0].mxu0 %v2800
        %v2802 = vpop.f32.mrb[0].mxu0
        %v2803 = vadd.f32 %v2243, %v2802
        %v2804 = vpop.f32.mrb[0].mxu0
        %2805 = vmatprep.mubr.f32.mxu0 0.0
        %v2806 = vand.u32 %v640, 4294901760
        %v2807 = vsub.f32 %v640, %v2806
        %v2808 = vand.u32 %v2807, 4294901760
        %2809 = vmatmul.mubr.f32.gmra.mrb[0].mxu0 %v2808
        %v2810 = vpop.f32.mrb[0].mxu0
        %v2811 = vadd.f32 %v2250, %v2810
        %v2812 = vpop.f32.mrb[0].mxu0
        %2813 = vmatprep.mubr.f32.mxu0 0.0
        %v2814 = vand.u32 %v643, 4294901760
        %v2815 = vsub.f32 %v643, %v2814
        %v2816 = vand.u32 %v2815, 4294901760
        %2817 = vmatmul.mubr.f32.gmra.mrb[0].mxu0 %v2816
        %v2818 = vpop.f32.mrb[0].mxu0
        %v2819 = vadd.f32 %v2257, %v2818
        %v2820 = vpop.f32.mrb[0].mxu0
        %2821 = vmatprep.mubr.f32.mxu0 0.0
        %v2822 = vand.u32 %v646, 4294901760
        %v2823 = vsub.f32 %v646, %v2822
        %v2824 = vand.u32 %v2823, 4294901760
        %2825 = vmatmul.mubr.f32.gmra.mrb[0].mxu0 %v2824
        %v2826 = vpop.f32.mrb[0].mxu0
        %v2827 = vadd.f32 %v2264, %v2826
        %v2828 = vpop.f32.mrb[0].mxu0
        %2829 = vmatprep.mubr.f32.mxu0 0.0
        %v2830 = vand.u32 %v649, 4294901760
        %v2831 = vsub.f32 %v649, %v2830
        %v2832 = vand.u32 %v2831, 4294901760
        %2833 = vmatmul.mubr.f32.gmra.mrb[0].mxu0 %v2832
        %v2834 = vpop.f32.mrb[0].mxu0
        %v2835 = vadd.f32 %v2271, %v2834
        %v2836 = vpop.f32.mrb[0].mxu0
        %2837 = vmatprep.mubr.f32.mxu0 0.0
        %v2838 = vand.u32 %v652, 4294901760
        %v2839 = vsub.f32 %v652, %v2838
        %v2840 = vand.u32 %v2839, 4294901760
        %2841 = vmatmul.mubr.f32.gmra.mrb[0].mxu0 %v2840
        %v2842 = vpop.f32.mrb[0].mxu0
        %v2843 = vadd.f32 %v2278, %v2842
        %v2844 = vpop.f32.mrb[0].mxu0
        %2845 = vmatprep.mubr.f32.mxu0 0.0
        %v2846 = vand.u32 %v655, 4294901760
        %v2847 = vsub.f32 %v655, %v2846
        %v2848 = vand.u32 %v2847, 4294901760
        %2849 = vmatmul.mubr.f32.gmra.mrb[0].mxu0 %v2848
        %v2850 = vpop.f32.mrb[0].mxu0
        %v2851 = vadd.f32 %v2285, %v2850
        %v2852 = vpop.f32.mrb[0].mxu0
        %2853 = vmatprep.mubr.f32.mxu0 0.0
        %v2854 = vand.u32 %v658, 4294901760
        %v2855 = vsub.f32 %v658, %v2854
        %v2856 = vand.u32 %v2855, 4294901760
        %2857 = vmatmul.mubr.f32.gmra.mrb[0].mxu0 %v2856
        %v2858 = vpop.f32.mrb[0].mxu0
        %v2859 = vadd.f32 %v2292, %v2858
        %v2860 = vpop.f32.mrb[0].mxu0
        %2861 = vmatprep.mubr.f32.mxu0 0.0
        %v2862 = vand.u32 %v661, 4294901760
        %v2863 = vsub.f32 %v661, %v2862
        %v2864 = vand.u32 %v2863, 4294901760
        %2865 = vmatmul.mubr.f32.gmra.mrb[0].mxu0 %v2864
        %v2866 = vpop.f32.mrb[0].mxu0
        %v2867 = vadd.f32 %v2299, %v2866
        %v2868 = vpop.f32.mrb[0].mxu0
        %2869 = vmatprep.mubr.f32.mxu0 0.0
        %v2870 = vand.u32 %v664, 4294901760
        %v2871 = vsub.f32 %v664, %v2870
        %v2872 = vand.u32 %v2871, 4294901760
        %2873 = vmatmul.mubr.f32.gmra.mrb[0].mxu0 %v2872
        %v2874 = vpop.f32.mrb[0].mxu0
        %v2875 = vadd.f32 %v2306, %v2874
        %v2876 = vpop.f32.mrb[0].mxu0
        %2877 = vmatprep.mubr.f32.mxu0 0.0
        %v2878 = vand.u32 %v667, 4294901760
        %v2879 = vsub.f32 %v667, %v2878
        %v2880 = vand.u32 %v2879, 4294901760
        %2881 = vmatmul.mubr.f32.gmra.mrb[0].mxu0 %v2880
        %v2882 = vpop.f32.mrb[0].mxu0
        %v2883 = vadd.f32 %v2313, %v2882
        %v2884 = vpop.f32.mrb[0].mxu0
        %2885 = vmatprep.mubr.f32.mxu0 0.0
        %v2886 = vand.u32 %v670, 4294901760
        %v2887 = vsub.f32 %v670, %v2886
        %v2888 = vand.u32 %v2887, 4294901760
        %2889 = vmatmul.mubr.f32.gmra.mrb[0].mxu0 %v2888
        %v2890 = vpop.f32.mrb[0].mxu0
        %v2891 = vadd.f32 %v2320, %v2890
        %v2892 = vpop.f32.mrb[0].mxu0
        %2893 = vmatprep.mubr.f32.mxu0 0.0
        %v2894 = vand.u32 %v673, 4294901760
        %v2895 = vsub.f32 %v673, %v2894
        %v2896 = vand.u32 %v2895, 4294901760
        %2897 = vmatmul.mubr.f32.gmra.mrb[0].mxu0 %v2896
        %v2898 = vpop.f32.mrb[0].mxu0
        %v2899 = vadd.f32 %v2327, %v2898
        %v2900 = vpop.f32.mrb[0].mxu0
        %2901 = vmatprep.mubr.f32.mxu0 0.0
        %v2902 = vand.u32 %v676, 4294901760
        %v2903 = vsub.f32 %v676, %v2902
        %v2904 = vand.u32 %v2903, 4294901760
        %2905 = vmatmul.mubr.f32.gmra.mrb[0].mxu0 %v2904
        %v2906 = vpop.f32.mrb[0].mxu0
        %v2907 = vadd.f32 %v2334, %v2906
        %v2908 = vpop.f32.mrb[0].mxu0
        %2909 = vmatprep.mubr.f32.mxu0 0.0
        %v2910 = vand.u32 %v679, 4294901760
        %v2911 = vsub.f32 %v679, %v2910
        %v2912 = vand.u32 %v2911, 4294901760
        %2913 = vmatmul.mubr.f32.gmra.mrb[0].mxu0 %v2912
        %v2914 = vpop.f32.mrb[0].mxu0
        %v2915 = vadd.f32 %v2341, %v2914
        %v2916 = vpop.f32.mrb[0].mxu0
        %2917 = vmatprep.mubr.f32.mxu0 0.0
        %v2918 = vand.u32 %v682, 4294901760
        %v2919 = vsub.f32 %v682, %v2918
        %v2920 = vand.u32 %v2919, 4294901760
        %2921 = vmatmul.mubr.f32.gmra.mrb[0].mxu0 %v2920
        %v2922 = vpop.f32.mrb[0].mxu0
        %v2923 = vadd.f32 %v2348, %v2922
        %v2924 = vpop.f32.mrb[0].mxu0
        %2925 = vmatprep.mubr.f32.mxu0 0.0
        %v2926 = vand.u32 %v685, 4294901760
        %v2927 = vsub.f32 %v685, %v2926
        %v2928 = vand.u32 %v2927, 4294901760
        %2929 = vmatmul.mubr.f32.gmra.mrb[0].mxu0 %v2928
        %v2930 = vpop.f32.mrb[0].mxu0
        %v2931 = vadd.f32 %v2355, %v2930
        %v2932 = vpop.f32.mrb[0].mxu0
        %2933 = vmatprep.mubr.f32.mxu0 0.0
        %v2934 = vand.u32 %v688, 4294901760
        %v2935 = vsub.f32 %v688, %v2934
        %v2936 = vand.u32 %v2935, 4294901760
        %2937 = vmatmul.mubr.f32.gmra.mrb[0].mxu0 %v2936
        %v2938 = vpop.f32.mrb[0].mxu0
        %v2939 = vadd.f32 %v2362, %v2938
        %v2940 = vpop.f32.mrb[0].mxu0
        %2941 = vmatprep.mubr.f32.mxu0 0.0
        %v2942 = vand.u32 %v691, 4294901760
        %v2943 = vsub.f32 %v691, %v2942
        %v2944 = vand.u32 %v2943, 4294901760
        %2945 = vmatmul.mubr.f32.gmra.mrb[0].mxu0 %v2944
        %v2946 = vpop.f32.mrb[0].mxu0
        %v2947 = vadd.f32 %v2369, %v2946
        %v2948 = vpop.f32.mrb[0].mxu0
        %2949 = vdwg.mxu0
        %2950 = vmatprep.subr.mxu0 0.0
        %v2951 = vand.u32 %v695, 4294901760
        %v2952 = vsub.f32 %v695, %v2951
        %v2953 = vand.u32 %v2952, 4294901760
        %2954 = vmatpush1.msra.mxu0 %v2953
        %2955 = vmatprep.subr.mxu0 0.0
        %2956 = vmatpush1.msra.mxu0 0.0
        %2957 = vmatprep.subr.mxu0 0.0
        %2958 = vmatpush1.msra.mxu0 0.0
        %2959 = vmatprep.subr.mxu0 0.0
        %2960 = vmatpush1.msra.mxu0 0.0
        %2961 = vmatprep.subr.mxu0 0.0
        %2962 = vmatpush1.msra.mxu0 0.0
        %2963 = vmatprep.subr.mxu0 0.0
        %2964 = vmatpush1.msra.mxu0 0.0
        %2965 = vmatprep.subr.mxu0 0.0
        %2966 = vmatpush1.msra.mxu0 0.0
        %2967 = vmatprep.subr.mxu0 0.0
        %2968 = vmatpush1.msra.mxu0 0.0
        %2969 = vmatprep.subr.mxu0 0.0
        %2970 = vmatpush1.msra.mxu0 0.0
        %2971 = vmatprep.subr.mxu0 0.0
        %2972 = vmatpush1.msra.mxu0 0.0
        %2973 = vmatprep.subr.mxu0 0.0
        %2974 = vmatpush1.msra.mxu0 0.0
        %2975 = vmatprep.subr.mxu0 0.0
        %2976 = vmatpush1.msra.mxu0 0.0
        %2977 = vmatprep.subr.mxu0 0.0
        %2978 = vmatpush1.msra.mxu0 0.0
        %2979 = vmatprep.subr.mxu0 0.0
        %2980 = vmatpush1.msra.mxu0 0.0
        %2981 = vmatprep.subr.mxu0 0.0
        %2982 = vmatpush1.msra.mxu0 0.0
        %2983 = vmatprep.subr.mxu0 0.0
        %2984 = vmatpush1.msra.mxu0 0.0
        %2985 = vmatprep.subr.mxu0 0.0
        %2986 = vmatpush1.msra.mxu0 0.0
        %2987 = vmatprep.subr.mxu0 0.0
        %2988 = vmatpush1.msra.mxu0 0.0
        %2989 = vmatprep.subr.mxu0 0.0
        %2990 = vmatpush1.msra.mxu0 0.0
        %2991 = vmatprep.subr.mxu0 0.0
        %2992 = vmatpush1.msra.mxu0 0.0
        %2993 = vmatprep.subr.mxu0 0.0
        %2994 = vmatpush1.msra.mxu0 0.0
        %2995 = vmatprep.subr.mxu0 0.0
        %2996 = vmatpush1.msra.mxu0 0.0
        %2997 = vmatprep.subr.mxu0 0.0
        %2998 = vmatpush1.msra.mxu0 0.0
        %2999 = vmatprep.subr.mxu0 0.0
        %3000 = vmatpush1.msra.mxu0 0.0
        %3001 = vmatprep.subr.mxu0 0.0
        %3002 = vmatpush1.msra.mxu0 0.0
        %3003 = vmatprep.subr.mxu0 0.0
        %3004 = vmatpush1.msra.mxu0 0.0
        %3005 = vmatprep.subr.mxu0 0.0
        %3006 = vmatpush1.msra.mxu0 0.0
        %3007 = vmatprep.subr.mxu0 0.0
        %3008 = vmatpush1.msra.mxu0 0.0
        %3009 = vmatprep.subr.mxu0 0.0
        %3010 = vmatpush1.msra.mxu0 0.0
        %3011 = vmatprep.subr.mxu0 0.0
        %3012 = vmatpush1.msra.mxu0 0.0
        %3013 = vmatprep.subr.mxu0 0.0
        %3014 = vmatpush1.msra.mxu0 0.0
        %3015 = vmatprep.subr.mxu0 0.0
        %3016 = vmatpush1.msra.mxu0 0.0
        %3017 = vmatprep.mubr.f32.mxu0 0.0
        %v3018 = vand.u32 %v502, 4294901760
        %3019 = vmatmul.mubr.f32.gmra.mrb[0].mxu0 %v3018
        %v3020 = vpop.f32.mrb[0].mxu0
        %v3021 = vadd.f32 %v2443, %v3020
        %v3022 = vpop.f32.mrb[0].mxu0
        %3023 = vmatprep.mubr.f32.mxu0 0.0
        %v3024 = vand.u32 %v505, 4294901760
        %3025 = vmatmul.mubr.f32.gmra.mrb[0].mxu0 %v3024
        %v3026 = vpop.f32.mrb[0].mxu0
        %v3027 = vadd.f32 %v2451, %v3026
        %v3028 = vpop.f32.mrb[0].mxu0
        %3029 = vmatprep.mubr.f32.mxu0 0.0
        %v3030 = vand.u32 %v508, 4294901760
        %3031 = vmatmul.mubr.f32.gmra.mrb[0].mxu0 %v3030
        %v3032 = vpop.f32.mrb[0].mxu0
        %v3033 = vadd.f32 %v2459, %v3032
        %v3034 = vpop.f32.mrb[0].mxu0
        %3035 = vmatprep.mubr.f32.mxu0 0.0
        %v3036 = vand.u32 %v511, 4294901760
        %3037 = vmatmul.mubr.f32.gmra.mrb[0].mxu0 %v3036
        %v3038 = vpop.f32.mrb[0].mxu0
        %v3039 = vadd.f32 %v2467, %v3038
        %v3040 = vpop.f32.mrb[0].mxu0
        %3041 = vmatprep.mubr.f32.mxu0 0.0
        %v3042 = vand.u32 %v514, 4294901760
        %3043 = vmatmul.mubr.f32.gmra.mrb[0].mxu0 %v3042
        %v3044 = vpop.f32.mrb[0].mxu0
        %v3045 = vadd.f32 %v2475, %v3044
        %v3046 = vpop.f32.mrb[0].mxu0
        %3047 = vmatprep.mubr.f32.mxu0 0.0
        %v3048 = vand.u32 %v517, 4294901760
        %3049 = vmatmul.mubr.f32.gmra.mrb[0].mxu0 %v3048
        %v3050 = vpop.f32.mrb[0].mxu0
        %v3051 = vadd.f32 %v2483, %v3050
        %v3052 = vpop.f32.mrb[0].mxu0
        %3053 = vmatprep.mubr.f32.mxu0 0.0
        %v3054 = vand.u32 %v520, 4294901760
        %3055 = vmatmul.mubr.f32.gmra.mrb[0].mxu0 %v3054
        %v3056 = vpop.f32.mrb[0].mxu0
        %v3057 = vadd.f32 %v2491, %v3056
        %v3058 = vpop.f32.mrb[0].mxu0
        %3059 = vmatprep.mubr.f32.mxu0 0.0
        %v3060 = vand.u32 %v523, 4294901760
        %3061 = vmatmul.mubr.f32.gmra.mrb[0].mxu0 %v3060
        %v3062 = vpop.f32.mrb[0].mxu0
        %v3063 = vadd.f32 %v2499, %v3062
        %v3064 = vpop.f32.mrb[0].mxu0
        %3065 = vmatprep.mubr.f32.mxu0 0.0
        %v3066 = vand.u32 %v526, 4294901760
        %3067 = vmatmul.mubr.f32.gmra.mrb[0].mxu0 %v3066
        %v3068 = vpop.f32.mrb[0].mxu0
        %v3069 = vadd.f32 %v2507, %v3068
        %v3070 = vpop.f32.mrb[0].mxu0
        %3071 = vmatprep.mubr.f32.mxu0 0.0
        %v3072 = vand.u32 %v529, 4294901760
        %3073 = vmatmul.mubr.f32.gmra.mrb[0].mxu0 %v3072
        %v3074 = vpop.f32.mrb[0].mxu0
        %v3075 = vadd.f32 %v2515, %v3074
        %v3076 = vpop.f32.mrb[0].mxu0
        %3077 = vmatprep.mubr.f32.mxu0 0.0
        %v3078 = vand.u32 %v532, 4294901760
        %3079 = vmatmul.mubr.f32.gmra.mrb[0].mxu0 %v3078
        %v3080 = vpop.f32.mrb[0].mxu0
        %v3081 = vadd.f32 %v2523, %v3080
        %v3082 = vpop.f32.mrb[0].mxu0
        %3083 = vmatprep.mubr.f32.mxu0 0.0
        %v3084 = vand.u32 %v535, 4294901760
        %3085 = vmatmul.mubr.f32.gmra.mrb[0].mxu0 %v3084
        %v3086 = vpop.f32.mrb[0].mxu0
        %v3087 = vadd.f32 %v2531, %v3086
        %v3088 = vpop.f32.mrb[0].mxu0
        %3089 = vmatprep.mubr.f32.mxu0 0.0
        %v3090 = vand.u32 %v538, 4294901760
        %3091 = vmatmul.mubr.f32.gmra.mrb[0].mxu0 %v3090
        %v3092 = vpop.f32.mrb[0].mxu0
        %v3093 = vadd.f32 %v2539, %v3092
        %v3094 = vpop.f32.mrb[0].mxu0
        %3095 = vmatprep.mubr.f32.mxu0 0.0
        %v3096 = vand.u32 %v541, 4294901760
        %3097 = vmatmul.mubr.f32.gmra.mrb[0].mxu0 %v3096
        %v3098 = vpop.f32.mrb[0].mxu0
        %v3099 = vadd.f32 %v2547, %v3098
        %v3100 = vpop.f32.mrb[0].mxu0
        %3101 = vmatprep.mubr.f32.mxu0 0.0
        %v3102 = vand.u32 %v544, 4294901760
        %3103 = vmatmul.mubr.f32.gmra.mrb[0].mxu0 %v3102
        %v3104 = vpop.f32.mrb[0].mxu0
        %v3105 = vadd.f32 %v2555, %v3104
        %v3106 = vpop.f32.mrb[0].mxu0
        %3107 = vmatprep.mubr.f32.mxu0 0.0
        %v3108 = vand.u32 %v547, 4294901760
        %3109 = vmatmul.mubr.f32.gmra.mrb[0].mxu0 %v3108
        %v3110 = vpop.f32.mrb[0].mxu0
        %v3111 = vadd.f32 %v2563, %v3110
        %v3112 = vpop.f32.mrb[0].mxu0
        %3113 = vmatprep.mubr.f32.mxu0 0.0
        %v3114 = vand.u32 %v550, 4294901760
        %3115 = vmatmul.mubr.f32.gmra.mrb[0].mxu0 %v3114
        %v3116 = vpop.f32.mrb[0].mxu0
        %v3117 = vadd.f32 %v2571, %v3116
        %v3118 = vpop.f32.mrb[0].mxu0
        %3119 = vmatprep.mubr.f32.mxu0 0.0
        %v3120 = vand.u32 %v553, 4294901760
        %3121 = vmatmul.mubr.f32.gmra.mrb[0].mxu0 %v3120
        %v3122 = vpop.f32.mrb[0].mxu0
        %v3123 = vadd.f32 %v2579, %v3122
        %v3124 = vpop.f32.mrb[0].mxu0
        %3125 = vmatprep.mubr.f32.mxu0 0.0
        %v3126 = vand.u32 %v556, 4294901760
        %3127 = vmatmul.mubr.f32.gmra.mrb[0].mxu0 %v3126
        %v3128 = vpop.f32.mrb[0].mxu0
        %v3129 = vadd.f32 %v2587, %v3128
        %v3130 = vpop.f32.mrb[0].mxu0
        %3131 = vmatprep.mubr.f32.mxu0 0.0
        %v3132 = vand.u32 %v559, 4294901760
        %3133 = vmatmul.mubr.f32.gmra.mrb[0].mxu0 %v3132
        %v3134 = vpop.f32.mrb[0].mxu0
        %v3135 = vadd.f32 %v2595, %v3134
        %v3136 = vpop.f32.mrb[0].mxu0
        %3137 = vmatprep.mubr.f32.mxu0 0.0
        %v3138 = vand.u32 %v562, 4294901760
        %3139 = vmatmul.mubr.f32.gmra.mrb[0].mxu0 %v3138
        %v3140 = vpop.f32.mrb[0].mxu0
        %v3141 = vadd.f32 %v2603, %v3140
        %v3142 = vpop.f32.mrb[0].mxu0
        %3143 = vmatprep.mubr.f32.mxu0 0.0
        %v3144 = vand.u32 %v565, 4294901760
        %3145 = vmatmul.mubr.f32.gmra.mrb[0].mxu0 %v3144
        %v3146 = vpop.f32.mrb[0].mxu0
        %v3147 = vadd.f32 %v2611, %v3146
        %v3148 = vpop.f32.mrb[0].mxu0
        %3149 = vmatprep.mubr.f32.mxu0 0.0
        %v3150 = vand.u32 %v568, 4294901760
        %3151 = vmatmul.mubr.f32.gmra.mrb[0].mxu0 %v3150
        %v3152 = vpop.f32.mrb[0].mxu0
        %v3153 = vadd.f32 %v2619, %v3152
        %v3154 = vpop.f32.mrb[0].mxu0
        %3155 = vmatprep.mubr.f32.mxu0 0.0
        %v3156 = vand.u32 %v571, 4294901760
        %3157 = vmatmul.mubr.f32.gmra.mrb[0].mxu0 %v3156
        %v3158 = vpop.f32.mrb[0].mxu0
        %v3159 = vadd.f32 %v2627, %v3158
        %v3160 = vpop.f32.mrb[0].mxu0
        %3161 = vmatprep.mubr.f32.mxu0 0.0
        %v3162 = vand.u32 %v574, 4294901760
        %3163 = vmatmul.mubr.f32.gmra.mrb[0].mxu0 %v3162
        %v3164 = vpop.f32.mrb[0].mxu0
        %v3165 = vadd.f32 %v2635, %v3164
        %v3166 = vpop.f32.mrb[0].mxu0
        %3167 = vmatprep.mubr.f32.mxu0 0.0
        %v3168 = vand.u32 %v577, 4294901760
        %3169 = vmatmul.mubr.f32.gmra.mrb[0].mxu0 %v3168
        %v3170 = vpop.f32.mrb[0].mxu0
        %v3171 = vadd.f32 %v2643, %v3170
        %v3172 = vpop.f32.mrb[0].mxu0
        %3173 = vmatprep.mubr.f32.mxu0 0.0
        %v3174 = vand.u32 %v580, 4294901760
        %3175 = vmatmul.mubr.f32.gmra.mrb[0].mxu0 %v3174
        %v3176 = vpop.f32.mrb[0].mxu0
        %v3177 = vadd.f32 %v2651, %v3176
        %v3178 = vpop.f32.mrb[0].mxu0
        %3179 = vmatprep.mubr.f32.mxu0 0.0
        %v3180 = vand.u32 %v583, 4294901760
        %3181 = vmatmul.mubr.f32.gmra.mrb[0].mxu0 %v3180
        %v3182 = vpop.f32.mrb[0].mxu0
        %v3183 = vadd.f32 %v2659, %v3182
        %v3184 = vpop.f32.mrb[0].mxu0
        %3185 = vmatprep.mubr.f32.mxu0 0.0
        %v3186 = vand.u32 %v586, 4294901760
        %3187 = vmatmul.mubr.f32.gmra.mrb[0].mxu0 %v3186
        %v3188 = vpop.f32.mrb[0].mxu0
        %v3189 = vadd.f32 %v2667, %v3188
        %v3190 = vpop.f32.mrb[0].mxu0
        %3191 = vmatprep.mubr.f32.mxu0 0.0
        %v3192 = vand.u32 %v589, 4294901760
        %3193 = vmatmul.mubr.f32.gmra.mrb[0].mxu0 %v3192
        %v3194 = vpop.f32.mrb[0].mxu0
        %v3195 = vadd.f32 %v2675, %v3194
        %v3196 = vpop.f32.mrb[0].mxu0
        %3197 = vmatprep.mubr.f32.mxu0 0.0
        %v3198 = vand.u32 %v592, 4294901760
        %3199 = vmatmul.mubr.f32.gmra.mrb[0].mxu0 %v3198
        %v3200 = vpop.f32.mrb[0].mxu0
        %v3201 = vadd.f32 %v2683, %v3200
        %v3202 = vpop.f32.mrb[0].mxu0
        %3203 = vmatprep.mubr.f32.mxu0 0.0
        %v3204 = vand.u32 %v595, 4294901760
        %3205 = vmatmul.mubr.f32.gmra.mrb[0].mxu0 %v3204
        %v3206 = vpop.f32.mrb[0].mxu0
        %v3207 = vadd.f32 %v2691, %v3206
        %v3208 = vpop.f32.mrb[0].mxu0
        %3209 = vmatprep.mubr.f32.mxu0 0.0
        %v3210 = vand.u32 %v598, 4294901760
        %3211 = vmatmul.mubr.f32.gmra.mrb[0].mxu0 %v3210
        %v3212 = vpop.f32.mrb[0].mxu0
        %v3213 = vadd.f32 %v2699, %v3212
        %v3214 = vpop.f32.mrb[0].mxu0
        %3215 = vmatprep.mubr.f32.mxu0 0.0
        %v3216 = vand.u32 %v601, 4294901760
        %3217 = vmatmul.mubr.f32.gmra.mrb[0].mxu0 %v3216
        %v3218 = vpop.f32.mrb[0].mxu0
        %v3219 = vadd.f32 %v2707, %v3218
        %v3220 = vpop.f32.mrb[0].mxu0
        %3221 = vmatprep.mubr.f32.mxu0 0.0
        %v3222 = vand.u32 %v604, 4294901760
        %3223 = vmatmul.mubr.f32.gmra.mrb[0].mxu0 %v3222
        %v3224 = vpop.f32.mrb[0].mxu0
        %v3225 = vadd.f32 %v2715, %v3224
        %v3226 = vpop.f32.mrb[0].mxu0
        %3227 = vmatprep.mubr.f32.mxu0 0.0
        %v3228 = vand.u32 %v607, 4294901760
        %3229 = vmatmul.mubr.f32.gmra.mrb[0].mxu0 %v3228
        %v3230 = vpop.f32.mrb[0].mxu0
        %v3231 = vadd.f32 %v2723, %v3230
        %v3232 = vpop.f32.mrb[0].mxu0
        %3233 = vmatprep.mubr.f32.mxu0 0.0
        %v3234 = vand.u32 %v610, 4294901760
        %3235 = vmatmul.mubr.f32.gmra.mrb[0].mxu0 %v3234
        %v3236 = vpop.f32.mrb[0].mxu0
        %v3237 = vadd.f32 %v2731, %v3236
        %v3238 = vpop.f32.mrb[0].mxu0
        %3239 = vmatprep.mubr.f32.mxu0 0.0
        %v3240 = vand.u32 %v613, 4294901760
        %3241 = vmatmul.mubr.f32.gmra.mrb[0].mxu0 %v3240
        %v3242 = vpop.f32.mrb[0].mxu0
        %v3243 = vadd.f32 %v2739, %v3242
        %v3244 = vpop.f32.mrb[0].mxu0
        %3245 = vmatprep.mubr.f32.mxu0 0.0
        %v3246 = vand.u32 %v616, 4294901760
        %3247 = vmatmul.mubr.f32.gmra.mrb[0].mxu0 %v3246
        %v3248 = vpop.f32.mrb[0].mxu0
        %v3249 = vadd.f32 %v2747, %v3248
        %v3250 = vpop.f32.mrb[0].mxu0
        %3251 = vmatprep.mubr.f32.mxu0 0.0
        %v3252 = vand.u32 %v619, 4294901760
        %3253 = vmatmul.mubr.f32.gmra.mrb[0].mxu0 %v3252
        %v3254 = vpop.f32.mrb[0].mxu0
        %v3255 = vadd.f32 %v2755, %v3254
        %v3256 = vpop.f32.mrb[0].mxu0
        %3257 = vmatprep.mubr.f32.mxu0 0.0
        %v3258 = vand.u32 %v622, 4294901760
        %3259 = vmatmul.mubr.f32.gmra.mrb[0].mxu0 %v3258
        %v3260 = vpop.f32.mrb[0].mxu0
        %v3261 = vadd.f32 %v2763, %v3260
        %v3262 = vpop.f32.mrb[0].mxu0
        %3263 = vmatprep.mubr.f32.mxu0 0.0
        %v3264 = vand.u32 %v625, 4294901760
        %3265 = vmatmul.mubr.f32.gmra.mrb[0].mxu0 %v3264
        %v3266 = vpop.f32.mrb[0].mxu0
        %v3267 = vadd.f32 %v2771, %v3266
        %v3268 = vpop.f32.mrb[0].mxu0
        %3269 = vmatprep.mubr.f32.mxu0 0.0
        %v3270 = vand.u32 %v628, 4294901760
        %3271 = vmatmul.mubr.f32.gmra.mrb[0].mxu0 %v3270
        %v3272 = vpop.f32.mrb[0].mxu0
        %v3273 = vadd.f32 %v2779, %v3272
        %v3274 = vpop.f32.mrb[0].mxu0
        %3275 = vmatprep.mubr.f32.mxu0 0.0
        %v3276 = vand.u32 %v631, 4294901760
        %3277 = vmatmul.mubr.f32.gmra.mrb[0].mxu0 %v3276
        %v3278 = vpop.f32.mrb[0].mxu0
        %v3279 = vadd.f32 %v2787, %v3278
        %v3280 = vpop.f32.mrb[0].mxu0
        %3281 = vmatprep.mubr.f32.mxu0 0.0
        %v3282 = vand.u32 %v634, 4294901760
        %3283 = vmatmul.mubr.f32.gmra.mrb[0].mxu0 %v3282
        %v3284 = vpop.f32.mrb[0].mxu0
        %v3285 = vadd.f32 %v2795, %v3284
        %v3286 = vpop.f32.mrb[0].mxu0
        %3287 = vmatprep.mubr.f32.mxu0 0.0
        %v3288 = vand.u32 %v637, 4294901760
        %3289 = vmatmul.mubr.f32.gmra.mrb[0].mxu0 %v3288
        %v3290 = vpop.f32.mrb[0].mxu0
        %v3291 = vadd.f32 %v2803, %v3290
        %v3292 = vpop.f32.mrb[0].mxu0
        %3293 = vmatprep.mubr.f32.mxu0 0.0
        %v3294 = vand.u32 %v640, 4294901760
        %3295 = vmatmul.mubr.f32.gmra.mrb[0].mxu0 %v3294
        %v3296 = vpop.f32.mrb[0].mxu0
        %v3297 = vadd.f32 %v2811, %v3296
        %v3298 = vpop.f32.mrb[0].mxu0
        %3299 = vmatprep.mubr.f32.mxu0 0.0
        %v3300 = vand.u32 %v643, 4294901760
        %3301 = vmatmul.mubr.f32.gmra.mrb[0].mxu0 %v3300
        %v3302 = vpop.f32.mrb[0].mxu0
        %v3303 = vadd.f32 %v2819, %v3302
        %v3304 = vpop.f32.mrb[0].mxu0
        %3305 = vmatprep.mubr.f32.mxu0 0.0
        %v3306 = vand.u32 %v646, 4294901760
        %3307 = vmatmul.mubr.f32.gmra.mrb[0].mxu0 %v3306
        %v3308 = vpop.f32.mrb[0].mxu0
        %v3309 = vadd.f32 %v2827, %v3308
        %v3310 = vpop.f32.mrb[0].mxu0
        %3311 = vmatprep.mubr.f32.mxu0 0.0
        %v3312 = vand.u32 %v649, 4294901760
        %3313 = vmatmul.mubr.f32.gmra.mrb[0].mxu0 %v3312
        %v3314 = vpop.f32.mrb[0].mxu0
        %v3315 = vadd.f32 %v2835, %v3314
        %v3316 = vpop.f32.mrb[0].mxu0
        %3317 = vmatprep.mubr.f32.mxu0 0.0
        %v3318 = vand.u32 %v652, 4294901760
        %3319 = vmatmul.mubr.f32.gmra.mrb[0].mxu0 %v3318
        %v3320 = vpop.f32.mrb[0].mxu0
        %v3321 = vadd.f32 %v2843, %v3320
        %v3322 = vpop.f32.mrb[0].mxu0
        %3323 = vmatprep.mubr.f32.mxu0 0.0
        %v3324 = vand.u32 %v655, 4294901760
        %3325 = vmatmul.mubr.f32.gmra.mrb[0].mxu0 %v3324
        %v3326 = vpop.f32.mrb[0].mxu0
        %v3327 = vadd.f32 %v2851, %v3326
        %v3328 = vpop.f32.mrb[0].mxu0
        %3329 = vmatprep.mubr.f32.mxu0 0.0
        %v3330 = vand.u32 %v658, 4294901760
        %3331 = vmatmul.mubr.f32.gmra.mrb[0].mxu0 %v3330
        %v3332 = vpop.f32.mrb[0].mxu0
        %v3333 = vadd.f32 %v2859, %v3332
        %v3334 = vpop.f32.mrb[0].mxu0
        %3335 = vmatprep.mubr.f32.mxu0 0.0
        %v3336 = vand.u32 %v661, 4294901760
        %3337 = vmatmul.mubr.f32.gmra.mrb[0].mxu0 %v3336
        %v3338 = vpop.f32.mrb[0].mxu0
        %v3339 = vadd.f32 %v2867, %v3338
        %v3340 = vpop.f32.mrb[0].mxu0
        %3341 = vmatprep.mubr.f32.mxu0 0.0
        %v3342 = vand.u32 %v664, 4294901760
        %3343 = vmatmul.mubr.f32.gmra.mrb[0].mxu0 %v3342
        %v3344 = vpop.f32.mrb[0].mxu0
        %v3345 = vadd.f32 %v2875, %v3344
        %v3346 = vpop.f32.mrb[0].mxu0
        %3347 = vmatprep.mubr.f32.mxu0 0.0
        %v3348 = vand.u32 %v667, 4294901760
        %3349 = vmatmul.mubr.f32.gmra.mrb[0].mxu0 %v3348
        %v3350 = vpop.f32.mrb[0].mxu0
        %v3351 = vadd.f32 %v2883, %v3350
        %v3352 = vpop.f32.mrb[0].mxu0
        %3353 = vmatprep.mubr.f32.mxu0 0.0
        %v3354 = vand.u32 %v670, 4294901760
        %3355 = vmatmul.mubr.f32.gmra.mrb[0].mxu0 %v3354
        %v3356 = vpop.f32.mrb[0].mxu0
        %v3357 = vadd.f32 %v2891, %v3356
        %v3358 = vpop.f32.mrb[0].mxu0
        %3359 = vmatprep.mubr.f32.mxu0 0.0
        %v3360 = vand.u32 %v673, 4294901760
        %3361 = vmatmul.mubr.f32.gmra.mrb[0].mxu0 %v3360
        %v3362 = vpop.f32.mrb[0].mxu0
        %v3363 = vadd.f32 %v2899, %v3362
        %v3364 = vpop.f32.mrb[0].mxu0
        %3365 = vmatprep.mubr.f32.mxu0 0.0
        %v3366 = vand.u32 %v676, 4294901760
        %3367 = vmatmul.mubr.f32.gmra.mrb[0].mxu0 %v3366
        %v3368 = vpop.f32.mrb[0].mxu0
        %v3369 = vadd.f32 %v2907, %v3368
        %v3370 = vpop.f32.mrb[0].mxu0
        %3371 = vmatprep.mubr.f32.mxu0 0.0
        %v3372 = vand.u32 %v679, 4294901760
        %3373 = vmatmul.mubr.f32.gmra.mrb[0].mxu0 %v3372
        %v3374 = vpop.f32.mrb[0].mxu0
        %v3375 = vadd.f32 %v2915, %v3374
        %v3376 = vpop.f32.mrb[0].mxu0
        %3377 = vmatprep.mubr.f32.mxu0 0.0
        %v3378 = vand.u32 %v682, 4294901760
        %3379 = vmatmul.mubr.f32.gmra.mrb[0].mxu0 %v3378
        %v3380 = vpop.f32.mrb[0].mxu0
        %v3381 = vadd.f32 %v2923, %v3380
        %v3382 = vpop.f32.mrb[0].mxu0
        %3383 = vmatprep.mubr.f32.mxu0 0.0
        %v3384 = vand.u32 %v685, 4294901760
        %3385 = vmatmul.mubr.f32.gmra.mrb[0].mxu0 %v3384
        %v3386 = vpop.f32.mrb[0].mxu0
        %v3387 = vadd.f32 %v2931, %v3386
        %v3388 = vpop.f32.mrb[0].mxu0
        %3389 = vmatprep.mubr.f32.mxu0 0.0
        %v3390 = vand.u32 %v688, 4294901760
        %3391 = vmatmul.mubr.f32.gmra.mrb[0].mxu0 %v3390
        %v3392 = vpop.f32.mrb[0].mxu0
        %v3393 = vadd.f32 %v2939, %v3392
        %v3394 = vpop.f32.mrb[0].mxu0
        %3395 = vmatprep.mubr.f32.mxu0 0.0
        %v3396 = vand.u32 %v691, 4294901760
        %3397 = vmatmul.mubr.f32.gmra.mrb[0].mxu0 %v3396
        %v3398 = vpop.f32.mrb[0].mxu0
        %v3399 = vadd.f32 %v2947, %v3398
        %v3400 = vpop.f32.mrb[0].mxu0
        %3401 = vdwg.mxu0
        %3402 = vmatprep.subr.mxu0 0.0
        %v3403 = vand.u32 %v695, 4294901760
        %3404 = vmatpush1.msra.mxu0 %v3403
        %3405 = vmatprep.subr.mxu0 0.0
        %3406 = vmatpush1.msra.mxu0 0.0
        %3407 = vmatprep.subr.mxu0 0.0
        %3408 = vmatpush1.msra.mxu0 0.0
        %3409 = vmatprep.subr.mxu0 0.0
        %3410 = vmatpush1.msra.mxu0 0.0
        %3411 = vmatprep.subr.mxu0 0.0
        %3412 = vmatpush1.msra.mxu0 0.0
        %3413 = vmatprep.subr.mxu0 0.0
        %3414 = vmatpush1.msra.mxu0 0.0
        %3415 = vmatprep.subr.mxu0 0.0
        %3416 = vmatpush1.msra.mxu0 0.0
        %3417 = vmatprep.subr.mxu0 0.0
        %3418 = vmatpush1.msra.mxu0 0.0
        %3419 = vmatprep.subr.mxu0 0.0
        %3420 = vmatpush1.msra.mxu0 0.0
        %3421 = vmatprep.subr.mxu0 0.0
        %3422 = vmatpush1.msra.mxu0 0.0
        %3423 = vmatprep.subr.mxu0 0.0
        %3424 = vmatpush1.msra.mxu0 0.0
        %3425 = vmatprep.subr.mxu0 0.0
        %3426 = vmatpush1.msra.mxu0 0.0
        %3427 = vmatprep.subr.mxu0 0.0
        %3428 = vmatpush1.msra.mxu0 0.0
        %3429 = vmatprep.subr.mxu0 0.0
        %3430 = vmatpush1.msra.mxu0 0.0
        %3431 = vmatprep.subr.mxu0 0.0
        %3432 = vmatpush1.msra.mxu0 0.0
        %3433 = vmatprep.subr.mxu0 0.0
        %3434 = vmatpush1.msra.mxu0 0.0
        %3435 = vmatprep.subr.mxu0 0.0
        %3436 = vmatpush1.msra.mxu0 0.0
        %3437 = vmatprep.subr.mxu0 0.0
        %3438 = vmatpush1.msra.mxu0 0.0
        %3439 = vmatprep.subr.mxu0 0.0
        %3440 = vmatpush1.msra.mxu0 0.0
        %3441 = vmatprep.subr.mxu0 0.0
        %3442 = vmatpush1.msra.mxu0 0.0
        %3443 = vmatprep.subr.mxu0 0.0
        %3444 = vmatpush1.msra.mxu0 0.0
        %3445 = vmatprep.subr.mxu0 0.0
        %3446 = vmatpush1.msra.mxu0 0.0
        %3447 = vmatprep.subr.mxu0 0.0
        %3448 = vmatpush1.msra.mxu0 0.0
        %3449 = vmatprep.subr.mxu0 0.0
        %3450 = vmatpush1.msra.mxu0 0.0
        %3451 = vmatprep.subr.mxu0 0.0
        %3452 = vmatpush1.msra.mxu0 0.0
        %3453 = vmatprep.subr.mxu0 0.0
        %3454 = vmatpush1.msra.mxu0 0.0
        %3455 = vmatprep.subr.mxu0 0.0
        %3456 = vmatpush1.msra.mxu0 0.0
        %3457 = vmatprep.subr.mxu0 0.0
        %3458 = vmatpush1.msra.mxu0 0.0
        %3459 = vmatprep.subr.mxu0 0.0
        %3460 = vmatpush1.msra.mxu0 0.0
        %3461 = vmatprep.subr.mxu0 0.0
        %3462 = vmatpush1.msra.mxu0 0.0
        %3463 = vmatprep.subr.mxu0 0.0
        %3464 = vmatpush1.msra.mxu0 0.0
        %3465 = vmatprep.subr.mxu0 0.0
        %3466 = vmatpush1.msra.mxu0 0.0
        %3467 = vmatprep.mubr.f32.mxu0 0.0
        %v3468 = vand.u32 %v502, 4294901760
        %3469 = vmatmul.mubr.f32.gmra.mrb[0].mxu0 %v3468
        %v3470 = vpop.f32.mrb[0].mxu0
        %v3471 = vadd.f32 %v3021, %v3470
        %v3472 = vpop.f32.mrb[0].mxu0
        %3473 = vmatprep.mubr.f32.mxu0 0.0
        %v3474 = vand.u32 %v505, 4294901760
        %3475 = vmatmul.mubr.f32.gmra.mrb[0].mxu0 %v3474
        %v3476 = vpop.f32.mrb[0].mxu0
        %v3477 = vadd.f32 %v3027, %v3476
        %v3478 = vpop.f32.mrb[0].mxu0
        %3479 = vmatprep.mubr.f32.mxu0 0.0
        %v3480 = vand.u32 %v508, 4294901760
        %3481 = vmatmul.mubr.f32.gmra.mrb[0].mxu0 %v3480
        %v3482 = vpop.f32.mrb[0].mxu0
        %v3483 = vadd.f32 %v3033, %v3482
        %v3484 = vpop.f32.mrb[0].mxu0
        %3485 = vmatprep.mubr.f32.mxu0 0.0
        %v3486 = vand.u32 %v511, 4294901760
        %3487 = vmatmul.mubr.f32.gmra.mrb[0].mxu0 %v3486
        %v3488 = vpop.f32.mrb[0].mxu0
        %v3489 = vadd.f32 %v3039, %v3488
        %v3490 = vpop.f32.mrb[0].mxu0
        %3491 = vmatprep.mubr.f32.mxu0 0.0
        %v3492 = vand.u32 %v514, 4294901760
        %3493 = vmatmul.mubr.f32.gmra.mrb[0].mxu0 %v3492
        %v3494 = vpop.f32.mrb[0].mxu0
        %v3495 = vadd.f32 %v3045, %v3494
        %v3496 = vpop.f32.mrb[0].mxu0
        %3497 = vmatprep.mubr.f32.mxu0 0.0
        %v3498 = vand.u32 %v517, 4294901760
        %3499 = vmatmul.mubr.f32.gmra.mrb[0].mxu0 %v3498
        %v3500 = vpop.f32.mrb[0].mxu0
        %v3501 = vadd.f32 %v3051, %v3500
        %v3502 = vpop.f32.mrb[0].mxu0
        %3503 = vmatprep.mubr.f32.mxu0 0.0
        %v3504 = vand.u32 %v520, 4294901760
        %3505 = vmatmul.mubr.f32.gmra.mrb[0].mxu0 %v3504
        %v3506 = vpop.f32.mrb[0].mxu0
        %v3507 = vadd.f32 %v3057, %v3506
        %v3508 = vpop.f32.mrb[0].mxu0
        %3509 = vmatprep.mubr.f32.mxu0 0.0
        %v3510 = vand.u32 %v523, 4294901760
        %3511 = vmatmul.mubr.f32.gmra.mrb[0].mxu0 %v3510
        %v3512 = vpop.f32.mrb[0].mxu0
        %v3513 = vadd.f32 %v3063, %v3512
        %v3514 = vpop.f32.mrb[0].mxu0
        %3515 = vmatprep.mubr.f32.mxu0 0.0
        %v3516 = vand.u32 %v526, 4294901760
        %3517 = vmatmul.mubr.f32.gmra.mrb[0].mxu0 %v3516
        %v3518 = vpop.f32.mrb[0].mxu0
        %v3519 = vadd.f32 %v3069, %v3518
        %v3520 = vpop.f32.mrb[0].mxu0
        %3521 = vmatprep.mubr.f32.mxu0 0.0
        %v3522 = vand.u32 %v529, 4294901760
        %3523 = vmatmul.mubr.f32.gmra.mrb[0].mxu0 %v3522
        %v3524 = vpop.f32.mrb[0].mxu0
        %v3525 = vadd.f32 %v3075, %v3524
        %v3526 = vpop.f32.mrb[0].mxu0
        %3527 = vmatprep.mubr.f32.mxu0 0.0
        %v3528 = vand.u32 %v532, 4294901760
        %3529 = vmatmul.mubr.f32.gmra.mrb[0].mxu0 %v3528
        %v3530 = vpop.f32.mrb[0].mxu0
        %v3531 = vadd.f32 %v3081, %v3530
        %v3532 = vpop.f32.mrb[0].mxu0
        %3533 = vmatprep.mubr.f32.mxu0 0.0
        %v3534 = vand.u32 %v535, 4294901760
        %3535 = vmatmul.mubr.f32.gmra.mrb[0].mxu0 %v3534
        %v3536 = vpop.f32.mrb[0].mxu0
        %v3537 = vadd.f32 %v3087, %v3536
        %v3538 = vpop.f32.mrb[0].mxu0
        %3539 = vmatprep.mubr.f32.mxu0 0.0
        %v3540 = vand.u32 %v538, 4294901760
        %3541 = vmatmul.mubr.f32.gmra.mrb[0].mxu0 %v3540
        %v3542 = vpop.f32.mrb[0].mxu0
        %v3543 = vadd.f32 %v3093, %v3542
        %v3544 = vpop.f32.mrb[0].mxu0
        %3545 = vmatprep.mubr.f32.mxu0 0.0
        %v3546 = vand.u32 %v541, 4294901760
        %3547 = vmatmul.mubr.f32.gmra.mrb[0].mxu0 %v3546
        %v3548 = vpop.f32.mrb[0].mxu0
        %v3549 = vadd.f32 %v3099, %v3548
        %v3550 = vpop.f32.mrb[0].mxu0
        %3551 = vmatprep.mubr.f32.mxu0 0.0
        %v3552 = vand.u32 %v544, 4294901760
        %3553 = vmatmul.mubr.f32.gmra.mrb[0].mxu0 %v3552
        %v3554 = vpop.f32.mrb[0].mxu0
        %v3555 = vadd.f32 %v3105, %v3554
        %v3556 = vpop.f32.mrb[0].mxu0
        %3557 = vmatprep.mubr.f32.mxu0 0.0
        %v3558 = vand.u32 %v547, 4294901760
        %3559 = vmatmul.mubr.f32.gmra.mrb[0].mxu0 %v3558
        %v3560 = vpop.f32.mrb[0].mxu0
        %v3561 = vadd.f32 %v3111, %v3560
        %v3562 = vpop.f32.mrb[0].mxu0
        %3563 = vmatprep.mubr.f32.mxu0 0.0
        %v3564 = vand.u32 %v550, 4294901760
        %3565 = vmatmul.mubr.f32.gmra.mrb[0].mxu0 %v3564
        %v3566 = vpop.f32.mrb[0].mxu0
        %v3567 = vadd.f32 %v3117, %v3566
        %v3568 = vpop.f32.mrb[0].mxu0
        %3569 = vmatprep.mubr.f32.mxu0 0.0
        %v3570 = vand.u32 %v553, 4294901760
        %3571 = vmatmul.mubr.f32.gmra.mrb[0].mxu0 %v3570
        %v3572 = vpop.f32.mrb[0].mxu0
        %v3573 = vadd.f32 %v3123, %v3572
        %v3574 = vpop.f32.mrb[0].mxu0
        %3575 = vmatprep.mubr.f32.mxu0 0.0
        %v3576 = vand.u32 %v556, 4294901760
        %3577 = vmatmul.mubr.f32.gmra.mrb[0].mxu0 %v3576
        %v3578 = vpop.f32.mrb[0].mxu0
        %v3579 = vadd.f32 %v3129, %v3578
        %v3580 = vpop.f32.mrb[0].mxu0
        %3581 = vmatprep.mubr.f32.mxu0 0.0
        %v3582 = vand.u32 %v559, 4294901760
        %3583 = vmatmul.mubr.f32.gmra.mrb[0].mxu0 %v3582
        %v3584 = vpop.f32.mrb[0].mxu0
        %v3585 = vadd.f32 %v3135, %v3584
        %v3586 = vpop.f32.mrb[0].mxu0
        %3587 = vmatprep.mubr.f32.mxu0 0.0
        %v3588 = vand.u32 %v562, 4294901760
        %3589 = vmatmul.mubr.f32.gmra.mrb[0].mxu0 %v3588
        %v3590 = vpop.f32.mrb[0].mxu0
        %v3591 = vadd.f32 %v3141, %v3590
        %v3592 = vpop.f32.mrb[0].mxu0
        %3593 = vmatprep.mubr.f32.mxu0 0.0
        %v3594 = vand.u32 %v565, 4294901760
        %3595 = vmatmul.mubr.f32.gmra.mrb[0].mxu0 %v3594
        %v3596 = vpop.f32.mrb[0].mxu0
        %v3597 = vadd.f32 %v3147, %v3596
        %v3598 = vpop.f32.mrb[0].mxu0
        %3599 = vmatprep.mubr.f32.mxu0 0.0
        %v3600 = vand.u32 %v568, 4294901760
        %3601 = vmatmul.mubr.f32.gmra.mrb[0].mxu0 %v3600
        %v3602 = vpop.f32.mrb[0].mxu0
        %v3603 = vadd.f32 %v3153, %v3602
        %v3604 = vpop.f32.mrb[0].mxu0
        %3605 = vmatprep.mubr.f32.mxu0 0.0
        %v3606 = vand.u32 %v571, 4294901760
        %3607 = vmatmul.mubr.f32.gmra.mrb[0].mxu0 %v3606
        %v3608 = vpop.f32.mrb[0].mxu0
        %v3609 = vadd.f32 %v3159, %v3608
        %v3610 = vpop.f32.mrb[0].mxu0
        %3611 = vmatprep.mubr.f32.mxu0 0.0
        %v3612 = vand.u32 %v574, 4294901760
        %3613 = vmatmul.mubr.f32.gmra.mrb[0].mxu0 %v3612
        %v3614 = vpop.f32.mrb[0].mxu0
        %v3615 = vadd.f32 %v3165, %v3614
        %v3616 = vpop.f32.mrb[0].mxu0
        %3617 = vmatprep.mubr.f32.mxu0 0.0
        %v3618 = vand.u32 %v577, 4294901760
        %3619 = vmatmul.mubr.f32.gmra.mrb[0].mxu0 %v3618
        %v3620 = vpop.f32.mrb[0].mxu0
        %v3621 = vadd.f32 %v3171, %v3620
        %v3622 = vpop.f32.mrb[0].mxu0
        %3623 = vmatprep.mubr.f32.mxu0 0.0
        %v3624 = vand.u32 %v580, 4294901760
        %3625 = vmatmul.mubr.f32.gmra.mrb[0].mxu0 %v3624
        %v3626 = vpop.f32.mrb[0].mxu0
        %v3627 = vadd.f32 %v3177, %v3626
        %v3628 = vpop.f32.mrb[0].mxu0
        %3629 = vmatprep.mubr.f32.mxu0 0.0
        %v3630 = vand.u32 %v583, 4294901760
        %3631 = vmatmul.mubr.f32.gmra.mrb[0].mxu0 %v3630
        %v3632 = vpop.f32.mrb[0].mxu0
        %v3633 = vadd.f32 %v3183, %v3632
        %v3634 = vpop.f32.mrb[0].mxu0
        %3635 = vmatprep.mubr.f32.mxu0 0.0
        %v3636 = vand.u32 %v586, 4294901760
        %3637 = vmatmul.mubr.f32.gmra.mrb[0].mxu0 %v3636
        %v3638 = vpop.f32.mrb[0].mxu0
        %v3639 = vadd.f32 %v3189, %v3638
        %v3640 = vpop.f32.mrb[0].mxu0
        %3641 = vmatprep.mubr.f32.mxu0 0.0
        %v3642 = vand.u32 %v589, 4294901760
        %3643 = vmatmul.mubr.f32.gmra.mrb[0].mxu0 %v3642
        %v3644 = vpop.f32.mrb[0].mxu0
        %v3645 = vadd.f32 %v3195, %v3644
        %v3646 = vpop.f32.mrb[0].mxu0
        %3647 = vmatprep.mubr.f32.mxu0 0.0
        %v3648 = vand.u32 %v592, 4294901760
        %3649 = vmatmul.mubr.f32.gmra.mrb[0].mxu0 %v3648
        %v3650 = vpop.f32.mrb[0].mxu0
        %v3651 = vadd.f32 %v3201, %v3650
        %v3652 = vpop.f32.mrb[0].mxu0
        %3653 = vmatprep.mubr.f32.mxu0 0.0
        %v3654 = vand.u32 %v595, 4294901760
        %3655 = vmatmul.mubr.f32.gmra.mrb[0].mxu0 %v3654
        %v3656 = vpop.f32.mrb[0].mxu0
        %v3657 = vadd.f32 %v3207, %v3656
        %v3658 = vpop.f32.mrb[0].mxu0
        %3659 = vmatprep.mubr.f32.mxu0 0.0
        %v3660 = vand.u32 %v598, 4294901760
        %3661 = vmatmul.mubr.f32.gmra.mrb[0].mxu0 %v3660
        %v3662 = vpop.f32.mrb[0].mxu0
        %v3663 = vadd.f32 %v3213, %v3662
        %v3664 = vpop.f32.mrb[0].mxu0
        %3665 = vmatprep.mubr.f32.mxu0 0.0
        %v3666 = vand.u32 %v601, 4294901760
        %3667 = vmatmul.mubr.f32.gmra.mrb[0].mxu0 %v3666
        %v3668 = vpop.f32.mrb[0].mxu0
        %v3669 = vadd.f32 %v3219, %v3668
        %v3670 = vpop.f32.mrb[0].mxu0
        %3671 = vmatprep.mubr.f32.mxu0 0.0
        %v3672 = vand.u32 %v604, 4294901760
        %3673 = vmatmul.mubr.f32.gmra.mrb[0].mxu0 %v3672
        %v3674 = vpop.f32.mrb[0].mxu0
        %v3675 = vadd.f32 %v3225, %v3674
        %v3676 = vpop.f32.mrb[0].mxu0
        %3677 = vmatprep.mubr.f32.mxu0 0.0
        %v3678 = vand.u32 %v607, 4294901760
        %3679 = vmatmul.mubr.f32.gmra.mrb[0].mxu0 %v3678
        %v3680 = vpop.f32.mrb[0].mxu0
        %v3681 = vadd.f32 %v3231, %v3680
        %v3682 = vpop.f32.mrb[0].mxu0
        %3683 = vmatprep.mubr.f32.mxu0 0.0
        %v3684 = vand.u32 %v610, 4294901760
        %3685 = vmatmul.mubr.f32.gmra.mrb[0].mxu0 %v3684
        %v3686 = vpop.f32.mrb[0].mxu0
        %v3687 = vadd.f32 %v3237, %v3686
        %v3688 = vpop.f32.mrb[0].mxu0
        %3689 = vmatprep.mubr.f32.mxu0 0.0
        %v3690 = vand.u32 %v613, 4294901760
        %3691 = vmatmul.mubr.f32.gmra.mrb[0].mxu0 %v3690
        %v3692 = vpop.f32.mrb[0].mxu0
        %v3693 = vadd.f32 %v3243, %v3692
        %v3694 = vpop.f32.mrb[0].mxu0
        %3695 = vmatprep.mubr.f32.mxu0 0.0
        %v3696 = vand.u32 %v616, 4294901760
        %3697 = vmatmul.mubr.f32.gmra.mrb[0].mxu0 %v3696
        %v3698 = vpop.f32.mrb[0].mxu0
        %v3699 = vadd.f32 %v3249, %v3698
        %v3700 = vpop.f32.mrb[0].mxu0
        %3701 = vmatprep.mubr.f32.mxu0 0.0
        %v3702 = vand.u32 %v619, 4294901760
        %3703 = vmatmul.mubr.f32.gmra.mrb[0].mxu0 %v3702
        %v3704 = vpop.f32.mrb[0].mxu0
        %v3705 = vadd.f32 %v3255, %v3704
        %v3706 = vpop.f32.mrb[0].mxu0
        %3707 = vmatprep.mubr.f32.mxu0 0.0
        %v3708 = vand.u32 %v622, 4294901760
        %3709 = vmatmul.mubr.f32.gmra.mrb[0].mxu0 %v3708
        %v3710 = vpop.f32.mrb[0].mxu0
        %v3711 = vadd.f32 %v3261, %v3710
        %v3712 = vpop.f32.mrb[0].mxu0
        %3713 = vmatprep.mubr.f32.mxu0 0.0
        %v3714 = vand.u32 %v625, 4294901760
        %3715 = vmatmul.mubr.f32.gmra.mrb[0].mxu0 %v3714
        %v3716 = vpop.f32.mrb[0].mxu0
        %v3717 = vadd.f32 %v3267, %v3716
        %v3718 = vpop.f32.mrb[0].mxu0
        %3719 = vmatprep.mubr.f32.mxu0 0.0
        %v3720 = vand.u32 %v628, 4294901760
        %3721 = vmatmul.mubr.f32.gmra.mrb[0].mxu0 %v3720
        %v3722 = vpop.f32.mrb[0].mxu0
        %v3723 = vadd.f32 %v3273, %v3722
        %v3724 = vpop.f32.mrb[0].mxu0
        %3725 = vmatprep.mubr.f32.mxu0 0.0
        %v3726 = vand.u32 %v631, 4294901760
        %3727 = vmatmul.mubr.f32.gmra.mrb[0].mxu0 %v3726
        %v3728 = vpop.f32.mrb[0].mxu0
        %v3729 = vadd.f32 %v3279, %v3728
        %v3730 = vpop.f32.mrb[0].mxu0
        %3731 = vmatprep.mubr.f32.mxu0 0.0
        %v3732 = vand.u32 %v634, 4294901760
        %3733 = vmatmul.mubr.f32.gmra.mrb[0].mxu0 %v3732
        %v3734 = vpop.f32.mrb[0].mxu0
        %v3735 = vadd.f32 %v3285, %v3734
        %v3736 = vpop.f32.mrb[0].mxu0
        %3737 = vmatprep.mubr.f32.mxu0 0.0
        %v3738 = vand.u32 %v637, 4294901760
        %3739 = vmatmul.mubr.f32.gmra.mrb[0].mxu0 %v3738
        %v3740 = vpop.f32.mrb[0].mxu0
        %v3741 = vadd.f32 %v3291, %v3740
        %v3742 = vpop.f32.mrb[0].mxu0
        %3743 = vmatprep.mubr.f32.mxu0 0.0
        %v3744 = vand.u32 %v640, 4294901760
        %3745 = vmatmul.mubr.f32.gmra.mrb[0].mxu0 %v3744
        %v3746 = vpop.f32.mrb[0].mxu0
        %v3747 = vadd.f32 %v3297, %v3746
        %v3748 = vpop.f32.mrb[0].mxu0
        %3749 = vmatprep.mubr.f32.mxu0 0.0
        %v3750 = vand.u32 %v643, 4294901760
        %3751 = vmatmul.mubr.f32.gmra.mrb[0].mxu0 %v3750
        %v3752 = vpop.f32.mrb[0].mxu0
        %v3753 = vadd.f32 %v3303, %v3752
        %v3754 = vpop.f32.mrb[0].mxu0
        %3755 = vmatprep.mubr.f32.mxu0 0.0
        %v3756 = vand.u32 %v646, 4294901760
        %3757 = vmatmul.mubr.f32.gmra.mrb[0].mxu0 %v3756
        %v3758 = vpop.f32.mrb[0].mxu0
        %v3759 = vadd.f32 %v3309, %v3758
        %v3760 = vpop.f32.mrb[0].mxu0
        %3761 = vmatprep.mubr.f32.mxu0 0.0
        %v3762 = vand.u32 %v649, 4294901760
        %3763 = vmatmul.mubr.f32.gmra.mrb[0].mxu0 %v3762
        %v3764 = vpop.f32.mrb[0].mxu0
        %v3765 = vadd.f32 %v3315, %v3764
        %v3766 = vpop.f32.mrb[0].mxu0
        %3767 = vmatprep.mubr.f32.mxu0 0.0
        %v3768 = vand.u32 %v652, 4294901760
        %3769 = vmatmul.mubr.f32.gmra.mrb[0].mxu0 %v3768
        %v3770 = vpop.f32.mrb[0].mxu0
        %v3771 = vadd.f32 %v3321, %v3770
        %v3772 = vpop.f32.mrb[0].mxu0
        %3773 = vmatprep.mubr.f32.mxu0 0.0
        %v3774 = vand.u32 %v655, 4294901760
        %3775 = vmatmul.mubr.f32.gmra.mrb[0].mxu0 %v3774
        %v3776 = vpop.f32.mrb[0].mxu0
        %v3777 = vadd.f32 %v3327, %v3776
        %v3778 = vpop.f32.mrb[0].mxu0
        %3779 = vmatprep.mubr.f32.mxu0 0.0
        %v3780 = vand.u32 %v658, 4294901760
        %3781 = vmatmul.mubr.f32.gmra.mrb[0].mxu0 %v3780
        %v3782 = vpop.f32.mrb[0].mxu0
        %v3783 = vadd.f32 %v3333, %v3782
        %v3784 = vpop.f32.mrb[0].mxu0
        %3785 = vmatprep.mubr.f32.mxu0 0.0
        %v3786 = vand.u32 %v661, 4294901760
        %3787 = vmatmul.mubr.f32.gmra.mrb[0].mxu0 %v3786
        %v3788 = vpop.f32.mrb[0].mxu0
        %v3789 = vadd.f32 %v3339, %v3788
        %v3790 = vpop.f32.mrb[0].mxu0
        %3791 = vmatprep.mubr.f32.mxu0 0.0
        %v3792 = vand.u32 %v664, 4294901760
        %3793 = vmatmul.mubr.f32.gmra.mrb[0].mxu0 %v3792
        %v3794 = vpop.f32.mrb[0].mxu0
        %v3795 = vadd.f32 %v3345, %v3794
        %v3796 = vpop.f32.mrb[0].mxu0
        %3797 = vmatprep.mubr.f32.mxu0 0.0
        %v3798 = vand.u32 %v667, 4294901760
        %3799 = vmatmul.mubr.f32.gmra.mrb[0].mxu0 %v3798
        %v3800 = vpop.f32.mrb[0].mxu0
        %v3801 = vadd.f32 %v3351, %v3800
        %v3802 = vpop.f32.mrb[0].mxu0
        %3803 = vmatprep.mubr.f32.mxu0 0.0
        %v3804 = vand.u32 %v670, 4294901760
        %3805 = vmatmul.mubr.f32.gmra.mrb[0].mxu0 %v3804
        %v3806 = vpop.f32.mrb[0].mxu0
        %v3807 = vadd.f32 %v3357, %v3806
        %v3808 = vpop.f32.mrb[0].mxu0
        %3809 = vmatprep.mubr.f32.mxu0 0.0
        %v3810 = vand.u32 %v673, 4294901760
        %3811 = vmatmul.mubr.f32.gmra.mrb[0].mxu0 %v3810
        %v3812 = vpop.f32.mrb[0].mxu0
        %v3813 = vadd.f32 %v3363, %v3812
        %v3814 = vpop.f32.mrb[0].mxu0
        %3815 = vmatprep.mubr.f32.mxu0 0.0
        %v3816 = vand.u32 %v676, 4294901760
        %3817 = vmatmul.mubr.f32.gmra.mrb[0].mxu0 %v3816
        %v3818 = vpop.f32.mrb[0].mxu0
        %v3819 = vadd.f32 %v3369, %v3818
        %v3820 = vpop.f32.mrb[0].mxu0
        %3821 = vmatprep.mubr.f32.mxu0 0.0
        %v3822 = vand.u32 %v679, 4294901760
        %3823 = vmatmul.mubr.f32.gmra.mrb[0].mxu0 %v3822
        %v3824 = vpop.f32.mrb[0].mxu0
        %v3825 = vadd.f32 %v3375, %v3824
        %v3826 = vpop.f32.mrb[0].mxu0
        %3827 = vmatprep.mubr.f32.mxu0 0.0
        %v3828 = vand.u32 %v682, 4294901760
        %3829 = vmatmul.mubr.f32.gmra.mrb[0].mxu0 %v3828
        %v3830 = vpop.f32.mrb[0].mxu0
        %v3831 = vadd.f32 %v3381, %v3830
        %v3832 = vpop.f32.mrb[0].mxu0
        %3833 = vmatprep.mubr.f32.mxu0 0.0
        %v3834 = vand.u32 %v685, 4294901760
        %3835 = vmatmul.mubr.f32.gmra.mrb[0].mxu0 %v3834
        %v3836 = vpop.f32.mrb[0].mxu0
        %v3837 = vadd.f32 %v3387, %v3836
        %v3838 = vpop.f32.mrb[0].mxu0
        %3839 = vmatprep.mubr.f32.mxu0 0.0
        %v3840 = vand.u32 %v688, 4294901760
        %3841 = vmatmul.mubr.f32.gmra.mrb[0].mxu0 %v3840
        %v3842 = vpop.f32.mrb[0].mxu0
        %v3843 = vadd.f32 %v3393, %v3842
        %v3844 = vpop.f32.mrb[0].mxu0
        %3845 = vmatprep.mubr.f32.mxu0 0.0
        %v3846 = vand.u32 %v691, 4294901760
        %3847 = vmatmul.mubr.f32.gmra.mrb[0].mxu0 %v3846
        %v3848 = vpop.f32.mrb[0].mxu0
        %v3849 = vadd.f32 %v3399, %v3848
        %v3850 = vpop.f32.mrb[0].mxu0
        %3851 = vdwg.mxu0
        %v3852 = vmax.f32 %v3471, 0.0
        %v3853 = vmax.f32 %v3477, 0.0
        %v3854 = vmax.f32 %v3483, 0.0
        %v3855 = vmax.f32 %v3489, 0.0
        %v3856 = vmax.f32 %v3495, 0.0
        %v3857 = vmax.f32 %v3501, 0.0
        %v3858 = vmax.f32 %v3507, 0.0
        %v3859 = vmax.f32 %v3513, 0.0
        %v3860 = vmax.f32 %v3519, 0.0
        %v3861 = vmax.f32 %v3525, 0.0
        %v3862 = vmax.f32 %v3531, 0.0
        %v3863 = vmax.f32 %v3537, 0.0
        %v3864 = vmax.f32 %v3543, 0.0
        %v3865 = vmax.f32 %v3549, 0.0
        %v3866 = vmax.f32 %v3555, 0.0
        %v3867 = vmax.f32 %v3561, 0.0
        %v3868 = vmax.f32 %v3567, 0.0
        %v3869 = vmax.f32 %v3573, 0.0
        %v3870 = vmax.f32 %v3579, 0.0
        %v3871 = vmax.f32 %v3585, 0.0
        %v3872 = vmax.f32 %v3591, 0.0
        %v3873 = vmax.f32 %v3597, 0.0
        %v3874 = vmax.f32 %v3603, 0.0
        %v3875 = vmax.f32 %v3609, 0.0
        %v3876 = vmax.f32 %v3615, 0.0
        %v3877 = vmax.f32 %v3621, 0.0
        %v3878 = vmax.f32 %v3627, 0.0
        %v3879 = vmax.f32 %v3633, 0.0
        %v3880 = vmax.f32 %v3639, 0.0
        %v3881 = vmax.f32 %v3645, 0.0
        %v3882 = vmax.f32 %v3651, 0.0
        %v3883 = vmax.f32 %v3657, 0.0
        %v3884 = vmax.f32 %v3663, 0.0
        %v3885 = vmax.f32 %v3669, 0.0
        %v3886 = vmax.f32 %v3675, 0.0
        %v3887 = vmax.f32 %v3681, 0.0
        %v3888 = vmax.f32 %v3687, 0.0
        %v3889 = vmax.f32 %v3693, 0.0
        %v3890 = vmax.f32 %v3699, 0.0
        %v3891 = vmax.f32 %v3705, 0.0
        %v3892 = vmax.f32 %v3711, 0.0
        %v3893 = vmax.f32 %v3717, 0.0
        %v3894 = vmax.f32 %v3723, 0.0
        %v3895 = vmax.f32 %v3729, 0.0
        %v3896 = vmax.f32 %v3735, 0.0
        %v3897 = vmax.f32 %v3741, 0.0
        %v3898 = vmax.f32 %v3747, 0.0
        %v3899 = vmax.f32 %v3753, 0.0
        %v3900 = vmax.f32 %v3759, 0.0
        %v3901 = vmax.f32 %v3765, 0.0
        %v3902 = vmax.f32 %v3771, 0.0
        %v3903 = vmax.f32 %v3777, 0.0
        %v3904 = vmax.f32 %v3783, 0.0
        %v3905 = vmax.f32 %v3789, 0.0
        %v3906 = vmax.f32 %v3795, 0.0
        %v3907 = vmax.f32 %v3801, 0.0
        %v3908 = vmax.f32 %v3807, 0.0
        %v3909 = vmax.f32 %v3813, 0.0
        %v3910 = vmax.f32 %v3819, 0.0
        %v3911 = vmax.f32 %v3825, 0.0
        %v3912 = vmax.f32 %v3831, 0.0
        %v3913 = vmax.f32 %v3837, 0.0
        %v3914 = vmax.f32 %v3843, 0.0
        %v3915 = vmax.f32 %v3849, 0.0
        %v3917 = vlaneseq
        %v3918 = vshrl.u32 %v3917, 7
        %v3919 = vsub.s32 0, %v3918
        %v3920 = vrot.slane %v493, %v3919
        %3922 = vmatprep.subr.mxu0 0.0
        %v3923 = vand.u32 %v476, 4294901760
        %3924 = vmatpush1.msra.mxu0 %v3923
        %3925 = vmatprep.subr.mxu0 0.0
        %v3926 = vand.u32 %v477, 4294901760
        %3927 = vmatpush1.msra.mxu0 %v3926
        %3928 = vmatprep.subr.mxu0 0.0
        %v3929 = vand.u32 %v478, 4294901760
        %3930 = vmatpush1.msra.mxu0 %v3929
        %3931 = vmatprep.subr.mxu0 0.0
        %v3932 = vand.u32 %v479, 4294901760
        %3933 = vmatpush1.msra.mxu0 %v3932
        %3934 = vmatprep.subr.mxu0 0.0
        %v3935 = vand.u32 %v480, 4294901760
        %3936 = vmatpush1.msra.mxu0 %v3935
        %3937 = vmatprep.subr.mxu0 0.0
        %v3938 = vand.u32 %v481, 4294901760
        %3939 = vmatpush1.msra.mxu0 %v3938
        %3940 = vmatprep.subr.mxu0 0.0
        %v3941 = vand.u32 %v482, 4294901760
        %3942 = vmatpush1.msra.mxu0 %v3941
        %3943 = vmatprep.subr.mxu0 0.0
        %v3944 = vand.u32 %v483, 4294901760
        %3945 = vmatpush1.msra.mxu0 %v3944
        %3946 = vmatprep.subr.mxu0 0.0
        %v3947 = vand.u32 %v484, 4294901760
        %3948 = vmatpush1.msra.mxu0 %v3947
        %3949 = vmatprep.subr.mxu0 0.0
        %v3950 = vand.u32 %v485, 4294901760
        %3951 = vmatpush1.msra.mxu0 %v3950
        %3952 = vmatprep.subr.mxu0 0.0
        %v3953 = vand.u32 %v486, 4294901760
        %3954 = vmatpush1.msra.mxu0 %v3953
        %3955 = vmatprep.subr.mxu0 0.0
        %v3956 = vand.u32 %v487, 4294901760
        %3957 = vmatpush1.msra.mxu0 %v3956
        %3958 = vmatprep.subr.mxu0 0.0
        %v3959 = vand.u32 %v488, 4294901760
        %3960 = vmatpush1.msra.mxu0 %v3959
        %3961 = vmatprep.subr.mxu0 0.0
        %v3962 = vand.u32 %v489, 4294901760
        %3963 = vmatpush1.msra.mxu0 %v3962
        %3964 = vmatprep.subr.mxu0 0.0
        %v3965 = vand.u32 %v490, 4294901760
        %3966 = vmatpush1.msra.mxu0 %v3965
        %3967 = vmatprep.subr.mxu0 0.0
        %v3968 = vand.u32 %v491, 4294901760
        %3969 = vmatpush1.msra.mxu0 %v3968
        %3970 = vmatprep.subr.mxu0 0.0
        %3971 = vmatpush1.msra.mxu0 0.0
        %3972 = vmatprep.subr.mxu0 0.0
        %3973 = vmatpush1.msra.mxu0 0.0
        %3974 = vmatprep.subr.mxu0 0.0
        %3975 = vmatpush1.msra.mxu0 0.0
        %3976 = vmatprep.subr.mxu0 0.0
        %3977 = vmatpush1.msra.mxu0 0.0
        %3978 = vmatprep.subr.mxu0 0.0
        %3979 = vmatpush1.msra.mxu0 0.0
        %3980 = vmatprep.subr.mxu0 0.0
        %3981 = vmatpush1.msra.mxu0 0.0
        %3982 = vmatprep.subr.mxu0 0.0
        %3983 = vmatpush1.msra.mxu0 0.0
        %3984 = vmatprep.subr.mxu0 0.0
        %3985 = vmatpush1.msra.mxu0 0.0
        %3986 = vmatprep.subr.mxu0 0.0
        %3987 = vmatpush1.msra.mxu0 0.0
        %3988 = vmatprep.subr.mxu0 0.0
        %3989 = vmatpush1.msra.mxu0 0.0
        %3990 = vmatprep.subr.mxu0 0.0
        %3991 = vmatpush1.msra.mxu0 0.0
        %3992 = vmatprep.subr.mxu0 0.0
        %3993 = vmatpush1.msra.mxu0 0.0
        %3994 = vmatprep.subr.mxu0 0.0
        %3995 = vmatpush1.msra.mxu0 0.0
        %3996 = vmatprep.subr.mxu0 0.0
        %3997 = vmatpush1.msra.mxu0 0.0
        %3998 = vmatprep.subr.mxu0 0.0
        %3999 = vmatpush1.msra.mxu0 0.0
        %4000 = vmatprep.subr.mxu0 0.0
        %4001 = vmatpush1.msra.mxu0 0.0
        %4002 = vmatprep.mubr.f32.mxu0 0.0
        %v4003 = vand.u32 %v3852, 4294901760
        %v4004 = vsub.f32 %v3852, %v4003
        %v4005 = vand.u32 %v4004, 4294901760
        %v4006 = vsub.f32 %v4004, %v4005
        %v4007 = vand.u32 %v4006, 4294901760
        %4008 = vmatmul.mubr.f32.gmra.mrb[0].mxu0 %v4007
        %v4009 = vpop.f32.mrb[0].mxu0
        %v4010 = vadd.f32 %v3920, %v4009
        %v4011 = vpop.f32.mrb[0].mxu0
        %4012 = vmatprep.mubr.f32.mxu0 0.0
        %v4013 = vand.u32 %v3853, 4294901760
        %v4014 = vsub.f32 %v3853, %v4013
        %v4015 = vand.u32 %v4014, 4294901760
        %v4016 = vsub.f32 %v4014, %v4015
        %v4017 = vand.u32 %v4016, 4294901760
        %4018 = vmatmul.mubr.f32.gmra.mrb[0].mxu0 %v4017
        %v4019 = vpop.f32.mrb[0].mxu0
        %v4020 = vadd.f32 %v3920, %v4019
        %v4021 = vpop.f32.mrb[0].mxu0
        %4022 = vmatprep.mubr.f32.mxu0 0.0
        %v4023 = vand.u32 %v3854, 4294901760
        %v4024 = vsub.f32 %v3854, %v4023
        %v4025 = vand.u32 %v4024, 4294901760
        %v4026 = vsub.f32 %v4024, %v4025
        %v4027 = vand.u32 %v4026, 4294901760
        %4028 = vmatmul.mubr.f32.gmra.mrb[0].mxu0 %v4027
        %v4029 = vpop.f32.mrb[0].mxu0
        %v4030 = vadd.f32 %v3920, %v4029
        %v4031 = vpop.f32.mrb[0].mxu0
        %4032 = vmatprep.mubr.f32.mxu0 0.0
        %v4033 = vand.u32 %v3855, 4294901760
        %v4034 = vsub.f32 %v3855, %v4033
        %v4035 = vand.u32 %v4034, 4294901760
        %v4036 = vsub.f32 %v4034, %v4035
        %v4037 = vand.u32 %v4036, 4294901760
        %4038 = vmatmul.mubr.f32.gmra.mrb[0].mxu0 %v4037
        %v4039 = vpop.f32.mrb[0].mxu0
        %v4040 = vadd.f32 %v3920, %v4039
        %v4041 = vpop.f32.mrb[0].mxu0
        %4042 = vmatprep.mubr.f32.mxu0 0.0
        %v4043 = vand.u32 %v3856, 4294901760
        %v4044 = vsub.f32 %v3856, %v4043
        %v4045 = vand.u32 %v4044, 4294901760
        %v4046 = vsub.f32 %v4044, %v4045
        %v4047 = vand.u32 %v4046, 4294901760
        %4048 = vmatmul.mubr.f32.gmra.mrb[0].mxu0 %v4047
        %v4049 = vpop.f32.mrb[0].mxu0
        %v4050 = vadd.f32 %v3920, %v4049
        %v4051 = vpop.f32.mrb[0].mxu0
        %4052 = vmatprep.mubr.f32.mxu0 0.0
        %v4053 = vand.u32 %v3857, 4294901760
        %v4054 = vsub.f32 %v3857, %v4053
        %v4055 = vand.u32 %v4054, 4294901760
        %v4056 = vsub.f32 %v4054, %v4055
        %v4057 = vand.u32 %v4056, 4294901760
        %4058 = vmatmul.mubr.f32.gmra.mrb[0].mxu0 %v4057
        %v4059 = vpop.f32.mrb[0].mxu0
        %v4060 = vadd.f32 %v3920, %v4059
        %v4061 = vpop.f32.mrb[0].mxu0
        %4062 = vmatprep.mubr.f32.mxu0 0.0
        %v4063 = vand.u32 %v3858, 4294901760
        %v4064 = vsub.f32 %v3858, %v4063
        %v4065 = vand.u32 %v4064, 4294901760
        %v4066 = vsub.f32 %v4064, %v4065
        %v4067 = vand.u32 %v4066, 4294901760
        %4068 = vmatmul.mubr.f32.gmra.mrb[0].mxu0 %v4067
        %v4069 = vpop.f32.mrb[0].mxu0
        %v4070 = vadd.f32 %v3920, %v4069
        %v4071 = vpop.f32.mrb[0].mxu0
        %4072 = vmatprep.mubr.f32.mxu0 0.0
        %v4073 = vand.u32 %v3859, 4294901760
        %v4074 = vsub.f32 %v3859, %v4073
        %v4075 = vand.u32 %v4074, 4294901760
        %v4076 = vsub.f32 %v4074, %v4075
        %v4077 = vand.u32 %v4076, 4294901760
        %4078 = vmatmul.mubr.f32.gmra.mrb[0].mxu0 %v4077
        %v4079 = vpop.f32.mrb[0].mxu0
        %v4080 = vadd.f32 %v3920, %v4079
        %v4081 = vpop.f32.mrb[0].mxu0
        %4082 = vmatprep.mubr.f32.mxu0 0.0
        %v4083 = vand.u32 %v3860, 4294901760
        %v4084 = vsub.f32 %v3860, %v4083
        %v4085 = vand.u32 %v4084, 4294901760
        %v4086 = vsub.f32 %v4084, %v4085
        %v4087 = vand.u32 %v4086, 4294901760
        %4088 = vmatmul.mubr.f32.gmra.mrb[0].mxu0 %v4087
        %v4089 = vpop.f32.mrb[0].mxu0
        %v4090 = vadd.f32 %v3920, %v4089
        %v4091 = vpop.f32.mrb[0].mxu0
        %4092 = vmatprep.mubr.f32.mxu0 0.0
        %v4093 = vand.u32 %v3861, 4294901760
        %v4094 = vsub.f32 %v3861, %v4093
        %v4095 = vand.u32 %v4094, 4294901760
        %v4096 = vsub.f32 %v4094, %v4095
        %v4097 = vand.u32 %v4096, 4294901760
        %4098 = vmatmul.mubr.f32.gmra.mrb[0].mxu0 %v4097
        %v4099 = vpop.f32.mrb[0].mxu0
        %v4100 = vadd.f32 %v3920, %v4099
        %v4101 = vpop.f32.mrb[0].mxu0
        %4102 = vmatprep.mubr.f32.mxu0 0.0
        %v4103 = vand.u32 %v3862, 4294901760
        %v4104 = vsub.f32 %v3862, %v4103
        %v4105 = vand.u32 %v4104, 4294901760
        %v4106 = vsub.f32 %v4104, %v4105
        %v4107 = vand.u32 %v4106, 4294901760
        %4108 = vmatmul.mubr.f32.gmra.mrb[0].mxu0 %v4107
        %v4109 = vpop.f32.mrb[0].mxu0
        %v4110 = vadd.f32 %v3920, %v4109
        %v4111 = vpop.f32.mrb[0].mxu0
        %4112 = vmatprep.mubr.f32.mxu0 0.0
        %v4113 = vand.u32 %v3863, 4294901760
        %v4114 = vsub.f32 %v3863, %v4113
        %v4115 = vand.u32 %v4114, 4294901760
        %v4116 = vsub.f32 %v4114, %v4115
        %v4117 = vand.u32 %v4116, 4294901760
        %4118 = vmatmul.mubr.f32.gmra.mrb[0].mxu0 %v4117
        %v4119 = vpop.f32.mrb[0].mxu0
        %v4120 = vadd.f32 %v3920, %v4119
        %v4121 = vpop.f32.mrb[0].mxu0
        %4122 = vmatprep.mubr.f32.mxu0 0.0
        %v4123 = vand.u32 %v3864, 4294901760
        %v4124 = vsub.f32 %v3864, %v4123
        %v4125 = vand.u32 %v4124, 4294901760
        %v4126 = vsub.f32 %v4124, %v4125
        %v4127 = vand.u32 %v4126, 4294901760
        %4128 = vmatmul.mubr.f32.gmra.mrb[0].mxu0 %v4127
        %v4129 = vpop.f32.mrb[0].mxu0
        %v4130 = vadd.f32 %v3920, %v4129
        %v4131 = vpop.f32.mrb[0].mxu0
        %4132 = vmatprep.mubr.f32.mxu0 0.0
        %v4133 = vand.u32 %v3865, 4294901760
        %v4134 = vsub.f32 %v3865, %v4133
        %v4135 = vand.u32 %v4134, 4294901760
        %v4136 = vsub.f32 %v4134, %v4135
        %v4137 = vand.u32 %v4136, 4294901760
        %4138 = vmatmul.mubr.f32.gmra.mrb[0].mxu0 %v4137
        %v4139 = vpop.f32.mrb[0].mxu0
        %v4140 = vadd.f32 %v3920, %v4139
        %v4141 = vpop.f32.mrb[0].mxu0
        %4142 = vmatprep.mubr.f32.mxu0 0.0
        %v4143 = vand.u32 %v3866, 4294901760
        %v4144 = vsub.f32 %v3866, %v4143
        %v4145 = vand.u32 %v4144, 4294901760
        %v4146 = vsub.f32 %v4144, %v4145
        %v4147 = vand.u32 %v4146, 4294901760
        %4148 = vmatmul.mubr.f32.gmra.mrb[0].mxu0 %v4147
        %v4149 = vpop.f32.mrb[0].mxu0
        %v4150 = vadd.f32 %v3920, %v4149
        %v4151 = vpop.f32.mrb[0].mxu0
        %4152 = vmatprep.mubr.f32.mxu0 0.0
        %v4153 = vand.u32 %v3867, 4294901760
        %v4154 = vsub.f32 %v3867, %v4153
        %v4155 = vand.u32 %v4154, 4294901760
        %v4156 = vsub.f32 %v4154, %v4155
        %v4157 = vand.u32 %v4156, 4294901760
        %4158 = vmatmul.mubr.f32.gmra.mrb[0].mxu0 %v4157
        %v4159 = vpop.f32.mrb[0].mxu0
        %v4160 = vadd.f32 %v3920, %v4159
        %v4161 = vpop.f32.mrb[0].mxu0
        %4162 = vmatprep.mubr.f32.mxu0 0.0
        %v4163 = vand.u32 %v3868, 4294901760
        %v4164 = vsub.f32 %v3868, %v4163
        %v4165 = vand.u32 %v4164, 4294901760
        %v4166 = vsub.f32 %v4164, %v4165
        %v4167 = vand.u32 %v4166, 4294901760
        %4168 = vmatmul.mubr.f32.gmra.mrb[0].mxu0 %v4167
        %v4169 = vpop.f32.mrb[0].mxu0
        %v4170 = vadd.f32 %v3920, %v4169
        %v4171 = vpop.f32.mrb[0].mxu0
        %4172 = vmatprep.mubr.f32.mxu0 0.0
        %v4173 = vand.u32 %v3869, 4294901760
        %v4174 = vsub.f32 %v3869, %v4173
        %v4175 = vand.u32 %v4174, 4294901760
        %v4176 = vsub.f32 %v4174, %v4175
        %v4177 = vand.u32 %v4176, 4294901760
        %4178 = vmatmul.mubr.f32.gmra.mrb[0].mxu0 %v4177
        %v4179 = vpop.f32.mrb[0].mxu0
        %v4180 = vadd.f32 %v3920, %v4179
        %v4181 = vpop.f32.mrb[0].mxu0
        %4182 = vmatprep.mubr.f32.mxu0 0.0
        %v4183 = vand.u32 %v3870, 4294901760
        %v4184 = vsub.f32 %v3870, %v4183
        %v4185 = vand.u32 %v4184, 4294901760
        %v4186 = vsub.f32 %v4184, %v4185
        %v4187 = vand.u32 %v4186, 4294901760
        %4188 = vmatmul.mubr.f32.gmra.mrb[0].mxu0 %v4187
        %v4189 = vpop.f32.mrb[0].mxu0
        %v4190 = vadd.f32 %v3920, %v4189
        %v4191 = vpop.f32.mrb[0].mxu0
        %4192 = vmatprep.mubr.f32.mxu0 0.0
        %v4193 = vand.u32 %v3871, 4294901760
        %v4194 = vsub.f32 %v3871, %v4193
        %v4195 = vand.u32 %v4194, 4294901760
        %v4196 = vsub.f32 %v4194, %v4195
        %v4197 = vand.u32 %v4196, 4294901760
        %4198 = vmatmul.mubr.f32.gmra.mrb[0].mxu0 %v4197
        %v4199 = vpop.f32.mrb[0].mxu0
        %v4200 = vadd.f32 %v3920, %v4199
        %v4201 = vpop.f32.mrb[0].mxu0
        %4202 = vmatprep.mubr.f32.mxu0 0.0
        %v4203 = vand.u32 %v3872, 4294901760
        %v4204 = vsub.f32 %v3872, %v4203
        %v4205 = vand.u32 %v4204, 4294901760
        %v4206 = vsub.f32 %v4204, %v4205
        %v4207 = vand.u32 %v4206, 4294901760
        %4208 = vmatmul.mubr.f32.gmra.mrb[0].mxu0 %v4207
        %v4209 = vpop.f32.mrb[0].mxu0
        %v4210 = vadd.f32 %v3920, %v4209
        %v4211 = vpop.f32.mrb[0].mxu0
        %4212 = vmatprep.mubr.f32.mxu0 0.0
        %v4213 = vand.u32 %v3873, 4294901760
        %v4214 = vsub.f32 %v3873, %v4213
        %v4215 = vand.u32 %v4214, 4294901760
        %v4216 = vsub.f32 %v4214, %v4215
        %v4217 = vand.u32 %v4216, 4294901760
        %4218 = vmatmul.mubr.f32.gmra.mrb[0].mxu0 %v4217
        %v4219 = vpop.f32.mrb[0].mxu0
        %v4220 = vadd.f32 %v3920, %v4219
        %v4221 = vpop.f32.mrb[0].mxu0
        %4222 = vmatprep.mubr.f32.mxu0 0.0
        %v4223 = vand.u32 %v3874, 4294901760
        %v4224 = vsub.f32 %v3874, %v4223
        %v4225 = vand.u32 %v4224, 4294901760
        %v4226 = vsub.f32 %v4224, %v4225
        %v4227 = vand.u32 %v4226, 4294901760
        %4228 = vmatmul.mubr.f32.gmra.mrb[0].mxu0 %v4227
        %v4229 = vpop.f32.mrb[0].mxu0
        %v4230 = vadd.f32 %v3920, %v4229
        %v4231 = vpop.f32.mrb[0].mxu0
        %4232 = vmatprep.mubr.f32.mxu0 0.0
        %v4233 = vand.u32 %v3875, 4294901760
        %v4234 = vsub.f32 %v3875, %v4233
        %v4235 = vand.u32 %v4234, 4294901760
        %v4236 = vsub.f32 %v4234, %v4235
        %v4237 = vand.u32 %v4236, 4294901760
        %4238 = vmatmul.mubr.f32.gmra.mrb[0].mxu0 %v4237
        %v4239 = vpop.f32.mrb[0].mxu0
        %v4240 = vadd.f32 %v3920, %v4239
        %v4241 = vpop.f32.mrb[0].mxu0
        %4242 = vmatprep.mubr.f32.mxu0 0.0
        %v4243 = vand.u32 %v3876, 4294901760
        %v4244 = vsub.f32 %v3876, %v4243
        %v4245 = vand.u32 %v4244, 4294901760
        %v4246 = vsub.f32 %v4244, %v4245
        %v4247 = vand.u32 %v4246, 4294901760
        %4248 = vmatmul.mubr.f32.gmra.mrb[0].mxu0 %v4247
        %v4249 = vpop.f32.mrb[0].mxu0
        %v4250 = vadd.f32 %v3920, %v4249
        %v4251 = vpop.f32.mrb[0].mxu0
        %4252 = vmatprep.mubr.f32.mxu0 0.0
        %v4253 = vand.u32 %v3877, 4294901760
        %v4254 = vsub.f32 %v3877, %v4253
        %v4255 = vand.u32 %v4254, 4294901760
        %v4256 = vsub.f32 %v4254, %v4255
        %v4257 = vand.u32 %v4256, 4294901760
        %4258 = vmatmul.mubr.f32.gmra.mrb[0].mxu0 %v4257
        %v4259 = vpop.f32.mrb[0].mxu0
        %v4260 = vadd.f32 %v3920, %v4259
        %v4261 = vpop.f32.mrb[0].mxu0
        %4262 = vmatprep.mubr.f32.mxu0 0.0
        %v4263 = vand.u32 %v3878, 4294901760
        %v4264 = vsub.f32 %v3878, %v4263
        %v4265 = vand.u32 %v4264, 4294901760
        %v4266 = vsub.f32 %v4264, %v4265
        %v4267 = vand.u32 %v4266, 4294901760
        %4268 = vmatmul.mubr.f32.gmra.mrb[0].mxu0 %v4267
        %v4269 = vpop.f32.mrb[0].mxu0
        %v4270 = vadd.f32 %v3920, %v4269
        %v4271 = vpop.f32.mrb[0].mxu0
        %4272 = vmatprep.mubr.f32.mxu0 0.0
        %v4273 = vand.u32 %v3879, 4294901760
        %v4274 = vsub.f32 %v3879, %v4273
        %v4275 = vand.u32 %v4274, 4294901760
        %v4276 = vsub.f32 %v4274, %v4275
        %v4277 = vand.u32 %v4276, 4294901760
        %4278 = vmatmul.mubr.f32.gmra.mrb[0].mxu0 %v4277
        %v4279 = vpop.f32.mrb[0].mxu0
        %v4280 = vadd.f32 %v3920, %v4279
        %v4281 = vpop.f32.mrb[0].mxu0
        %4282 = vmatprep.mubr.f32.mxu0 0.0
        %v4283 = vand.u32 %v3880, 4294901760
        %v4284 = vsub.f32 %v3880, %v4283
        %v4285 = vand.u32 %v4284, 4294901760
        %v4286 = vsub.f32 %v4284, %v4285
        %v4287 = vand.u32 %v4286, 4294901760
        %4288 = vmatmul.mubr.f32.gmra.mrb[0].mxu0 %v4287
        %v4289 = vpop.f32.mrb[0].mxu0
        %v4290 = vadd.f32 %v3920, %v4289
        %v4291 = vpop.f32.mrb[0].mxu0
        %4292 = vmatprep.mubr.f32.mxu0 0.0
        %v4293 = vand.u32 %v3881, 4294901760
        %v4294 = vsub.f32 %v3881, %v4293
        %v4295 = vand.u32 %v4294, 4294901760
        %v4296 = vsub.f32 %v4294, %v4295
        %v4297 = vand.u32 %v4296, 4294901760
        %4298 = vmatmul.mubr.f32.gmra.mrb[0].mxu0 %v4297
        %v4299 = vpop.f32.mrb[0].mxu0
        %v4300 = vadd.f32 %v3920, %v4299
        %v4301 = vpop.f32.mrb[0].mxu0
        %4302 = vmatprep.mubr.f32.mxu0 0.0
        %v4303 = vand.u32 %v3882, 4294901760
        %v4304 = vsub.f32 %v3882, %v4303
        %v4305 = vand.u32 %v4304, 4294901760
        %v4306 = vsub.f32 %v4304, %v4305
        %v4307 = vand.u32 %v4306, 4294901760
        %4308 = vmatmul.mubr.f32.gmra.mrb[0].mxu0 %v4307
        %v4309 = vpop.f32.mrb[0].mxu0
        %v4310 = vadd.f32 %v3920, %v4309
        %v4311 = vpop.f32.mrb[0].mxu0
        %4312 = vmatprep.mubr.f32.mxu0 0.0
        %v4313 = vand.u32 %v3883, 4294901760
        %v4314 = vsub.f32 %v3883, %v4313
        %v4315 = vand.u32 %v4314, 4294901760
        %v4316 = vsub.f32 %v4314, %v4315
        %v4317 = vand.u32 %v4316, 4294901760
        %4318 = vmatmul.mubr.f32.gmra.mrb[0].mxu0 %v4317
        %v4319 = vpop.f32.mrb[0].mxu0
        %v4320 = vadd.f32 %v3920, %v4319
        %v4321 = vpop.f32.mrb[0].mxu0
        %4322 = vmatprep.mubr.f32.mxu0 0.0
        %v4323 = vand.u32 %v3884, 4294901760
        %v4324 = vsub.f32 %v3884, %v4323
        %v4325 = vand.u32 %v4324, 4294901760
        %v4326 = vsub.f32 %v4324, %v4325
        %v4327 = vand.u32 %v4326, 4294901760
        %4328 = vmatmul.mubr.f32.gmra.mrb[0].mxu0 %v4327
        %v4329 = vpop.f32.mrb[0].mxu0
        %v4330 = vadd.f32 %v3920, %v4329
        %v4331 = vpop.f32.mrb[0].mxu0
        %4332 = vmatprep.mubr.f32.mxu0 0.0
        %v4333 = vand.u32 %v3885, 4294901760
        %v4334 = vsub.f32 %v3885, %v4333
        %v4335 = vand.u32 %v4334, 4294901760
        %v4336 = vsub.f32 %v4334, %v4335
        %v4337 = vand.u32 %v4336, 4294901760
        %4338 = vmatmul.mubr.f32.gmra.mrb[0].mxu0 %v4337
        %v4339 = vpop.f32.mrb[0].mxu0
        %v4340 = vadd.f32 %v3920, %v4339
        %v4341 = vpop.f32.mrb[0].mxu0
        %4342 = vmatprep.mubr.f32.mxu0 0.0
        %v4343 = vand.u32 %v3886, 4294901760
        %v4344 = vsub.f32 %v3886, %v4343
        %v4345 = vand.u32 %v4344, 4294901760
        %v4346 = vsub.f32 %v4344, %v4345
        %v4347 = vand.u32 %v4346, 4294901760
        %4348 = vmatmul.mubr.f32.gmra.mrb[0].mxu0 %v4347
        %v4349 = vpop.f32.mrb[0].mxu0
        %v4350 = vadd.f32 %v3920, %v4349
        %v4351 = vpop.f32.mrb[0].mxu0
        %4352 = vmatprep.mubr.f32.mxu0 0.0
        %v4353 = vand.u32 %v3887, 4294901760
        %v4354 = vsub.f32 %v3887, %v4353
        %v4355 = vand.u32 %v4354, 4294901760
        %v4356 = vsub.f32 %v4354, %v4355
        %v4357 = vand.u32 %v4356, 4294901760
        %4358 = vmatmul.mubr.f32.gmra.mrb[0].mxu0 %v4357
        %v4359 = vpop.f32.mrb[0].mxu0
        %v4360 = vadd.f32 %v3920, %v4359
        %v4361 = vpop.f32.mrb[0].mxu0
        %4362 = vmatprep.mubr.f32.mxu0 0.0
        %v4363 = vand.u32 %v3888, 4294901760
        %v4364 = vsub.f32 %v3888, %v4363
        %v4365 = vand.u32 %v4364, 4294901760
        %v4366 = vsub.f32 %v4364, %v4365
        %v4367 = vand.u32 %v4366, 4294901760
        %4368 = vmatmul.mubr.f32.gmra.mrb[0].mxu0 %v4367
        %v4369 = vpop.f32.mrb[0].mxu0
        %v4370 = vadd.f32 %v3920, %v4369
        %v4371 = vpop.f32.mrb[0].mxu0
        %4372 = vmatprep.mubr.f32.mxu0 0.0
        %v4373 = vand.u32 %v3889, 4294901760
        %v4374 = vsub.f32 %v3889, %v4373
        %v4375 = vand.u32 %v4374, 4294901760
        %v4376 = vsub.f32 %v4374, %v4375
        %v4377 = vand.u32 %v4376, 4294901760
        %4378 = vmatmul.mubr.f32.gmra.mrb[0].mxu0 %v4377
        %v4379 = vpop.f32.mrb[0].mxu0
        %v4380 = vadd.f32 %v3920, %v4379
        %v4381 = vpop.f32.mrb[0].mxu0
        %4382 = vmatprep.mubr.f32.mxu0 0.0
        %v4383 = vand.u32 %v3890, 4294901760
        %v4384 = vsub.f32 %v3890, %v4383
        %v4385 = vand.u32 %v4384, 4294901760
        %v4386 = vsub.f32 %v4384, %v4385
        %v4387 = vand.u32 %v4386, 4294901760
        %4388 = vmatmul.mubr.f32.gmra.mrb[0].mxu0 %v4387
        %v4389 = vpop.f32.mrb[0].mxu0
        %v4390 = vadd.f32 %v3920, %v4389
        %v4391 = vpop.f32.mrb[0].mxu0
        %4392 = vmatprep.mubr.f32.mxu0 0.0
        %v4393 = vand.u32 %v3891, 4294901760
        %v4394 = vsub.f32 %v3891, %v4393
        %v4395 = vand.u32 %v4394, 4294901760
        %v4396 = vsub.f32 %v4394, %v4395
        %v4397 = vand.u32 %v4396, 4294901760
        %4398 = vmatmul.mubr.f32.gmra.mrb[0].mxu0 %v4397
        %v4399 = vpop.f32.mrb[0].mxu0
        %v4400 = vadd.f32 %v3920, %v4399
        %v4401 = vpop.f32.mrb[0].mxu0
        %4402 = vmatprep.mubr.f32.mxu0 0.0
        %v4403 = vand.u32 %v3892, 4294901760
        %v4404 = vsub.f32 %v3892, %v4403
        %v4405 = vand.u32 %v4404, 4294901760
        %v4406 = vsub.f32 %v4404, %v4405
        %v4407 = vand.u32 %v4406, 4294901760
        %4408 = vmatmul.mubr.f32.gmra.mrb[0].mxu0 %v4407
        %v4409 = vpop.f32.mrb[0].mxu0
        %v4410 = vadd.f32 %v3920, %v4409
        %v4411 = vpop.f32.mrb[0].mxu0
        %4412 = vmatprep.mubr.f32.mxu0 0.0
        %v4413 = vand.u32 %v3893, 4294901760
        %v4414 = vsub.f32 %v3893, %v4413
        %v4415 = vand.u32 %v4414, 4294901760
        %v4416 = vsub.f32 %v4414, %v4415
        %v4417 = vand.u32 %v4416, 4294901760
        %4418 = vmatmul.mubr.f32.gmra.mrb[0].mxu0 %v4417
        %v4419 = vpop.f32.mrb[0].mxu0
        %v4420 = vadd.f32 %v3920, %v4419
        %v4421 = vpop.f32.mrb[0].mxu0
        %4422 = vmatprep.mubr.f32.mxu0 0.0
        %v4423 = vand.u32 %v3894, 4294901760
        %v4424 = vsub.f32 %v3894, %v4423
        %v4425 = vand.u32 %v4424, 4294901760
        %v4426 = vsub.f32 %v4424, %v4425
        %v4427 = vand.u32 %v4426, 4294901760
        %4428 = vmatmul.mubr.f32.gmra.mrb[0].mxu0 %v4427
        %v4429 = vpop.f32.mrb[0].mxu0
        %v4430 = vadd.f32 %v3920, %v4429
        %v4431 = vpop.f32.mrb[0].mxu0
        %4432 = vmatprep.mubr.f32.mxu0 0.0
        %v4433 = vand.u32 %v3895, 4294901760
        %v4434 = vsub.f32 %v3895, %v4433
        %v4435 = vand.u32 %v4434, 4294901760
        %v4436 = vsub.f32 %v4434, %v4435
        %v4437 = vand.u32 %v4436, 4294901760
        %4438 = vmatmul.mubr.f32.gmra.mrb[0].mxu0 %v4437
        %v4439 = vpop.f32.mrb[0].mxu0
        %v4440 = vadd.f32 %v3920, %v4439
        %v4441 = vpop.f32.mrb[0].mxu0
        %4442 = vmatprep.mubr.f32.mxu0 0.0
        %v4443 = vand.u32 %v3896, 4294901760
        %v4444 = vsub.f32 %v3896, %v4443
        %v4445 = vand.u32 %v4444, 4294901760
        %v4446 = vsub.f32 %v4444, %v4445
        %v4447 = vand.u32 %v4446, 4294901760
        %4448 = vmatmul.mubr.f32.gmra.mrb[0].mxu0 %v4447
        %v4449 = vpop.f32.mrb[0].mxu0
        %v4450 = vadd.f32 %v3920, %v4449
        %v4451 = vpop.f32.mrb[0].mxu0
        %4452 = vmatprep.mubr.f32.mxu0 0.0
        %v4453 = vand.u32 %v3897, 4294901760
        %v4454 = vsub.f32 %v3897, %v4453
        %v4455 = vand.u32 %v4454, 4294901760
        %v4456 = vsub.f32 %v4454, %v4455
        %v4457 = vand.u32 %v4456, 4294901760
        %4458 = vmatmul.mubr.f32.gmra.mrb[0].mxu0 %v4457
        %v4459 = vpop.f32.mrb[0].mxu0
        %v4460 = vadd.f32 %v3920, %v4459
        %v4461 = vpop.f32.mrb[0].mxu0
        %4462 = vmatprep.mubr.f32.mxu0 0.0
        %v4463 = vand.u32 %v3898, 4294901760
        %v4464 = vsub.f32 %v3898, %v4463
        %v4465 = vand.u32 %v4464, 4294901760
        %v4466 = vsub.f32 %v4464, %v4465
        %v4467 = vand.u32 %v4466, 4294901760
        %4468 = vmatmul.mubr.f32.gmra.mrb[0].mxu0 %v4467
        %v4469 = vpop.f32.mrb[0].mxu0
        %v4470 = vadd.f32 %v3920, %v4469
        %v4471 = vpop.f32.mrb[0].mxu0
        %4472 = vmatprep.mubr.f32.mxu0 0.0
        %v4473 = vand.u32 %v3899, 4294901760
        %v4474 = vsub.f32 %v3899, %v4473
        %v4475 = vand.u32 %v4474, 4294901760
        %v4476 = vsub.f32 %v4474, %v4475
        %v4477 = vand.u32 %v4476, 4294901760
        %4478 = vmatmul.mubr.f32.gmra.mrb[0].mxu0 %v4477
        %v4479 = vpop.f32.mrb[0].mxu0
        %v4480 = vadd.f32 %v3920, %v4479
        %v4481 = vpop.f32.mrb[0].mxu0
        %4482 = vmatprep.mubr.f32.mxu0 0.0
        %v4483 = vand.u32 %v3900, 4294901760
        %v4484 = vsub.f32 %v3900, %v4483
        %v4485 = vand.u32 %v4484, 4294901760
        %v4486 = vsub.f32 %v4484, %v4485
        %v4487 = vand.u32 %v4486, 4294901760
        %4488 = vmatmul.mubr.f32.gmra.mrb[0].mxu0 %v4487
        %v4489 = vpop.f32.mrb[0].mxu0
        %v4490 = vadd.f32 %v3920, %v4489
        %v4491 = vpop.f32.mrb[0].mxu0
        %4492 = vmatprep.mubr.f32.mxu0 0.0
        %v4493 = vand.u32 %v3901, 4294901760
        %v4494 = vsub.f32 %v3901, %v4493
        %v4495 = vand.u32 %v4494, 4294901760
        %v4496 = vsub.f32 %v4494, %v4495
        %v4497 = vand.u32 %v4496, 4294901760
        %4498 = vmatmul.mubr.f32.gmra.mrb[0].mxu0 %v4497
        %v4499 = vpop.f32.mrb[0].mxu0
        %v4500 = vadd.f32 %v3920, %v4499
        %v4501 = vpop.f32.mrb[0].mxu0
        %4502 = vmatprep.mubr.f32.mxu0 0.0
        %v4503 = vand.u32 %v3902, 4294901760
        %v4504 = vsub.f32 %v3902, %v4503
        %v4505 = vand.u32 %v4504, 4294901760
        %v4506 = vsub.f32 %v4504, %v4505
        %v4507 = vand.u32 %v4506, 4294901760
        %4508 = vmatmul.mubr.f32.gmra.mrb[0].mxu0 %v4507
        %v4509 = vpop.f32.mrb[0].mxu0
        %v4510 = vadd.f32 %v3920, %v4509
        %v4511 = vpop.f32.mrb[0].mxu0
        %4512 = vmatprep.mubr.f32.mxu0 0.0
        %v4513 = vand.u32 %v3903, 4294901760
        %v4514 = vsub.f32 %v3903, %v4513
        %v4515 = vand.u32 %v4514, 4294901760
        %v4516 = vsub.f32 %v4514, %v4515
        %v4517 = vand.u32 %v4516, 4294901760
        %4518 = vmatmul.mubr.f32.gmra.mrb[0].mxu0 %v4517
        %v4519 = vpop.f32.mrb[0].mxu0
        %v4520 = vadd.f32 %v3920, %v4519
        %v4521 = vpop.f32.mrb[0].mxu0
        %4522 = vmatprep.mubr.f32.mxu0 0.0
        %v4523 = vand.u32 %v3904, 4294901760
        %v4524 = vsub.f32 %v3904, %v4523
        %v4525 = vand.u32 %v4524, 4294901760
        %v4526 = vsub.f32 %v4524, %v4525
        %v4527 = vand.u32 %v4526, 4294901760
        %4528 = vmatmul.mubr.f32.gmra.mrb[0].mxu0 %v4527
        %v4529 = vpop.f32.mrb[0].mxu0
        %v4530 = vadd.f32 %v3920, %v4529
        %v4531 = vpop.f32.mrb[0].mxu0
        %4532 = vmatprep.mubr.f32.mxu0 0.0
        %v4533 = vand.u32 %v3905, 4294901760
        %v4534 = vsub.f32 %v3905, %v4533
        %v4535 = vand.u32 %v4534, 4294901760
        %v4536 = vsub.f32 %v4534, %v4535
        %v4537 = vand.u32 %v4536, 4294901760
        %4538 = vmatmul.mubr.f32.gmra.mrb[0].mxu0 %v4537
        %v4539 = vpop.f32.mrb[0].mxu0
        %v4540 = vadd.f32 %v3920, %v4539
        %v4541 = vpop.f32.mrb[0].mxu0
        %4542 = vmatprep.mubr.f32.mxu0 0.0
        %v4543 = vand.u32 %v3906, 4294901760
        %v4544 = vsub.f32 %v3906, %v4543
        %v4545 = vand.u32 %v4544, 4294901760
        %v4546 = vsub.f32 %v4544, %v4545
        %v4547 = vand.u32 %v4546, 4294901760
        %4548 = vmatmul.mubr.f32.gmra.mrb[0].mxu0 %v4547
        %v4549 = vpop.f32.mrb[0].mxu0
        %v4550 = vadd.f32 %v3920, %v4549
        %v4551 = vpop.f32.mrb[0].mxu0
        %4552 = vmatprep.mubr.f32.mxu0 0.0
        %v4553 = vand.u32 %v3907, 4294901760
        %v4554 = vsub.f32 %v3907, %v4553
        %v4555 = vand.u32 %v4554, 4294901760
        %v4556 = vsub.f32 %v4554, %v4555
        %v4557 = vand.u32 %v4556, 4294901760
        %4558 = vmatmul.mubr.f32.gmra.mrb[0].mxu0 %v4557
        %v4559 = vpop.f32.mrb[0].mxu0
        %v4560 = vadd.f32 %v3920, %v4559
        %v4561 = vpop.f32.mrb[0].mxu0
        %4562 = vmatprep.mubr.f32.mxu0 0.0
        %v4563 = vand.u32 %v3908, 4294901760
        %v4564 = vsub.f32 %v3908, %v4563
        %v4565 = vand.u32 %v4564, 4294901760
        %v4566 = vsub.f32 %v4564, %v4565
        %v4567 = vand.u32 %v4566, 4294901760
        %4568 = vmatmul.mubr.f32.gmra.mrb[0].mxu0 %v4567
        %v4569 = vpop.f32.mrb[0].mxu0
        %v4570 = vadd.f32 %v3920, %v4569
        %v4571 = vpop.f32.mrb[0].mxu0
        %4572 = vmatprep.mubr.f32.mxu0 0.0
        %v4573 = vand.u32 %v3909, 4294901760
        %v4574 = vsub.f32 %v3909, %v4573
        %v4575 = vand.u32 %v4574, 4294901760
        %v4576 = vsub.f32 %v4574, %v4575
        %v4577 = vand.u32 %v4576, 4294901760
        %4578 = vmatmul.mubr.f32.gmra.mrb[0].mxu0 %v4577
        %v4579 = vpop.f32.mrb[0].mxu0
        %v4580 = vadd.f32 %v3920, %v4579
        %v4581 = vpop.f32.mrb[0].mxu0
        %4582 = vmatprep.mubr.f32.mxu0 0.0
        %v4583 = vand.u32 %v3910, 4294901760
        %v4584 = vsub.f32 %v3910, %v4583
        %v4585 = vand.u32 %v4584, 4294901760
        %v4586 = vsub.f32 %v4584, %v4585
        %v4587 = vand.u32 %v4586, 4294901760
        %4588 = vmatmul.mubr.f32.gmra.mrb[0].mxu0 %v4587
        %v4589 = vpop.f32.mrb[0].mxu0
        %v4590 = vadd.f32 %v3920, %v4589
        %v4591 = vpop.f32.mrb[0].mxu0
        %4592 = vmatprep.mubr.f32.mxu0 0.0
        %v4593 = vand.u32 %v3911, 4294901760
        %v4594 = vsub.f32 %v3911, %v4593
        %v4595 = vand.u32 %v4594, 4294901760
        %v4596 = vsub.f32 %v4594, %v4595
        %v4597 = vand.u32 %v4596, 4294901760
        %4598 = vmatmul.mubr.f32.gmra.mrb[0].mxu0 %v4597
        %v4599 = vpop.f32.mrb[0].mxu0
        %v4600 = vadd.f32 %v3920, %v4599
        %v4601 = vpop.f32.mrb[0].mxu0
        %4602 = vmatprep.mubr.f32.mxu0 0.0
        %v4603 = vand.u32 %v3912, 4294901760
        %v4604 = vsub.f32 %v3912, %v4603
        %v4605 = vand.u32 %v4604, 4294901760
        %v4606 = vsub.f32 %v4604, %v4605
        %v4607 = vand.u32 %v4606, 4294901760
        %4608 = vmatmul.mubr.f32.gmra.mrb[0].mxu0 %v4607
        %v4609 = vpop.f32.mrb[0].mxu0
        %v4610 = vadd.f32 %v3920, %v4609
        %v4611 = vpop.f32.mrb[0].mxu0
        %4612 = vmatprep.mubr.f32.mxu0 0.0
        %v4613 = vand.u32 %v3913, 4294901760
        %v4614 = vsub.f32 %v3913, %v4613
        %v4615 = vand.u32 %v4614, 4294901760
        %v4616 = vsub.f32 %v4614, %v4615
        %v4617 = vand.u32 %v4616, 4294901760
        %4618 = vmatmul.mubr.f32.gmra.mrb[0].mxu0 %v4617
        %v4619 = vpop.f32.mrb[0].mxu0
        %v4620 = vadd.f32 %v3920, %v4619
        %v4621 = vpop.f32.mrb[0].mxu0
        %4622 = vmatprep.mubr.f32.mxu0 0.0
        %v4623 = vand.u32 %v3914, 4294901760
        %v4624 = vsub.f32 %v3914, %v4623
        %v4625 = vand.u32 %v4624, 4294901760
        %v4626 = vsub.f32 %v4624, %v4625
        %v4627 = vand.u32 %v4626, 4294901760
        %4628 = vmatmul.mubr.f32.gmra.mrb[0].mxu0 %v4627
        %v4629 = vpop.f32.mrb[0].mxu0
        %v4630 = vadd.f32 %v3920, %v4629
        %v4631 = vpop.f32.mrb[0].mxu0
        %4632 = vmatprep.mubr.f32.mxu0 0.0
        %v4633 = vand.u32 %v3915, 4294901760
        %v4634 = vsub.f32 %v3915, %v4633
        %v4635 = vand.u32 %v4634, 4294901760
        %v4636 = vsub.f32 %v4634, %v4635
        %v4637 = vand.u32 %v4636, 4294901760
        %4638 = vmatmul.mubr.f32.gmra.mrb[0].mxu0 %v4637
        %v4639 = vpop.f32.mrb[0].mxu0
        %v4640 = vadd.f32 %v3920, %v4639
        %v4641 = vpop.f32.mrb[0].mxu0
        %4642 = vdwg.mxu0
        %4643 = vmatprep.subr.mxu0 0.0
        %v4644 = vand.u32 %v476, 4294901760
        %v4645 = vsub.f32 %v476, %v4644
        %v4646 = vand.u32 %v4645, 4294901760
        %v4647 = vsub.f32 %v4645, %v4646
        %v4648 = vand.u32 %v4647, 4294901760
        %4649 = vmatpush1.msra.mxu0 %v4648
        %4650 = vmatprep.subr.mxu0 0.0
        %v4651 = vand.u32 %v477, 4294901760
        %v4652 = vsub.f32 %v477, %v4651
        %v4653 = vand.u32 %v4652, 4294901760
        %v4654 = vsub.f32 %v4652, %v4653
        %v4655 = vand.u32 %v4654, 4294901760
        %4656 = vmatpush1.msra.mxu0 %v4655
        %4657 = vmatprep.subr.mxu0 0.0
        %v4658 = vand.u32 %v478, 4294901760
        %v4659 = vsub.f32 %v478, %v4658
        %v4660 = vand.u32 %v4659, 4294901760
        %v4661 = vsub.f32 %v4659, %v4660
        %v4662 = vand.u32 %v4661, 4294901760
        %4663 = vmatpush1.msra.mxu0 %v4662
        %4664 = vmatprep.subr.mxu0 0.0
        %v4665 = vand.u32 %v479, 4294901760
        %v4666 = vsub.f32 %v479, %v4665
        %v4667 = vand.u32 %v4666, 4294901760
        %v4668 = vsub.f32 %v4666, %v4667
        %v4669 = vand.u32 %v4668, 4294901760
        %4670 = vmatpush1.msra.mxu0 %v4669
        %4671 = vmatprep.subr.mxu0 0.0
        %v4672 = vand.u32 %v480, 4294901760
        %v4673 = vsub.f32 %v480, %v4672
        %v4674 = vand.u32 %v4673, 4294901760
        %v4675 = vsub.f32 %v4673, %v4674
        %v4676 = vand.u32 %v4675, 4294901760
        %4677 = vmatpush1.msra.mxu0 %v4676
        %4678 = vmatprep.subr.mxu0 0.0
        %v4679 = vand.u32 %v481, 4294901760
        %v4680 = vsub.f32 %v481, %v4679
        %v4681 = vand.u32 %v4680, 4294901760
        %v4682 = vsub.f32 %v4680, %v4681
        %v4683 = vand.u32 %v4682, 4294901760
        %4684 = vmatpush1.msra.mxu0 %v4683
        %4685 = vmatprep.subr.mxu0 0.0
        %v4686 = vand.u32 %v482, 4294901760
        %v4687 = vsub.f32 %v482, %v4686
        %v4688 = vand.u32 %v4687, 4294901760
        %v4689 = vsub.f32 %v4687, %v4688
        %v4690 = vand.u32 %v4689, 4294901760
        %4691 = vmatpush1.msra.mxu0 %v4690
        %4692 = vmatprep.subr.mxu0 0.0
        %v4693 = vand.u32 %v483, 4294901760
        %v4694 = vsub.f32 %v483, %v4693
        %v4695 = vand.u32 %v4694, 4294901760
        %v4696 = vsub.f32 %v4694, %v4695
        %v4697 = vand.u32 %v4696, 4294901760
        %4698 = vmatpush1.msra.mxu0 %v4697
        %4699 = vmatprep.subr.mxu0 0.0
        %v4700 = vand.u32 %v484, 4294901760
        %v4701 = vsub.f32 %v484, %v4700
        %v4702 = vand.u32 %v4701, 4294901760
        %v4703 = vsub.f32 %v4701, %v4702
        %v4704 = vand.u32 %v4703, 4294901760
        %4705 = vmatpush1.msra.mxu0 %v4704
        %4706 = vmatprep.subr.mxu0 0.0
        %v4707 = vand.u32 %v485, 4294901760
        %v4708 = vsub.f32 %v485, %v4707
        %v4709 = vand.u32 %v4708, 4294901760
        %v4710 = vsub.f32 %v4708, %v4709
        %v4711 = vand.u32 %v4710, 4294901760
        %4712 = vmatpush1.msra.mxu0 %v4711
        %4713 = vmatprep.subr.mxu0 0.0
        %v4714 = vand.u32 %v486, 4294901760
        %v4715 = vsub.f32 %v486, %v4714
        %v4716 = vand.u32 %v4715, 4294901760
        %v4717 = vsub.f32 %v4715, %v4716
        %v4718 = vand.u32 %v4717, 4294901760
        %4719 = vmatpush1.msra.mxu0 %v4718
        %4720 = vmatprep.subr.mxu0 0.0
        %v4721 = vand.u32 %v487, 4294901760
        %v4722 = vsub.f32 %v487, %v4721
        %v4723 = vand.u32 %v4722, 4294901760
        %v4724 = vsub.f32 %v4722, %v4723
        %v4725 = vand.u32 %v4724, 4294901760
        %4726 = vmatpush1.msra.mxu0 %v4725
        %4727 = vmatprep.subr.mxu0 0.0
        %v4728 = vand.u32 %v488, 4294901760
        %v4729 = vsub.f32 %v488, %v4728
        %v4730 = vand.u32 %v4729, 4294901760
        %v4731 = vsub.f32 %v4729, %v4730
        %v4732 = vand.u32 %v4731, 4294901760
        %4733 = vmatpush1.msra.mxu0 %v4732
        %4734 = vmatprep.subr.mxu0 0.0
        %v4735 = vand.u32 %v489, 4294901760
        %v4736 = vsub.f32 %v489, %v4735
        %v4737 = vand.u32 %v4736, 4294901760
        %v4738 = vsub.f32 %v4736, %v4737
        %v4739 = vand.u32 %v4738, 4294901760
        %4740 = vmatpush1.msra.mxu0 %v4739
        %4741 = vmatprep.subr.mxu0 0.0
        %v4742 = vand.u32 %v490, 4294901760
        %v4743 = vsub.f32 %v490, %v4742
        %v4744 = vand.u32 %v4743, 4294901760
        %v4745 = vsub.f32 %v4743, %v4744
        %v4746 = vand.u32 %v4745, 4294901760
        %4747 = vmatpush1.msra.mxu0 %v4746
        %4748 = vmatprep.subr.mxu0 0.0
        %v4749 = vand.u32 %v491, 4294901760
        %v4750 = vsub.f32 %v491, %v4749
        %v4751 = vand.u32 %v4750, 4294901760
        %v4752 = vsub.f32 %v4750, %v4751
        %v4753 = vand.u32 %v4752, 4294901760
        %4754 = vmatpush1.msra.mxu0 %v4753
        %4755 = vmatprep.subr.mxu0 0.0
        %4756 = vmatpush1.msra.mxu0 0.0
        %4757 = vmatprep.subr.mxu0 0.0
        %4758 = vmatpush1.msra.mxu0 0.0
        %4759 = vmatprep.subr.mxu0 0.0
        %4760 = vmatpush1.msra.mxu0 0.0
        %4761 = vmatprep.subr.mxu0 0.0
        %4762 = vmatpush1.msra.mxu0 0.0
        %4763 = vmatprep.subr.mxu0 0.0
        %4764 = vmatpush1.msra.mxu0 0.0
        %4765 = vmatprep.subr.mxu0 0.0
        %4766 = vmatpush1.msra.mxu0 0.0
        %4767 = vmatprep.subr.mxu0 0.0
        %4768 = vmatpush1.msra.mxu0 0.0
        %4769 = vmatprep.subr.mxu0 0.0
        %4770 = vmatpush1.msra.mxu0 0.0
        %4771 = vmatprep.subr.mxu0 0.0
        %4772 = vmatpush1.msra.mxu0 0.0
        %4773 = vmatprep.subr.mxu0 0.0
        %4774 = vmatpush1.msra.mxu0 0.0
        %4775 = vmatprep.subr.mxu0 0.0
        %4776 = vmatpush1.msra.mxu0 0.0
        %4777 = vmatprep.subr.mxu0 0.0
        %4778 = vmatpush1.msra.mxu0 0.0
        %4779 = vmatprep.subr.mxu0 0.0
        %4780 = vmatpush1.msra.mxu0 0.0
        %4781 = vmatprep.subr.mxu0 0.0
        %4782 = vmatpush1.msra.mxu0 0.0
        %4783 = vmatprep.subr.mxu0 0.0
        %4784 = vmatpush1.msra.mxu0 0.0
        %4785 = vmatprep.subr.mxu0 0.0
        %4786 = vmatpush1.msra.mxu0 0.0
        %4787 = vmatprep.mubr.f32.mxu0 0.0
        %v4788 = vand.u32 %v3852, 4294901760
        %4789 = vmatmul.mubr.f32.gmra.mrb[0].mxu0 %v4788
        %v4790 = vpop.f32.mrb[0].mxu0
        %v4791 = vadd.f32 %v4010, %v4790
        %v4792 = vpop.f32.mrb[0].mxu0
        %4793 = vmatprep.mubr.f32.mxu0 0.0
        %v4794 = vand.u32 %v3853, 4294901760
        %4795 = vmatmul.mubr.f32.gmra.mrb[0].mxu0 %v4794
        %v4796 = vpop.f32.mrb[0].mxu0
        %v4797 = vadd.f32 %v4020, %v4796
        %v4798 = vpop.f32.mrb[0].mxu0
        %4799 = vmatprep.mubr.f32.mxu0 0.0
        %v4800 = vand.u32 %v3854, 4294901760
        %4801 = vmatmul.mubr.f32.gmra.mrb[0].mxu0 %v4800
        %v4802 = vpop.f32.mrb[0].mxu0
        %v4803 = vadd.f32 %v4030, %v4802
        %v4804 = vpop.f32.mrb[0].mxu0
        %4805 = vmatprep.mubr.f32.mxu0 0.0
        %v4806 = vand.u32 %v3855, 4294901760
        %4807 = vmatmul.mubr.f32.gmra.mrb[0].mxu0 %v4806
        %v4808 = vpop.f32.mrb[0].mxu0
        %v4809 = vadd.f32 %v4040, %v4808
        %v4810 = vpop.f32.mrb[0].mxu0
        %4811 = vmatprep.mubr.f32.mxu0 0.0
        %v4812 = vand.u32 %v3856, 4294901760
        %4813 = vmatmul.mubr.f32.gmra.mrb[0].mxu0 %v4812
        %v4814 = vpop.f32.mrb[0].mxu0
        %v4815 = vadd.f32 %v4050, %v4814
        %v4816 = vpop.f32.mrb[0].mxu0
        %4817 = vmatprep.mubr.f32.mxu0 0.0
        %v4818 = vand.u32 %v3857, 4294901760
        %4819 = vmatmul.mubr.f32.gmra.mrb[0].mxu0 %v4818
        %v4820 = vpop.f32.mrb[0].mxu0
        %v4821 = vadd.f32 %v4060, %v4820
        %v4822 = vpop.f32.mrb[0].mxu0
        %4823 = vmatprep.mubr.f32.mxu0 0.0
        %v4824 = vand.u32 %v3858, 4294901760
        %4825 = vmatmul.mubr.f32.gmra.mrb[0].mxu0 %v4824
        %v4826 = vpop.f32.mrb[0].mxu0
        %v4827 = vadd.f32 %v4070, %v4826
        %v4828 = vpop.f32.mrb[0].mxu0
        %4829 = vmatprep.mubr.f32.mxu0 0.0
        %v4830 = vand.u32 %v3859, 4294901760
        %4831 = vmatmul.mubr.f32.gmra.mrb[0].mxu0 %v4830
        %v4832 = vpop.f32.mrb[0].mxu0
        %v4833 = vadd.f32 %v4080, %v4832
        %v4834 = vpop.f32.mrb[0].mxu0
        %4835 = vmatprep.mubr.f32.mxu0 0.0
        %v4836 = vand.u32 %v3860, 4294901760
        %4837 = vmatmul.mubr.f32.gmra.mrb[0].mxu0 %v4836
        %v4838 = vpop.f32.mrb[0].mxu0
        %v4839 = vadd.f32 %v4090, %v4838
        %v4840 = vpop.f32.mrb[0].mxu0
        %4841 = vmatprep.mubr.f32.mxu0 0.0
        %v4842 = vand.u32 %v3861, 4294901760
        %4843 = vmatmul.mubr.f32.gmra.mrb[0].mxu0 %v4842
        %v4844 = vpop.f32.mrb[0].mxu0
        %v4845 = vadd.f32 %v4100, %v4844
        %v4846 = vpop.f32.mrb[0].mxu0
        %4847 = vmatprep.mubr.f32.mxu0 0.0
        %v4848 = vand.u32 %v3862, 4294901760
        %4849 = vmatmul.mubr.f32.gmra.mrb[0].mxu0 %v4848
        %v4850 = vpop.f32.mrb[0].mxu0
        %v4851 = vadd.f32 %v4110, %v4850
        %v4852 = vpop.f32.mrb[0].mxu0
        %4853 = vmatprep.mubr.f32.mxu0 0.0
        %v4854 = vand.u32 %v3863, 4294901760
        %4855 = vmatmul.mubr.f32.gmra.mrb[0].mxu0 %v4854
        %v4856 = vpop.f32.mrb[0].mxu0
        %v4857 = vadd.f32 %v4120, %v4856
        %v4858 = vpop.f32.mrb[0].mxu0
        %4859 = vmatprep.mubr.f32.mxu0 0.0
        %v4860 = vand.u32 %v3864, 4294901760
        %4861 = vmatmul.mubr.f32.gmra.mrb[0].mxu0 %v4860
        %v4862 = vpop.f32.mrb[0].mxu0
        %v4863 = vadd.f32 %v4130, %v4862
        %v4864 = vpop.f32.mrb[0].mxu0
        %4865 = vmatprep.mubr.f32.mxu0 0.0
        %v4866 = vand.u32 %v3865, 4294901760
        %4867 = vmatmul.mubr.f32.gmra.mrb[0].mxu0 %v4866
        %v4868 = vpop.f32.mrb[0].mxu0
        %v4869 = vadd.f32 %v4140, %v4868
        %v4870 = vpop.f32.mrb[0].mxu0
        %4871 = vmatprep.mubr.f32.mxu0 0.0
        %v4872 = vand.u32 %v3866, 4294901760
        %4873 = vmatmul.mubr.f32.gmra.mrb[0].mxu0 %v4872
        %v4874 = vpop.f32.mrb[0].mxu0
        %v4875 = vadd.f32 %v4150, %v4874
        %v4876 = vpop.f32.mrb[0].mxu0
        %4877 = vmatprep.mubr.f32.mxu0 0.0
        %v4878 = vand.u32 %v3867, 4294901760
        %4879 = vmatmul.mubr.f32.gmra.mrb[0].mxu0 %v4878
        %v4880 = vpop.f32.mrb[0].mxu0
        %v4881 = vadd.f32 %v4160, %v4880
        %v4882 = vpop.f32.mrb[0].mxu0
        %4883 = vmatprep.mubr.f32.mxu0 0.0
        %v4884 = vand.u32 %v3868, 4294901760
        %4885 = vmatmul.mubr.f32.gmra.mrb[0].mxu0 %v4884
        %v4886 = vpop.f32.mrb[0].mxu0
        %v4887 = vadd.f32 %v4170, %v4886
        %v4888 = vpop.f32.mrb[0].mxu0
        %4889 = vmatprep.mubr.f32.mxu0 0.0
        %v4890 = vand.u32 %v3869, 4294901760
        %4891 = vmatmul.mubr.f32.gmra.mrb[0].mxu0 %v4890
        %v4892 = vpop.f32.mrb[0].mxu0
        %v4893 = vadd.f32 %v4180, %v4892
        %v4894 = vpop.f32.mrb[0].mxu0
        %4895 = vmatprep.mubr.f32.mxu0 0.0
        %v4896 = vand.u32 %v3870, 4294901760
        %4897 = vmatmul.mubr.f32.gmra.mrb[0].mxu0 %v4896
        %v4898 = vpop.f32.mrb[0].mxu0
        %v4899 = vadd.f32 %v4190, %v4898
        %v4900 = vpop.f32.mrb[0].mxu0
        %4901 = vmatprep.mubr.f32.mxu0 0.0
        %v4902 = vand.u32 %v3871, 4294901760
        %4903 = vmatmul.mubr.f32.gmra.mrb[0].mxu0 %v4902
        %v4904 = vpop.f32.mrb[0].mxu0
        %v4905 = vadd.f32 %v4200, %v4904
        %v4906 = vpop.f32.mrb[0].mxu0
        %4907 = vmatprep.mubr.f32.mxu0 0.0
        %v4908 = vand.u32 %v3872, 4294901760
        %4909 = vmatmul.mubr.f32.gmra.mrb[0].mxu0 %v4908
        %v4910 = vpop.f32.mrb[0].mxu0
        %v4911 = vadd.f32 %v4210, %v4910
        %v4912 = vpop.f32.mrb[0].mxu0
        %4913 = vmatprep.mubr.f32.mxu0 0.0
        %v4914 = vand.u32 %v3873, 4294901760
        %4915 = vmatmul.mubr.f32.gmra.mrb[0].mxu0 %v4914
        %v4916 = vpop.f32.mrb[0].mxu0
        %v4917 = vadd.f32 %v4220, %v4916
        %v4918 = vpop.f32.mrb[0].mxu0
        %4919 = vmatprep.mubr.f32.mxu0 0.0
        %v4920 = vand.u32 %v3874, 4294901760
        %4921 = vmatmul.mubr.f32.gmra.mrb[0].mxu0 %v4920
        %v4922 = vpop.f32.mrb[0].mxu0
        %v4923 = vadd.f32 %v4230, %v4922
        %v4924 = vpop.f32.mrb[0].mxu0
        %4925 = vmatprep.mubr.f32.mxu0 0.0
        %v4926 = vand.u32 %v3875, 4294901760
        %4927 = vmatmul.mubr.f32.gmra.mrb[0].mxu0 %v4926
        %v4928 = vpop.f32.mrb[0].mxu0
        %v4929 = vadd.f32 %v4240, %v4928
        %v4930 = vpop.f32.mrb[0].mxu0
        %4931 = vmatprep.mubr.f32.mxu0 0.0
        %v4932 = vand.u32 %v3876, 4294901760
        %4933 = vmatmul.mubr.f32.gmra.mrb[0].mxu0 %v4932
        %v4934 = vpop.f32.mrb[0].mxu0
        %v4935 = vadd.f32 %v4250, %v4934
        %v4936 = vpop.f32.mrb[0].mxu0
        %4937 = vmatprep.mubr.f32.mxu0 0.0
        %v4938 = vand.u32 %v3877, 4294901760
        %4939 = vmatmul.mubr.f32.gmra.mrb[0].mxu0 %v4938
        %v4940 = vpop.f32.mrb[0].mxu0
        %v4941 = vadd.f32 %v4260, %v4940
        %v4942 = vpop.f32.mrb[0].mxu0
        %4943 = vmatprep.mubr.f32.mxu0 0.0
        %v4944 = vand.u32 %v3878, 4294901760
        %4945 = vmatmul.mubr.f32.gmra.mrb[0].mxu0 %v4944
        %v4946 = vpop.f32.mrb[0].mxu0
        %v4947 = vadd.f32 %v4270, %v4946
        %v4948 = vpop.f32.mrb[0].mxu0
        %4949 = vmatprep.mubr.f32.mxu0 0.0
        %v4950 = vand.u32 %v3879, 4294901760
        %4951 = vmatmul.mubr.f32.gmra.mrb[0].mxu0 %v4950
        %v4952 = vpop.f32.mrb[0].mxu0
        %v4953 = vadd.f32 %v4280, %v4952
        %v4954 = vpop.f32.mrb[0].mxu0
        %4955 = vmatprep.mubr.f32.mxu0 0.0
        %v4956 = vand.u32 %v3880, 4294901760
        %4957 = vmatmul.mubr.f32.gmra.mrb[0].mxu0 %v4956
        %v4958 = vpop.f32.mrb[0].mxu0
        %v4959 = vadd.f32 %v4290, %v4958
        %v4960 = vpop.f32.mrb[0].mxu0
        %4961 = vmatprep.mubr.f32.mxu0 0.0
        %v4962 = vand.u32 %v3881, 4294901760
        %4963 = vmatmul.mubr.f32.gmra.mrb[0].mxu0 %v4962
        %v4964 = vpop.f32.mrb[0].mxu0
        %v4965 = vadd.f32 %v4300, %v4964
        %v4966 = vpop.f32.mrb[0].mxu0
        %4967 = vmatprep.mubr.f32.mxu0 0.0
        %v4968 = vand.u32 %v3882, 4294901760
        %4969 = vmatmul.mubr.f32.gmra.mrb[0].mxu0 %v4968
        %v4970 = vpop.f32.mrb[0].mxu0
        %v4971 = vadd.f32 %v4310, %v4970
        %v4972 = vpop.f32.mrb[0].mxu0
        %4973 = vmatprep.mubr.f32.mxu0 0.0
        %v4974 = vand.u32 %v3883, 4294901760
        %4975 = vmatmul.mubr.f32.gmra.mrb[0].mxu0 %v4974
        %v4976 = vpop.f32.mrb[0].mxu0
        %v4977 = vadd.f32 %v4320, %v4976
        %v4978 = vpop.f32.mrb[0].mxu0
        %4979 = vmatprep.mubr.f32.mxu0 0.0
        %v4980 = vand.u32 %v3884, 4294901760
        %4981 = vmatmul.mubr.f32.gmra.mrb[0].mxu0 %v4980
        %v4982 = vpop.f32.mrb[0].mxu0
        %v4983 = vadd.f32 %v4330, %v4982
        %v4984 = vpop.f32.mrb[0].mxu0
        %4985 = vmatprep.mubr.f32.mxu0 0.0
        %v4986 = vand.u32 %v3885, 4294901760
        %4987 = vmatmul.mubr.f32.gmra.mrb[0].mxu0 %v4986
        %v4988 = vpop.f32.mrb[0].mxu0
        %v4989 = vadd.f32 %v4340, %v4988
        %v4990 = vpop.f32.mrb[0].mxu0
        %4991 = vmatprep.mubr.f32.mxu0 0.0
        %v4992 = vand.u32 %v3886, 4294901760
        %4993 = vmatmul.mubr.f32.gmra.mrb[0].mxu0 %v4992
        %v4994 = vpop.f32.mrb[0].mxu0
        %v4995 = vadd.f32 %v4350, %v4994
        %v4996 = vpop.f32.mrb[0].mxu0
        %4997 = vmatprep.mubr.f32.mxu0 0.0
        %v4998 = vand.u32 %v3887, 4294901760
        %4999 = vmatmul.mubr.f32.gmra.mrb[0].mxu0 %v4998
        %v5000 = vpop.f32.mrb[0].mxu0
        %v5001 = vadd.f32 %v4360, %v5000
        %v5002 = vpop.f32.mrb[0].mxu0
        %5003 = vmatprep.mubr.f32.mxu0 0.0
        %v5004 = vand.u32 %v3888, 4294901760
        %5005 = vmatmul.mubr.f32.gmra.mrb[0].mxu0 %v5004
        %v5006 = vpop.f32.mrb[0].mxu0
        %v5007 = vadd.f32 %v4370, %v5006
        %v5008 = vpop.f32.mrb[0].mxu0
        %5009 = vmatprep.mubr.f32.mxu0 0.0
        %v5010 = vand.u32 %v3889, 4294901760
        %5011 = vmatmul.mubr.f32.gmra.mrb[0].mxu0 %v5010
        %v5012 = vpop.f32.mrb[0].mxu0
        %v5013 = vadd.f32 %v4380, %v5012
        %v5014 = vpop.f32.mrb[0].mxu0
        %5015 = vmatprep.mubr.f32.mxu0 0.0
        %v5016 = vand.u32 %v3890, 4294901760
        %5017 = vmatmul.mubr.f32.gmra.mrb[0].mxu0 %v5016
        %v5018 = vpop.f32.mrb[0].mxu0
        %v5019 = vadd.f32 %v4390, %v5018
        %v5020 = vpop.f32.mrb[0].mxu0
        %5021 = vmatprep.mubr.f32.mxu0 0.0
        %v5022 = vand.u32 %v3891, 4294901760
        %5023 = vmatmul.mubr.f32.gmra.mrb[0].mxu0 %v5022
        %v5024 = vpop.f32.mrb[0].mxu0
        %v5025 = vadd.f32 %v4400, %v5024
        %v5026 = vpop.f32.mrb[0].mxu0
        %5027 = vmatprep.mubr.f32.mxu0 0.0
        %v5028 = vand.u32 %v3892, 4294901760
        %5029 = vmatmul.mubr.f32.gmra.mrb[0].mxu0 %v5028
        %v5030 = vpop.f32.mrb[0].mxu0
        %v5031 = vadd.f32 %v4410, %v5030
        %v5032 = vpop.f32.mrb[0].mxu0
        %5033 = vmatprep.mubr.f32.mxu0 0.0
        %v5034 = vand.u32 %v3893, 4294901760
        %5035 = vmatmul.mubr.f32.gmra.mrb[0].mxu0 %v5034
        %v5036 = vpop.f32.mrb[0].mxu0
        %v5037 = vadd.f32 %v4420, %v5036
        %v5038 = vpop.f32.mrb[0].mxu0
        %5039 = vmatprep.mubr.f32.mxu0 0.0
        %v5040 = vand.u32 %v3894, 4294901760
        %5041 = vmatmul.mubr.f32.gmra.mrb[0].mxu0 %v5040
        %v5042 = vpop.f32.mrb[0].mxu0
        %v5043 = vadd.f32 %v4430, %v5042
        %v5044 = vpop.f32.mrb[0].mxu0
        %5045 = vmatprep.mubr.f32.mxu0 0.0
        %v5046 = vand.u32 %v3895, 4294901760
        %5047 = vmatmul.mubr.f32.gmra.mrb[0].mxu0 %v5046
        %v5048 = vpop.f32.mrb[0].mxu0
        %v5049 = vadd.f32 %v4440, %v5048
        %v5050 = vpop.f32.mrb[0].mxu0
        %5051 = vmatprep.mubr.f32.mxu0 0.0
        %v5052 = vand.u32 %v3896, 4294901760
        %5053 = vmatmul.mubr.f32.gmra.mrb[0].mxu0 %v5052
        %v5054 = vpop.f32.mrb[0].mxu0
        %v5055 = vadd.f32 %v4450, %v5054
        %v5056 = vpop.f32.mrb[0].mxu0
        %5057 = vmatprep.mubr.f32.mxu0 0.0
        %v5058 = vand.u32 %v3897, 4294901760
        %5059 = vmatmul.mubr.f32.gmra.mrb[0].mxu0 %v5058
        %v5060 = vpop.f32.mrb[0].mxu0
        %v5061 = vadd.f32 %v4460, %v5060
        %v5062 = vpop.f32.mrb[0].mxu0
        %5063 = vmatprep.mubr.f32.mxu0 0.0
        %v5064 = vand.u32 %v3898, 4294901760
        %5065 = vmatmul.mubr.f32.gmra.mrb[0].mxu0 %v5064
        %v5066 = vpop.f32.mrb[0].mxu0
        %v5067 = vadd.f32 %v4470, %v5066
        %v5068 = vpop.f32.mrb[0].mxu0
        %5069 = vmatprep.mubr.f32.mxu0 0.0
        %v5070 = vand.u32 %v3899, 4294901760
        %5071 = vmatmul.mubr.f32.gmra.mrb[0].mxu0 %v5070
        %v5072 = vpop.f32.mrb[0].mxu0
        %v5073 = vadd.f32 %v4480, %v5072
        %v5074 = vpop.f32.mrb[0].mxu0
        %5075 = vmatprep.mubr.f32.mxu0 0.0
        %v5076 = vand.u32 %v3900, 4294901760
        %5077 = vmatmul.mubr.f32.gmra.mrb[0].mxu0 %v5076
        %v5078 = vpop.f32.mrb[0].mxu0
        %v5079 = vadd.f32 %v4490, %v5078
        %v5080 = vpop.f32.mrb[0].mxu0
        %5081 = vmatprep.mubr.f32.mxu0 0.0
        %v5082 = vand.u32 %v3901, 4294901760
        %5083 = vmatmul.mubr.f32.gmra.mrb[0].mxu0 %v5082
        %v5084 = vpop.f32.mrb[0].mxu0
        %v5085 = vadd.f32 %v4500, %v5084
        %v5086 = vpop.f32.mrb[0].mxu0
        %5087 = vmatprep.mubr.f32.mxu0 0.0
        %v5088 = vand.u32 %v3902, 4294901760
        %5089 = vmatmul.mubr.f32.gmra.mrb[0].mxu0 %v5088
        %v5090 = vpop.f32.mrb[0].mxu0
        %v5091 = vadd.f32 %v4510, %v5090
        %v5092 = vpop.f32.mrb[0].mxu0
        %5093 = vmatprep.mubr.f32.mxu0 0.0
        %v5094 = vand.u32 %v3903, 4294901760
        %5095 = vmatmul.mubr.f32.gmra.mrb[0].mxu0 %v5094
        %v5096 = vpop.f32.mrb[0].mxu0
        %v5097 = vadd.f32 %v4520, %v5096
        %v5098 = vpop.f32.mrb[0].mxu0
        %5099 = vmatprep.mubr.f32.mxu0 0.0
        %v5100 = vand.u32 %v3904, 4294901760
        %5101 = vmatmul.mubr.f32.gmra.mrb[0].mxu0 %v5100
        %v5102 = vpop.f32.mrb[0].mxu0
        %v5103 = vadd.f32 %v4530, %v5102
        %v5104 = vpop.f32.mrb[0].mxu0
        %5105 = vmatprep.mubr.f32.mxu0 0.0
        %v5106 = vand.u32 %v3905, 4294901760
        %5107 = vmatmul.mubr.f32.gmra.mrb[0].mxu0 %v5106
        %v5108 = vpop.f32.mrb[0].mxu0
        %v5109 = vadd.f32 %v4540, %v5108
        %v5110 = vpop.f32.mrb[0].mxu0
        %5111 = vmatprep.mubr.f32.mxu0 0.0
        %v5112 = vand.u32 %v3906, 4294901760
        %5113 = vmatmul.mubr.f32.gmra.mrb[0].mxu0 %v5112
        %v5114 = vpop.f32.mrb[0].mxu0
        %v5115 = vadd.f32 %v4550, %v5114
        %v5116 = vpop.f32.mrb[0].mxu0
        %5117 = vmatprep.mubr.f32.mxu0 0.0
        %v5118 = vand.u32 %v3907, 4294901760
        %5119 = vmatmul.mubr.f32.gmra.mrb[0].mxu0 %v5118
        %v5120 = vpop.f32.mrb[0].mxu0
        %v5121 = vadd.f32 %v4560, %v5120
        %v5122 = vpop.f32.mrb[0].mxu0
        %5123 = vmatprep.mubr.f32.mxu0 0.0
        %v5124 = vand.u32 %v3908, 4294901760
        %5125 = vmatmul.mubr.f32.gmra.mrb[0].mxu0 %v5124
        %v5126 = vpop.f32.mrb[0].mxu0
        %v5127 = vadd.f32 %v4570, %v5126
        %v5128 = vpop.f32.mrb[0].mxu0
        %5129 = vmatprep.mubr.f32.mxu0 0.0
        %v5130 = vand.u32 %v3909, 4294901760
        %5131 = vmatmul.mubr.f32.gmra.mrb[0].mxu0 %v5130
        %v5132 = vpop.f32.mrb[0].mxu0
        %v5133 = vadd.f32 %v4580, %v5132
        %v5134 = vpop.f32.mrb[0].mxu0
        %5135 = vmatprep.mubr.f32.mxu0 0.0
        %v5136 = vand.u32 %v3910, 4294901760
        %5137 = vmatmul.mubr.f32.gmra.mrb[0].mxu0 %v5136
        %v5138 = vpop.f32.mrb[0].mxu0
        %v5139 = vadd.f32 %v4590, %v5138
        %v5140 = vpop.f32.mrb[0].mxu0
        %5141 = vmatprep.mubr.f32.mxu0 0.0
        %v5142 = vand.u32 %v3911, 4294901760
        %5143 = vmatmul.mubr.f32.gmra.mrb[0].mxu0 %v5142
        %v5144 = vpop.f32.mrb[0].mxu0
        %v5145 = vadd.f32 %v4600, %v5144
        %v5146 = vpop.f32.mrb[0].mxu0
        %5147 = vmatprep.mubr.f32.mxu0 0.0
        %v5148 = vand.u32 %v3912, 4294901760
        %5149 = vmatmul.mubr.f32.gmra.mrb[0].mxu0 %v5148
        %v5150 = vpop.f32.mrb[0].mxu0
        %v5151 = vadd.f32 %v4610, %v5150
        %v5152 = vpop.f32.mrb[0].mxu0
        %5153 = vmatprep.mubr.f32.mxu0 0.0
        %v5154 = vand.u32 %v3913, 4294901760
        %5155 = vmatmul.mubr.f32.gmra.mrb[0].mxu0 %v5154
        %v5156 = vpop.f32.mrb[0].mxu0
        %v5157 = vadd.f32 %v4620, %v5156
        %v5158 = vpop.f32.mrb[0].mxu0
        %5159 = vmatprep.mubr.f32.mxu0 0.0
        %v5160 = vand.u32 %v3914, 4294901760
        %5161 = vmatmul.mubr.f32.gmra.mrb[0].mxu0 %v5160
        %v5162 = vpop.f32.mrb[0].mxu0
        %v5163 = vadd.f32 %v4630, %v5162
        %v5164 = vpop.f32.mrb[0].mxu0
        %5165 = vmatprep.mubr.f32.mxu0 0.0
        %v5166 = vand.u32 %v3915, 4294901760
        %5167 = vmatmul.mubr.f32.gmra.mrb[0].mxu0 %v5166
        %v5168 = vpop.f32.mrb[0].mxu0
        %v5169 = vadd.f32 %v4640, %v5168
        %v5170 = vpop.f32.mrb[0].mxu0
        %5171 = vdwg.mxu0
        %5172 = vmatprep.subr.mxu0 0.0
        %v5173 = vand.u32 %v476, 4294901760
        %v5174 = vsub.f32 %v476, %v5173
        %5175 = vmatpush1.msra.mxu0 %v5174
        %5176 = vmatprep.subr.mxu0 0.0
        %v5177 = vand.u32 %v477, 4294901760
        %v5178 = vsub.f32 %v477, %v5177
        %5179 = vmatpush1.msra.mxu0 %v5178
        %5180 = vmatprep.subr.mxu0 0.0
        %v5181 = vand.u32 %v478, 4294901760
        %v5182 = vsub.f32 %v478, %v5181
        %5183 = vmatpush1.msra.mxu0 %v5182
        %5184 = vmatprep.subr.mxu0 0.0
        %v5185 = vand.u32 %v479, 4294901760
        %v5186 = vsub.f32 %v479, %v5185
        %5187 = vmatpush1.msra.mxu0 %v5186
        %5188 = vmatprep.subr.mxu0 0.0
        %v5189 = vand.u32 %v480, 4294901760
        %v5190 = vsub.f32 %v480, %v5189
        %5191 = vmatpush1.msra.mxu0 %v5190
        %5192 = vmatprep.subr.mxu0 0.0
        %v5193 = vand.u32 %v481, 4294901760
        %v5194 = vsub.f32 %v481, %v5193
        %5195 = vmatpush1.msra.mxu0 %v5194
        %5196 = vmatprep.subr.mxu0 0.0
        %v5197 = vand.u32 %v482, 4294901760
        %v5198 = vsub.f32 %v482, %v5197
        %5199 = vmatpush1.msra.mxu0 %v5198
        %5200 = vmatprep.subr.mxu0 0.0
        %v5201 = vand.u32 %v483, 4294901760
        %v5202 = vsub.f32 %v483, %v5201
        %5203 = vmatpush1.msra.mxu0 %v5202
        %5204 = vmatprep.subr.mxu0 0.0
        %v5205 = vand.u32 %v484, 4294901760
        %v5206 = vsub.f32 %v484, %v5205
        %5207 = vmatpush1.msra.mxu0 %v5206
        %5208 = vmatprep.subr.mxu0 0.0
        %v5209 = vand.u32 %v485, 4294901760
        %v5210 = vsub.f32 %v485, %v5209
        %5211 = vmatpush1.msra.mxu0 %v5210
        %5212 = vmatprep.subr.mxu0 0.0
        %v5213 = vand.u32 %v486, 4294901760
        %v5214 = vsub.f32 %v486, %v5213
        %5215 = vmatpush1.msra.mxu0 %v5214
        %5216 = vmatprep.subr.mxu0 0.0
        %v5217 = vand.u32 %v487, 4294901760
        %v5218 = vsub.f32 %v487, %v5217
        %5219 = vmatpush1.msra.mxu0 %v5218
        %5220 = vmatprep.subr.mxu0 0.0
        %v5221 = vand.u32 %v488, 4294901760
        %v5222 = vsub.f32 %v488, %v5221
        %5223 = vmatpush1.msra.mxu0 %v5222
        %5224 = vmatprep.subr.mxu0 0.0
        %v5225 = vand.u32 %v489, 4294901760
        %v5226 = vsub.f32 %v489, %v5225
        %5227 = vmatpush1.msra.mxu0 %v5226
        %5228 = vmatprep.subr.mxu0 0.0
        %v5229 = vand.u32 %v490, 4294901760
        %v5230 = vsub.f32 %v490, %v5229
        %5231 = vmatpush1.msra.mxu0 %v5230
        %5232 = vmatprep.subr.mxu0 0.0
        %v5233 = vand.u32 %v491, 4294901760
        %v5234 = vsub.f32 %v491, %v5233
        %5235 = vmatpush1.msra.mxu0 %v5234
        %5236 = vmatprep.subr.mxu0 0.0
        %5237 = vmatpush1.msra.mxu0 0.0
        %5238 = vmatprep.subr.mxu0 0.0
        %5239 = vmatpush1.msra.mxu0 0.0
        %5240 = vmatprep.subr.mxu0 0.0
        %5241 = vmatpush1.msra.mxu0 0.0
        %5242 = vmatprep.subr.mxu0 0.0
        %5243 = vmatpush1.msra.mxu0 0.0
        %5244 = vmatprep.subr.mxu0 0.0
        %5245 = vmatpush1.msra.mxu0 0.0
        %5246 = vmatprep.subr.mxu0 0.0
        %5247 = vmatpush1.msra.mxu0 0.0
        %5248 = vmatprep.subr.mxu0 0.0
        %5249 = vmatpush1.msra.mxu0 0.0
        %5250 = vmatprep.subr.mxu0 0.0
        %5251 = vmatpush1.msra.mxu0 0.0
        %5252 = vmatprep.subr.mxu0 0.0
        %5253 = vmatpush1.msra.mxu0 0.0
        %5254 = vmatprep.subr.mxu0 0.0
        %5255 = vmatpush1.msra.mxu0 0.0
        %5256 = vmatprep.subr.mxu0 0.0
        %5257 = vmatpush1.msra.mxu0 0.0
        %5258 = vmatprep.subr.mxu0 0.0
        %5259 = vmatpush1.msra.mxu0 0.0
        %5260 = vmatprep.subr.mxu0 0.0
        %5261 = vmatpush1.msra.mxu0 0.0
        %5262 = vmatprep.subr.mxu0 0.0
        %5263 = vmatpush1.msra.mxu0 0.0
        %5264 = vmatprep.subr.mxu0 0.0
        %5265 = vmatpush1.msra.mxu0 0.0
        %5266 = vmatprep.subr.mxu0 0.0
        %5267 = vmatpush1.msra.mxu0 0.0
        %5268 = vmatprep.mubr.f32.mxu0 0.0
        %v5269 = vand.u32 %v3852, 4294901760
        %v5270 = vsub.f32 %v3852, %v5269
        %5271 = vmatmul.mubr.f32.gmra.mrb[0].mxu0 %v5270
        %v5272 = vpop.f32.mrb[0].mxu0
        %v5273 = vadd.f32 %v4791, %v5272
        %v5274 = vpop.f32.mrb[0].mxu0
        %5275 = vmatprep.mubr.f32.mxu0 0.0
        %v5276 = vand.u32 %v3853, 4294901760
        %v5277 = vsub.f32 %v3853, %v5276
        %5278 = vmatmul.mubr.f32.gmra.mrb[0].mxu0 %v5277
        %v5279 = vpop.f32.mrb[0].mxu0
        %v5280 = vadd.f32 %v4797, %v5279
        %v5281 = vpop.f32.mrb[0].mxu0
        %5282 = vmatprep.mubr.f32.mxu0 0.0
        %v5283 = vand.u32 %v3854, 4294901760
        %v5284 = vsub.f32 %v3854, %v5283
        %5285 = vmatmul.mubr.f32.gmra.mrb[0].mxu0 %v5284
        %v5286 = vpop.f32.mrb[0].mxu0
        %v5287 = vadd.f32 %v4803, %v5286
        %v5288 = vpop.f32.mrb[0].mxu0
        %5289 = vmatprep.mubr.f32.mxu0 0.0
        %v5290 = vand.u32 %v3855, 4294901760
        %v5291 = vsub.f32 %v3855, %v5290
        %5292 = vmatmul.mubr.f32.gmra.mrb[0].mxu0 %v5291
        %v5293 = vpop.f32.mrb[0].mxu0
        %v5294 = vadd.f32 %v4809, %v5293
        %v5295 = vpop.f32.mrb[0].mxu0
        %5296 = vmatprep.mubr.f32.mxu0 0.0
        %v5297 = vand.u32 %v3856, 4294901760
        %v5298 = vsub.f32 %v3856, %v5297
        %5299 = vmatmul.mubr.f32.gmra.mrb[0].mxu0 %v5298
        %v5300 = vpop.f32.mrb[0].mxu0
        %v5301 = vadd.f32 %v4815, %v5300
        %v5302 = vpop.f32.mrb[0].mxu0
        %5303 = vmatprep.mubr.f32.mxu0 0.0
        %v5304 = vand.u32 %v3857, 4294901760
        %v5305 = vsub.f32 %v3857, %v5304
        %5306 = vmatmul.mubr.f32.gmra.mrb[0].mxu0 %v5305
        %v5307 = vpop.f32.mrb[0].mxu0
        %v5308 = vadd.f32 %v4821, %v5307
        %v5309 = vpop.f32.mrb[0].mxu0
        %5310 = vmatprep.mubr.f32.mxu0 0.0
        %v5311 = vand.u32 %v3858, 4294901760
        %v5312 = vsub.f32 %v3858, %v5311
        %5313 = vmatmul.mubr.f32.gmra.mrb[0].mxu0 %v5312
        %v5314 = vpop.f32.mrb[0].mxu0
        %v5315 = vadd.f32 %v4827, %v5314
        %v5316 = vpop.f32.mrb[0].mxu0
        %5317 = vmatprep.mubr.f32.mxu0 0.0
        %v5318 = vand.u32 %v3859, 4294901760
        %v5319 = vsub.f32 %v3859, %v5318
        %5320 = vmatmul.mubr.f32.gmra.mrb[0].mxu0 %v5319
        %v5321 = vpop.f32.mrb[0].mxu0
        %v5322 = vadd.f32 %v4833, %v5321
        %v5323 = vpop.f32.mrb[0].mxu0
        %5324 = vmatprep.mubr.f32.mxu0 0.0
        %v5325 = vand.u32 %v3860, 4294901760
        %v5326 = vsub.f32 %v3860, %v5325
        %5327 = vmatmul.mubr.f32.gmra.mrb[0].mxu0 %v5326
        %v5328 = vpop.f32.mrb[0].mxu0
        %v5329 = vadd.f32 %v4839, %v5328
        %v5330 = vpop.f32.mrb[0].mxu0
        %5331 = vmatprep.mubr.f32.mxu0 0.0
        %v5332 = vand.u32 %v3861, 4294901760
        %v5333 = vsub.f32 %v3861, %v5332
        %5334 = vmatmul.mubr.f32.gmra.mrb[0].mxu0 %v5333
        %v5335 = vpop.f32.mrb[0].mxu0
        %v5336 = vadd.f32 %v4845, %v5335
        %v5337 = vpop.f32.mrb[0].mxu0
        %5338 = vmatprep.mubr.f32.mxu0 0.0
        %v5339 = vand.u32 %v3862, 4294901760
        %v5340 = vsub.f32 %v3862, %v5339
        %5341 = vmatmul.mubr.f32.gmra.mrb[0].mxu0 %v5340
        %v5342 = vpop.f32.mrb[0].mxu0
        %v5343 = vadd.f32 %v4851, %v5342
        %v5344 = vpop.f32.mrb[0].mxu0
        %5345 = vmatprep.mubr.f32.mxu0 0.0
        %v5346 = vand.u32 %v3863, 4294901760
        %v5347 = vsub.f32 %v3863, %v5346
        %5348 = vmatmul.mubr.f32.gmra.mrb[0].mxu0 %v5347
        %v5349 = vpop.f32.mrb[0].mxu0
        %v5350 = vadd.f32 %v4857, %v5349
        %v5351 = vpop.f32.mrb[0].mxu0
        %5352 = vmatprep.mubr.f32.mxu0 0.0
        %v5353 = vand.u32 %v3864, 4294901760
        %v5354 = vsub.f32 %v3864, %v5353
        %5355 = vmatmul.mubr.f32.gmra.mrb[0].mxu0 %v5354
        %v5356 = vpop.f32.mrb[0].mxu0
        %v5357 = vadd.f32 %v4863, %v5356
        %v5358 = vpop.f32.mrb[0].mxu0
        %5359 = vmatprep.mubr.f32.mxu0 0.0
        %v5360 = vand.u32 %v3865, 4294901760
        %v5361 = vsub.f32 %v3865, %v5360
        %5362 = vmatmul.mubr.f32.gmra.mrb[0].mxu0 %v5361
        %v5363 = vpop.f32.mrb[0].mxu0
        %v5364 = vadd.f32 %v4869, %v5363
        %v5365 = vpop.f32.mrb[0].mxu0
        %5366 = vmatprep.mubr.f32.mxu0 0.0
        %v5367 = vand.u32 %v3866, 4294901760
        %v5368 = vsub.f32 %v3866, %v5367
        %5369 = vmatmul.mubr.f32.gmra.mrb[0].mxu0 %v5368
        %v5370 = vpop.f32.mrb[0].mxu0
        %v5371 = vadd.f32 %v4875, %v5370
        %v5372 = vpop.f32.mrb[0].mxu0
        %5373 = vmatprep.mubr.f32.mxu0 0.0
        %v5374 = vand.u32 %v3867, 4294901760
        %v5375 = vsub.f32 %v3867, %v5374
        %5376 = vmatmul.mubr.f32.gmra.mrb[0].mxu0 %v5375
        %v5377 = vpop.f32.mrb[0].mxu0
        %v5378 = vadd.f32 %v4881, %v5377
        %v5379 = vpop.f32.mrb[0].mxu0
        %5380 = vmatprep.mubr.f32.mxu0 0.0
        %v5381 = vand.u32 %v3868, 4294901760
        %v5382 = vsub.f32 %v3868, %v5381
        %5383 = vmatmul.mubr.f32.gmra.mrb[0].mxu0 %v5382
        %v5384 = vpop.f32.mrb[0].mxu0
        %v5385 = vadd.f32 %v4887, %v5384
        %v5386 = vpop.f32.mrb[0].mxu0
        %5387 = vmatprep.mubr.f32.mxu0 0.0
        %v5388 = vand.u32 %v3869, 4294901760
        %v5389 = vsub.f32 %v3869, %v5388
        %5390 = vmatmul.mubr.f32.gmra.mrb[0].mxu0 %v5389
        %v5391 = vpop.f32.mrb[0].mxu0
        %v5392 = vadd.f32 %v4893, %v5391
        %v5393 = vpop.f32.mrb[0].mxu0
        %5394 = vmatprep.mubr.f32.mxu0 0.0
        %v5395 = vand.u32 %v3870, 4294901760
        %v5396 = vsub.f32 %v3870, %v5395
        %5397 = vmatmul.mubr.f32.gmra.mrb[0].mxu0 %v5396
        %v5398 = vpop.f32.mrb[0].mxu0
        %v5399 = vadd.f32 %v4899, %v5398
        %v5400 = vpop.f32.mrb[0].mxu0
        %5401 = vmatprep.mubr.f32.mxu0 0.0
        %v5402 = vand.u32 %v3871, 4294901760
        %v5403 = vsub.f32 %v3871, %v5402
        %5404 = vmatmul.mubr.f32.gmra.mrb[0].mxu0 %v5403
        %v5405 = vpop.f32.mrb[0].mxu0
        %v5406 = vadd.f32 %v4905, %v5405
        %v5407 = vpop.f32.mrb[0].mxu0
        %5408 = vmatprep.mubr.f32.mxu0 0.0
        %v5409 = vand.u32 %v3872, 4294901760
        %v5410 = vsub.f32 %v3872, %v5409
        %5411 = vmatmul.mubr.f32.gmra.mrb[0].mxu0 %v5410
        %v5412 = vpop.f32.mrb[0].mxu0
        %v5413 = vadd.f32 %v4911, %v5412
        %v5414 = vpop.f32.mrb[0].mxu0
        %5415 = vmatprep.mubr.f32.mxu0 0.0
        %v5416 = vand.u32 %v3873, 4294901760
        %v5417 = vsub.f32 %v3873, %v5416
        %5418 = vmatmul.mubr.f32.gmra.mrb[0].mxu0 %v5417
        %v5419 = vpop.f32.mrb[0].mxu0
        %v5420 = vadd.f32 %v4917, %v5419
        %v5421 = vpop.f32.mrb[0].mxu0
        %5422 = vmatprep.mubr.f32.mxu0 0.0
        %v5423 = vand.u32 %v3874, 4294901760
        %v5424 = vsub.f32 %v3874, %v5423
        %5425 = vmatmul.mubr.f32.gmra.mrb[0].mxu0 %v5424
        %v5426 = vpop.f32.mrb[0].mxu0
        %v5427 = vadd.f32 %v4923, %v5426
        %v5428 = vpop.f32.mrb[0].mxu0
        %5429 = vmatprep.mubr.f32.mxu0 0.0
        %v5430 = vand.u32 %v3875, 4294901760
        %v5431 = vsub.f32 %v3875, %v5430
        %5432 = vmatmul.mubr.f32.gmra.mrb[0].mxu0 %v5431
        %v5433 = vpop.f32.mrb[0].mxu0
        %v5434 = vadd.f32 %v4929, %v5433
        %v5435 = vpop.f32.mrb[0].mxu0
        %5436 = vmatprep.mubr.f32.mxu0 0.0
        %v5437 = vand.u32 %v3876, 4294901760
        %v5438 = vsub.f32 %v3876, %v5437
        %5439 = vmatmul.mubr.f32.gmra.mrb[0].mxu0 %v5438
        %v5440 = vpop.f32.mrb[0].mxu0
        %v5441 = vadd.f32 %v4935, %v5440
        %v5442 = vpop.f32.mrb[0].mxu0
        %5443 = vmatprep.mubr.f32.mxu0 0.0
        %v5444 = vand.u32 %v3877, 4294901760
        %v5445 = vsub.f32 %v3877, %v5444
        %5446 = vmatmul.mubr.f32.gmra.mrb[0].mxu0 %v5445
        %v5447 = vpop.f32.mrb[0].mxu0
        %v5448 = vadd.f32 %v4941, %v5447
        %v5449 = vpop.f32.mrb[0].mxu0
        %5450 = vmatprep.mubr.f32.mxu0 0.0
        %v5451 = vand.u32 %v3878, 4294901760
        %v5452 = vsub.f32 %v3878, %v5451
        %5453 = vmatmul.mubr.f32.gmra.mrb[0].mxu0 %v5452
        %v5454 = vpop.f32.mrb[0].mxu0
        %v5455 = vadd.f32 %v4947, %v5454
        %v5456 = vpop.f32.mrb[0].mxu0
        %5457 = vmatprep.mubr.f32.mxu0 0.0
        %v5458 = vand.u32 %v3879, 4294901760
        %v5459 = vsub.f32 %v3879, %v5458
        %5460 = vmatmul.mubr.f32.gmra.mrb[0].mxu0 %v5459
        %v5461 = vpop.f32.mrb[0].mxu0
        %v5462 = vadd.f32 %v4953, %v5461
        %v5463 = vpop.f32.mrb[0].mxu0
        %5464 = vmatprep.mubr.f32.mxu0 0.0
        %v5465 = vand.u32 %v3880, 4294901760
        %v5466 = vsub.f32 %v3880, %v5465
        %5467 = vmatmul.mubr.f32.gmra.mrb[0].mxu0 %v5466
        %v5468 = vpop.f32.mrb[0].mxu0
        %v5469 = vadd.f32 %v4959, %v5468
        %v5470 = vpop.f32.mrb[0].mxu0
        %5471 = vmatprep.mubr.f32.mxu0 0.0
        %v5472 = vand.u32 %v3881, 4294901760
        %v5473 = vsub.f32 %v3881, %v5472
        %5474 = vmatmul.mubr.f32.gmra.mrb[0].mxu0 %v5473
        %v5475 = vpop.f32.mrb[0].mxu0
        %v5476 = vadd.f32 %v4965, %v5475
        %v5477 = vpop.f32.mrb[0].mxu0
        %5478 = vmatprep.mubr.f32.mxu0 0.0
        %v5479 = vand.u32 %v3882, 4294901760
        %v5480 = vsub.f32 %v3882, %v5479
        %5481 = vmatmul.mubr.f32.gmra.mrb[0].mxu0 %v5480
        %v5482 = vpop.f32.mrb[0].mxu0
        %v5483 = vadd.f32 %v4971, %v5482
        %v5484 = vpop.f32.mrb[0].mxu0
        %5485 = vmatprep.mubr.f32.mxu0 0.0
        %v5486 = vand.u32 %v3883, 4294901760
        %v5487 = vsub.f32 %v3883, %v5486
        %5488 = vmatmul.mubr.f32.gmra.mrb[0].mxu0 %v5487
        %v5489 = vpop.f32.mrb[0].mxu0
        %v5490 = vadd.f32 %v4977, %v5489
        %v5491 = vpop.f32.mrb[0].mxu0
        %5492 = vmatprep.mubr.f32.mxu0 0.0
        %v5493 = vand.u32 %v3884, 4294901760
        %v5494 = vsub.f32 %v3884, %v5493
        %5495 = vmatmul.mubr.f32.gmra.mrb[0].mxu0 %v5494
        %v5496 = vpop.f32.mrb[0].mxu0
        %v5497 = vadd.f32 %v4983, %v5496
        %v5498 = vpop.f32.mrb[0].mxu0
        %5499 = vmatprep.mubr.f32.mxu0 0.0
        %v5500 = vand.u32 %v3885, 4294901760
        %v5501 = vsub.f32 %v3885, %v5500
        %5502 = vmatmul.mubr.f32.gmra.mrb[0].mxu0 %v5501
        %v5503 = vpop.f32.mrb[0].mxu0
        %v5504 = vadd.f32 %v4989, %v5503
        %v5505 = vpop.f32.mrb[0].mxu0
        %5506 = vmatprep.mubr.f32.mxu0 0.0
        %v5507 = vand.u32 %v3886, 4294901760
        %v5508 = vsub.f32 %v3886, %v5507
        %5509 = vmatmul.mubr.f32.gmra.mrb[0].mxu0 %v5508
        %v5510 = vpop.f32.mrb[0].mxu0
        %v5511 = vadd.f32 %v4995, %v5510
        %v5512 = vpop.f32.mrb[0].mxu0
        %5513 = vmatprep.mubr.f32.mxu0 0.0
        %v5514 = vand.u32 %v3887, 4294901760
        %v5515 = vsub.f32 %v3887, %v5514
        %5516 = vmatmul.mubr.f32.gmra.mrb[0].mxu0 %v5515
        %v5517 = vpop.f32.mrb[0].mxu0
        %v5518 = vadd.f32 %v5001, %v5517
        %v5519 = vpop.f32.mrb[0].mxu0
        %5520 = vmatprep.mubr.f32.mxu0 0.0
        %v5521 = vand.u32 %v3888, 4294901760
        %v5522 = vsub.f32 %v3888, %v5521
        %5523 = vmatmul.mubr.f32.gmra.mrb[0].mxu0 %v5522
        %v5524 = vpop.f32.mrb[0].mxu0
        %v5525 = vadd.f32 %v5007, %v5524
        %v5526 = vpop.f32.mrb[0].mxu0
        %5527 = vmatprep.mubr.f32.mxu0 0.0
        %v5528 = vand.u32 %v3889, 4294901760
        %v5529 = vsub.f32 %v3889, %v5528
        %5530 = vmatmul.mubr.f32.gmra.mrb[0].mxu0 %v5529
        %v5531 = vpop.f32.mrb[0].mxu0
        %v5532 = vadd.f32 %v5013, %v5531
        %v5533 = vpop.f32.mrb[0].mxu0
        %5534 = vmatprep.mubr.f32.mxu0 0.0
        %v5535 = vand.u32 %v3890, 4294901760
        %v5536 = vsub.f32 %v3890, %v5535
        %5537 = vmatmul.mubr.f32.gmra.mrb[0].mxu0 %v5536
        %v5538 = vpop.f32.mrb[0].mxu0
        %v5539 = vadd.f32 %v5019, %v5538
        %v5540 = vpop.f32.mrb[0].mxu0
        %5541 = vmatprep.mubr.f32.mxu0 0.0
        %v5542 = vand.u32 %v3891, 4294901760
        %v5543 = vsub.f32 %v3891, %v5542
        %5544 = vmatmul.mubr.f32.gmra.mrb[0].mxu0 %v5543
        %v5545 = vpop.f32.mrb[0].mxu0
        %v5546 = vadd.f32 %v5025, %v5545
        %v5547 = vpop.f32.mrb[0].mxu0
        %5548 = vmatprep.mubr.f32.mxu0 0.0
        %v5549 = vand.u32 %v3892, 4294901760
        %v5550 = vsub.f32 %v3892, %v5549
        %5551 = vmatmul.mubr.f32.gmra.mrb[0].mxu0 %v5550
        %v5552 = vpop.f32.mrb[0].mxu0
        %v5553 = vadd.f32 %v5031, %v5552
        %v5554 = vpop.f32.mrb[0].mxu0
        %5555 = vmatprep.mubr.f32.mxu0 0.0
        %v5556 = vand.u32 %v3893, 4294901760
        %v5557 = vsub.f32 %v3893, %v5556
        %5558 = vmatmul.mubr.f32.gmra.mrb[0].mxu0 %v5557
        %v5559 = vpop.f32.mrb[0].mxu0
        %v5560 = vadd.f32 %v5037, %v5559
        %v5561 = vpop.f32.mrb[0].mxu0
        %5562 = vmatprep.mubr.f32.mxu0 0.0
        %v5563 = vand.u32 %v3894, 4294901760
        %v5564 = vsub.f32 %v3894, %v5563
        %5565 = vmatmul.mubr.f32.gmra.mrb[0].mxu0 %v5564
        %v5566 = vpop.f32.mrb[0].mxu0
        %v5567 = vadd.f32 %v5043, %v5566
        %v5568 = vpop.f32.mrb[0].mxu0
        %5569 = vmatprep.mubr.f32.mxu0 0.0
        %v5570 = vand.u32 %v3895, 4294901760
        %v5571 = vsub.f32 %v3895, %v5570
        %5572 = vmatmul.mubr.f32.gmra.mrb[0].mxu0 %v5571
        %v5573 = vpop.f32.mrb[0].mxu0
        %v5574 = vadd.f32 %v5049, %v5573
        %v5575 = vpop.f32.mrb[0].mxu0
        %5576 = vmatprep.mubr.f32.mxu0 0.0
        %v5577 = vand.u32 %v3896, 4294901760
        %v5578 = vsub.f32 %v3896, %v5577
        %5579 = vmatmul.mubr.f32.gmra.mrb[0].mxu0 %v5578
        %v5580 = vpop.f32.mrb[0].mxu0
        %v5581 = vadd.f32 %v5055, %v5580
        %v5582 = vpop.f32.mrb[0].mxu0
        %5583 = vmatprep.mubr.f32.mxu0 0.0
        %v5584 = vand.u32 %v3897, 4294901760
        %v5585 = vsub.f32 %v3897, %v5584
        %5586 = vmatmul.mubr.f32.gmra.mrb[0].mxu0 %v5585
        %v5587 = vpop.f32.mrb[0].mxu0
        %v5588 = vadd.f32 %v5061, %v5587
        %v5589 = vpop.f32.mrb[0].mxu0
        %5590 = vmatprep.mubr.f32.mxu0 0.0
        %v5591 = vand.u32 %v3898, 4294901760
        %v5592 = vsub.f32 %v3898, %v5591
        %5593 = vmatmul.mubr.f32.gmra.mrb[0].mxu0 %v5592
        %v5594 = vpop.f32.mrb[0].mxu0
        %v5595 = vadd.f32 %v5067, %v5594
        %v5596 = vpop.f32.mrb[0].mxu0
        %5597 = vmatprep.mubr.f32.mxu0 0.0
        %v5598 = vand.u32 %v3899, 4294901760
        %v5599 = vsub.f32 %v3899, %v5598
        %5600 = vmatmul.mubr.f32.gmra.mrb[0].mxu0 %v5599
        %v5601 = vpop.f32.mrb[0].mxu0
        %v5602 = vadd.f32 %v5073, %v5601
        %v5603 = vpop.f32.mrb[0].mxu0
        %5604 = vmatprep.mubr.f32.mxu0 0.0
        %v5605 = vand.u32 %v3900, 4294901760
        %v5606 = vsub.f32 %v3900, %v5605
        %5607 = vmatmul.mubr.f32.gmra.mrb[0].mxu0 %v5606
        %v5608 = vpop.f32.mrb[0].mxu0
        %v5609 = vadd.f32 %v5079, %v5608
        %v5610 = vpop.f32.mrb[0].mxu0
        %5611 = vmatprep.mubr.f32.mxu0 0.0
        %v5612 = vand.u32 %v3901, 4294901760
        %v5613 = vsub.f32 %v3901, %v5612
        %5614 = vmatmul.mubr.f32.gmra.mrb[0].mxu0 %v5613
        %v5615 = vpop.f32.mrb[0].mxu0
        %v5616 = vadd.f32 %v5085, %v5615
        %v5617 = vpop.f32.mrb[0].mxu0
        %5618 = vmatprep.mubr.f32.mxu0 0.0
        %v5619 = vand.u32 %v3902, 4294901760
        %v5620 = vsub.f32 %v3902, %v5619
        %5621 = vmatmul.mubr.f32.gmra.mrb[0].mxu0 %v5620
        %v5622 = vpop.f32.mrb[0].mxu0
        %v5623 = vadd.f32 %v5091, %v5622
        %v5624 = vpop.f32.mrb[0].mxu0
        %5625 = vmatprep.mubr.f32.mxu0 0.0
        %v5626 = vand.u32 %v3903, 4294901760
        %v5627 = vsub.f32 %v3903, %v5626
        %5628 = vmatmul.mubr.f32.gmra.mrb[0].mxu0 %v5627
        %v5629 = vpop.f32.mrb[0].mxu0
        %v5630 = vadd.f32 %v5097, %v5629
        %v5631 = vpop.f32.mrb[0].mxu0
        %5632 = vmatprep.mubr.f32.mxu0 0.0
        %v5633 = vand.u32 %v3904, 4294901760
        %v5634 = vsub.f32 %v3904, %v5633
        %5635 = vmatmul.mubr.f32.gmra.mrb[0].mxu0 %v5634
        %v5636 = vpop.f32.mrb[0].mxu0
        %v5637 = vadd.f32 %v5103, %v5636
        %v5638 = vpop.f32.mrb[0].mxu0
        %5639 = vmatprep.mubr.f32.mxu0 0.0
        %v5640 = vand.u32 %v3905, 4294901760
        %v5641 = vsub.f32 %v3905, %v5640
        %5642 = vmatmul.mubr.f32.gmra.mrb[0].mxu0 %v5641
        %v5643 = vpop.f32.mrb[0].mxu0
        %v5644 = vadd.f32 %v5109, %v5643
        %v5645 = vpop.f32.mrb[0].mxu0
        %5646 = vmatprep.mubr.f32.mxu0 0.0
        %v5647 = vand.u32 %v3906, 4294901760
        %v5648 = vsub.f32 %v3906, %v5647
        %5649 = vmatmul.mubr.f32.gmra.mrb[0].mxu0 %v5648
        %v5650 = vpop.f32.mrb[0].mxu0
        %v5651 = vadd.f32 %v5115, %v5650
        %v5652 = vpop.f32.mrb[0].mxu0
        %5653 = vmatprep.mubr.f32.mxu0 0.0
        %v5654 = vand.u32 %v3907, 4294901760
        %v5655 = vsub.f32 %v3907, %v5654
        %5656 = vmatmul.mubr.f32.gmra.mrb[0].mxu0 %v5655
        %v5657 = vpop.f32.mrb[0].mxu0
        %v5658 = vadd.f32 %v5121, %v5657
        %v5659 = vpop.f32.mrb[0].mxu0
        %5660 = vmatprep.mubr.f32.mxu0 0.0
        %v5661 = vand.u32 %v3908, 4294901760
        %v5662 = vsub.f32 %v3908, %v5661
        %5663 = vmatmul.mubr.f32.gmra.mrb[0].mxu0 %v5662
        %v5664 = vpop.f32.mrb[0].mxu0
        %v5665 = vadd.f32 %v5127, %v5664
        %v5666 = vpop.f32.mrb[0].mxu0
        %5667 = vmatprep.mubr.f32.mxu0 0.0
        %v5668 = vand.u32 %v3909, 4294901760
        %v5669 = vsub.f32 %v3909, %v5668
        %5670 = vmatmul.mubr.f32.gmra.mrb[0].mxu0 %v5669
        %v5671 = vpop.f32.mrb[0].mxu0
        %v5672 = vadd.f32 %v5133, %v5671
        %v5673 = vpop.f32.mrb[0].mxu0
        %5674 = vmatprep.mubr.f32.mxu0 0.0
        %v5675 = vand.u32 %v3910, 4294901760
        %v5676 = vsub.f32 %v3910, %v5675
        %5677 = vmatmul.mubr.f32.gmra.mrb[0].mxu0 %v5676
        %v5678 = vpop.f32.mrb[0].mxu0
        %v5679 = vadd.f32 %v5139, %v5678
        %v5680 = vpop.f32.mrb[0].mxu0
        %5681 = vmatprep.mubr.f32.mxu0 0.0
        %v5682 = vand.u32 %v3911, 4294901760
        %v5683 = vsub.f32 %v3911, %v5682
        %5684 = vmatmul.mubr.f32.gmra.mrb[0].mxu0 %v5683
        %v5685 = vpop.f32.mrb[0].mxu0
        %v5686 = vadd.f32 %v5145, %v5685
        %v5687 = vpop.f32.mrb[0].mxu0
        %5688 = vmatprep.mubr.f32.mxu0 0.0
        %v5689 = vand.u32 %v3912, 4294901760
        %v5690 = vsub.f32 %v3912, %v5689
        %5691 = vmatmul.mubr.f32.gmra.mrb[0].mxu0 %v5690
        %v5692 = vpop.f32.mrb[0].mxu0
        %v5693 = vadd.f32 %v5151, %v5692
        %v5694 = vpop.f32.mrb[0].mxu0
        %5695 = vmatprep.mubr.f32.mxu0 0.0
        %v5696 = vand.u32 %v3913, 4294901760
        %v5697 = vsub.f32 %v3913, %v5696
        %5698 = vmatmul.mubr.f32.gmra.mrb[0].mxu0 %v5697
        %v5699 = vpop.f32.mrb[0].mxu0
        %v5700 = vadd.f32 %v5157, %v5699
        %v5701 = vpop.f32.mrb[0].mxu0
        %5702 = vmatprep.mubr.f32.mxu0 0.0
        %v5703 = vand.u32 %v3914, 4294901760
        %v5704 = vsub.f32 %v3914, %v5703
        %5705 = vmatmul.mubr.f32.gmra.mrb[0].mxu0 %v5704
        %v5706 = vpop.f32.mrb[0].mxu0
        %v5707 = vadd.f32 %v5163, %v5706
        %v5708 = vpop.f32.mrb[0].mxu0
        %5709 = vmatprep.mubr.f32.mxu0 0.0
        %v5710 = vand.u32 %v3915, 4294901760
        %v5711 = vsub.f32 %v3915, %v5710
        %5712 = vmatmul.mubr.f32.gmra.mrb[0].mxu0 %v5711
        %v5713 = vpop.f32.mrb[0].mxu0
        %v5714 = vadd.f32 %v5169, %v5713
        %v5715 = vpop.f32.mrb[0].mxu0
        %5716 = vdwg.mxu0
        %5717 = vmatprep.subr.mxu0 0.0
        %v5718 = vand.u32 %v476, 4294901760
        %5719 = vmatpush1.msra.mxu0 %v5718
        %5720 = vmatprep.subr.mxu0 0.0
        %v5721 = vand.u32 %v477, 4294901760
        %5722 = vmatpush1.msra.mxu0 %v5721
        %5723 = vmatprep.subr.mxu0 0.0
        %v5724 = vand.u32 %v478, 4294901760
        %5725 = vmatpush1.msra.mxu0 %v5724
        %5726 = vmatprep.subr.mxu0 0.0
        %v5727 = vand.u32 %v479, 4294901760
        %5728 = vmatpush1.msra.mxu0 %v5727
        %5729 = vmatprep.subr.mxu0 0.0
        %v5730 = vand.u32 %v480, 4294901760
        %5731 = vmatpush1.msra.mxu0 %v5730
        %5732 = vmatprep.subr.mxu0 0.0
        %v5733 = vand.u32 %v481, 4294901760
        %5734 = vmatpush1.msra.mxu0 %v5733
        %5735 = vmatprep.subr.mxu0 0.0
        %v5736 = vand.u32 %v482, 4294901760
        %5737 = vmatpush1.msra.mxu0 %v5736
        %5738 = vmatprep.subr.mxu0 0.0
        %v5739 = vand.u32 %v483, 4294901760
        %5740 = vmatpush1.msra.mxu0 %v5739
        %5741 = vmatprep.subr.mxu0 0.0
        %v5742 = vand.u32 %v484, 4294901760
        %5743 = vmatpush1.msra.mxu0 %v5742
        %5744 = vmatprep.subr.mxu0 0.0
        %v5745 = vand.u32 %v485, 4294901760
        %5746 = vmatpush1.msra.mxu0 %v5745
        %5747 = vmatprep.subr.mxu0 0.0
        %v5748 = vand.u32 %v486, 4294901760
        %5749 = vmatpush1.msra.mxu0 %v5748
        %5750 = vmatprep.subr.mxu0 0.0
        %v5751 = vand.u32 %v487, 4294901760
        %5752 = vmatpush1.msra.mxu0 %v5751
        %5753 = vmatprep.subr.mxu0 0.0
        %v5754 = vand.u32 %v488, 4294901760
        %5755 = vmatpush1.msra.mxu0 %v5754
        %5756 = vmatprep.subr.mxu0 0.0
        %v5757 = vand.u32 %v489, 4294901760
        %5758 = vmatpush1.msra.mxu0 %v5757
        %5759 = vmatprep.subr.mxu0 0.0
        %v5760 = vand.u32 %v490, 4294901760
        %5761 = vmatpush1.msra.mxu0 %v5760
        %5762 = vmatprep.subr.mxu0 0.0
        %v5763 = vand.u32 %v491, 4294901760
        %5764 = vmatpush1.msra.mxu0 %v5763
        %5765 = vmatprep.subr.mxu0 0.0
        %5766 = vmatpush1.msra.mxu0 0.0
        %5767 = vmatprep.subr.mxu0 0.0
        %5768 = vmatpush1.msra.mxu0 0.0
        %5769 = vmatprep.subr.mxu0 0.0
        %5770 = vmatpush1.msra.mxu0 0.0
        %5771 = vmatprep.subr.mxu0 0.0
        %5772 = vmatpush1.msra.mxu0 0.0
        %5773 = vmatprep.subr.mxu0 0.0
        %5774 = vmatpush1.msra.mxu0 0.0
        %5775 = vmatprep.subr.mxu0 0.0
        %5776 = vmatpush1.msra.mxu0 0.0
        %5777 = vmatprep.subr.mxu0 0.0
        %5778 = vmatpush1.msra.mxu0 0.0
        %5779 = vmatprep.subr.mxu0 0.0
        %5780 = vmatpush1.msra.mxu0 0.0
        %5781 = vmatprep.subr.mxu0 0.0
        %5782 = vmatpush1.msra.mxu0 0.0
        %5783 = vmatprep.subr.mxu0 0.0
        %5784 = vmatpush1.msra.mxu0 0.0
        %5785 = vmatprep.subr.mxu0 0.0
        %5786 = vmatpush1.msra.mxu0 0.0
        %5787 = vmatprep.subr.mxu0 0.0
        %5788 = vmatpush1.msra.mxu0 0.0
        %5789 = vmatprep.subr.mxu0 0.0
        %5790 = vmatpush1.msra.mxu0 0.0
        %5791 = vmatprep.subr.mxu0 0.0
        %5792 = vmatpush1.msra.mxu0 0.0
        %5793 = vmatprep.subr.mxu0 0.0
        %5794 = vmatpush1.msra.mxu0 0.0
        %5795 = vmatprep.subr.mxu0 0.0
        %5796 = vmatpush1.msra.mxu0 0.0
        %5797 = vmatprep.mubr.f32.mxu0 0.0
        %v5798 = vand.u32 %v3852, 4294901760
        %v5799 = vsub.f32 %v3852, %v5798
        %v5800 = vand.u32 %v5799, 4294901760
        %5801 = vmatmul.mubr.f32.gmra.mrb[0].mxu0 %v5800
        %v5802 = vpop.f32.mrb[0].mxu0
        %v5803 = vadd.f32 %v5273, %v5802
        %v5804 = vpop.f32.mrb[0].mxu0
        %5805 = vmatprep.mubr.f32.mxu0 0.0
        %v5806 = vand.u32 %v3853, 4294901760
        %v5807 = vsub.f32 %v3853, %v5806
        %v5808 = vand.u32 %v5807, 4294901760
        %5809 = vmatmul.mubr.f32.gmra.mrb[0].mxu0 %v5808
        %v5810 = vpop.f32.mrb[0].mxu0
        %v5811 = vadd.f32 %v5280, %v5810
        %v5812 = vpop.f32.mrb[0].mxu0
        %5813 = vmatprep.mubr.f32.mxu0 0.0
        %v5814 = vand.u32 %v3854, 4294901760
        %v5815 = vsub.f32 %v3854, %v5814
        %v5816 = vand.u32 %v5815, 4294901760
        %5817 = vmatmul.mubr.f32.gmra.mrb[0].mxu0 %v5816
        %v5818 = vpop.f32.mrb[0].mxu0
        %v5819 = vadd.f32 %v5287, %v5818
        %v5820 = vpop.f32.mrb[0].mxu0
        %5821 = vmatprep.mubr.f32.mxu0 0.0
        %v5822 = vand.u32 %v3855, 4294901760
        %v5823 = vsub.f32 %v3855, %v5822
        %v5824 = vand.u32 %v5823, 4294901760
        %5825 = vmatmul.mubr.f32.gmra.mrb[0].mxu0 %v5824
        %v5826 = vpop.f32.mrb[0].mxu0
        %v5827 = vadd.f32 %v5294, %v5826
        %v5828 = vpop.f32.mrb[0].mxu0
        %5829 = vmatprep.mubr.f32.mxu0 0.0
        %v5830 = vand.u32 %v3856, 4294901760
        %v5831 = vsub.f32 %v3856, %v5830
        %v5832 = vand.u32 %v5831, 4294901760
        %5833 = vmatmul.mubr.f32.gmra.mrb[0].mxu0 %v5832
        %v5834 = vpop.f32.mrb[0].mxu0
        %v5835 = vadd.f32 %v5301, %v5834
        %v5836 = vpop.f32.mrb[0].mxu0
        %5837 = vmatprep.mubr.f32.mxu0 0.0
        %v5838 = vand.u32 %v3857, 4294901760
        %v5839 = vsub.f32 %v3857, %v5838
        %v5840 = vand.u32 %v5839, 4294901760
        %5841 = vmatmul.mubr.f32.gmra.mrb[0].mxu0 %v5840
        %v5842 = vpop.f32.mrb[0].mxu0
        %v5843 = vadd.f32 %v5308, %v5842
        %v5844 = vpop.f32.mrb[0].mxu0
        %5845 = vmatprep.mubr.f32.mxu0 0.0
        %v5846 = vand.u32 %v3858, 4294901760
        %v5847 = vsub.f32 %v3858, %v5846
        %v5848 = vand.u32 %v5847, 4294901760
        %5849 = vmatmul.mubr.f32.gmra.mrb[0].mxu0 %v5848
        %v5850 = vpop.f32.mrb[0].mxu0
        %v5851 = vadd.f32 %v5315, %v5850
        %v5852 = vpop.f32.mrb[0].mxu0
        %5853 = vmatprep.mubr.f32.mxu0 0.0
        %v5854 = vand.u32 %v3859, 4294901760
        %v5855 = vsub.f32 %v3859, %v5854
        %v5856 = vand.u32 %v5855, 4294901760
        %5857 = vmatmul.mubr.f32.gmra.mrb[0].mxu0 %v5856
        %v5858 = vpop.f32.mrb[0].mxu0
        %v5859 = vadd.f32 %v5322, %v5858
        %v5860 = vpop.f32.mrb[0].mxu0
        %5861 = vmatprep.mubr.f32.mxu0 0.0
        %v5862 = vand.u32 %v3860, 4294901760
        %v5863 = vsub.f32 %v3860, %v5862
        %v5864 = vand.u32 %v5863, 4294901760
        %5865 = vmatmul.mubr.f32.gmra.mrb[0].mxu0 %v5864
        %v5866 = vpop.f32.mrb[0].mxu0
        %v5867 = vadd.f32 %v5329, %v5866
        %v5868 = vpop.f32.mrb[0].mxu0
        %5869 = vmatprep.mubr.f32.mxu0 0.0
        %v5870 = vand.u32 %v3861, 4294901760
        %v5871 = vsub.f32 %v3861, %v5870
        %v5872 = vand.u32 %v5871, 4294901760
        %5873 = vmatmul.mubr.f32.gmra.mrb[0].mxu0 %v5872
        %v5874 = vpop.f32.mrb[0].mxu0
        %v5875 = vadd.f32 %v5336, %v5874
        %v5876 = vpop.f32.mrb[0].mxu0
        %5877 = vmatprep.mubr.f32.mxu0 0.0
        %v5878 = vand.u32 %v3862, 4294901760
        %v5879 = vsub.f32 %v3862, %v5878
        %v5880 = vand.u32 %v5879, 4294901760
        %5881 = vmatmul.mubr.f32.gmra.mrb[0].mxu0 %v5880
        %v5882 = vpop.f32.mrb[0].mxu0
        %v5883 = vadd.f32 %v5343, %v5882
        %v5884 = vpop.f32.mrb[0].mxu0
        %5885 = vmatprep.mubr.f32.mxu0 0.0
        %v5886 = vand.u32 %v3863, 4294901760
        %v5887 = vsub.f32 %v3863, %v5886
        %v5888 = vand.u32 %v5887, 4294901760
        %5889 = vmatmul.mubr.f32.gmra.mrb[0].mxu0 %v5888
        %v5890 = vpop.f32.mrb[0].mxu0
        %v5891 = vadd.f32 %v5350, %v5890
        %v5892 = vpop.f32.mrb[0].mxu0
        %5893 = vmatprep.mubr.f32.mxu0 0.0
        %v5894 = vand.u32 %v3864, 4294901760
        %v5895 = vsub.f32 %v3864, %v5894
        %v5896 = vand.u32 %v5895, 4294901760
        %5897 = vmatmul.mubr.f32.gmra.mrb[0].mxu0 %v5896
        %v5898 = vpop.f32.mrb[0].mxu0
        %v5899 = vadd.f32 %v5357, %v5898
        %v5900 = vpop.f32.mrb[0].mxu0
        %5901 = vmatprep.mubr.f32.mxu0 0.0
        %v5902 = vand.u32 %v3865, 4294901760
        %v5903 = vsub.f32 %v3865, %v5902
        %v5904 = vand.u32 %v5903, 4294901760
        %5905 = vmatmul.mubr.f32.gmra.mrb[0].mxu0 %v5904
        %v5906 = vpop.f32.mrb[0].mxu0
        %v5907 = vadd.f32 %v5364, %v5906
        %v5908 = vpop.f32.mrb[0].mxu0
        %5909 = vmatprep.mubr.f32.mxu0 0.0
        %v5910 = vand.u32 %v3866, 4294901760
        %v5911 = vsub.f32 %v3866, %v5910
        %v5912 = vand.u32 %v5911, 4294901760
        %5913 = vmatmul.mubr.f32.gmra.mrb[0].mxu0 %v5912
        %v5914 = vpop.f32.mrb[0].mxu0
        %v5915 = vadd.f32 %v5371, %v5914
        %v5916 = vpop.f32.mrb[0].mxu0
        %5917 = vmatprep.mubr.f32.mxu0 0.0
        %v5918 = vand.u32 %v3867, 4294901760
        %v5919 = vsub.f32 %v3867, %v5918
        %v5920 = vand.u32 %v5919, 4294901760
        %5921 = vmatmul.mubr.f32.gmra.mrb[0].mxu0 %v5920
        %v5922 = vpop.f32.mrb[0].mxu0
        %v5923 = vadd.f32 %v5378, %v5922
        %v5924 = vpop.f32.mrb[0].mxu0
        %5925 = vmatprep.mubr.f32.mxu0 0.0
        %v5926 = vand.u32 %v3868, 4294901760
        %v5927 = vsub.f32 %v3868, %v5926
        %v5928 = vand.u32 %v5927, 4294901760
        %5929 = vmatmul.mubr.f32.gmra.mrb[0].mxu0 %v5928
        %v5930 = vpop.f32.mrb[0].mxu0
        %v5931 = vadd.f32 %v5385, %v5930
        %v5932 = vpop.f32.mrb[0].mxu0
        %5933 = vmatprep.mubr.f32.mxu0 0.0
        %v5934 = vand.u32 %v3869, 4294901760
        %v5935 = vsub.f32 %v3869, %v5934
        %v5936 = vand.u32 %v5935, 4294901760
        %5937 = vmatmul.mubr.f32.gmra.mrb[0].mxu0 %v5936
        %v5938 = vpop.f32.mrb[0].mxu0
        %v5939 = vadd.f32 %v5392, %v5938
        %v5940 = vpop.f32.mrb[0].mxu0
        %5941 = vmatprep.mubr.f32.mxu0 0.0
        %v5942 = vand.u32 %v3870, 4294901760
        %v5943 = vsub.f32 %v3870, %v5942
        %v5944 = vand.u32 %v5943, 4294901760
        %5945 = vmatmul.mubr.f32.gmra.mrb[0].mxu0 %v5944
        %v5946 = vpop.f32.mrb[0].mxu0
        %v5947 = vadd.f32 %v5399, %v5946
        %v5948 = vpop.f32.mrb[0].mxu0
        %5949 = vmatprep.mubr.f32.mxu0 0.0
        %v5950 = vand.u32 %v3871, 4294901760
        %v5951 = vsub.f32 %v3871, %v5950
        %v5952 = vand.u32 %v5951, 4294901760
        %5953 = vmatmul.mubr.f32.gmra.mrb[0].mxu0 %v5952
        %v5954 = vpop.f32.mrb[0].mxu0
        %v5955 = vadd.f32 %v5406, %v5954
        %v5956 = vpop.f32.mrb[0].mxu0
        %5957 = vmatprep.mubr.f32.mxu0 0.0
        %v5958 = vand.u32 %v3872, 4294901760
        %v5959 = vsub.f32 %v3872, %v5958
        %v5960 = vand.u32 %v5959, 4294901760
        %5961 = vmatmul.mubr.f32.gmra.mrb[0].mxu0 %v5960
        %v5962 = vpop.f32.mrb[0].mxu0
        %v5963 = vadd.f32 %v5413, %v5962
        %v5964 = vpop.f32.mrb[0].mxu0
        %5965 = vmatprep.mubr.f32.mxu0 0.0
        %v5966 = vand.u32 %v3873, 4294901760
        %v5967 = vsub.f32 %v3873, %v5966
        %v5968 = vand.u32 %v5967, 4294901760
        %5969 = vmatmul.mubr.f32.gmra.mrb[0].mxu0 %v5968
        %v5970 = vpop.f32.mrb[0].mxu0
        %v5971 = vadd.f32 %v5420, %v5970
        %v5972 = vpop.f32.mrb[0].mxu0
        %5973 = vmatprep.mubr.f32.mxu0 0.0
        %v5974 = vand.u32 %v3874, 4294901760
        %v5975 = vsub.f32 %v3874, %v5974
        %v5976 = vand.u32 %v5975, 4294901760
        %5977 = vmatmul.mubr.f32.gmra.mrb[0].mxu0 %v5976
        %v5978 = vpop.f32.mrb[0].mxu0
        %v5979 = vadd.f32 %v5427, %v5978
        %v5980 = vpop.f32.mrb[0].mxu0
        %5981 = vmatprep.mubr.f32.mxu0 0.0
        %v5982 = vand.u32 %v3875, 4294901760
        %v5983 = vsub.f32 %v3875, %v5982
        %v5984 = vand.u32 %v5983, 4294901760
        %5985 = vmatmul.mubr.f32.gmra.mrb[0].mxu0 %v5984
        %v5986 = vpop.f32.mrb[0].mxu0
        %v5987 = vadd.f32 %v5434, %v5986
        %v5988 = vpop.f32.mrb[0].mxu0
        %5989 = vmatprep.mubr.f32.mxu0 0.0
        %v5990 = vand.u32 %v3876, 4294901760
        %v5991 = vsub.f32 %v3876, %v5990
        %v5992 = vand.u32 %v5991, 4294901760
        %5993 = vmatmul.mubr.f32.gmra.mrb[0].mxu0 %v5992
        %v5994 = vpop.f32.mrb[0].mxu0
        %v5995 = vadd.f32 %v5441, %v5994
        %v5996 = vpop.f32.mrb[0].mxu0
        %5997 = vmatprep.mubr.f32.mxu0 0.0
        %v5998 = vand.u32 %v3877, 4294901760
        %v5999 = vsub.f32 %v3877, %v5998
        %v6000 = vand.u32 %v5999, 4294901760
        %6001 = vmatmul.mubr.f32.gmra.mrb[0].mxu0 %v6000
        %v6002 = vpop.f32.mrb[0].mxu0
        %v6003 = vadd.f32 %v5448, %v6002
        %v6004 = vpop.f32.mrb[0].mxu0
        %6005 = vmatprep.mubr.f32.mxu0 0.0
        %v6006 = vand.u32 %v3878, 4294901760
        %v6007 = vsub.f32 %v3878, %v6006
        %v6008 = vand.u32 %v6007, 4294901760
        %6009 = vmatmul.mubr.f32.gmra.mrb[0].mxu0 %v6008
        %v6010 = vpop.f32.mrb[0].mxu0
        %v6011 = vadd.f32 %v5455, %v6010
        %v6012 = vpop.f32.mrb[0].mxu0
        %6013 = vmatprep.mubr.f32.mxu0 0.0
        %v6014 = vand.u32 %v3879, 4294901760
        %v6015 = vsub.f32 %v3879, %v6014
        %v6016 = vand.u32 %v6015, 4294901760
        %6017 = vmatmul.mubr.f32.gmra.mrb[0].mxu0 %v6016
        %v6018 = vpop.f32.mrb[0].mxu0
        %v6019 = vadd.f32 %v5462, %v6018
        %v6020 = vpop.f32.mrb[0].mxu0
        %6021 = vmatprep.mubr.f32.mxu0 0.0
        %v6022 = vand.u32 %v3880, 4294901760
        %v6023 = vsub.f32 %v3880, %v6022
        %v6024 = vand.u32 %v6023, 4294901760
        %6025 = vmatmul.mubr.f32.gmra.mrb[0].mxu0 %v6024
        %v6026 = vpop.f32.mrb[0].mxu0
        %v6027 = vadd.f32 %v5469, %v6026
        %v6028 = vpop.f32.mrb[0].mxu0
        %6029 = vmatprep.mubr.f32.mxu0 0.0
        %v6030 = vand.u32 %v3881, 4294901760
        %v6031 = vsub.f32 %v3881, %v6030
        %v6032 = vand.u32 %v6031, 4294901760
        %6033 = vmatmul.mubr.f32.gmra.mrb[0].mxu0 %v6032
        %v6034 = vpop.f32.mrb[0].mxu0
        %v6035 = vadd.f32 %v5476, %v6034
        %v6036 = vpop.f32.mrb[0].mxu0
        %6037 = vmatprep.mubr.f32.mxu0 0.0
        %v6038 = vand.u32 %v3882, 4294901760
        %v6039 = vsub.f32 %v3882, %v6038
        %v6040 = vand.u32 %v6039, 4294901760
        %6041 = vmatmul.mubr.f32.gmra.mrb[0].mxu0 %v6040
        %v6042 = vpop.f32.mrb[0].mxu0
        %v6043 = vadd.f32 %v5483, %v6042
        %v6044 = vpop.f32.mrb[0].mxu0
        %6045 = vmatprep.mubr.f32.mxu0 0.0
        %v6046 = vand.u32 %v3883, 4294901760
        %v6047 = vsub.f32 %v3883, %v6046
        %v6048 = vand.u32 %v6047, 4294901760
        %6049 = vmatmul.mubr.f32.gmra.mrb[0].mxu0 %v6048
        %v6050 = vpop.f32.mrb[0].mxu0
        %v6051 = vadd.f32 %v5490, %v6050
        %v6052 = vpop.f32.mrb[0].mxu0
        %6053 = vmatprep.mubr.f32.mxu0 0.0
        %v6054 = vand.u32 %v3884, 4294901760
        %v6055 = vsub.f32 %v3884, %v6054
        %v6056 = vand.u32 %v6055, 4294901760
        %6057 = vmatmul.mubr.f32.gmra.mrb[0].mxu0 %v6056
        %v6058 = vpop.f32.mrb[0].mxu0
        %v6059 = vadd.f32 %v5497, %v6058
        %v6060 = vpop.f32.mrb[0].mxu0
        %6061 = vmatprep.mubr.f32.mxu0 0.0
        %v6062 = vand.u32 %v3885, 4294901760
        %v6063 = vsub.f32 %v3885, %v6062
        %v6064 = vand.u32 %v6063, 4294901760
        %6065 = vmatmul.mubr.f32.gmra.mrb[0].mxu0 %v6064
        %v6066 = vpop.f32.mrb[0].mxu0
        %v6067 = vadd.f32 %v5504, %v6066
        %v6068 = vpop.f32.mrb[0].mxu0
        %6069 = vmatprep.mubr.f32.mxu0 0.0
        %v6070 = vand.u32 %v3886, 4294901760
        %v6071 = vsub.f32 %v3886, %v6070
        %v6072 = vand.u32 %v6071, 4294901760
        %6073 = vmatmul.mubr.f32.gmra.mrb[0].mxu0 %v6072
        %v6074 = vpop.f32.mrb[0].mxu0
        %v6075 = vadd.f32 %v5511, %v6074
        %v6076 = vpop.f32.mrb[0].mxu0
        %6077 = vmatprep.mubr.f32.mxu0 0.0
        %v6078 = vand.u32 %v3887, 4294901760
        %v6079 = vsub.f32 %v3887, %v6078
        %v6080 = vand.u32 %v6079, 4294901760
        %6081 = vmatmul.mubr.f32.gmra.mrb[0].mxu0 %v6080
        %v6082 = vpop.f32.mrb[0].mxu0
        %v6083 = vadd.f32 %v5518, %v6082
        %v6084 = vpop.f32.mrb[0].mxu0
        %6085 = vmatprep.mubr.f32.mxu0 0.0
        %v6086 = vand.u32 %v3888, 4294901760
        %v6087 = vsub.f32 %v3888, %v6086
        %v6088 = vand.u32 %v6087, 4294901760
        %6089 = vmatmul.mubr.f32.gmra.mrb[0].mxu0 %v6088
        %v6090 = vpop.f32.mrb[0].mxu0
        %v6091 = vadd.f32 %v5525, %v6090
        %v6092 = vpop.f32.mrb[0].mxu0
        %6093 = vmatprep.mubr.f32.mxu0 0.0
        %v6094 = vand.u32 %v3889, 4294901760
        %v6095 = vsub.f32 %v3889, %v6094
        %v6096 = vand.u32 %v6095, 4294901760
        %6097 = vmatmul.mubr.f32.gmra.mrb[0].mxu0 %v6096
        %v6098 = vpop.f32.mrb[0].mxu0
        %v6099 = vadd.f32 %v5532, %v6098
        %v6100 = vpop.f32.mrb[0].mxu0
        %6101 = vmatprep.mubr.f32.mxu0 0.0
        %v6102 = vand.u32 %v3890, 4294901760
        %v6103 = vsub.f32 %v3890, %v6102
        %v6104 = vand.u32 %v6103, 4294901760
        %6105 = vmatmul.mubr.f32.gmra.mrb[0].mxu0 %v6104
        %v6106 = vpop.f32.mrb[0].mxu0
        %v6107 = vadd.f32 %v5539, %v6106
        %v6108 = vpop.f32.mrb[0].mxu0
        %6109 = vmatprep.mubr.f32.mxu0 0.0
        %v6110 = vand.u32 %v3891, 4294901760
        %v6111 = vsub.f32 %v3891, %v6110
        %v6112 = vand.u32 %v6111, 4294901760
        %6113 = vmatmul.mubr.f32.gmra.mrb[0].mxu0 %v6112
        %v6114 = vpop.f32.mrb[0].mxu0
        %v6115 = vadd.f32 %v5546, %v6114
        %v6116 = vpop.f32.mrb[0].mxu0
        %6117 = vmatprep.mubr.f32.mxu0 0.0
        %v6118 = vand.u32 %v3892, 4294901760
        %v6119 = vsub.f32 %v3892, %v6118
        %v6120 = vand.u32 %v6119, 4294901760
        %6121 = vmatmul.mubr.f32.gmra.mrb[0].mxu0 %v6120
        %v6122 = vpop.f32.mrb[0].mxu0
        %v6123 = vadd.f32 %v5553, %v6122
        %v6124 = vpop.f32.mrb[0].mxu0
        %6125 = vmatprep.mubr.f32.mxu0 0.0
        %v6126 = vand.u32 %v3893, 4294901760
        %v6127 = vsub.f32 %v3893, %v6126
        %v6128 = vand.u32 %v6127, 4294901760
        %6129 = vmatmul.mubr.f32.gmra.mrb[0].mxu0 %v6128
        %v6130 = vpop.f32.mrb[0].mxu0
        %v6131 = vadd.f32 %v5560, %v6130
        %v6132 = vpop.f32.mrb[0].mxu0
        %6133 = vmatprep.mubr.f32.mxu0 0.0
        %v6134 = vand.u32 %v3894, 4294901760
        %v6135 = vsub.f32 %v3894, %v6134
        %v6136 = vand.u32 %v6135, 4294901760
        %6137 = vmatmul.mubr.f32.gmra.mrb[0].mxu0 %v6136
        %v6138 = vpop.f32.mrb[0].mxu0
        %v6139 = vadd.f32 %v5567, %v6138
        %v6140 = vpop.f32.mrb[0].mxu0
        %6141 = vmatprep.mubr.f32.mxu0 0.0
        %v6142 = vand.u32 %v3895, 4294901760
        %v6143 = vsub.f32 %v3895, %v6142
        %v6144 = vand.u32 %v6143, 4294901760
        %6145 = vmatmul.mubr.f32.gmra.mrb[0].mxu0 %v6144
        %v6146 = vpop.f32.mrb[0].mxu0
        %v6147 = vadd.f32 %v5574, %v6146
        %v6148 = vpop.f32.mrb[0].mxu0
        %6149 = vmatprep.mubr.f32.mxu0 0.0
        %v6150 = vand.u32 %v3896, 4294901760
        %v6151 = vsub.f32 %v3896, %v6150
        %v6152 = vand.u32 %v6151, 4294901760
        %6153 = vmatmul.mubr.f32.gmra.mrb[0].mxu0 %v6152
        %v6154 = vpop.f32.mrb[0].mxu0
        %v6155 = vadd.f32 %v5581, %v6154
        %v6156 = vpop.f32.mrb[0].mxu0
        %6157 = vmatprep.mubr.f32.mxu0 0.0
        %v6158 = vand.u32 %v3897, 4294901760
        %v6159 = vsub.f32 %v3897, %v6158
        %v6160 = vand.u32 %v6159, 4294901760
        %6161 = vmatmul.mubr.f32.gmra.mrb[0].mxu0 %v6160
        %v6162 = vpop.f32.mrb[0].mxu0
        %v6163 = vadd.f32 %v5588, %v6162
        %v6164 = vpop.f32.mrb[0].mxu0
        %6165 = vmatprep.mubr.f32.mxu0 0.0
        %v6166 = vand.u32 %v3898, 4294901760
        %v6167 = vsub.f32 %v3898, %v6166
        %v6168 = vand.u32 %v6167, 4294901760
        %6169 = vmatmul.mubr.f32.gmra.mrb[0].mxu0 %v6168
        %v6170 = vpop.f32.mrb[0].mxu0
        %v6171 = vadd.f32 %v5595, %v6170
        %v6172 = vpop.f32.mrb[0].mxu0
        %6173 = vmatprep.mubr.f32.mxu0 0.0
        %v6174 = vand.u32 %v3899, 4294901760
        %v6175 = vsub.f32 %v3899, %v6174
        %v6176 = vand.u32 %v6175, 4294901760
        %6177 = vmatmul.mubr.f32.gmra.mrb[0].mxu0 %v6176
        %v6178 = vpop.f32.mrb[0].mxu0
        %v6179 = vadd.f32 %v5602, %v6178
        %v6180 = vpop.f32.mrb[0].mxu0
        %6181 = vmatprep.mubr.f32.mxu0 0.0
        %v6182 = vand.u32 %v3900, 4294901760
        %v6183 = vsub.f32 %v3900, %v6182
        %v6184 = vand.u32 %v6183, 4294901760
        %6185 = vmatmul.mubr.f32.gmra.mrb[0].mxu0 %v6184
        %v6186 = vpop.f32.mrb[0].mxu0
        %v6187 = vadd.f32 %v5609, %v6186
        %v6188 = vpop.f32.mrb[0].mxu0
        %6189 = vmatprep.mubr.f32.mxu0 0.0
        %v6190 = vand.u32 %v3901, 4294901760
        %v6191 = vsub.f32 %v3901, %v6190
        %v6192 = vand.u32 %v6191, 4294901760
        %6193 = vmatmul.mubr.f32.gmra.mrb[0].mxu0 %v6192
        %v6194 = vpop.f32.mrb[0].mxu0
        %v6195 = vadd.f32 %v5616, %v6194
        %v6196 = vpop.f32.mrb[0].mxu0
        %6197 = vmatprep.mubr.f32.mxu0 0.0
        %v6198 = vand.u32 %v3902, 4294901760
        %v6199 = vsub.f32 %v3902, %v6198
        %v6200 = vand.u32 %v6199, 4294901760
        %6201 = vmatmul.mubr.f32.gmra.mrb[0].mxu0 %v6200
        %v6202 = vpop.f32.mrb[0].mxu0
        %v6203 = vadd.f32 %v5623, %v6202
        %v6204 = vpop.f32.mrb[0].mxu0
        %6205 = vmatprep.mubr.f32.mxu0 0.0
        %v6206 = vand.u32 %v3903, 4294901760
        %v6207 = vsub.f32 %v3903, %v6206
        %v6208 = vand.u32 %v6207, 4294901760
        %6209 = vmatmul.mubr.f32.gmra.mrb[0].mxu0 %v6208
        %v6210 = vpop.f32.mrb[0].mxu0
        %v6211 = vadd.f32 %v5630, %v6210
        %v6212 = vpop.f32.mrb[0].mxu0
        %6213 = vmatprep.mubr.f32.mxu0 0.0
        %v6214 = vand.u32 %v3904, 4294901760
        %v6215 = vsub.f32 %v3904, %v6214
        %v6216 = vand.u32 %v6215, 4294901760
        %6217 = vmatmul.mubr.f32.gmra.mrb[0].mxu0 %v6216
        %v6218 = vpop.f32.mrb[0].mxu0
        %v6219 = vadd.f32 %v5637, %v6218
        %v6220 = vpop.f32.mrb[0].mxu0
        %6221 = vmatprep.mubr.f32.mxu0 0.0
        %v6222 = vand.u32 %v3905, 4294901760
        %v6223 = vsub.f32 %v3905, %v6222
        %v6224 = vand.u32 %v6223, 4294901760
        %6225 = vmatmul.mubr.f32.gmra.mrb[0].mxu0 %v6224
        %v6226 = vpop.f32.mrb[0].mxu0
        %v6227 = vadd.f32 %v5644, %v6226
        %v6228 = vpop.f32.mrb[0].mxu0
        %6229 = vmatprep.mubr.f32.mxu0 0.0
        %v6230 = vand.u32 %v3906, 4294901760
        %v6231 = vsub.f32 %v3906, %v6230
        %v6232 = vand.u32 %v6231, 4294901760
        %6233 = vmatmul.mubr.f32.gmra.mrb[0].mxu0 %v6232
        %v6234 = vpop.f32.mrb[0].mxu0
        %v6235 = vadd.f32 %v5651, %v6234
        %v6236 = vpop.f32.mrb[0].mxu0
        %6237 = vmatprep.mubr.f32.mxu0 0.0
        %v6238 = vand.u32 %v3907, 4294901760
        %v6239 = vsub.f32 %v3907, %v6238
        %v6240 = vand.u32 %v6239, 4294901760
        %6241 = vmatmul.mubr.f32.gmra.mrb[0].mxu0 %v6240
        %v6242 = vpop.f32.mrb[0].mxu0
        %v6243 = vadd.f32 %v5658, %v6242
        %v6244 = vpop.f32.mrb[0].mxu0
        %6245 = vmatprep.mubr.f32.mxu0 0.0
        %v6246 = vand.u32 %v3908, 4294901760
        %v6247 = vsub.f32 %v3908, %v6246
        %v6248 = vand.u32 %v6247, 4294901760
        %6249 = vmatmul.mubr.f32.gmra.mrb[0].mxu0 %v6248
        %v6250 = vpop.f32.mrb[0].mxu0
        %v6251 = vadd.f32 %v5665, %v6250
        %v6252 = vpop.f32.mrb[0].mxu0
        %6253 = vmatprep.mubr.f32.mxu0 0.0
        %v6254 = vand.u32 %v3909, 4294901760
        %v6255 = vsub.f32 %v3909, %v6254
        %v6256 = vand.u32 %v6255, 4294901760
        %6257 = vmatmul.mubr.f32.gmra.mrb[0].mxu0 %v6256
        %v6258 = vpop.f32.mrb[0].mxu0
        %v6259 = vadd.f32 %v5672, %v6258
        %v6260 = vpop.f32.mrb[0].mxu0
        %6261 = vmatprep.mubr.f32.mxu0 0.0
        %v6262 = vand.u32 %v3910, 4294901760
        %v6263 = vsub.f32 %v3910, %v6262
        %v6264 = vand.u32 %v6263, 4294901760
        %6265 = vmatmul.mubr.f32.gmra.mrb[0].mxu0 %v6264
        %v6266 = vpop.f32.mrb[0].mxu0
        %v6267 = vadd.f32 %v5679, %v6266
        %v6268 = vpop.f32.mrb[0].mxu0
        %6269 = vmatprep.mubr.f32.mxu0 0.0
        %v6270 = vand.u32 %v3911, 4294901760
        %v6271 = vsub.f32 %v3911, %v6270
        %v6272 = vand.u32 %v6271, 4294901760
        %6273 = vmatmul.mubr.f32.gmra.mrb[0].mxu0 %v6272
        %v6274 = vpop.f32.mrb[0].mxu0
        %v6275 = vadd.f32 %v5686, %v6274
        %v6276 = vpop.f32.mrb[0].mxu0
        %6277 = vmatprep.mubr.f32.mxu0 0.0
        %v6278 = vand.u32 %v3912, 4294901760
        %v6279 = vsub.f32 %v3912, %v6278
        %v6280 = vand.u32 %v6279, 4294901760
        %6281 = vmatmul.mubr.f32.gmra.mrb[0].mxu0 %v6280
        %v6282 = vpop.f32.mrb[0].mxu0
        %v6283 = vadd.f32 %v5693, %v6282
        %v6284 = vpop.f32.mrb[0].mxu0
        %6285 = vmatprep.mubr.f32.mxu0 0.0
        %v6286 = vand.u32 %v3913, 4294901760
        %v6287 = vsub.f32 %v3913, %v6286
        %v6288 = vand.u32 %v6287, 4294901760
        %6289 = vmatmul.mubr.f32.gmra.mrb[0].mxu0 %v6288
        %v6290 = vpop.f32.mrb[0].mxu0
        %v6291 = vadd.f32 %v5700, %v6290
        %v6292 = vpop.f32.mrb[0].mxu0
        %6293 = vmatprep.mubr.f32.mxu0 0.0
        %v6294 = vand.u32 %v3914, 4294901760
        %v6295 = vsub.f32 %v3914, %v6294
        %v6296 = vand.u32 %v6295, 4294901760
        %6297 = vmatmul.mubr.f32.gmra.mrb[0].mxu0 %v6296
        %v6298 = vpop.f32.mrb[0].mxu0
        %v6299 = vadd.f32 %v5707, %v6298
        %v6300 = vpop.f32.mrb[0].mxu0
        %6301 = vmatprep.mubr.f32.mxu0 0.0
        %v6302 = vand.u32 %v3915, 4294901760
        %v6303 = vsub.f32 %v3915, %v6302
        %v6304 = vand.u32 %v6303, 4294901760
        %6305 = vmatmul.mubr.f32.gmra.mrb[0].mxu0 %v6304
        %v6306 = vpop.f32.mrb[0].mxu0
        %v6307 = vadd.f32 %v5714, %v6306
        %v6308 = vpop.f32.mrb[0].mxu0
        %6309 = vdwg.mxu0
        %6310 = vmatprep.subr.mxu0 0.0
        %v6311 = vand.u32 %v476, 4294901760
        %v6312 = vsub.f32 %v476, %v6311
        %v6313 = vand.u32 %v6312, 4294901760
        %6314 = vmatpush1.msra.mxu0 %v6313
        %6315 = vmatprep.subr.mxu0 0.0
        %v6316 = vand.u32 %v477, 4294901760
        %v6317 = vsub.f32 %v477, %v6316
        %v6318 = vand.u32 %v6317, 4294901760
        %6319 = vmatpush1.msra.mxu0 %v6318
        %6320 = vmatprep.subr.mxu0 0.0
        %v6321 = vand.u32 %v478, 4294901760
        %v6322 = vsub.f32 %v478, %v6321
        %v6323 = vand.u32 %v6322, 4294901760
        %6324 = vmatpush1.msra.mxu0 %v6323
        %6325 = vmatprep.subr.mxu0 0.0
        %v6326 = vand.u32 %v479, 4294901760
        %v6327 = vsub.f32 %v479, %v6326
        %v6328 = vand.u32 %v6327, 4294901760
        %6329 = vmatpush1.msra.mxu0 %v6328
        %6330 = vmatprep.subr.mxu0 0.0
        %v6331 = vand.u32 %v480, 4294901760
        %v6332 = vsub.f32 %v480, %v6331
        %v6333 = vand.u32 %v6332, 4294901760
        %6334 = vmatpush1.msra.mxu0 %v6333
        %6335 = vmatprep.subr.mxu0 0.0
        %v6336 = vand.u32 %v481, 4294901760
        %v6337 = vsub.f32 %v481, %v6336
        %v6338 = vand.u32 %v6337, 4294901760
        %6339 = vmatpush1.msra.mxu0 %v6338
        %6340 = vmatprep.subr.mxu0 0.0
        %v6341 = vand.u32 %v482, 4294901760
        %v6342 = vsub.f32 %v482, %v6341
        %v6343 = vand.u32 %v6342, 4294901760
        %6344 = vmatpush1.msra.mxu0 %v6343
        %6345 = vmatprep.subr.mxu0 0.0
        %v6346 = vand.u32 %v483, 4294901760
        %v6347 = vsub.f32 %v483, %v6346
        %v6348 = vand.u32 %v6347, 4294901760
        %6349 = vmatpush1.msra.mxu0 %v6348
        %6350 = vmatprep.subr.mxu0 0.0
        %v6351 = vand.u32 %v484, 4294901760
        %v6352 = vsub.f32 %v484, %v6351
        %v6353 = vand.u32 %v6352, 4294901760
        %6354 = vmatpush1.msra.mxu0 %v6353
        %6355 = vmatprep.subr.mxu0 0.0
        %v6356 = vand.u32 %v485, 4294901760
        %v6357 = vsub.f32 %v485, %v6356
        %v6358 = vand.u32 %v6357, 4294901760
        %6359 = vmatpush1.msra.mxu0 %v6358
        %6360 = vmatprep.subr.mxu0 0.0
        %v6361 = vand.u32 %v486, 4294901760
        %v6362 = vsub.f32 %v486, %v6361
        %v6363 = vand.u32 %v6362, 4294901760
        %6364 = vmatpush1.msra.mxu0 %v6363
        %6365 = vmatprep.subr.mxu0 0.0
        %v6366 = vand.u32 %v487, 4294901760
        %v6367 = vsub.f32 %v487, %v6366
        %v6368 = vand.u32 %v6367, 4294901760
        %6369 = vmatpush1.msra.mxu0 %v6368
        %6370 = vmatprep.subr.mxu0 0.0
        %v6371 = vand.u32 %v488, 4294901760
        %v6372 = vsub.f32 %v488, %v6371
        %v6373 = vand.u32 %v6372, 4294901760
        %6374 = vmatpush1.msra.mxu0 %v6373
        %6375 = vmatprep.subr.mxu0 0.0
        %v6376 = vand.u32 %v489, 4294901760
        %v6377 = vsub.f32 %v489, %v6376
        %v6378 = vand.u32 %v6377, 4294901760
        %6379 = vmatpush1.msra.mxu0 %v6378
        %6380 = vmatprep.subr.mxu0 0.0
        %v6381 = vand.u32 %v490, 4294901760
        %v6382 = vsub.f32 %v490, %v6381
        %v6383 = vand.u32 %v6382, 4294901760
        %6384 = vmatpush1.msra.mxu0 %v6383
        %6385 = vmatprep.subr.mxu0 0.0
        %v6386 = vand.u32 %v491, 4294901760
        %v6387 = vsub.f32 %v491, %v6386
        %v6388 = vand.u32 %v6387, 4294901760
        %6389 = vmatpush1.msra.mxu0 %v6388
        %6390 = vmatprep.subr.mxu0 0.0
        %6391 = vmatpush1.msra.mxu0 0.0
        %6392 = vmatprep.subr.mxu0 0.0
        %6393 = vmatpush1.msra.mxu0 0.0
        %6394 = vmatprep.subr.mxu0 0.0
        %6395 = vmatpush1.msra.mxu0 0.0
        %6396 = vmatprep.subr.mxu0 0.0
        %6397 = vmatpush1.msra.mxu0 0.0
        %6398 = vmatprep.subr.mxu0 0.0
        %6399 = vmatpush1.msra.mxu0 0.0
        %6400 = vmatprep.subr.mxu0 0.0
        %6401 = vmatpush1.msra.mxu0 0.0
        %6402 = vmatprep.subr.mxu0 0.0
        %6403 = vmatpush1.msra.mxu0 0.0
        %6404 = vmatprep.subr.mxu0 0.0
        %6405 = vmatpush1.msra.mxu0 0.0
        %6406 = vmatprep.subr.mxu0 0.0
        %6407 = vmatpush1.msra.mxu0 0.0
        %6408 = vmatprep.subr.mxu0 0.0
        %6409 = vmatpush1.msra.mxu0 0.0
        %6410 = vmatprep.subr.mxu0 0.0
        %6411 = vmatpush1.msra.mxu0 0.0
        %6412 = vmatprep.subr.mxu0 0.0
        %6413 = vmatpush1.msra.mxu0 0.0
        %6414 = vmatprep.subr.mxu0 0.0
        %6415 = vmatpush1.msra.mxu0 0.0
        %6416 = vmatprep.subr.mxu0 0.0
        %6417 = vmatpush1.msra.mxu0 0.0
        %6418 = vmatprep.subr.mxu0 0.0
        %6419 = vmatpush1.msra.mxu0 0.0
        %6420 = vmatprep.subr.mxu0 0.0
        %6421 = vmatpush1.msra.mxu0 0.0
        %6422 = vmatprep.mubr.f32.mxu0 0.0
        %v6423 = vand.u32 %v3852, 4294901760
        %6424 = vmatmul.mubr.f32.gmra.mrb[0].mxu0 %v6423
        %v6425 = vpop.f32.mrb[0].mxu0
        %v6426 = vadd.f32 %v5803, %v6425
        %v6427 = vpop.f32.mrb[0].mxu0
        %6428 = vmatprep.mubr.f32.mxu0 0.0
        %v6429 = vand.u32 %v3853, 4294901760
        %6430 = vmatmul.mubr.f32.gmra.mrb[0].mxu0 %v6429
        %v6431 = vpop.f32.mrb[0].mxu0
        %v6432 = vadd.f32 %v5811, %v6431
        %v6433 = vpop.f32.mrb[0].mxu0
        %6434 = vmatprep.mubr.f32.mxu0 0.0
        %v6435 = vand.u32 %v3854, 4294901760
        %6436 = vmatmul.mubr.f32.gmra.mrb[0].mxu0 %v6435
        %v6437 = vpop.f32.mrb[0].mxu0
        %v6438 = vadd.f32 %v5819, %v6437
        %v6439 = vpop.f32.mrb[0].mxu0
        %6440 = vmatprep.mubr.f32.mxu0 0.0
        %v6441 = vand.u32 %v3855, 4294901760
        %6442 = vmatmul.mubr.f32.gmra.mrb[0].mxu0 %v6441
        %v6443 = vpop.f32.mrb[0].mxu0
        %v6444 = vadd.f32 %v5827, %v6443
        %v6445 = vpop.f32.mrb[0].mxu0
        %6446 = vmatprep.mubr.f32.mxu0 0.0
        %v6447 = vand.u32 %v3856, 4294901760
        %6448 = vmatmul.mubr.f32.gmra.mrb[0].mxu0 %v6447
        %v6449 = vpop.f32.mrb[0].mxu0
        %v6450 = vadd.f32 %v5835, %v6449
        %v6451 = vpop.f32.mrb[0].mxu0
        %6452 = vmatprep.mubr.f32.mxu0 0.0
        %v6453 = vand.u32 %v3857, 4294901760
        %6454 = vmatmul.mubr.f32.gmra.mrb[0].mxu0 %v6453
        %v6455 = vpop.f32.mrb[0].mxu0
        %v6456 = vadd.f32 %v5843, %v6455
        %v6457 = vpop.f32.mrb[0].mxu0
        %6458 = vmatprep.mubr.f32.mxu0 0.0
        %v6459 = vand.u32 %v3858, 4294901760
        %6460 = vmatmul.mubr.f32.gmra.mrb[0].mxu0 %v6459
        %v6461 = vpop.f32.mrb[0].mxu0
        %v6462 = vadd.f32 %v5851, %v6461
        %v6463 = vpop.f32.mrb[0].mxu0
        %6464 = vmatprep.mubr.f32.mxu0 0.0
        %v6465 = vand.u32 %v3859, 4294901760
        %6466 = vmatmul.mubr.f32.gmra.mrb[0].mxu0 %v6465
        %v6467 = vpop.f32.mrb[0].mxu0
        %v6468 = vadd.f32 %v5859, %v6467
        %v6469 = vpop.f32.mrb[0].mxu0
        %6470 = vmatprep.mubr.f32.mxu0 0.0
        %v6471 = vand.u32 %v3860, 4294901760
        %6472 = vmatmul.mubr.f32.gmra.mrb[0].mxu0 %v6471
        %v6473 = vpop.f32.mrb[0].mxu0
        %v6474 = vadd.f32 %v5867, %v6473
        %v6475 = vpop.f32.mrb[0].mxu0
        %6476 = vmatprep.mubr.f32.mxu0 0.0
        %v6477 = vand.u32 %v3861, 4294901760
        %6478 = vmatmul.mubr.f32.gmra.mrb[0].mxu0 %v6477
        %v6479 = vpop.f32.mrb[0].mxu0
        %v6480 = vadd.f32 %v5875, %v6479
        %v6481 = vpop.f32.mrb[0].mxu0
        %6482 = vmatprep.mubr.f32.mxu0 0.0
        %v6483 = vand.u32 %v3862, 4294901760
        %6484 = vmatmul.mubr.f32.gmra.mrb[0].mxu0 %v6483
        %v6485 = vpop.f32.mrb[0].mxu0
        %v6486 = vadd.f32 %v5883, %v6485
        %v6487 = vpop.f32.mrb[0].mxu0
        %6488 = vmatprep.mubr.f32.mxu0 0.0
        %v6489 = vand.u32 %v3863, 4294901760
        %6490 = vmatmul.mubr.f32.gmra.mrb[0].mxu0 %v6489
        %v6491 = vpop.f32.mrb[0].mxu0
        %v6492 = vadd.f32 %v5891, %v6491
        %v6493 = vpop.f32.mrb[0].mxu0
        %6494 = vmatprep.mubr.f32.mxu0 0.0
        %v6495 = vand.u32 %v3864, 4294901760
        %6496 = vmatmul.mubr.f32.gmra.mrb[0].mxu0 %v6495
        %v6497 = vpop.f32.mrb[0].mxu0
        %v6498 = vadd.f32 %v5899, %v6497
        %v6499 = vpop.f32.mrb[0].mxu0
        %6500 = vmatprep.mubr.f32.mxu0 0.0
        %v6501 = vand.u32 %v3865, 4294901760
        %6502 = vmatmul.mubr.f32.gmra.mrb[0].mxu0 %v6501
        %v6503 = vpop.f32.mrb[0].mxu0
        %v6504 = vadd.f32 %v5907, %v6503
        %v6505 = vpop.f32.mrb[0].mxu0
        %6506 = vmatprep.mubr.f32.mxu0 0.0
        %v6507 = vand.u32 %v3866, 4294901760
        %6508 = vmatmul.mubr.f32.gmra.mrb[0].mxu0 %v6507
        %v6509 = vpop.f32.mrb[0].mxu0
        %v6510 = vadd.f32 %v5915, %v6509
        %v6511 = vpop.f32.mrb[0].mxu0
        %6512 = vmatprep.mubr.f32.mxu0 0.0
        %v6513 = vand.u32 %v3867, 4294901760
        %6514 = vmatmul.mubr.f32.gmra.mrb[0].mxu0 %v6513
        %v6515 = vpop.f32.mrb[0].mxu0
        %v6516 = vadd.f32 %v5923, %v6515
        %v6517 = vpop.f32.mrb[0].mxu0
        %6518 = vmatprep.mubr.f32.mxu0 0.0
        %v6519 = vand.u32 %v3868, 4294901760
        %6520 = vmatmul.mubr.f32.gmra.mrb[0].mxu0 %v6519
        %v6521 = vpop.f32.mrb[0].mxu0
        %v6522 = vadd.f32 %v5931, %v6521
        %v6523 = vpop.f32.mrb[0].mxu0
        %6524 = vmatprep.mubr.f32.mxu0 0.0
        %v6525 = vand.u32 %v3869, 4294901760
        %6526 = vmatmul.mubr.f32.gmra.mrb[0].mxu0 %v6525
        %v6527 = vpop.f32.mrb[0].mxu0
        %v6528 = vadd.f32 %v5939, %v6527
        %v6529 = vpop.f32.mrb[0].mxu0
        %6530 = vmatprep.mubr.f32.mxu0 0.0
        %v6531 = vand.u32 %v3870, 4294901760
        %6532 = vmatmul.mubr.f32.gmra.mrb[0].mxu0 %v6531
        %v6533 = vpop.f32.mrb[0].mxu0
        %v6534 = vadd.f32 %v5947, %v6533
        %v6535 = vpop.f32.mrb[0].mxu0
        %6536 = vmatprep.mubr.f32.mxu0 0.0
        %v6537 = vand.u32 %v3871, 4294901760
        %6538 = vmatmul.mubr.f32.gmra.mrb[0].mxu0 %v6537
        %v6539 = vpop.f32.mrb[0].mxu0
        %v6540 = vadd.f32 %v5955, %v6539
        %v6541 = vpop.f32.mrb[0].mxu0
        %6542 = vmatprep.mubr.f32.mxu0 0.0
        %v6543 = vand.u32 %v3872, 4294901760
        %6544 = vmatmul.mubr.f32.gmra.mrb[0].mxu0 %v6543
        %v6545 = vpop.f32.mrb[0].mxu0
        %v6546 = vadd.f32 %v5963, %v6545
        %v6547 = vpop.f32.mrb[0].mxu0
        %6548 = vmatprep.mubr.f32.mxu0 0.0
        %v6549 = vand.u32 %v3873, 4294901760
        %6550 = vmatmul.mubr.f32.gmra.mrb[0].mxu0 %v6549
        %v6551 = vpop.f32.mrb[0].mxu0
        %v6552 = vadd.f32 %v5971, %v6551
        %v6553 = vpop.f32.mrb[0].mxu0
        %6554 = vmatprep.mubr.f32.mxu0 0.0
        %v6555 = vand.u32 %v3874, 4294901760
        %6556 = vmatmul.mubr.f32.gmra.mrb[0].mxu0 %v6555
        %v6557 = vpop.f32.mrb[0].mxu0
        %v6558 = vadd.f32 %v5979, %v6557
        %v6559 = vpop.f32.mrb[0].mxu0
        %6560 = vmatprep.mubr.f32.mxu0 0.0
        %v6561 = vand.u32 %v3875, 4294901760
        %6562 = vmatmul.mubr.f32.gmra.mrb[0].mxu0 %v6561
        %v6563 = vpop.f32.mrb[0].mxu0
        %v6564 = vadd.f32 %v5987, %v6563
        %v6565 = vpop.f32.mrb[0].mxu0
        %6566 = vmatprep.mubr.f32.mxu0 0.0
        %v6567 = vand.u32 %v3876, 4294901760
        %6568 = vmatmul.mubr.f32.gmra.mrb[0].mxu0 %v6567
        %v6569 = vpop.f32.mrb[0].mxu0
        %v6570 = vadd.f32 %v5995, %v6569
        %v6571 = vpop.f32.mrb[0].mxu0
        %6572 = vmatprep.mubr.f32.mxu0 0.0
        %v6573 = vand.u32 %v3877, 4294901760
        %6574 = vmatmul.mubr.f32.gmra.mrb[0].mxu0 %v6573
        %v6575 = vpop.f32.mrb[0].mxu0
        %v6576 = vadd.f32 %v6003, %v6575
        %v6577 = vpop.f32.mrb[0].mxu0
        %6578 = vmatprep.mubr.f32.mxu0 0.0
        %v6579 = vand.u32 %v3878, 4294901760
        %6580 = vmatmul.mubr.f32.gmra.mrb[0].mxu0 %v6579
        %v6581 = vpop.f32.mrb[0].mxu0
        %v6582 = vadd.f32 %v6011, %v6581
        %v6583 = vpop.f32.mrb[0].mxu0
        %6584 = vmatprep.mubr.f32.mxu0 0.0
        %v6585 = vand.u32 %v3879, 4294901760
        %6586 = vmatmul.mubr.f32.gmra.mrb[0].mxu0 %v6585
        %v6587 = vpop.f32.mrb[0].mxu0
        %v6588 = vadd.f32 %v6019, %v6587
        %v6589 = vpop.f32.mrb[0].mxu0
        %6590 = vmatprep.mubr.f32.mxu0 0.0
        %v6591 = vand.u32 %v3880, 4294901760
        %6592 = vmatmul.mubr.f32.gmra.mrb[0].mxu0 %v6591
        %v6593 = vpop.f32.mrb[0].mxu0
        %v6594 = vadd.f32 %v6027, %v6593
        %v6595 = vpop.f32.mrb[0].mxu0
        %6596 = vmatprep.mubr.f32.mxu0 0.0
        %v6597 = vand.u32 %v3881, 4294901760
        %6598 = vmatmul.mubr.f32.gmra.mrb[0].mxu0 %v6597
        %v6599 = vpop.f32.mrb[0].mxu0
        %v6600 = vadd.f32 %v6035, %v6599
        %v6601 = vpop.f32.mrb[0].mxu0
        %6602 = vmatprep.mubr.f32.mxu0 0.0
        %v6603 = vand.u32 %v3882, 4294901760
        %6604 = vmatmul.mubr.f32.gmra.mrb[0].mxu0 %v6603
        %v6605 = vpop.f32.mrb[0].mxu0
        %v6606 = vadd.f32 %v6043, %v6605
        %v6607 = vpop.f32.mrb[0].mxu0
        %6608 = vmatprep.mubr.f32.mxu0 0.0
        %v6609 = vand.u32 %v3883, 4294901760
        %6610 = vmatmul.mubr.f32.gmra.mrb[0].mxu0 %v6609
        %v6611 = vpop.f32.mrb[0].mxu0
        %v6612 = vadd.f32 %v6051, %v6611
        %v6613 = vpop.f32.mrb[0].mxu0
        %6614 = vmatprep.mubr.f32.mxu0 0.0
        %v6615 = vand.u32 %v3884, 4294901760
        %6616 = vmatmul.mubr.f32.gmra.mrb[0].mxu0 %v6615
        %v6617 = vpop.f32.mrb[0].mxu0
        %v6618 = vadd.f32 %v6059, %v6617
        %v6619 = vpop.f32.mrb[0].mxu0
        %6620 = vmatprep.mubr.f32.mxu0 0.0
        %v6621 = vand.u32 %v3885, 4294901760
        %6622 = vmatmul.mubr.f32.gmra.mrb[0].mxu0 %v6621
        %v6623 = vpop.f32.mrb[0].mxu0
        %v6624 = vadd.f32 %v6067, %v6623
        %v6625 = vpop.f32.mrb[0].mxu0
        %6626 = vmatprep.mubr.f32.mxu0 0.0
        %v6627 = vand.u32 %v3886, 4294901760
        %6628 = vmatmul.mubr.f32.gmra.mrb[0].mxu0 %v6627
        %v6629 = vpop.f32.mrb[0].mxu0
        %v6630 = vadd.f32 %v6075, %v6629
        %v6631 = vpop.f32.mrb[0].mxu0
        %6632 = vmatprep.mubr.f32.mxu0 0.0
        %v6633 = vand.u32 %v3887, 4294901760
        %6634 = vmatmul.mubr.f32.gmra.mrb[0].mxu0 %v6633
        %v6635 = vpop.f32.mrb[0].mxu0
        %v6636 = vadd.f32 %v6083, %v6635
        %v6637 = vpop.f32.mrb[0].mxu0
        %6638 = vmatprep.mubr.f32.mxu0 0.0
        %v6639 = vand.u32 %v3888, 4294901760
        %6640 = vmatmul.mubr.f32.gmra.mrb[0].mxu0 %v6639
        %v6641 = vpop.f32.mrb[0].mxu0
        %v6642 = vadd.f32 %v6091, %v6641
        %v6643 = vpop.f32.mrb[0].mxu0
        %6644 = vmatprep.mubr.f32.mxu0 0.0
        %v6645 = vand.u32 %v3889, 4294901760
        %6646 = vmatmul.mubr.f32.gmra.mrb[0].mxu0 %v6645
        %v6647 = vpop.f32.mrb[0].mxu0
        %v6648 = vadd.f32 %v6099, %v6647
        %v6649 = vpop.f32.mrb[0].mxu0
        %6650 = vmatprep.mubr.f32.mxu0 0.0
        %v6651 = vand.u32 %v3890, 4294901760
        %6652 = vmatmul.mubr.f32.gmra.mrb[0].mxu0 %v6651
        %v6653 = vpop.f32.mrb[0].mxu0
        %v6654 = vadd.f32 %v6107, %v6653
        %v6655 = vpop.f32.mrb[0].mxu0
        %6656 = vmatprep.mubr.f32.mxu0 0.0
        %v6657 = vand.u32 %v3891, 4294901760
        %6658 = vmatmul.mubr.f32.gmra.mrb[0].mxu0 %v6657
        %v6659 = vpop.f32.mrb[0].mxu0
        %v6660 = vadd.f32 %v6115, %v6659
        %v6661 = vpop.f32.mrb[0].mxu0
        %6662 = vmatprep.mubr.f32.mxu0 0.0
        %v6663 = vand.u32 %v3892, 4294901760
        %6664 = vmatmul.mubr.f32.gmra.mrb[0].mxu0 %v6663
        %v6665 = vpop.f32.mrb[0].mxu0
        %v6666 = vadd.f32 %v6123, %v6665
        %v6667 = vpop.f32.mrb[0].mxu0
        %6668 = vmatprep.mubr.f32.mxu0 0.0
        %v6669 = vand.u32 %v3893, 4294901760
        %6670 = vmatmul.mubr.f32.gmra.mrb[0].mxu0 %v6669
        %v6671 = vpop.f32.mrb[0].mxu0
        %v6672 = vadd.f32 %v6131, %v6671
        %v6673 = vpop.f32.mrb[0].mxu0
        %6674 = vmatprep.mubr.f32.mxu0 0.0
        %v6675 = vand.u32 %v3894, 4294901760
        %6676 = vmatmul.mubr.f32.gmra.mrb[0].mxu0 %v6675
        %v6677 = vpop.f32.mrb[0].mxu0
        %v6678 = vadd.f32 %v6139, %v6677
        %v6679 = vpop.f32.mrb[0].mxu0
        %6680 = vmatprep.mubr.f32.mxu0 0.0
        %v6681 = vand.u32 %v3895, 4294901760
        %6682 = vmatmul.mubr.f32.gmra.mrb[0].mxu0 %v6681
        %v6683 = vpop.f32.mrb[0].mxu0
        %v6684 = vadd.f32 %v6147, %v6683
        %v6685 = vpop.f32.mrb[0].mxu0
        %6686 = vmatprep.mubr.f32.mxu0 0.0
        %v6687 = vand.u32 %v3896, 4294901760
        %6688 = vmatmul.mubr.f32.gmra.mrb[0].mxu0 %v6687
        %v6689 = vpop.f32.mrb[0].mxu0
        %v6690 = vadd.f32 %v6155, %v6689
        %v6691 = vpop.f32.mrb[0].mxu0
        %6692 = vmatprep.mubr.f32.mxu0 0.0
        %v6693 = vand.u32 %v3897, 4294901760
        %6694 = vmatmul.mubr.f32.gmra.mrb[0].mxu0 %v6693
        %v6695 = vpop.f32.mrb[0].mxu0
        %v6696 = vadd.f32 %v6163, %v6695
        %v6697 = vpop.f32.mrb[0].mxu0
        %6698 = vmatprep.mubr.f32.mxu0 0.0
        %v6699 = vand.u32 %v3898, 4294901760
        %6700 = vmatmul.mubr.f32.gmra.mrb[0].mxu0 %v6699
        %v6701 = vpop.f32.mrb[0].mxu0
        %v6702 = vadd.f32 %v6171, %v6701
        %v6703 = vpop.f32.mrb[0].mxu0
        %6704 = vmatprep.mubr.f32.mxu0 0.0
        %v6705 = vand.u32 %v3899, 4294901760
        %6706 = vmatmul.mubr.f32.gmra.mrb[0].mxu0 %v6705
        %v6707 = vpop.f32.mrb[0].mxu0
        %v6708 = vadd.f32 %v6179, %v6707
        %v6709 = vpop.f32.mrb[0].mxu0
        %6710 = vmatprep.mubr.f32.mxu0 0.0
        %v6711 = vand.u32 %v3900, 4294901760
        %6712 = vmatmul.mubr.f32.gmra.mrb[0].mxu0 %v6711
        %v6713 = vpop.f32.mrb[0].mxu0
        %v6714 = vadd.f32 %v6187, %v6713
        %v6715 = vpop.f32.mrb[0].mxu0
        %6716 = vmatprep.mubr.f32.mxu0 0.0
        %v6717 = vand.u32 %v3901, 4294901760
        %6718 = vmatmul.mubr.f32.gmra.mrb[0].mxu0 %v6717
        %v6719 = vpop.f32.mrb[0].mxu0
        %v6720 = vadd.f32 %v6195, %v6719
        %v6721 = vpop.f32.mrb[0].mxu0
        %6722 = vmatprep.mubr.f32.mxu0 0.0
        %v6723 = vand.u32 %v3902, 4294901760
        %6724 = vmatmul.mubr.f32.gmra.mrb[0].mxu0 %v6723
        %v6725 = vpop.f32.mrb[0].mxu0
        %v6726 = vadd.f32 %v6203, %v6725
        %v6727 = vpop.f32.mrb[0].mxu0
        %6728 = vmatprep.mubr.f32.mxu0 0.0
        %v6729 = vand.u32 %v3903, 4294901760
        %6730 = vmatmul.mubr.f32.gmra.mrb[0].mxu0 %v6729
        %v6731 = vpop.f32.mrb[0].mxu0
        %v6732 = vadd.f32 %v6211, %v6731
        %v6733 = vpop.f32.mrb[0].mxu0
        %6734 = vmatprep.mubr.f32.mxu0 0.0
        %v6735 = vand.u32 %v3904, 4294901760
        %6736 = vmatmul.mubr.f32.gmra.mrb[0].mxu0 %v6735
        %v6737 = vpop.f32.mrb[0].mxu0
        %v6738 = vadd.f32 %v6219, %v6737
        %v6739 = vpop.f32.mrb[0].mxu0
        %6740 = vmatprep.mubr.f32.mxu0 0.0
        %v6741 = vand.u32 %v3905, 4294901760
        %6742 = vmatmul.mubr.f32.gmra.mrb[0].mxu0 %v6741
        %v6743 = vpop.f32.mrb[0].mxu0
        %v6744 = vadd.f32 %v6227, %v6743
        %v6745 = vpop.f32.mrb[0].mxu0
        %6746 = vmatprep.mubr.f32.mxu0 0.0
        %v6747 = vand.u32 %v3906, 4294901760
        %6748 = vmatmul.mubr.f32.gmra.mrb[0].mxu0 %v6747
        %v6749 = vpop.f32.mrb[0].mxu0
        %v6750 = vadd.f32 %v6235, %v6749
        %v6751 = vpop.f32.mrb[0].mxu0
        %6752 = vmatprep.mubr.f32.mxu0 0.0
        %v6753 = vand.u32 %v3907, 4294901760
        %6754 = vmatmul.mubr.f32.gmra.mrb[0].mxu0 %v6753
        %v6755 = vpop.f32.mrb[0].mxu0
        %v6756 = vadd.f32 %v6243, %v6755
        %v6757 = vpop.f32.mrb[0].mxu0
        %6758 = vmatprep.mubr.f32.mxu0 0.0
        %v6759 = vand.u32 %v3908, 4294901760
        %6760 = vmatmul.mubr.f32.gmra.mrb[0].mxu0 %v6759
        %v6761 = vpop.f32.mrb[0].mxu0
        %v6762 = vadd.f32 %v6251, %v6761
        %v6763 = vpop.f32.mrb[0].mxu0
        %6764 = vmatprep.mubr.f32.mxu0 0.0
        %v6765 = vand.u32 %v3909, 4294901760
        %6766 = vmatmul.mubr.f32.gmra.mrb[0].mxu0 %v6765
        %v6767 = vpop.f32.mrb[0].mxu0
        %v6768 = vadd.f32 %v6259, %v6767
        %v6769 = vpop.f32.mrb[0].mxu0
        %6770 = vmatprep.mubr.f32.mxu0 0.0
        %v6771 = vand.u32 %v3910, 4294901760
        %6772 = vmatmul.mubr.f32.gmra.mrb[0].mxu0 %v6771
        %v6773 = vpop.f32.mrb[0].mxu0
        %v6774 = vadd.f32 %v6267, %v6773
        %v6775 = vpop.f32.mrb[0].mxu0
        %6776 = vmatprep.mubr.f32.mxu0 0.0
        %v6777 = vand.u32 %v3911, 4294901760
        %6778 = vmatmul.mubr.f32.gmra.mrb[0].mxu0 %v6777
        %v6779 = vpop.f32.mrb[0].mxu0
        %v6780 = vadd.f32 %v6275, %v6779
        %v6781 = vpop.f32.mrb[0].mxu0
        %6782 = vmatprep.mubr.f32.mxu0 0.0
        %v6783 = vand.u32 %v3912, 4294901760
        %6784 = vmatmul.mubr.f32.gmra.mrb[0].mxu0 %v6783
        %v6785 = vpop.f32.mrb[0].mxu0
        %v6786 = vadd.f32 %v6283, %v6785
        %v6787 = vpop.f32.mrb[0].mxu0
        %6788 = vmatprep.mubr.f32.mxu0 0.0
        %v6789 = vand.u32 %v3913, 4294901760
        %6790 = vmatmul.mubr.f32.gmra.mrb[0].mxu0 %v6789
        %v6791 = vpop.f32.mrb[0].mxu0
        %v6792 = vadd.f32 %v6291, %v6791
        %v6793 = vpop.f32.mrb[0].mxu0
        %6794 = vmatprep.mubr.f32.mxu0 0.0
        %v6795 = vand.u32 %v3914, 4294901760
        %6796 = vmatmul.mubr.f32.gmra.mrb[0].mxu0 %v6795
        %v6797 = vpop.f32.mrb[0].mxu0
        %v6798 = vadd.f32 %v6299, %v6797
        %v6799 = vpop.f32.mrb[0].mxu0
        %6800 = vmatprep.mubr.f32.mxu0 0.0
        %v6801 = vand.u32 %v3915, 4294901760
        %6802 = vmatmul.mubr.f32.gmra.mrb[0].mxu0 %v6801
        %v6803 = vpop.f32.mrb[0].mxu0
        %v6804 = vadd.f32 %v6307, %v6803
        %v6805 = vpop.f32.mrb[0].mxu0
        %6806 = vdwg.mxu0
        %6807 = vmatprep.subr.mxu0 0.0
        %v6808 = vand.u32 %v476, 4294901760
        %6809 = vmatpush1.msra.mxu0 %v6808
        %6810 = vmatprep.subr.mxu0 0.0
        %v6811 = vand.u32 %v477, 4294901760
        %6812 = vmatpush1.msra.mxu0 %v6811
        %6813 = vmatprep.subr.mxu0 0.0
        %v6814 = vand.u32 %v478, 4294901760
        %6815 = vmatpush1.msra.mxu0 %v6814
        %6816 = vmatprep.subr.mxu0 0.0
        %v6817 = vand.u32 %v479, 4294901760
        %6818 = vmatpush1.msra.mxu0 %v6817
        %6819 = vmatprep.subr.mxu0 0.0
        %v6820 = vand.u32 %v480, 4294901760
        %6821 = vmatpush1.msra.mxu0 %v6820
        %6822 = vmatprep.subr.mxu0 0.0
        %v6823 = vand.u32 %v481, 4294901760
        %6824 = vmatpush1.msra.mxu0 %v6823
        %6825 = vmatprep.subr.mxu0 0.0
        %v6826 = vand.u32 %v482, 4294901760
        %6827 = vmatpush1.msra.mxu0 %v6826
        %6828 = vmatprep.subr.mxu0 0.0
        %v6829 = vand.u32 %v483, 4294901760
        %6830 = vmatpush1.msra.mxu0 %v6829
        %6831 = vmatprep.subr.mxu0 0.0
        %v6832 = vand.u32 %v484, 4294901760
        %6833 = vmatpush1.msra.mxu0 %v6832
        %6834 = vmatprep.subr.mxu0 0.0
        %v6835 = vand.u32 %v485, 4294901760
        %6836 = vmatpush1.msra.mxu0 %v6835
        %6837 = vmatprep.subr.mxu0 0.0
        %v6838 = vand.u32 %v486, 4294901760
        %6839 = vmatpush1.msra.mxu0 %v6838
        %6840 = vmatprep.subr.mxu0 0.0
        %v6841 = vand.u32 %v487, 4294901760
        %6842 = vmatpush1.msra.mxu0 %v6841
        %6843 = vmatprep.subr.mxu0 0.0
        %v6844 = vand.u32 %v488, 4294901760
        %6845 = vmatpush1.msra.mxu0 %v6844
        %6846 = vmatprep.subr.mxu0 0.0
        %v6847 = vand.u32 %v489, 4294901760
        %6848 = vmatpush1.msra.mxu0 %v6847
        %6849 = vmatprep.subr.mxu0 0.0
        %v6850 = vand.u32 %v490, 4294901760
        %6851 = vmatpush1.msra.mxu0 %v6850
        %6852 = vmatprep.subr.mxu0 0.0
        %v6853 = vand.u32 %v491, 4294901760
        %6854 = vmatpush1.msra.mxu0 %v6853
        %6855 = vmatprep.subr.mxu0 0.0
        %6856 = vmatpush1.msra.mxu0 0.0
        %6857 = vmatprep.subr.mxu0 0.0
        %6858 = vmatpush1.msra.mxu0 0.0
        %6859 = vmatprep.subr.mxu0 0.0
        %6860 = vmatpush1.msra.mxu0 0.0
        %6861 = vmatprep.subr.mxu0 0.0
        %6862 = vmatpush1.msra.mxu0 0.0
        %6863 = vmatprep.subr.mxu0 0.0
        %6864 = vmatpush1.msra.mxu0 0.0
        %6865 = vmatprep.subr.mxu0 0.0
        %6866 = vmatpush1.msra.mxu0 0.0
        %6867 = vmatprep.subr.mxu0 0.0
        %6868 = vmatpush1.msra.mxu0 0.0
        %6869 = vmatprep.subr.mxu0 0.0
        %6870 = vmatpush1.msra.mxu0 0.0
        %6871 = vmatprep.subr.mxu0 0.0
        %6872 = vmatpush1.msra.mxu0 0.0
        %6873 = vmatprep.subr.mxu0 0.0
        %6874 = vmatpush1.msra.mxu0 0.0
        %6875 = vmatprep.subr.mxu0 0.0
        %6876 = vmatpush1.msra.mxu0 0.0
        %6877 = vmatprep.subr.mxu0 0.0
        %6878 = vmatpush1.msra.mxu0 0.0
        %6879 = vmatprep.subr.mxu0 0.0
        %6880 = vmatpush1.msra.mxu0 0.0
        %6881 = vmatprep.subr.mxu0 0.0
        %6882 = vmatpush1.msra.mxu0 0.0
        %6883 = vmatprep.subr.mxu0 0.0
        %6884 = vmatpush1.msra.mxu0 0.0
        %6885 = vmatprep.subr.mxu0 0.0
        %6886 = vmatpush1.msra.mxu0 0.0
        %6887 = vmatprep.mubr.f32.mxu0 0.0
        %v6888 = vand.u32 %v3852, 4294901760
        %6889 = vmatmul.mubr.f32.gmra.mrb[0].mxu0 %v6888
        %v6890 = vpop.f32.mrb[0].mxu0
        %v6891 = vadd.f32 %v6426, %v6890
        %v6892 = vpop.f32.mrb[0].mxu0
        %6893 = vmatprep.mubr.f32.mxu0 0.0
        %v6894 = vand.u32 %v3853, 4294901760
        %6895 = vmatmul.mubr.f32.gmra.mrb[0].mxu0 %v6894
        %v6896 = vpop.f32.mrb[0].mxu0
        %v6897 = vadd.f32 %v6432, %v6896
        %v6898 = vpop.f32.mrb[0].mxu0
        %6899 = vmatprep.mubr.f32.mxu0 0.0
        %v6900 = vand.u32 %v3854, 4294901760
        %6901 = vmatmul.mubr.f32.gmra.mrb[0].mxu0 %v6900
        %v6902 = vpop.f32.mrb[0].mxu0
        %v6903 = vadd.f32 %v6438, %v6902
        %v6904 = vpop.f32.mrb[0].mxu0
        %6905 = vmatprep.mubr.f32.mxu0 0.0
        %v6906 = vand.u32 %v3855, 4294901760
        %6907 = vmatmul.mubr.f32.gmra.mrb[0].mxu0 %v6906
        %v6908 = vpop.f32.mrb[0].mxu0
        %v6909 = vadd.f32 %v6444, %v6908
        %v6910 = vpop.f32.mrb[0].mxu0
        %6911 = vmatprep.mubr.f32.mxu0 0.0
        %v6912 = vand.u32 %v3856, 4294901760
        %6913 = vmatmul.mubr.f32.gmra.mrb[0].mxu0 %v6912
        %v6914 = vpop.f32.mrb[0].mxu0
        %v6915 = vadd.f32 %v6450, %v6914
        %v6916 = vpop.f32.mrb[0].mxu0
        %6917 = vmatprep.mubr.f32.mxu0 0.0
        %v6918 = vand.u32 %v3857, 4294901760
        %6919 = vmatmul.mubr.f32.gmra.mrb[0].mxu0 %v6918
        %v6920 = vpop.f32.mrb[0].mxu0
        %v6921 = vadd.f32 %v6456, %v6920
        %v6922 = vpop.f32.mrb[0].mxu0
        %6923 = vmatprep.mubr.f32.mxu0 0.0
        %v6924 = vand.u32 %v3858, 4294901760
        %6925 = vmatmul.mubr.f32.gmra.mrb[0].mxu0 %v6924
        %v6926 = vpop.f32.mrb[0].mxu0
        %v6927 = vadd.f32 %v6462, %v6926
        %v6928 = vpop.f32.mrb[0].mxu0
        %6929 = vmatprep.mubr.f32.mxu0 0.0
        %v6930 = vand.u32 %v3859, 4294901760
        %6931 = vmatmul.mubr.f32.gmra.mrb[0].mxu0 %v6930
        %v6932 = vpop.f32.mrb[0].mxu0
        %v6933 = vadd.f32 %v6468, %v6932
        %v6934 = vpop.f32.mrb[0].mxu0
        %6935 = vmatprep.mubr.f32.mxu0 0.0
        %v6936 = vand.u32 %v3860, 4294901760
        %6937 = vmatmul.mubr.f32.gmra.mrb[0].mxu0 %v6936
        %v6938 = vpop.f32.mrb[0].mxu0
        %v6939 = vadd.f32 %v6474, %v6938
        %v6940 = vpop.f32.mrb[0].mxu0
        %6941 = vmatprep.mubr.f32.mxu0 0.0
        %v6942 = vand.u32 %v3861, 4294901760
        %6943 = vmatmul.mubr.f32.gmra.mrb[0].mxu0 %v6942
        %v6944 = vpop.f32.mrb[0].mxu0
        %v6945 = vadd.f32 %v6480, %v6944
        %v6946 = vpop.f32.mrb[0].mxu0
        %6947 = vmatprep.mubr.f32.mxu0 0.0
        %v6948 = vand.u32 %v3862, 4294901760
        %6949 = vmatmul.mubr.f32.gmra.mrb[0].mxu0 %v6948
        %v6950 = vpop.f32.mrb[0].mxu0
        %v6951 = vadd.f32 %v6486, %v6950
        %v6952 = vpop.f32.mrb[0].mxu0
        %6953 = vmatprep.mubr.f32.mxu0 0.0
        %v6954 = vand.u32 %v3863, 4294901760
        %6955 = vmatmul.mubr.f32.gmra.mrb[0].mxu0 %v6954
        %v6956 = vpop.f32.mrb[0].mxu0
        %v6957 = vadd.f32 %v6492, %v6956
        %v6958 = vpop.f32.mrb[0].mxu0
        %6959 = vmatprep.mubr.f32.mxu0 0.0
        %v6960 = vand.u32 %v3864, 4294901760
        %6961 = vmatmul.mubr.f32.gmra.mrb[0].mxu0 %v6960
        %v6962 = vpop.f32.mrb[0].mxu0
        %v6963 = vadd.f32 %v6498, %v6962
        %v6964 = vpop.f32.mrb[0].mxu0
        %6965 = vmatprep.mubr.f32.mxu0 0.0
        %v6966 = vand.u32 %v3865, 4294901760
        %6967 = vmatmul.mubr.f32.gmra.mrb[0].mxu0 %v6966
        %v6968 = vpop.f32.mrb[0].mxu0
        %v6969 = vadd.f32 %v6504, %v6968
        %v6970 = vpop.f32.mrb[0].mxu0
        %6971 = vmatprep.mubr.f32.mxu0 0.0
        %v6972 = vand.u32 %v3866, 4294901760
        %6973 = vmatmul.mubr.f32.gmra.mrb[0].mxu0 %v6972
        %v6974 = vpop.f32.mrb[0].mxu0
        %v6975 = vadd.f32 %v6510, %v6974
        %v6976 = vpop.f32.mrb[0].mxu0
        %6977 = vmatprep.mubr.f32.mxu0 0.0
        %v6978 = vand.u32 %v3867, 4294901760
        %6979 = vmatmul.mubr.f32.gmra.mrb[0].mxu0 %v6978
        %v6980 = vpop.f32.mrb[0].mxu0
        %v6981 = vadd.f32 %v6516, %v6980
        %v6982 = vpop.f32.mrb[0].mxu0
        %6983 = vmatprep.mubr.f32.mxu0 0.0
        %v6984 = vand.u32 %v3868, 4294901760
        %6985 = vmatmul.mubr.f32.gmra.mrb[0].mxu0 %v6984
        %v6986 = vpop.f32.mrb[0].mxu0
        %v6987 = vadd.f32 %v6522, %v6986
        %v6988 = vpop.f32.mrb[0].mxu0
        %6989 = vmatprep.mubr.f32.mxu0 0.0
        %v6990 = vand.u32 %v3869, 4294901760
        %6991 = vmatmul.mubr.f32.gmra.mrb[0].mxu0 %v6990
        %v6992 = vpop.f32.mrb[0].mxu0
        %v6993 = vadd.f32 %v6528, %v6992
        %v6994 = vpop.f32.mrb[0].mxu0
        %6995 = vmatprep.mubr.f32.mxu0 0.0
        %v6996 = vand.u32 %v3870, 4294901760
        %6997 = vmatmul.mubr.f32.gmra.mrb[0].mxu0 %v6996
        %v6998 = vpop.f32.mrb[0].mxu0
        %v6999 = vadd.f32 %v6534, %v6998
        %v7000 = vpop.f32.mrb[0].mxu0
        %7001 = vmatprep.mubr.f32.mxu0 0.0
        %v7002 = vand.u32 %v3871, 4294901760
        %7003 = vmatmul.mubr.f32.gmra.mrb[0].mxu0 %v7002
        %v7004 = vpop.f32.mrb[0].mxu0
        %v7005 = vadd.f32 %v6540, %v7004
        %v7006 = vpop.f32.mrb[0].mxu0
        %7007 = vmatprep.mubr.f32.mxu0 0.0
        %v7008 = vand.u32 %v3872, 4294901760
        %7009 = vmatmul.mubr.f32.gmra.mrb[0].mxu0 %v7008
        %v7010 = vpop.f32.mrb[0].mxu0
        %v7011 = vadd.f32 %v6546, %v7010
        %v7012 = vpop.f32.mrb[0].mxu0
        %7013 = vmatprep.mubr.f32.mxu0 0.0
        %v7014 = vand.u32 %v3873, 4294901760
        %7015 = vmatmul.mubr.f32.gmra.mrb[0].mxu0 %v7014
        %v7016 = vpop.f32.mrb[0].mxu0
        %v7017 = vadd.f32 %v6552, %v7016
        %v7018 = vpop.f32.mrb[0].mxu0
        %7019 = vmatprep.mubr.f32.mxu0 0.0
        %v7020 = vand.u32 %v3874, 4294901760
        %7021 = vmatmul.mubr.f32.gmra.mrb[0].mxu0 %v7020
        %v7022 = vpop.f32.mrb[0].mxu0
        %v7023 = vadd.f32 %v6558, %v7022
        %v7024 = vpop.f32.mrb[0].mxu0
        %7025 = vmatprep.mubr.f32.mxu0 0.0
        %v7026 = vand.u32 %v3875, 4294901760
        %7027 = vmatmul.mubr.f32.gmra.mrb[0].mxu0 %v7026
        %v7028 = vpop.f32.mrb[0].mxu0
        %v7029 = vadd.f32 %v6564, %v7028
        %v7030 = vpop.f32.mrb[0].mxu0
        %7031 = vmatprep.mubr.f32.mxu0 0.0
        %v7032 = vand.u32 %v3876, 4294901760
        %7033 = vmatmul.mubr.f32.gmra.mrb[0].mxu0 %v7032
        %v7034 = vpop.f32.mrb[0].mxu0
        %v7035 = vadd.f32 %v6570, %v7034
        %v7036 = vpop.f32.mrb[0].mxu0
        %7037 = vmatprep.mubr.f32.mxu0 0.0
        %v7038 = vand.u32 %v3877, 4294901760
        %7039 = vmatmul.mubr.f32.gmra.mrb[0].mxu0 %v7038
        %v7040 = vpop.f32.mrb[0].mxu0
        %v7041 = vadd.f32 %v6576, %v7040
        %v7042 = vpop.f32.mrb[0].mxu0
        %7043 = vmatprep.mubr.f32.mxu0 0.0
        %v7044 = vand.u32 %v3878, 4294901760
        %7045 = vmatmul.mubr.f32.gmra.mrb[0].mxu0 %v7044
        %v7046 = vpop.f32.mrb[0].mxu0
        %v7047 = vadd.f32 %v6582, %v7046
        %v7048 = vpop.f32.mrb[0].mxu0
        %7049 = vmatprep.mubr.f32.mxu0 0.0
        %v7050 = vand.u32 %v3879, 4294901760
        %7051 = vmatmul.mubr.f32.gmra.mrb[0].mxu0 %v7050
        %v7052 = vpop.f32.mrb[0].mxu0
        %v7053 = vadd.f32 %v6588, %v7052
        %v7054 = vpop.f32.mrb[0].mxu0
        %7055 = vmatprep.mubr.f32.mxu0 0.0
        %v7056 = vand.u32 %v3880, 4294901760
        %7057 = vmatmul.mubr.f32.gmra.mrb[0].mxu0 %v7056
        %v7058 = vpop.f32.mrb[0].mxu0
        %v7059 = vadd.f32 %v6594, %v7058
        %v7060 = vpop.f32.mrb[0].mxu0
        %7061 = vmatprep.mubr.f32.mxu0 0.0
        %v7062 = vand.u32 %v3881, 4294901760
        %7063 = vmatmul.mubr.f32.gmra.mrb[0].mxu0 %v7062
        %v7064 = vpop.f32.mrb[0].mxu0
        %v7065 = vadd.f32 %v6600, %v7064
        %v7066 = vpop.f32.mrb[0].mxu0
        %7067 = vmatprep.mubr.f32.mxu0 0.0
        %v7068 = vand.u32 %v3882, 4294901760
        %7069 = vmatmul.mubr.f32.gmra.mrb[0].mxu0 %v7068
        %v7070 = vpop.f32.mrb[0].mxu0
        %v7071 = vadd.f32 %v6606, %v7070
        %v7072 = vpop.f32.mrb[0].mxu0
        %7073 = vmatprep.mubr.f32.mxu0 0.0
        %v7074 = vand.u32 %v3883, 4294901760
        %7075 = vmatmul.mubr.f32.gmra.mrb[0].mxu0 %v7074
        %v7076 = vpop.f32.mrb[0].mxu0
        %v7077 = vadd.f32 %v6612, %v7076
        %v7078 = vpop.f32.mrb[0].mxu0
        %7079 = vmatprep.mubr.f32.mxu0 0.0
        %v7080 = vand.u32 %v3884, 4294901760
        %7081 = vmatmul.mubr.f32.gmra.mrb[0].mxu0 %v7080
        %v7082 = vpop.f32.mrb[0].mxu0
        %v7083 = vadd.f32 %v6618, %v7082
        %v7084 = vpop.f32.mrb[0].mxu0
        %7085 = vmatprep.mubr.f32.mxu0 0.0
        %v7086 = vand.u32 %v3885, 4294901760
        %7087 = vmatmul.mubr.f32.gmra.mrb[0].mxu0 %v7086
        %v7088 = vpop.f32.mrb[0].mxu0
        %v7089 = vadd.f32 %v6624, %v7088
        %v7090 = vpop.f32.mrb[0].mxu0
        %7091 = vmatprep.mubr.f32.mxu0 0.0
        %v7092 = vand.u32 %v3886, 4294901760
        %7093 = vmatmul.mubr.f32.gmra.mrb[0].mxu0 %v7092
        %v7094 = vpop.f32.mrb[0].mxu0
        %v7095 = vadd.f32 %v6630, %v7094
        %v7096 = vpop.f32.mrb[0].mxu0
        %7097 = vmatprep.mubr.f32.mxu0 0.0
        %v7098 = vand.u32 %v3887, 4294901760
        %7099 = vmatmul.mubr.f32.gmra.mrb[0].mxu0 %v7098
        %v7100 = vpop.f32.mrb[0].mxu0
        %v7101 = vadd.f32 %v6636, %v7100
        %v7102 = vpop.f32.mrb[0].mxu0
        %7103 = vmatprep.mubr.f32.mxu0 0.0
        %v7104 = vand.u32 %v3888, 4294901760
        %7105 = vmatmul.mubr.f32.gmra.mrb[0].mxu0 %v7104
        %v7106 = vpop.f32.mrb[0].mxu0
        %v7107 = vadd.f32 %v6642, %v7106
        %v7108 = vpop.f32.mrb[0].mxu0
        %7109 = vmatprep.mubr.f32.mxu0 0.0
        %v7110 = vand.u32 %v3889, 4294901760
        %7111 = vmatmul.mubr.f32.gmra.mrb[0].mxu0 %v7110
        %v7112 = vpop.f32.mrb[0].mxu0
        %v7113 = vadd.f32 %v6648, %v7112
        %v7114 = vpop.f32.mrb[0].mxu0
        %7115 = vmatprep.mubr.f32.mxu0 0.0
        %v7116 = vand.u32 %v3890, 4294901760
        %7117 = vmatmul.mubr.f32.gmra.mrb[0].mxu0 %v7116
        %v7118 = vpop.f32.mrb[0].mxu0
        %v7119 = vadd.f32 %v6654, %v7118
        %v7120 = vpop.f32.mrb[0].mxu0
        %7121 = vmatprep.mubr.f32.mxu0 0.0
        %v7122 = vand.u32 %v3891, 4294901760
        %7123 = vmatmul.mubr.f32.gmra.mrb[0].mxu0 %v7122
        %v7124 = vpop.f32.mrb[0].mxu0
        %v7125 = vadd.f32 %v6660, %v7124
        %v7126 = vpop.f32.mrb[0].mxu0
        %7127 = vmatprep.mubr.f32.mxu0 0.0
        %v7128 = vand.u32 %v3892, 4294901760
        %7129 = vmatmul.mubr.f32.gmra.mrb[0].mxu0 %v7128
        %v7130 = vpop.f32.mrb[0].mxu0
        %v7131 = vadd.f32 %v6666, %v7130
        %v7132 = vpop.f32.mrb[0].mxu0
        %7133 = vmatprep.mubr.f32.mxu0 0.0
        %v7134 = vand.u32 %v3893, 4294901760
        %7135 = vmatmul.mubr.f32.gmra.mrb[0].mxu0 %v7134
        %v7136 = vpop.f32.mrb[0].mxu0
        %v7137 = vadd.f32 %v6672, %v7136
        %v7138 = vpop.f32.mrb[0].mxu0
        %7139 = vmatprep.mubr.f32.mxu0 0.0
        %v7140 = vand.u32 %v3894, 4294901760
        %7141 = vmatmul.mubr.f32.gmra.mrb[0].mxu0 %v7140
        %v7142 = vpop.f32.mrb[0].mxu0
        %v7143 = vadd.f32 %v6678, %v7142
        %v7144 = vpop.f32.mrb[0].mxu0
        %7145 = vmatprep.mubr.f32.mxu0 0.0
        %v7146 = vand.u32 %v3895, 4294901760
        %7147 = vmatmul.mubr.f32.gmra.mrb[0].mxu0 %v7146
        %v7148 = vpop.f32.mrb[0].mxu0
        %v7149 = vadd.f32 %v6684, %v7148
        %v7150 = vpop.f32.mrb[0].mxu0
        %7151 = vmatprep.mubr.f32.mxu0 0.0
        %v7152 = vand.u32 %v3896, 4294901760
        %7153 = vmatmul.mubr.f32.gmra.mrb[0].mxu0 %v7152
        %v7154 = vpop.f32.mrb[0].mxu0
        %v7155 = vadd.f32 %v6690, %v7154
        %v7156 = vpop.f32.mrb[0].mxu0
        %7157 = vmatprep.mubr.f32.mxu0 0.0
        %v7158 = vand.u32 %v3897, 4294901760
        %7159 = vmatmul.mubr.f32.gmra.mrb[0].mxu0 %v7158
        %v7160 = vpop.f32.mrb[0].mxu0
        %v7161 = vadd.f32 %v6696, %v7160
        %v7162 = vpop.f32.mrb[0].mxu0
        %7163 = vmatprep.mubr.f32.mxu0 0.0
        %v7164 = vand.u32 %v3898, 4294901760
        %7165 = vmatmul.mubr.f32.gmra.mrb[0].mxu0 %v7164
        %v7166 = vpop.f32.mrb[0].mxu0
        %v7167 = vadd.f32 %v6702, %v7166
        %v7168 = vpop.f32.mrb[0].mxu0
        %7169 = vmatprep.mubr.f32.mxu0 0.0
        %v7170 = vand.u32 %v3899, 4294901760
        %7171 = vmatmul.mubr.f32.gmra.mrb[0].mxu0 %v7170
        %v7172 = vpop.f32.mrb[0].mxu0
        %v7173 = vadd.f32 %v6708, %v7172
        %v7174 = vpop.f32.mrb[0].mxu0
        %7175 = vmatprep.mubr.f32.mxu0 0.0
        %v7176 = vand.u32 %v3900, 4294901760
        %7177 = vmatmul.mubr.f32.gmra.mrb[0].mxu0 %v7176
        %v7178 = vpop.f32.mrb[0].mxu0
        %v7179 = vadd.f32 %v6714, %v7178
        %v7180 = vpop.f32.mrb[0].mxu0
        %7181 = vmatprep.mubr.f32.mxu0 0.0
        %v7182 = vand.u32 %v3901, 4294901760
        %7183 = vmatmul.mubr.f32.gmra.mrb[0].mxu0 %v7182
        %v7184 = vpop.f32.mrb[0].mxu0
        %v7185 = vadd.f32 %v6720, %v7184
        %v7186 = vpop.f32.mrb[0].mxu0
        %7187 = vmatprep.mubr.f32.mxu0 0.0
        %v7188 = vand.u32 %v3902, 4294901760
        %7189 = vmatmul.mubr.f32.gmra.mrb[0].mxu0 %v7188
        %v7190 = vpop.f32.mrb[0].mxu0
        %v7191 = vadd.f32 %v6726, %v7190
        %v7192 = vpop.f32.mrb[0].mxu0
        %7193 = vmatprep.mubr.f32.mxu0 0.0
        %v7194 = vand.u32 %v3903, 4294901760
        %7195 = vmatmul.mubr.f32.gmra.mrb[0].mxu0 %v7194
        %v7196 = vpop.f32.mrb[0].mxu0
        %v7197 = vadd.f32 %v6732, %v7196
        %v7198 = vpop.f32.mrb[0].mxu0
        %7199 = vmatprep.mubr.f32.mxu0 0.0
        %v7200 = vand.u32 %v3904, 4294901760
        %7201 = vmatmul.mubr.f32.gmra.mrb[0].mxu0 %v7200
        %v7202 = vpop.f32.mrb[0].mxu0
        %v7203 = vadd.f32 %v6738, %v7202
        %v7204 = vpop.f32.mrb[0].mxu0
        %7205 = vmatprep.mubr.f32.mxu0 0.0
        %v7206 = vand.u32 %v3905, 4294901760
        %7207 = vmatmul.mubr.f32.gmra.mrb[0].mxu0 %v7206
        %v7208 = vpop.f32.mrb[0].mxu0
        %v7209 = vadd.f32 %v6744, %v7208
        %v7210 = vpop.f32.mrb[0].mxu0
        %7211 = vmatprep.mubr.f32.mxu0 0.0
        %v7212 = vand.u32 %v3906, 4294901760
        %7213 = vmatmul.mubr.f32.gmra.mrb[0].mxu0 %v7212
        %v7214 = vpop.f32.mrb[0].mxu0
        %v7215 = vadd.f32 %v6750, %v7214
        %v7216 = vpop.f32.mrb[0].mxu0
        %7217 = vmatprep.mubr.f32.mxu0 0.0
        %v7218 = vand.u32 %v3907, 4294901760
        %7219 = vmatmul.mubr.f32.gmra.mrb[0].mxu0 %v7218
        %v7220 = vpop.f32.mrb[0].mxu0
        %v7221 = vadd.f32 %v6756, %v7220
        %v7222 = vpop.f32.mrb[0].mxu0
        %7223 = vmatprep.mubr.f32.mxu0 0.0
        %v7224 = vand.u32 %v3908, 4294901760
        %7225 = vmatmul.mubr.f32.gmra.mrb[0].mxu0 %v7224
        %v7226 = vpop.f32.mrb[0].mxu0
        %v7227 = vadd.f32 %v6762, %v7226
        %v7228 = vpop.f32.mrb[0].mxu0
        %7229 = vmatprep.mubr.f32.mxu0 0.0
        %v7230 = vand.u32 %v3909, 4294901760
        %7231 = vmatmul.mubr.f32.gmra.mrb[0].mxu0 %v7230
        %v7232 = vpop.f32.mrb[0].mxu0
        %v7233 = vadd.f32 %v6768, %v7232
        %v7234 = vpop.f32.mrb[0].mxu0
        %7235 = vmatprep.mubr.f32.mxu0 0.0
        %v7236 = vand.u32 %v3910, 4294901760
        %7237 = vmatmul.mubr.f32.gmra.mrb[0].mxu0 %v7236
        %v7238 = vpop.f32.mrb[0].mxu0
        %v7239 = vadd.f32 %v6774, %v7238
        %v7240 = vpop.f32.mrb[0].mxu0
        %7241 = vmatprep.mubr.f32.mxu0 0.0
        %v7242 = vand.u32 %v3911, 4294901760
        %7243 = vmatmul.mubr.f32.gmra.mrb[0].mxu0 %v7242
        %v7244 = vpop.f32.mrb[0].mxu0
        %v7245 = vadd.f32 %v6780, %v7244
        %v7246 = vpop.f32.mrb[0].mxu0
        %7247 = vmatprep.mubr.f32.mxu0 0.0
        %v7248 = vand.u32 %v3912, 4294901760
        %7249 = vmatmul.mubr.f32.gmra.mrb[0].mxu0 %v7248
        %v7250 = vpop.f32.mrb[0].mxu0
        %v7251 = vadd.f32 %v6786, %v7250
        %v7252 = vpop.f32.mrb[0].mxu0
        %7253 = vmatprep.mubr.f32.mxu0 0.0
        %v7254 = vand.u32 %v3913, 4294901760
        %7255 = vmatmul.mubr.f32.gmra.mrb[0].mxu0 %v7254
        %v7256 = vpop.f32.mrb[0].mxu0
        %v7257 = vadd.f32 %v6792, %v7256
        %v7258 = vpop.f32.mrb[0].mxu0
        %7259 = vmatprep.mubr.f32.mxu0 0.0
        %v7260 = vand.u32 %v3914, 4294901760
        %7261 = vmatmul.mubr.f32.gmra.mrb[0].mxu0 %v7260
        %v7262 = vpop.f32.mrb[0].mxu0
        %v7263 = vadd.f32 %v6798, %v7262
        %v7264 = vpop.f32.mrb[0].mxu0
        %7265 = vmatprep.mubr.f32.mxu0 0.0
        %v7266 = vand.u32 %v3915, 4294901760
        %7267 = vmatmul.mubr.f32.gmra.mrb[0].mxu0 %v7266
        %v7268 = vpop.f32.mrb[0].mxu0
        %v7269 = vadd.f32 %v6804, %v7268
        %v7270 = vpop.f32.mrb[0].mxu0
        %7271 = vdwg.mxu0
        %v7272 = vmax.f32 %v6891, 0.0
        %v7273 = vmax.f32 %v6897, 0.0
        %v7274 = vmax.f32 %v6903, 0.0
        %v7275 = vmax.f32 %v6909, 0.0
        %v7276 = vmax.f32 %v6915, 0.0
        %v7277 = vmax.f32 %v6921, 0.0
        %v7278 = vmax.f32 %v6927, 0.0
        %v7279 = vmax.f32 %v6933, 0.0
        %v7280 = vmax.f32 %v6939, 0.0
        %v7281 = vmax.f32 %v6945, 0.0
        %v7282 = vmax.f32 %v6951, 0.0
        %v7283 = vmax.f32 %v6957, 0.0
        %v7284 = vmax.f32 %v6963, 0.0
        %v7285 = vmax.f32 %v6969, 0.0
        %v7286 = vmax.f32 %v6975, 0.0
        %v7287 = vmax.f32 %v6981, 0.0
        %v7288 = vmax.f32 %v6987, 0.0
        %v7289 = vmax.f32 %v6993, 0.0
        %v7290 = vmax.f32 %v6999, 0.0
        %v7291 = vmax.f32 %v7005, 0.0
        %v7292 = vmax.f32 %v7011, 0.0
        %v7293 = vmax.f32 %v7017, 0.0
        %v7294 = vmax.f32 %v7023, 0.0
        %v7295 = vmax.f32 %v7029, 0.0
        %v7296 = vmax.f32 %v7035, 0.0
        %v7297 = vmax.f32 %v7041, 0.0
        %v7298 = vmax.f32 %v7047, 0.0
        %v7299 = vmax.f32 %v7053, 0.0
        %v7300 = vmax.f32 %v7059, 0.0
        %v7301 = vmax.f32 %v7065, 0.0
        %v7302 = vmax.f32 %v7071, 0.0
        %v7303 = vmax.f32 %v7077, 0.0
        %v7304 = vmax.f32 %v7083, 0.0
        %v7305 = vmax.f32 %v7089, 0.0
        %v7306 = vmax.f32 %v7095, 0.0
        %v7307 = vmax.f32 %v7101, 0.0
        %v7308 = vmax.f32 %v7107, 0.0
        %v7309 = vmax.f32 %v7113, 0.0
        %v7310 = vmax.f32 %v7119, 0.0
        %v7311 = vmax.f32 %v7125, 0.0
        %v7312 = vmax.f32 %v7131, 0.0
        %v7313 = vmax.f32 %v7137, 0.0
        %v7314 = vmax.f32 %v7143, 0.0
        %v7315 = vmax.f32 %v7149, 0.0
        %v7316 = vmax.f32 %v7155, 0.0
        %v7317 = vmax.f32 %v7161, 0.0
        %v7318 = vmax.f32 %v7167, 0.0
        %v7319 = vmax.f32 %v7173, 0.0
        %v7320 = vmax.f32 %v7179, 0.0
        %v7321 = vmax.f32 %v7185, 0.0
        %v7322 = vmax.f32 %v7191, 0.0
        %v7323 = vmax.f32 %v7197, 0.0
        %v7324 = vmax.f32 %v7203, 0.0
        %v7325 = vmax.f32 %v7209, 0.0
        %v7326 = vmax.f32 %v7215, 0.0
        %v7327 = vmax.f32 %v7221, 0.0
        %v7328 = vmax.f32 %v7227, 0.0
        %v7329 = vmax.f32 %v7233, 0.0
        %v7330 = vmax.f32 %v7239, 0.0
        %v7331 = vmax.f32 %v7245, 0.0
        %v7332 = vmax.f32 %v7251, 0.0
        %v7333 = vmax.f32 %v7257, 0.0
        %v7334 = vmax.f32 %v7263, 0.0
        %v7335 = vmax.f32 %v7269, 0.0
        %7336 = vst [vmem:[#allocation2] sm:$0xff] %v7272
        %7337 = vst [vmem:[#allocation2 + $0x8] sm:$0xff] %v7273
        %7338 = vst [vmem:[#allocation2 + $0x10] sm:$0xff] %v7274
        %7339 = vst [vmem:[#allocation2 + $0x18] sm:$0xff] %v7275
        %7340 = vst [vmem:[#allocation2 + $0x20] sm:$0xff] %v7276
        %7341 = vst [vmem:[#allocation2 + $0x28] sm:$0xff] %v7277
        %7342 = vst [vmem:[#allocation2 + $0x30] sm:$0xff] %v7278
        %7343 = vst [vmem:[#allocation2 + $0x38] sm:$0xff] %v7279
        %7344 = vst [vmem:[#allocation2 + $0x40] sm:$0xff] %v7280
        %7345 = vst [vmem:[#allocation2 + $0x48] sm:$0xff] %v7281
        %7346 = vst [vmem:[#allocation2 + $0x50] sm:$0xff] %v7282
        %7347 = vst [vmem:[#allocation2 + $0x58] sm:$0xff] %v7283
        %7348 = vst [vmem:[#allocation2 + $0x60] sm:$0xff] %v7284
        %7349 = vst [vmem:[#allocation2 + $0x68] sm:$0xff] %v7285
        %7350 = vst [vmem:[#allocation2 + $0x70] sm:$0xff] %v7286
        %7351 = vst [vmem:[#allocation2 + $0x78] sm:$0xff] %v7287
        %7352 = vst [vmem:[#allocation2 + $0x80] sm:$0xff] %v7288
        %7353 = vst [vmem:[#allocation2 + $0x88] sm:$0xff] %v7289
        %7354 = vst [vmem:[#allocation2 + $0x90] sm:$0xff] %v7290
        %7355 = vst [vmem:[#allocation2 + $0x98] sm:$0xff] %v7291
        %7356 = vst [vmem:[#allocation2 + $0xa0] sm:$0xff] %v7292
        %7357 = vst [vmem:[#allocation2 + $0xa8] sm:$0xff] %v7293
        %7358 = vst [vmem:[#allocation2 + $0xb0] sm:$0xff] %v7294
        %7359 = vst [vmem:[#allocation2 + $0xb8] sm:$0xff] %v7295
        %7360 = vst [vmem:[#allocation2 + $0xc0] sm:$0xff] %v7296
        %7361 = vst [vmem:[#allocation2 + $0xc8] sm:$0xff] %v7297
        %7362 = vst [vmem:[#allocation2 + $0xd0] sm:$0xff] %v7298
        %7363 = vst [vmem:[#allocation2 + $0xd8] sm:$0xff] %v7299
        %7364 = vst [vmem:[#allocation2 + $0xe0] sm:$0xff] %v7300
        %7365 = vst [vmem:[#allocation2 + $0xe8] sm:$0xff] %v7301
        %7366 = vst [vmem:[#allocation2 + $0xf0] sm:$0xff] %v7302
        %7367 = vst [vmem:[#allocation2 + $0xf8] sm:$0xff] %v7303
        %7368 = vst [vmem:[#allocation2 + $0x100] sm:$0xff] %v7304
        %7369 = vst [vmem:[#allocation2 + $0x108] sm:$0xff] %v7305
        %7370 = vst [vmem:[#allocation2 + $0x110] sm:$0xff] %v7306
        %7371 = vst [vmem:[#allocation2 + $0x118] sm:$0xff] %v7307
        %7372 = vst [vmem:[#allocation2 + $0x120] sm:$0xff] %v7308
        %7373 = vst [vmem:[#allocation2 + $0x128] sm:$0xff] %v7309
        %7374 = vst [vmem:[#allocation2 + $0x130] sm:$0xff] %v7310
        %7375 = vst [vmem:[#allocation2 + $0x138] sm:$0xff] %v7311
        %7376 = vst [vmem:[#allocation2 + $0x140] sm:$0xff] %v7312
        %7377 = vst [vmem:[#allocation2 + $0x148] sm:$0xff] %v7313
        %7378 = vst [vmem:[#allocation2 + $0x150] sm:$0xff] %v7314
        %7379 = vst [vmem:[#allocation2 + $0x158] sm:$0xff] %v7315
        %7380 = vst [vmem:[#allocation2 + $0x160] sm:$0xff] %v7316
        %7381 = vst [vmem:[#allocation2 + $0x168] sm:$0xff] %v7317
        %7382 = vst [vmem:[#allocation2 + $0x170] sm:$0xff] %v7318
        %7383 = vst [vmem:[#allocation2 + $0x178] sm:$0xff] %v7319
        %7384 = vst [vmem:[#allocation2 + $0x180] sm:$0xff] %v7320
        %7385 = vst [vmem:[#allocation2 + $0x188] sm:$0xff] %v7321
        %7386 = vst [vmem:[#allocation2 + $0x190] sm:$0xff] %v7322
        %7387 = vst [vmem:[#allocation2 + $0x198] sm:$0xff] %v7323
        %7388 = vst [vmem:[#allocation2 + $0x1a0] sm:$0xff] %v7324
        %7389 = vst [vmem:[#allocation2 + $0x1a8] sm:$0xff] %v7325
        %7390 = vst [vmem:[#allocation2 + $0x1b0] sm:$0xff] %v7326
        %7391 = vst [vmem:[#allocation2 + $0x1b8] sm:$0xff] %v7327
        %7392 = vst [vmem:[#allocation2 + $0x1c0] sm:$0xff] %v7328
        %7393 = vst [vmem:[#allocation2 + $0x1c8] sm:$0xff] %v7329
        %7394 = vst [vmem:[#allocation2 + $0x1d0] sm:$0xff] %v7330
        %7395 = vst [vmem:[#allocation2 + $0x1d8] sm:$0xff] %v7331
        %7396 = vst [vmem:[#allocation2 + $0x1e0] sm:$0xff] %v7332
        %7397 = vst [vmem:[#allocation2 + $0x1e8] sm:$0xff] %v7333
        %7398 = vst [vmem:[#allocation2 + $0x1f0] sm:$0xff] %v7334
        %7399 = vst [vmem:[#allocation2 + $0x1f8] sm:$0xff] %v7335
        loop: start=0, step=1, limit=32
        $region61: #{tpu_custom_call.1} parent=43 // loop_pre_header
          _
        $region62: #{tpu_custom_call.1} parent=43 // loop_header
          %s7401 = sphi 0, %s7405
          %p7402 = scmp.ge.s32.totalorder %s7401, 32
        $region63: #{tpu_custom_call.1} parent=43 // loop_header_branch
          %7404 = sbr.rel (%p7402) target = $region67
        $region64: #{tpu_custom_call.1} parent=43 // loop_body
          %s7406 = smul.u32 %s7401, 16
          %s7407 = scalar_lea.vmem [#allocation2], %s7406
          %v7408 = vld [vmem:[%s7407] sm:$0xff]
          %s7409 = sadd.s32 %s7406, 8
          %s7410 = scalar_lea.vmem [#allocation2], %s7409
          %v7411 = vld [vmem:[%s7410] sm:$0x1f]
          %s7412 = smul.u32 %s7401, 8
          %s7413 = scalar_lea.vmem %s395, %s7412
          %v7414 = vld [vmem:[%s7413] sm:$0xff]
          %7415 = vxpose.xlu0.b32.start [1/16] %v7408, 128
          %7416 = vxpose.xlu0.b32.cont [2/16] 0.0, 128
          %7417 = vxpose.xlu0.b32.cont [3/16] 0.0, 128
          %7418 = vxpose.xlu0.b32.cont [4/16] 0.0, 128
          %7419 = vxpose.xlu0.b32.cont [5/16] 0.0, 128
          %7420 = vxpose.xlu0.b32.cont [6/16] 0.0, 128
          %7421 = vxpose.xlu0.b32.cont [7/16] 0.0, 128
          %7422 = vxpose.xlu0.b32.cont [8/16] 0.0, 128
          %7423 = vxpose.xlu0.b32.cont [9/16] 0.0, 128
          %7424 = vxpose.xlu0.b32.cont [10/16] 0.0, 128
          %7425 = vxpose.xlu0.b32.cont [11/16] 0.0, 128
          %7426 = vxpose.xlu0.b32.cont [12/16] 0.0, 128
          %7427 = vxpose.xlu0.b32.cont [13/16] 0.0, 128
          %7428 = vxpose.xlu0.b32.cont [14/16] 0.0, 128
          %7429 = vxpose.xlu0.b32.cont [15/16] 0.0, 128
          %7430 = vxpose.xlu0.b32.end [16/16] 0.0, 128
          %v7431 = vpop.trf.xlu0
          %v7432 = vpop.trf.xlu0
          %v7433 = vpop.trf.xlu0
          %v7434 = vpop.trf.xlu0
          %v7435 = vpop.trf.xlu0
          %v7436 = vpop.trf.xlu0
          %v7437 = vpop.trf.xlu0
          %v7438 = vpop.trf.xlu0
          %v7439 = vpop.trf.xlu0
          %v7440 = vpop.trf.xlu0
          %v7441 = vpop.trf.xlu0
          %v7442 = vpop.trf.xlu0
          %v7443 = vpop.trf.xlu0
          %v7444 = vpop.trf.xlu0
          %v7445 = vpop.trf.xlu0
          %v7446 = vpop.trf.xlu0
          %vm7447 = vcmask 64512
          %v7449 = vsel %vm7447, %v7431, 0
          %v7452 = vsel %vm7447, %v7432, 0
          %v7455 = vsel %vm7447, %v7433, 0
          %v7458 = vsel %vm7447, %v7434, 0
          %v7461 = vsel %vm7447, %v7435, 0
          %v7464 = vsel %vm7447, %v7436, 0
          %v7467 = vsel %vm7447, %v7437, 0
          %v7470 = vsel %vm7447, %v7438, 0
          %v7473 = vsel %vm7447, %v7439, 0
          %v7476 = vsel %vm7447, %v7440, 0
          %v7479 = vsel %vm7447, %v7441, 0
          %v7482 = vsel %vm7447, %v7442, 0
          %v7485 = vsel %vm7447, %v7443, 0
          %v7488 = vsel %vm7447, %v7444, 0
          %v7491 = vsel %vm7447, %v7445, 0
          %v7494 = vsel %vm7447, %v7446, 0
          %7496 = vmatprep.subr.mxu0 0.0
          %v7497 = vand.u32 %v7408, 4294901760
          %7498 = vmatpush1.msra.mxu0 %v7497
          %7499 = vmatprep.subr.mxu0 0.0
          %7500 = vmatpush1.msra.mxu0 0.0
          %7501 = vmatprep.subr.mxu0 0.0
          %7502 = vmatpush1.msra.mxu0 0.0
          %7503 = vmatprep.subr.mxu0 0.0
          %7504 = vmatpush1.msra.mxu0 0.0
          %7505 = vmatprep.subr.mxu0 0.0
          %7506 = vmatpush1.msra.mxu0 0.0
          %7507 = vmatprep.subr.mxu0 0.0
          %7508 = vmatpush1.msra.mxu0 0.0
          %7509 = vmatprep.subr.mxu0 0.0
          %7510 = vmatpush1.msra.mxu0 0.0
          %7511 = vmatprep.subr.mxu0 0.0
          %7512 = vmatpush1.msra.mxu0 0.0
          %7513 = vmatprep.subr.mxu0 0.0
          %7514 = vmatpush1.msra.mxu0 0.0
          %7515 = vmatprep.subr.mxu0 0.0
          %7516 = vmatpush1.msra.mxu0 0.0
          %7517 = vmatprep.subr.mxu0 0.0
          %7518 = vmatpush1.msra.mxu0 0.0
          %7519 = vmatprep.subr.mxu0 0.0
          %7520 = vmatpush1.msra.mxu0 0.0
          %7521 = vmatprep.subr.mxu0 0.0
          %7522 = vmatpush1.msra.mxu0 0.0
          %7523 = vmatprep.subr.mxu0 0.0
          %7524 = vmatpush1.msra.mxu0 0.0
          %7525 = vmatprep.subr.mxu0 0.0
          %7526 = vmatpush1.msra.mxu0 0.0
          %7527 = vmatprep.subr.mxu0 0.0
          %7528 = vmatpush1.msra.mxu0 0.0
          %7529 = vmatprep.subr.mxu0 0.0
          %7530 = vmatpush1.msra.mxu0 0.0
          %7531 = vmatprep.subr.mxu0 0.0
          %7532 = vmatpush1.msra.mxu0 0.0
          %7533 = vmatprep.subr.mxu0 0.0
          %7534 = vmatpush1.msra.mxu0 0.0
          %7535 = vmatprep.subr.mxu0 0.0
          %7536 = vmatpush1.msra.mxu0 0.0
          %7537 = vmatprep.subr.mxu0 0.0
          %7538 = vmatpush1.msra.mxu0 0.0
          %7539 = vmatprep.subr.mxu0 0.0
          %7540 = vmatpush1.msra.mxu0 0.0
          %7541 = vmatprep.subr.mxu0 0.0
          %7542 = vmatpush1.msra.mxu0 0.0
          %7543 = vmatprep.subr.mxu0 0.0
          %7544 = vmatpush1.msra.mxu0 0.0
          %7545 = vmatprep.subr.mxu0 0.0
          %7546 = vmatpush1.msra.mxu0 0.0
          %7547 = vmatprep.subr.mxu0 0.0
          %7548 = vmatpush1.msra.mxu0 0.0
          %7549 = vmatprep.subr.mxu0 0.0
          %7550 = vmatpush1.msra.mxu0 0.0
          %7551 = vmatprep.subr.mxu0 0.0
          %7552 = vmatpush1.msra.mxu0 0.0
          %7553 = vmatprep.subr.mxu0 0.0
          %7554 = vmatpush1.msra.mxu0 0.0
          %7555 = vmatprep.subr.mxu0 0.0
          %7556 = vmatpush1.msra.mxu0 0.0
          %7557 = vmatprep.subr.mxu0 0.0
          %7558 = vmatpush1.msra.mxu0 0.0
          %7559 = vmatprep.subr.mxu0 0.0
          %7560 = vmatpush1.msra.mxu0 0.0
          %7561 = vmatprep.mubr.f32.mxu0 0.0
          %v7562 = vand.u32 %v7449, 4294901760
          %v7563 = vsub.f32 %v7449, %v7562
          %v7564 = vand.u32 %v7563, 4294901760
          %v7565 = vsub.f32 %v7563, %v7564
          %v7566 = vand.u32 %v7565, 4294901760
          %7567 = vmatmul.mubr.f32.gmra.mrb[0].mxu0 %v7566
          %v7568 = vpop.f32.mrb[0].mxu0
          %v7569 = vadd.f32 0.0, %v7568
          %v7570 = vpop.f32.mrb[0].mxu0
          %7571 = vmatprep.mubr.f32.mxu0 0.0
          %v7572 = vand.u32 %v7452, 4294901760
          %v7573 = vsub.f32 %v7452, %v7572
          %v7574 = vand.u32 %v7573, 4294901760
          %v7575 = vsub.f32 %v7573, %v7574
          %v7576 = vand.u32 %v7575, 4294901760
          %7577 = vmatmul.mubr.f32.gmra.mrb[0].mxu0 %v7576
          %v7578 = vpop.f32.mrb[0].mxu0
          %v7579 = vadd.f32 0.0, %v7578
          %v7580 = vpop.f32.mrb[0].mxu0
          %7581 = vmatprep.mubr.f32.mxu0 0.0
          %v7582 = vand.u32 %v7455, 4294901760
          %v7583 = vsub.f32 %v7455, %v7582
          %v7584 = vand.u32 %v7583, 4294901760
          %v7585 = vsub.f32 %v7583, %v7584
          %v7586 = vand.u32 %v7585, 4294901760
          %7587 = vmatmul.mubr.f32.gmra.mrb[0].mxu0 %v7586
          %v7588 = vpop.f32.mrb[0].mxu0
          %v7589 = vadd.f32 0.0, %v7588
          %v7590 = vpop.f32.mrb[0].mxu0
          %7591 = vmatprep.mubr.f32.mxu0 0.0
          %v7592 = vand.u32 %v7458, 4294901760
          %v7593 = vsub.f32 %v7458, %v7592
          %v7594 = vand.u32 %v7593, 4294901760
          %v7595 = vsub.f32 %v7593, %v7594
          %v7596 = vand.u32 %v7595, 4294901760
          %7597 = vmatmul.mubr.f32.gmra.mrb[0].mxu0 %v7596
          %v7598 = vpop.f32.mrb[0].mxu0
          %v7599 = vadd.f32 0.0, %v7598
          %v7600 = vpop.f32.mrb[0].mxu0
          %7601 = vmatprep.mubr.f32.mxu0 0.0
          %v7602 = vand.u32 %v7461, 4294901760
          %v7603 = vsub.f32 %v7461, %v7602
          %v7604 = vand.u32 %v7603, 4294901760
          %v7605 = vsub.f32 %v7603, %v7604
          %v7606 = vand.u32 %v7605, 4294901760
          %7607 = vmatmul.mubr.f32.gmra.mrb[0].mxu0 %v7606
          %v7608 = vpop.f32.mrb[0].mxu0
          %v7609 = vadd.f32 0.0, %v7608
          %v7610 = vpop.f32.mrb[0].mxu0
          %7611 = vmatprep.mubr.f32.mxu0 0.0
          %v7612 = vand.u32 %v7464, 4294901760
          %v7613 = vsub.f32 %v7464, %v7612
          %v7614 = vand.u32 %v7613, 4294901760
          %v7615 = vsub.f32 %v7613, %v7614
          %v7616 = vand.u32 %v7615, 4294901760
          %7617 = vmatmul.mubr.f32.gmra.mrb[0].mxu0 %v7616
          %v7618 = vpop.f32.mrb[0].mxu0
          %v7619 = vadd.f32 0.0, %v7618
          %v7620 = vpop.f32.mrb[0].mxu0
          %7621 = vmatprep.mubr.f32.mxu0 0.0
          %v7622 = vand.u32 %v7467, 4294901760
          %v7623 = vsub.f32 %v7467, %v7622
          %v7624 = vand.u32 %v7623, 4294901760
          %v7625 = vsub.f32 %v7623, %v7624
          %v7626 = vand.u32 %v7625, 4294901760
          %7627 = vmatmul.mubr.f32.gmra.mrb[0].mxu0 %v7626
          %v7628 = vpop.f32.mrb[0].mxu0
          %v7629 = vadd.f32 0.0, %v7628
          %v7630 = vpop.f32.mrb[0].mxu0
          %7631 = vmatprep.mubr.f32.mxu0 0.0
          %v7632 = vand.u32 %v7470, 4294901760
          %v7633 = vsub.f32 %v7470, %v7632
          %v7634 = vand.u32 %v7633, 4294901760
          %v7635 = vsub.f32 %v7633, %v7634
          %v7636 = vand.u32 %v7635, 4294901760
          %7637 = vmatmul.mubr.f32.gmra.mrb[0].mxu0 %v7636
          %v7638 = vpop.f32.mrb[0].mxu0
          %v7639 = vadd.f32 0.0, %v7638
          %v7640 = vpop.f32.mrb[0].mxu0
          %7641 = vmatprep.mubr.f32.mxu0 0.0
          %v7642 = vand.u32 %v7473, 4294901760
          %v7643 = vsub.f32 %v7473, %v7642
          %v7644 = vand.u32 %v7643, 4294901760
          %v7645 = vsub.f32 %v7643, %v7644
          %v7646 = vand.u32 %v7645, 4294901760
          %7647 = vmatmul.mubr.f32.gmra.mrb[0].mxu0 %v7646
          %v7648 = vpop.f32.mrb[0].mxu0
          %v7649 = vadd.f32 0.0, %v7648
          %v7650 = vpop.f32.mrb[0].mxu0
          %7651 = vmatprep.mubr.f32.mxu0 0.0
          %v7652 = vand.u32 %v7476, 4294901760
          %v7653 = vsub.f32 %v7476, %v7652
          %v7654 = vand.u32 %v7653, 4294901760
          %v7655 = vsub.f32 %v7653, %v7654
          %v7656 = vand.u32 %v7655, 4294901760
          %7657 = vmatmul.mubr.f32.gmra.mrb[0].mxu0 %v7656
          %v7658 = vpop.f32.mrb[0].mxu0
          %v7659 = vadd.f32 0.0, %v7658
          %v7660 = vpop.f32.mrb[0].mxu0
          %7661 = vmatprep.mubr.f32.mxu0 0.0
          %v7662 = vand.u32 %v7479, 4294901760
          %v7663 = vsub.f32 %v7479, %v7662
          %v7664 = vand.u32 %v7663, 4294901760
          %v7665 = vsub.f32 %v7663, %v7664
          %v7666 = vand.u32 %v7665, 4294901760
          %7667 = vmatmul.mubr.f32.gmra.mrb[0].mxu0 %v7666
          %v7668 = vpop.f32.mrb[0].mxu0
          %v7669 = vadd.f32 0.0, %v7668
          %v7670 = vpop.f32.mrb[0].mxu0
          %7671 = vmatprep.mubr.f32.mxu0 0.0
          %v7672 = vand.u32 %v7482, 4294901760
          %v7673 = vsub.f32 %v7482, %v7672
          %v7674 = vand.u32 %v7673, 4294901760
          %v7675 = vsub.f32 %v7673, %v7674
          %v7676 = vand.u32 %v7675, 4294901760
          %7677 = vmatmul.mubr.f32.gmra.mrb[0].mxu0 %v7676
          %v7678 = vpop.f32.mrb[0].mxu0
          %v7679 = vadd.f32 0.0, %v7678
          %v7680 = vpop.f32.mrb[0].mxu0
          %7681 = vmatprep.mubr.f32.mxu0 0.0
          %v7682 = vand.u32 %v7485, 4294901760
          %v7683 = vsub.f32 %v7485, %v7682
          %v7684 = vand.u32 %v7683, 4294901760
          %v7685 = vsub.f32 %v7683, %v7684
          %v7686 = vand.u32 %v7685, 4294901760
          %7687 = vmatmul.mubr.f32.gmra.mrb[0].mxu0 %v7686
          %v7688 = vpop.f32.mrb[0].mxu0
          %v7689 = vadd.f32 0.0, %v7688
          %v7690 = vpop.f32.mrb[0].mxu0
          %7691 = vmatprep.mubr.f32.mxu0 0.0
          %v7692 = vand.u32 %v7488, 4294901760
          %v7693 = vsub.f32 %v7488, %v7692
          %v7694 = vand.u32 %v7693, 4294901760
          %v7695 = vsub.f32 %v7693, %v7694
          %v7696 = vand.u32 %v7695, 4294901760
          %7697 = vmatmul.mubr.f32.gmra.mrb[0].mxu0 %v7696
          %v7698 = vpop.f32.mrb[0].mxu0
          %v7699 = vadd.f32 0.0, %v7698
          %v7700 = vpop.f32.mrb[0].mxu0
          %7701 = vmatprep.mubr.f32.mxu0 0.0
          %v7702 = vand.u32 %v7491, 4294901760
          %v7703 = vsub.f32 %v7491, %v7702
          %v7704 = vand.u32 %v7703, 4294901760
          %v7705 = vsub.f32 %v7703, %v7704
          %v7706 = vand.u32 %v7705, 4294901760
          %7707 = vmatmul.mubr.f32.gmra.mrb[0].mxu0 %v7706
          %v7708 = vpop.f32.mrb[0].mxu0
          %v7709 = vadd.f32 0.0, %v7708
          %v7710 = vpop.f32.mrb[0].mxu0
          %7711 = vmatprep.mubr.f32.mxu0 0.0
          %v7712 = vand.u32 %v7494, 4294901760
          %v7713 = vsub.f32 %v7494, %v7712
          %v7714 = vand.u32 %v7713, 4294901760
          %v7715 = vsub.f32 %v7713, %v7714
          %v7716 = vand.u32 %v7715, 4294901760
          %7717 = vmatmul.mubr.f32.gmra.mrb[0].mxu0 %v7716
          %v7718 = vpop.f32.mrb[0].mxu0
          %v7719 = vadd.f32 0.0, %v7718
          %v7720 = vpop.f32.mrb[0].mxu0
          %7721 = vdwg.mxu0
          %7722 = vmatprep.subr.mxu0 0.0
          %v7723 = vand.u32 %v7408, 4294901760
          %v7724 = vsub.f32 %v7408, %v7723
          %v7725 = vand.u32 %v7724, 4294901760
          %v7726 = vsub.f32 %v7724, %v7725
          %v7727 = vand.u32 %v7726, 4294901760
          %7728 = vmatpush1.msra.mxu0 %v7727
          %7729 = vmatprep.subr.mxu0 0.0
          %7730 = vmatpush1.msra.mxu0 0.0
          %7731 = vmatprep.subr.mxu0 0.0
          %7732 = vmatpush1.msra.mxu0 0.0
          %7733 = vmatprep.subr.mxu0 0.0
          %7734 = vmatpush1.msra.mxu0 0.0
          %7735 = vmatprep.subr.mxu0 0.0
          %7736 = vmatpush1.msra.mxu0 0.0
          %7737 = vmatprep.subr.mxu0 0.0
          %7738 = vmatpush1.msra.mxu0 0.0
          %7739 = vmatprep.subr.mxu0 0.0
          %7740 = vmatpush1.msra.mxu0 0.0
          %7741 = vmatprep.subr.mxu0 0.0
          %7742 = vmatpush1.msra.mxu0 0.0
          %7743 = vmatprep.subr.mxu0 0.0
          %7744 = vmatpush1.msra.mxu0 0.0
          %7745 = vmatprep.subr.mxu0 0.0
          %7746 = vmatpush1.msra.mxu0 0.0
          %7747 = vmatprep.subr.mxu0 0.0
          %7748 = vmatpush1.msra.mxu0 0.0
          %7749 = vmatprep.subr.mxu0 0.0
          %7750 = vmatpush1.msra.mxu0 0.0
          %7751 = vmatprep.subr.mxu0 0.0
          %7752 = vmatpush1.msra.mxu0 0.0
          %7753 = vmatprep.subr.mxu0 0.0
          %7754 = vmatpush1.msra.mxu0 0.0
          %7755 = vmatprep.subr.mxu0 0.0
          %7756 = vmatpush1.msra.mxu0 0.0
          %7757 = vmatprep.subr.mxu0 0.0
          %7758 = vmatpush1.msra.mxu0 0.0
          %7759 = vmatprep.subr.mxu0 0.0
          %7760 = vmatpush1.msra.mxu0 0.0
          %7761 = vmatprep.subr.mxu0 0.0
          %7762 = vmatpush1.msra.mxu0 0.0
          %7763 = vmatprep.subr.mxu0 0.0
          %7764 = vmatpush1.msra.mxu0 0.0
          %7765 = vmatprep.subr.mxu0 0.0
          %7766 = vmatpush1.msra.mxu0 0.0
          %7767 = vmatprep.subr.mxu0 0.0
          %7768 = vmatpush1.msra.mxu0 0.0
          %7769 = vmatprep.subr.mxu0 0.0
          %7770 = vmatpush1.msra.mxu0 0.0
          %7771 = vmatprep.subr.mxu0 0.0
          %7772 = vmatpush1.msra.mxu0 0.0
          %7773 = vmatprep.subr.mxu0 0.0
          %7774 = vmatpush1.msra.mxu0 0.0
          %7775 = vmatprep.subr.mxu0 0.0
          %7776 = vmatpush1.msra.mxu0 0.0
          %7777 = vmatprep.subr.mxu0 0.0
          %7778 = vmatpush1.msra.mxu0 0.0
          %7779 = vmatprep.subr.mxu0 0.0
          %7780 = vmatpush1.msra.mxu0 0.0
          %7781 = vmatprep.subr.mxu0 0.0
          %7782 = vmatpush1.msra.mxu0 0.0
          %7783 = vmatprep.subr.mxu0 0.0
          %7784 = vmatpush1.msra.mxu0 0.0
          %7785 = vmatprep.subr.mxu0 0.0
          %7786 = vmatpush1.msra.mxu0 0.0
          %7787 = vmatprep.subr.mxu0 0.0
          %7788 = vmatpush1.msra.mxu0 0.0
          %7789 = vmatprep.subr.mxu0 0.0
          %7790 = vmatpush1.msra.mxu0 0.0
          %7791 = vmatprep.mubr.f32.mxu0 0.0
          %v7792 = vand.u32 %v7449, 4294901760
          %7793 = vmatmul.mubr.f32.gmra.mrb[0].mxu0 %v7792
          %v7794 = vpop.f32.mrb[0].mxu0
          %v7795 = vadd.f32 %v7569, %v7794
          %v7796 = vpop.f32.mrb[0].mxu0
          %7797 = vmatprep.mubr.f32.mxu0 0.0
          %v7798 = vand.u32 %v7452, 4294901760
          %7799 = vmatmul.mubr.f32.gmra.mrb[0].mxu0 %v7798
          %v7800 = vpop.f32.mrb[0].mxu0
          %v7801 = vadd.f32 %v7579, %v7800
          %v7802 = vpop.f32.mrb[0].mxu0
          %7803 = vmatprep.mubr.f32.mxu0 0.0
          %v7804 = vand.u32 %v7455, 4294901760
          %7805 = vmatmul.mubr.f32.gmra.mrb[0].mxu0 %v7804
          %v7806 = vpop.f32.mrb[0].mxu0
          %v7807 = vadd.f32 %v7589, %v7806
          %v7808 = vpop.f32.mrb[0].mxu0
          %7809 = vmatprep.mubr.f32.mxu0 0.0
          %v7810 = vand.u32 %v7458, 4294901760
          %7811 = vmatmul.mubr.f32.gmra.mrb[0].mxu0 %v7810
          %v7812 = vpop.f32.mrb[0].mxu0
          %v7813 = vadd.f32 %v7599, %v7812
          %v7814 = vpop.f32.mrb[0].mxu0
          %7815 = vmatprep.mubr.f32.mxu0 0.0
          %v7816 = vand.u32 %v7461, 4294901760
          %7817 = vmatmul.mubr.f32.gmra.mrb[0].mxu0 %v7816
          %v7818 = vpop.f32.mrb[0].mxu0
          %v7819 = vadd.f32 %v7609, %v7818
          %v7820 = vpop.f32.mrb[0].mxu0
          %7821 = vmatprep.mubr.f32.mxu0 0.0
          %v7822 = vand.u32 %v7464, 4294901760
          %7823 = vmatmul.mubr.f32.gmra.mrb[0].mxu0 %v7822
          %v7824 = vpop.f32.mrb[0].mxu0
          %v7825 = vadd.f32 %v7619, %v7824
          %v7826 = vpop.f32.mrb[0].mxu0
          %7827 = vmatprep.mubr.f32.mxu0 0.0
          %v7828 = vand.u32 %v7467, 4294901760
          %7829 = vmatmul.mubr.f32.gmra.mrb[0].mxu0 %v7828
          %v7830 = vpop.f32.mrb[0].mxu0
          %v7831 = vadd.f32 %v7629, %v7830
          %v7832 = vpop.f32.mrb[0].mxu0
          %7833 = vmatprep.mubr.f32.mxu0 0.0
          %v7834 = vand.u32 %v7470, 4294901760
          %7835 = vmatmul.mubr.f32.gmra.mrb[0].mxu0 %v7834
          %v7836 = vpop.f32.mrb[0].mxu0
          %v7837 = vadd.f32 %v7639, %v7836
          %v7838 = vpop.f32.mrb[0].mxu0
          %7839 = vmatprep.mubr.f32.mxu0 0.0
          %v7840 = vand.u32 %v7473, 4294901760
          %7841 = vmatmul.mubr.f32.gmra.mrb[0].mxu0 %v7840
          %v7842 = vpop.f32.mrb[0].mxu0
          %v7843 = vadd.f32 %v7649, %v7842
          %v7844 = vpop.f32.mrb[0].mxu0
          %7845 = vmatprep.mubr.f32.mxu0 0.0
          %v7846 = vand.u32 %v7476, 4294901760
          %7847 = vmatmul.mubr.f32.gmra.mrb[0].mxu0 %v7846
          %v7848 = vpop.f32.mrb[0].mxu0
          %v7849 = vadd.f32 %v7659, %v7848
          %v7850 = vpop.f32.mrb[0].mxu0
          %7851 = vmatprep.mubr.f32.mxu0 0.0
          %v7852 = vand.u32 %v7479, 4294901760
          %7853 = vmatmul.mubr.f32.gmra.mrb[0].mxu0 %v7852
          %v7854 = vpop.f32.mrb[0].mxu0
          %v7855 = vadd.f32 %v7669, %v7854
          %v7856 = vpop.f32.mrb[0].mxu0
          %7857 = vmatprep.mubr.f32.mxu0 0.0
          %v7858 = vand.u32 %v7482, 4294901760
          %7859 = vmatmul.mubr.f32.gmra.mrb[0].mxu0 %v7858
          %v7860 = vpop.f32.mrb[0].mxu0
          %v7861 = vadd.f32 %v7679, %v7860
          %v7862 = vpop.f32.mrb[0].mxu0
          %7863 = vmatprep.mubr.f32.mxu0 0.0
          %v7864 = vand.u32 %v7485, 4294901760
          %7865 = vmatmul.mubr.f32.gmra.mrb[0].mxu0 %v7864
          %v7866 = vpop.f32.mrb[0].mxu0
          %v7867 = vadd.f32 %v7689, %v7866
          %v7868 = vpop.f32.mrb[0].mxu0
          %7869 = vmatprep.mubr.f32.mxu0 0.0
          %v7870 = vand.u32 %v7488, 4294901760
          %7871 = vmatmul.mubr.f32.gmra.mrb[0].mxu0 %v7870
          %v7872 = vpop.f32.mrb[0].mxu0
          %v7873 = vadd.f32 %v7699, %v7872
          %v7874 = vpop.f32.mrb[0].mxu0
          %7875 = vmatprep.mubr.f32.mxu0 0.0
          %v7876 = vand.u32 %v7491, 4294901760
          %7877 = vmatmul.mubr.f32.gmra.mrb[0].mxu0 %v7876
          %v7878 = vpop.f32.mrb[0].mxu0
          %v7879 = vadd.f32 %v7709, %v7878
          %v7880 = vpop.f32.mrb[0].mxu0
          %7881 = vmatprep.mubr.f32.mxu0 0.0
          %v7882 = vand.u32 %v7494, 4294901760
          %7883 = vmatmul.mubr.f32.gmra.mrb[0].mxu0 %v7882
          %v7884 = vpop.f32.mrb[0].mxu0
          %v7885 = vadd.f32 %v7719, %v7884
          %v7886 = vpop.f32.mrb[0].mxu0
          %7887 = vdwg.mxu0
          %7888 = vmatprep.subr.mxu0 0.0
          %v7889 = vand.u32 %v7408, 4294901760
          %v7890 = vsub.f32 %v7408, %v7889
          %7891 = vmatpush1.msra.mxu0 %v7890
          %7892 = vmatprep.subr.mxu0 0.0
          %7893 = vmatpush1.msra.mxu0 0.0
          %7894 = vmatprep.subr.mxu0 0.0
          %7895 = vmatpush1.msra.mxu0 0.0
          %7896 = vmatprep.subr.mxu0 0.0
          %7897 = vmatpush1.msra.mxu0 0.0
          %7898 = vmatprep.subr.mxu0 0.0
          %7899 = vmatpush1.msra.mxu0 0.0
          %7900 = vmatprep.subr.mxu0 0.0
          %7901 = vmatpush1.msra.mxu0 0.0
          %7902 = vmatprep.subr.mxu0 0.0
          %7903 = vmatpush1.msra.mxu0 0.0
          %7904 = vmatprep.subr.mxu0 0.0
          %7905 = vmatpush1.msra.mxu0 0.0
          %7906 = vmatprep.subr.mxu0 0.0
          %7907 = vmatpush1.msra.mxu0 0.0
          %7908 = vmatprep.subr.mxu0 0.0
          %7909 = vmatpush1.msra.mxu0 0.0
          %7910 = vmatprep.subr.mxu0 0.0
          %7911 = vmatpush1.msra.mxu0 0.0
          %7912 = vmatprep.subr.mxu0 0.0
          %7913 = vmatpush1.msra.mxu0 0.0
          %7914 = vmatprep.subr.mxu0 0.0
          %7915 = vmatpush1.msra.mxu0 0.0
          %7916 = vmatprep.subr.mxu0 0.0
          %7917 = vmatpush1.msra.mxu0 0.0
          %7918 = vmatprep.subr.mxu0 0.0
          %7919 = vmatpush1.msra.mxu0 0.0
          %7920 = vmatprep.subr.mxu0 0.0
          %7921 = vmatpush1.msra.mxu0 0.0
          %7922 = vmatprep.subr.mxu0 0.0
          %7923 = vmatpush1.msra.mxu0 0.0
          %7924 = vmatprep.subr.mxu0 0.0
          %7925 = vmatpush1.msra.mxu0 0.0
          %7926 = vmatprep.subr.mxu0 0.0
          %7927 = vmatpush1.msra.mxu0 0.0
          %7928 = vmatprep.subr.mxu0 0.0
          %7929 = vmatpush1.msra.mxu0 0.0
          %7930 = vmatprep.subr.mxu0 0.0
          %7931 = vmatpush1.msra.mxu0 0.0
          %7932 = vmatprep.subr.mxu0 0.0
          %7933 = vmatpush1.msra.mxu0 0.0
          %7934 = vmatprep.subr.mxu0 0.0
          %7935 = vmatpush1.msra.mxu0 0.0
          %7936 = vmatprep.subr.mxu0 0.0
          %7937 = vmatpush1.msra.mxu0 0.0
          %7938 = vmatprep.subr.mxu0 0.0
          %7939 = vmatpush1.msra.mxu0 0.0
          %7940 = vmatprep.subr.mxu0 0.0
          %7941 = vmatpush1.msra.mxu0 0.0
          %7942 = vmatprep.subr.mxu0 0.0
          %7943 = vmatpush1.msra.mxu0 0.0
          %7944 = vmatprep.subr.mxu0 0.0
          %7945 = vmatpush1.msra.mxu0 0.0
          %7946 = vmatprep.subr.mxu0 0.0
          %7947 = vmatpush1.msra.mxu0 0.0
          %7948 = vmatprep.subr.mxu0 0.0
          %7949 = vmatpush1.msra.mxu0 0.0
          %7950 = vmatprep.subr.mxu0 0.0
          %7951 = vmatpush1.msra.mxu0 0.0
          %7952 = vmatprep.subr.mxu0 0.0
          %7953 = vmatpush1.msra.mxu0 0.0
          %7954 = vmatprep.mubr.f32.mxu0 0.0
          %v7955 = vand.u32 %v7449, 4294901760
          %v7956 = vsub.f32 %v7449, %v7955
          %7957 = vmatmul.mubr.f32.gmra.mrb[0].mxu0 %v7956
          %v7958 = vpop.f32.mrb[0].mxu0
          %v7959 = vadd.f32 %v7795, %v7958
          %v7960 = vpop.f32.mrb[0].mxu0
          %7961 = vmatprep.mubr.f32.mxu0 0.0
          %v7962 = vand.u32 %v7452, 4294901760
          %v7963 = vsub.f32 %v7452, %v7962
          %7964 = vmatmul.mubr.f32.gmra.mrb[0].mxu0 %v7963
          %v7965 = vpop.f32.mrb[0].mxu0
          %v7966 = vadd.f32 %v7801, %v7965
          %v7967 = vpop.f32.mrb[0].mxu0
          %7968 = vmatprep.mubr.f32.mxu0 0.0
          %v7969 = vand.u32 %v7455, 4294901760
          %v7970 = vsub.f32 %v7455, %v7969
          %7971 = vmatmul.mubr.f32.gmra.mrb[0].mxu0 %v7970
          %v7972 = vpop.f32.mrb[0].mxu0
          %v7973 = vadd.f32 %v7807, %v7972
          %v7974 = vpop.f32.mrb[0].mxu0
          %7975 = vmatprep.mubr.f32.mxu0 0.0
          %v7976 = vand.u32 %v7458, 4294901760
          %v7977 = vsub.f32 %v7458, %v7976
          %7978 = vmatmul.mubr.f32.gmra.mrb[0].mxu0 %v7977
          %v7979 = vpop.f32.mrb[0].mxu0
          %v7980 = vadd.f32 %v7813, %v7979
          %v7981 = vpop.f32.mrb[0].mxu0
          %7982 = vmatprep.mubr.f32.mxu0 0.0
          %v7983 = vand.u32 %v7461, 4294901760
          %v7984 = vsub.f32 %v7461, %v7983
          %7985 = vmatmul.mubr.f32.gmra.mrb[0].mxu0 %v7984
          %v7986 = vpop.f32.mrb[0].mxu0
          %v7987 = vadd.f32 %v7819, %v7986
          %v7988 = vpop.f32.mrb[0].mxu0
          %7989 = vmatprep.mubr.f32.mxu0 0.0
          %v7990 = vand.u32 %v7464, 4294901760
          %v7991 = vsub.f32 %v7464, %v7990
          %7992 = vmatmul.mubr.f32.gmra.mrb[0].mxu0 %v7991
          %v7993 = vpop.f32.mrb[0].mxu0
          %v7994 = vadd.f32 %v7825, %v7993
          %v7995 = vpop.f32.mrb[0].mxu0
          %7996 = vmatprep.mubr.f32.mxu0 0.0
          %v7997 = vand.u32 %v7467, 4294901760
          %v7998 = vsub.f32 %v7467, %v7997
          %7999 = vmatmul.mubr.f32.gmra.mrb[0].mxu0 %v7998
          %v8000 = vpop.f32.mrb[0].mxu0
          %v8001 = vadd.f32 %v7831, %v8000
          %v8002 = vpop.f32.mrb[0].mxu0
          %8003 = vmatprep.mubr.f32.mxu0 0.0
          %v8004 = vand.u32 %v7470, 4294901760
          %v8005 = vsub.f32 %v7470, %v8004
          %8006 = vmatmul.mubr.f32.gmra.mrb[0].mxu0 %v8005
          %v8007 = vpop.f32.mrb[0].mxu0
          %v8008 = vadd.f32 %v7837, %v8007
          %v8009 = vpop.f32.mrb[0].mxu0
          %8010 = vmatprep.mubr.f32.mxu0 0.0
          %v8011 = vand.u32 %v7473, 4294901760
          %v8012 = vsub.f32 %v7473, %v8011
          %8013 = vmatmul.mubr.f32.gmra.mrb[0].mxu0 %v8012
          %v8014 = vpop.f32.mrb[0].mxu0
          %v8015 = vadd.f32 %v7843, %v8014
          %v8016 = vpop.f32.mrb[0].mxu0
          %8017 = vmatprep.mubr.f32.mxu0 0.0
          %v8018 = vand.u32 %v7476, 4294901760
          %v8019 = vsub.f32 %v7476, %v8018
          %8020 = vmatmul.mubr.f32.gmra.mrb[0].mxu0 %v8019
          %v8021 = vpop.f32.mrb[0].mxu0
          %v8022 = vadd.f32 %v7849, %v8021
          %v8023 = vpop.f32.mrb[0].mxu0
          %8024 = vmatprep.mubr.f32.mxu0 0.0
          %v8025 = vand.u32 %v7479, 4294901760
          %v8026 = vsub.f32 %v7479, %v8025
          %8027 = vmatmul.mubr.f32.gmra.mrb[0].mxu0 %v8026
          %v8028 = vpop.f32.mrb[0].mxu0
          %v8029 = vadd.f32 %v7855, %v8028
          %v8030 = vpop.f32.mrb[0].mxu0
          %8031 = vmatprep.mubr.f32.mxu0 0.0
          %v8032 = vand.u32 %v7482, 4294901760
          %v8033 = vsub.f32 %v7482, %v8032
          %8034 = vmatmul.mubr.f32.gmra.mrb[0].mxu0 %v8033
          %v8035 = vpop.f32.mrb[0].mxu0
          %v8036 = vadd.f32 %v7861, %v8035
          %v8037 = vpop.f32.mrb[0].mxu0
          %8038 = vmatprep.mubr.f32.mxu0 0.0
          %v8039 = vand.u32 %v7485, 4294901760
          %v8040 = vsub.f32 %v7485, %v8039
          %8041 = vmatmul.mubr.f32.gmra.mrb[0].mxu0 %v8040
          %v8042 = vpop.f32.mrb[0].mxu0
          %v8043 = vadd.f32 %v7867, %v8042
          %v8044 = vpop.f32.mrb[0].mxu0
          %8045 = vmatprep.mubr.f32.mxu0 0.0
          %v8046 = vand.u32 %v7488, 4294901760
          %v8047 = vsub.f32 %v7488, %v8046
          %8048 = vmatmul.mubr.f32.gmra.mrb[0].mxu0 %v8047
          %v8049 = vpop.f32.mrb[0].mxu0
          %v8050 = vadd.f32 %v7873, %v8049
          %v8051 = vpop.f32.mrb[0].mxu0
          %8052 = vmatprep.mubr.f32.mxu0 0.0
          %v8053 = vand.u32 %v7491, 4294901760
          %v8054 = vsub.f32 %v7491, %v8053
          %8055 = vmatmul.mubr.f32.gmra.mrb[0].mxu0 %v8054
          %v8056 = vpop.f32.mrb[0].mxu0
          %v8057 = vadd.f32 %v7879, %v8056
          %v8058 = vpop.f32.mrb[0].mxu0
          %8059 = vmatprep.mubr.f32.mxu0 0.0
          %v8060 = vand.u32 %v7494, 4294901760
          %v8061 = vsub.f32 %v7494, %v8060
          %8062 = vmatmul.mubr.f32.gmra.mrb[0].mxu0 %v8061
          %v8063 = vpop.f32.mrb[0].mxu0
          %v8064 = vadd.f32 %v7885, %v8063
          %v8065 = vpop.f32.mrb[0].mxu0
          %8066 = vdwg.mxu0
          %8067 = vmatprep.subr.mxu0 0.0
          %v8068 = vand.u32 %v7408, 4294901760
          %8069 = vmatpush1.msra.mxu0 %v8068
          %8070 = vmatprep.subr.mxu0 0.0
          %8071 = vmatpush1.msra.mxu0 0.0
          %8072 = vmatprep.subr.mxu0 0.0
          %8073 = vmatpush1.msra.mxu0 0.0
          %8074 = vmatprep.subr.mxu0 0.0
          %8075 = vmatpush1.msra.mxu0 0.0
          %8076 = vmatprep.subr.mxu0 0.0
          %8077 = vmatpush1.msra.mxu0 0.0
          %8078 = vmatprep.subr.mxu0 0.0
          %8079 = vmatpush1.msra.mxu0 0.0
          %8080 = vmatprep.subr.mxu0 0.0
          %8081 = vmatpush1.msra.mxu0 0.0
          %8082 = vmatprep.subr.mxu0 0.0
          %8083 = vmatpush1.msra.mxu0 0.0
          %8084 = vmatprep.subr.mxu0 0.0
          %8085 = vmatpush1.msra.mxu0 0.0
          %8086 = vmatprep.subr.mxu0 0.0
          %8087 = vmatpush1.msra.mxu0 0.0
          %8088 = vmatprep.subr.mxu0 0.0
          %8089 = vmatpush1.msra.mxu0 0.0
          %8090 = vmatprep.subr.mxu0 0.0
          %8091 = vmatpush1.msra.mxu0 0.0
          %8092 = vmatprep.subr.mxu0 0.0
          %8093 = vmatpush1.msra.mxu0 0.0
          %8094 = vmatprep.subr.mxu0 0.0
          %8095 = vmatpush1.msra.mxu0 0.0
          %8096 = vmatprep.subr.mxu0 0.0
          %8097 = vmatpush1.msra.mxu0 0.0
          %8098 = vmatprep.subr.mxu0 0.0
          %8099 = vmatpush1.msra.mxu0 0.0
          %8100 = vmatprep.subr.mxu0 0.0
          %8101 = vmatpush1.msra.mxu0 0.0
          %8102 = vmatprep.subr.mxu0 0.0
          %8103 = vmatpush1.msra.mxu0 0.0
          %8104 = vmatprep.subr.mxu0 0.0
          %8105 = vmatpush1.msra.mxu0 0.0
          %8106 = vmatprep.subr.mxu0 0.0
          %8107 = vmatpush1.msra.mxu0 0.0
          %8108 = vmatprep.subr.mxu0 0.0
          %8109 = vmatpush1.msra.mxu0 0.0
          %8110 = vmatprep.subr.mxu0 0.0
          %8111 = vmatpush1.msra.mxu0 0.0
          %8112 = vmatprep.subr.mxu0 0.0
          %8113 = vmatpush1.msra.mxu0 0.0
          %8114 = vmatprep.subr.mxu0 0.0
          %8115 = vmatpush1.msra.mxu0 0.0
          %8116 = vmatprep.subr.mxu0 0.0
          %8117 = vmatpush1.msra.mxu0 0.0
          %8118 = vmatprep.subr.mxu0 0.0
          %8119 = vmatpush1.msra.mxu0 0.0
          %8120 = vmatprep.subr.mxu0 0.0
          %8121 = vmatpush1.msra.mxu0 0.0
          %8122 = vmatprep.subr.mxu0 0.0
          %8123 = vmatpush1.msra.mxu0 0.0
          %8124 = vmatprep.subr.mxu0 0.0
          %8125 = vmatpush1.msra.mxu0 0.0
          %8126 = vmatprep.subr.mxu0 0.0
          %8127 = vmatpush1.msra.mxu0 0.0
          %8128 = vmatprep.subr.mxu0 0.0
          %8129 = vmatpush1.msra.mxu0 0.0
          %8130 = vmatprep.subr.mxu0 0.0
          %8131 = vmatpush1.msra.mxu0 0.0
          %8132 = vmatprep.mubr.f32.mxu0 0.0
          %v8133 = vand.u32 %v7449, 4294901760
          %v8134 = vsub.f32 %v7449, %v8133
          %v8135 = vand.u32 %v8134, 4294901760
          %8136 = vmatmul.mubr.f32.gmra.mrb[0].mxu0 %v8135
          %v8137 = vpop.f32.mrb[0].mxu0
          %v8138 = vadd.f32 %v7959, %v8137
          %v8139 = vpop.f32.mrb[0].mxu0
          %8140 = vmatprep.mubr.f32.mxu0 0.0
          %v8141 = vand.u32 %v7452, 4294901760
          %v8142 = vsub.f32 %v7452, %v8141
          %v8143 = vand.u32 %v8142, 4294901760
          %8144 = vmatmul.mubr.f32.gmra.mrb[0].mxu0 %v8143
          %v8145 = vpop.f32.mrb[0].mxu0
          %v8146 = vadd.f32 %v7966, %v8145
          %v8147 = vpop.f32.mrb[0].mxu0
          %8148 = vmatprep.mubr.f32.mxu0 0.0
          %v8149 = vand.u32 %v7455, 4294901760
          %v8150 = vsub.f32 %v7455, %v8149
          %v8151 = vand.u32 %v8150, 4294901760
          %8152 = vmatmul.mubr.f32.gmra.mrb[0].mxu0 %v8151
          %v8153 = vpop.f32.mrb[0].mxu0
          %v8154 = vadd.f32 %v7973, %v8153
          %v8155 = vpop.f32.mrb[0].mxu0
          %8156 = vmatprep.mubr.f32.mxu0 0.0
          %v8157 = vand.u32 %v7458, 4294901760
          %v8158 = vsub.f32 %v7458, %v8157
          %v8159 = vand.u32 %v8158, 4294901760
          %8160 = vmatmul.mubr.f32.gmra.mrb[0].mxu0 %v8159
          %v8161 = vpop.f32.mrb[0].mxu0
          %v8162 = vadd.f32 %v7980, %v8161
          %v8163 = vpop.f32.mrb[0].mxu0
          %8164 = vmatprep.mubr.f32.mxu0 0.0
          %v8165 = vand.u32 %v7461, 4294901760
          %v8166 = vsub.f32 %v7461, %v8165
          %v8167 = vand.u32 %v8166, 4294901760
          %8168 = vmatmul.mubr.f32.gmra.mrb[0].mxu0 %v8167
          %v8169 = vpop.f32.mrb[0].mxu0
          %v8170 = vadd.f32 %v7987, %v8169
          %v8171 = vpop.f32.mrb[0].mxu0
          %8172 = vmatprep.mubr.f32.mxu0 0.0
          %v8173 = vand.u32 %v7464, 4294901760
          %v8174 = vsub.f32 %v7464, %v8173
          %v8175 = vand.u32 %v8174, 4294901760
          %8176 = vmatmul.mubr.f32.gmra.mrb[0].mxu0 %v8175
          %v8177 = vpop.f32.mrb[0].mxu0
          %v8178 = vadd.f32 %v7994, %v8177
          %v8179 = vpop.f32.mrb[0].mxu0
          %8180 = vmatprep.mubr.f32.mxu0 0.0
          %v8181 = vand.u32 %v7467, 4294901760
          %v8182 = vsub.f32 %v7467, %v8181
          %v8183 = vand.u32 %v8182, 4294901760
          %8184 = vmatmul.mubr.f32.gmra.mrb[0].mxu0 %v8183
          %v8185 = vpop.f32.mrb[0].mxu0
          %v8186 = vadd.f32 %v8001, %v8185
          %v8187 = vpop.f32.mrb[0].mxu0
          %8188 = vmatprep.mubr.f32.mxu0 0.0
          %v8189 = vand.u32 %v7470, 4294901760
          %v8190 = vsub.f32 %v7470, %v8189
          %v8191 = vand.u32 %v8190, 4294901760
          %8192 = vmatmul.mubr.f32.gmra.mrb[0].mxu0 %v8191
          %v8193 = vpop.f32.mrb[0].mxu0
          %v8194 = vadd.f32 %v8008, %v8193
          %v8195 = vpop.f32.mrb[0].mxu0
          %8196 = vmatprep.mubr.f32.mxu0 0.0
          %v8197 = vand.u32 %v7473, 4294901760
          %v8198 = vsub.f32 %v7473, %v8197
          %v8199 = vand.u32 %v8198, 4294901760
          %8200 = vmatmul.mubr.f32.gmra.mrb[0].mxu0 %v8199
          %v8201 = vpop.f32.mrb[0].mxu0
          %v8202 = vadd.f32 %v8015, %v8201
          %v8203 = vpop.f32.mrb[0].mxu0
          %8204 = vmatprep.mubr.f32.mxu0 0.0
          %v8205 = vand.u32 %v7476, 4294901760
          %v8206 = vsub.f32 %v7476, %v8205
          %v8207 = vand.u32 %v8206, 4294901760
          %8208 = vmatmul.mubr.f32.gmra.mrb[0].mxu0 %v8207
          %v8209 = vpop.f32.mrb[0].mxu0
          %v8210 = vadd.f32 %v8022, %v8209
          %v8211 = vpop.f32.mrb[0].mxu0
          %8212 = vmatprep.mubr.f32.mxu0 0.0
          %v8213 = vand.u32 %v7479, 4294901760
          %v8214 = vsub.f32 %v7479, %v8213
          %v8215 = vand.u32 %v8214, 4294901760
          %8216 = vmatmul.mubr.f32.gmra.mrb[0].mxu0 %v8215
          %v8217 = vpop.f32.mrb[0].mxu0
          %v8218 = vadd.f32 %v8029, %v8217
          %v8219 = vpop.f32.mrb[0].mxu0
          %8220 = vmatprep.mubr.f32.mxu0 0.0
          %v8221 = vand.u32 %v7482, 4294901760
          %v8222 = vsub.f32 %v7482, %v8221
          %v8223 = vand.u32 %v8222, 4294901760
          %8224 = vmatmul.mubr.f32.gmra.mrb[0].mxu0 %v8223
          %v8225 = vpop.f32.mrb[0].mxu0
          %v8226 = vadd.f32 %v8036, %v8225
          %v8227 = vpop.f32.mrb[0].mxu0
          %8228 = vmatprep.mubr.f32.mxu0 0.0
          %v8229 = vand.u32 %v7485, 4294901760
          %v8230 = vsub.f32 %v7485, %v8229
          %v8231 = vand.u32 %v8230, 4294901760
          %8232 = vmatmul.mubr.f32.gmra.mrb[0].mxu0 %v8231
          %v8233 = vpop.f32.mrb[0].mxu0
          %v8234 = vadd.f32 %v8043, %v8233
          %v8235 = vpop.f32.mrb[0].mxu0
          %8236 = vmatprep.mubr.f32.mxu0 0.0
          %v8237 = vand.u32 %v7488, 4294901760
          %v8238 = vsub.f32 %v7488, %v8237
          %v8239 = vand.u32 %v8238, 4294901760
          %8240 = vmatmul.mubr.f32.gmra.mrb[0].mxu0 %v8239
          %v8241 = vpop.f32.mrb[0].mxu0
          %v8242 = vadd.f32 %v8050, %v8241
          %v8243 = vpop.f32.mrb[0].mxu0
          %8244 = vmatprep.mubr.f32.mxu0 0.0
          %v8245 = vand.u32 %v7491, 4294901760
          %v8246 = vsub.f32 %v7491, %v8245
          %v8247 = vand.u32 %v8246, 4294901760
          %8248 = vmatmul.mubr.f32.gmra.mrb[0].mxu0 %v8247
          %v8249 = vpop.f32.mrb[0].mxu0
          %v8250 = vadd.f32 %v8057, %v8249
          %v8251 = vpop.f32.mrb[0].mxu0
          %8252 = vmatprep.mubr.f32.mxu0 0.0
          %v8253 = vand.u32 %v7494, 4294901760
          %v8254 = vsub.f32 %v7494, %v8253
          %v8255 = vand.u32 %v8254, 4294901760
          %8256 = vmatmul.mubr.f32.gmra.mrb[0].mxu0 %v8255
          %v8257 = vpop.f32.mrb[0].mxu0
          %v8258 = vadd.f32 %v8064, %v8257
          %v8259 = vpop.f32.mrb[0].mxu0
          %8260 = vdwg.mxu0
          %8261 = vmatprep.subr.mxu0 0.0
          %v8262 = vand.u32 %v7408, 4294901760
          %v8263 = vsub.f32 %v7408, %v8262
          %v8264 = vand.u32 %v8263, 4294901760
          %8265 = vmatpush1.msra.mxu0 %v8264
          %8266 = vmatprep.subr.mxu0 0.0
          %8267 = vmatpush1.msra.mxu0 0.0
          %8268 = vmatprep.subr.mxu0 0.0
          %8269 = vmatpush1.msra.mxu0 0.0
          %8270 = vmatprep.subr.mxu0 0.0
          %8271 = vmatpush1.msra.mxu0 0.0
          %8272 = vmatprep.subr.mxu0 0.0
          %8273 = vmatpush1.msra.mxu0 0.0
          %8274 = vmatprep.subr.mxu0 0.0
          %8275 = vmatpush1.msra.mxu0 0.0
          %8276 = vmatprep.subr.mxu0 0.0
          %8277 = vmatpush1.msra.mxu0 0.0
          %8278 = vmatprep.subr.mxu0 0.0
          %8279 = vmatpush1.msra.mxu0 0.0
          %8280 = vmatprep.subr.mxu0 0.0
          %8281 = vmatpush1.msra.mxu0 0.0
          %8282 = vmatprep.subr.mxu0 0.0
          %8283 = vmatpush1.msra.mxu0 0.0
          %8284 = vmatprep.subr.mxu0 0.0
          %8285 = vmatpush1.msra.mxu0 0.0
          %8286 = vmatprep.subr.mxu0 0.0
          %8287 = vmatpush1.msra.mxu0 0.0
          %8288 = vmatprep.subr.mxu0 0.0
          %8289 = vmatpush1.msra.mxu0 0.0
          %8290 = vmatprep.subr.mxu0 0.0
          %8291 = vmatpush1.msra.mxu0 0.0
          %8292 = vmatprep.subr.mxu0 0.0
          %8293 = vmatpush1.msra.mxu0 0.0
          %8294 = vmatprep.subr.mxu0 0.0
          %8295 = vmatpush1.msra.mxu0 0.0
          %8296 = vmatprep.subr.mxu0 0.0
          %8297 = vmatpush1.msra.mxu0 0.0
          %8298 = vmatprep.subr.mxu0 0.0
          %8299 = vmatpush1.msra.mxu0 0.0
          %8300 = vmatprep.subr.mxu0 0.0
          %8301 = vmatpush1.msra.mxu0 0.0
          %8302 = vmatprep.subr.mxu0 0.0
          %8303 = vmatpush1.msra.mxu0 0.0
          %8304 = vmatprep.subr.mxu0 0.0
          %8305 = vmatpush1.msra.mxu0 0.0
          %8306 = vmatprep.subr.mxu0 0.0
          %8307 = vmatpush1.msra.mxu0 0.0
          %8308 = vmatprep.subr.mxu0 0.0
          %8309 = vmatpush1.msra.mxu0 0.0
          %8310 = vmatprep.subr.mxu0 0.0
          %8311 = vmatpush1.msra.mxu0 0.0
          %8312 = vmatprep.subr.mxu0 0.0
          %8313 = vmatpush1.msra.mxu0 0.0
          %8314 = vmatprep.subr.mxu0 0.0
          %8315 = vmatpush1.msra.mxu0 0.0
          %8316 = vmatprep.subr.mxu0 0.0
          %8317 = vmatpush1.msra.mxu0 0.0
          %8318 = vmatprep.subr.mxu0 0.0
          %8319 = vmatpush1.msra.mxu0 0.0
          %8320 = vmatprep.subr.mxu0 0.0
          %8321 = vmatpush1.msra.mxu0 0.0
          %8322 = vmatprep.subr.mxu0 0.0
          %8323 = vmatpush1.msra.mxu0 0.0
          %8324 = vmatprep.subr.mxu0 0.0
          %8325 = vmatpush1.msra.mxu0 0.0
          %8326 = vmatprep.subr.mxu0 0.0
          %8327 = vmatpush1.msra.mxu0 0.0
          %8328 = vmatprep.mubr.f32.mxu0 0.0
          %v8329 = vand.u32 %v7449, 4294901760
          %8330 = vmatmul.mubr.f32.gmra.mrb[0].mxu0 %v8329
          %v8331 = vpop.f32.mrb[0].mxu0
          %v8332 = vadd.f32 %v8138, %v8331
          %v8333 = vpop.f32.mrb[0].mxu0
          %8334 = vmatprep.mubr.f32.mxu0 0.0
          %v8335 = vand.u32 %v7452, 4294901760
          %8336 = vmatmul.mubr.f32.gmra.mrb[0].mxu0 %v8335
          %v8337 = vpop.f32.mrb[0].mxu0
          %v8338 = vadd.f32 %v8146, %v8337
          %v8339 = vpop.f32.mrb[0].mxu0
          %8340 = vmatprep.mubr.f32.mxu0 0.0
          %v8341 = vand.u32 %v7455, 4294901760
          %8342 = vmatmul.mubr.f32.gmra.mrb[0].mxu0 %v8341
          %v8343 = vpop.f32.mrb[0].mxu0
          %v8344 = vadd.f32 %v8154, %v8343
          %v8345 = vpop.f32.mrb[0].mxu0
          %8346 = vmatprep.mubr.f32.mxu0 0.0
          %v8347 = vand.u32 %v7458, 4294901760
          %8348 = vmatmul.mubr.f32.gmra.mrb[0].mxu0 %v8347
          %v8349 = vpop.f32.mrb[0].mxu0
          %v8350 = vadd.f32 %v8162, %v8349
          %v8351 = vpop.f32.mrb[0].mxu0
          %8352 = vmatprep.mubr.f32.mxu0 0.0
          %v8353 = vand.u32 %v7461, 4294901760
          %8354 = vmatmul.mubr.f32.gmra.mrb[0].mxu0 %v8353
          %v8355 = vpop.f32.mrb[0].mxu0
          %v8356 = vadd.f32 %v8170, %v8355
          %v8357 = vpop.f32.mrb[0].mxu0
          %8358 = vmatprep.mubr.f32.mxu0 0.0
          %v8359 = vand.u32 %v7464, 4294901760
          %8360 = vmatmul.mubr.f32.gmra.mrb[0].mxu0 %v8359
          %v8361 = vpop.f32.mrb[0].mxu0
          %v8362 = vadd.f32 %v8178, %v8361
          %v8363 = vpop.f32.mrb[0].mxu0
          %8364 = vmatprep.mubr.f32.mxu0 0.0
          %v8365 = vand.u32 %v7467, 4294901760
          %8366 = vmatmul.mubr.f32.gmra.mrb[0].mxu0 %v8365
          %v8367 = vpop.f32.mrb[0].mxu0
          %v8368 = vadd.f32 %v8186, %v8367
          %v8369 = vpop.f32.mrb[0].mxu0
          %8370 = vmatprep.mubr.f32.mxu0 0.0
          %v8371 = vand.u32 %v7470, 4294901760
          %8372 = vmatmul.mubr.f32.gmra.mrb[0].mxu0 %v8371
          %v8373 = vpop.f32.mrb[0].mxu0
          %v8374 = vadd.f32 %v8194, %v8373
          %v8375 = vpop.f32.mrb[0].mxu0
          %8376 = vmatprep.mubr.f32.mxu0 0.0
          %v8377 = vand.u32 %v7473, 4294901760
          %8378 = vmatmul.mubr.f32.gmra.mrb[0].mxu0 %v8377
          %v8379 = vpop.f32.mrb[0].mxu0
          %v8380 = vadd.f32 %v8202, %v8379
          %v8381 = vpop.f32.mrb[0].mxu0
          %8382 = vmatprep.mubr.f32.mxu0 0.0
          %v8383 = vand.u32 %v7476, 4294901760
          %8384 = vmatmul.mubr.f32.gmra.mrb[0].mxu0 %v8383
          %v8385 = vpop.f32.mrb[0].mxu0
          %v8386 = vadd.f32 %v8210, %v8385
          %v8387 = vpop.f32.mrb[0].mxu0
          %8388 = vmatprep.mubr.f32.mxu0 0.0
          %v8389 = vand.u32 %v7479, 4294901760
          %8390 = vmatmul.mubr.f32.gmra.mrb[0].mxu0 %v8389
          %v8391 = vpop.f32.mrb[0].mxu0
          %v8392 = vadd.f32 %v8218, %v8391
          %v8393 = vpop.f32.mrb[0].mxu0
          %8394 = vmatprep.mubr.f32.mxu0 0.0
          %v8395 = vand.u32 %v7482, 4294901760
          %8396 = vmatmul.mubr.f32.gmra.mrb[0].mxu0 %v8395
          %v8397 = vpop.f32.mrb[0].mxu0
          %v8398 = vadd.f32 %v8226, %v8397
          %v8399 = vpop.f32.mrb[0].mxu0
          %8400 = vmatprep.mubr.f32.mxu0 0.0
          %v8401 = vand.u32 %v7485, 4294901760
          %8402 = vmatmul.mubr.f32.gmra.mrb[0].mxu0 %v8401
          %v8403 = vpop.f32.mrb[0].mxu0
          %v8404 = vadd.f32 %v8234, %v8403
          %v8405 = vpop.f32.mrb[0].mxu0
          %8406 = vmatprep.mubr.f32.mxu0 0.0
          %v8407 = vand.u32 %v7488, 4294901760
          %8408 = vmatmul.mubr.f32.gmra.mrb[0].mxu0 %v8407
          %v8409 = vpop.f32.mrb[0].mxu0
          %v8410 = vadd.f32 %v8242, %v8409
          %v8411 = vpop.f32.mrb[0].mxu0
          %8412 = vmatprep.mubr.f32.mxu0 0.0
          %v8413 = vand.u32 %v7491, 4294901760
          %8414 = vmatmul.mubr.f32.gmra.mrb[0].mxu0 %v8413
          %v8415 = vpop.f32.mrb[0].mxu0
          %v8416 = vadd.f32 %v8250, %v8415
          %v8417 = vpop.f32.mrb[0].mxu0
          %8418 = vmatprep.mubr.f32.mxu0 0.0
          %v8419 = vand.u32 %v7494, 4294901760
          %8420 = vmatmul.mubr.f32.gmra.mrb[0].mxu0 %v8419
          %v8421 = vpop.f32.mrb[0].mxu0
          %v8422 = vadd.f32 %v8258, %v8421
          %v8423 = vpop.f32.mrb[0].mxu0
          %8424 = vdwg.mxu0
          %8425 = vmatprep.subr.mxu0 0.0
          %v8426 = vand.u32 %v7408, 4294901760
          %8427 = vmatpush1.msra.mxu0 %v8426
          %8428 = vmatprep.subr.mxu0 0.0
          %8429 = vmatpush1.msra.mxu0 0.0
          %8430 = vmatprep.subr.mxu0 0.0
          %8431 = vmatpush1.msra.mxu0 0.0
          %8432 = vmatprep.subr.mxu0 0.0
          %8433 = vmatpush1.msra.mxu0 0.0
          %8434 = vmatprep.subr.mxu0 0.0
          %8435 = vmatpush1.msra.mxu0 0.0
          %8436 = vmatprep.subr.mxu0 0.0
          %8437 = vmatpush1.msra.mxu0 0.0
          %8438 = vmatprep.subr.mxu0 0.0
          %8439 = vmatpush1.msra.mxu0 0.0
          %8440 = vmatprep.subr.mxu0 0.0
          %8441 = vmatpush1.msra.mxu0 0.0
          %8442 = vmatprep.subr.mxu0 0.0
          %8443 = vmatpush1.msra.mxu0 0.0
          %8444 = vmatprep.subr.mxu0 0.0
          %8445 = vmatpush1.msra.mxu0 0.0
          %8446 = vmatprep.subr.mxu0 0.0
          %8447 = vmatpush1.msra.mxu0 0.0
          %8448 = vmatprep.subr.mxu0 0.0
          %8449 = vmatpush1.msra.mxu0 0.0
          %8450 = vmatprep.subr.mxu0 0.0
          %8451 = vmatpush1.msra.mxu0 0.0
          %8452 = vmatprep.subr.mxu0 0.0
          %8453 = vmatpush1.msra.mxu0 0.0
          %8454 = vmatprep.subr.mxu0 0.0
          %8455 = vmatpush1.msra.mxu0 0.0
          %8456 = vmatprep.subr.mxu0 0.0
          %8457 = vmatpush1.msra.mxu0 0.0
          %8458 = vmatprep.subr.mxu0 0.0
          %8459 = vmatpush1.msra.mxu0 0.0
          %8460 = vmatprep.subr.mxu0 0.0
          %8461 = vmatpush1.msra.mxu0 0.0
          %8462 = vmatprep.subr.mxu0 0.0
          %8463 = vmatpush1.msra.mxu0 0.0
          %8464 = vmatprep.subr.mxu0 0.0
          %8465 = vmatpush1.msra.mxu0 0.0
          %8466 = vmatprep.subr.mxu0 0.0
          %8467 = vmatpush1.msra.mxu0 0.0
          %8468 = vmatprep.subr.mxu0 0.0
          %8469 = vmatpush1.msra.mxu0 0.0
          %8470 = vmatprep.subr.mxu0 0.0
          %8471 = vmatpush1.msra.mxu0 0.0
          %8472 = vmatprep.subr.mxu0 0.0
          %8473 = vmatpush1.msra.mxu0 0.0
          %8474 = vmatprep.subr.mxu0 0.0
          %8475 = vmatpush1.msra.mxu0 0.0
          %8476 = vmatprep.subr.mxu0 0.0
          %8477 = vmatpush1.msra.mxu0 0.0
          %8478 = vmatprep.subr.mxu0 0.0
          %8479 = vmatpush1.msra.mxu0 0.0
          %8480 = vmatprep.subr.mxu0 0.0
          %8481 = vmatpush1.msra.mxu0 0.0
          %8482 = vmatprep.subr.mxu0 0.0
          %8483 = vmatpush1.msra.mxu0 0.0
          %8484 = vmatprep.subr.mxu0 0.0
          %8485 = vmatpush1.msra.mxu0 0.0
          %8486 = vmatprep.subr.mxu0 0.0
          %8487 = vmatpush1.msra.mxu0 0.0
          %8488 = vmatprep.subr.mxu0 0.0
          %8489 = vmatpush1.msra.mxu0 0.0
          %8490 = vmatprep.mubr.f32.mxu0 0.0
          %v8491 = vand.u32 %v7449, 4294901760
          %8492 = vmatmul.mubr.f32.gmra.mrb[0].mxu0 %v8491
          %v8493 = vpop.f32.mrb[0].mxu0
          %v8494 = vadd.f32 %v8332, %v8493
          %v8495 = vpop.f32.mrb[0].mxu0
          %8496 = vmatprep.mubr.f32.mxu0 0.0
          %v8497 = vand.u32 %v7452, 4294901760
          %8498 = vmatmul.mubr.f32.gmra.mrb[0].mxu0 %v8497
          %v8499 = vpop.f32.mrb[0].mxu0
          %v8500 = vadd.f32 %v8338, %v8499
          %v8501 = vpop.f32.mrb[0].mxu0
          %8502 = vmatprep.mubr.f32.mxu0 0.0
          %v8503 = vand.u32 %v7455, 4294901760
          %8504 = vmatmul.mubr.f32.gmra.mrb[0].mxu0 %v8503
          %v8505 = vpop.f32.mrb[0].mxu0
          %v8506 = vadd.f32 %v8344, %v8505
          %v8507 = vpop.f32.mrb[0].mxu0
          %8508 = vmatprep.mubr.f32.mxu0 0.0
          %v8509 = vand.u32 %v7458, 4294901760
          %8510 = vmatmul.mubr.f32.gmra.mrb[0].mxu0 %v8509
          %v8511 = vpop.f32.mrb[0].mxu0
          %v8512 = vadd.f32 %v8350, %v8511
          %v8513 = vpop.f32.mrb[0].mxu0
          %8514 = vmatprep.mubr.f32.mxu0 0.0
          %v8515 = vand.u32 %v7461, 4294901760
          %8516 = vmatmul.mubr.f32.gmra.mrb[0].mxu0 %v8515
          %v8517 = vpop.f32.mrb[0].mxu0
          %v8518 = vadd.f32 %v8356, %v8517
          %v8519 = vpop.f32.mrb[0].mxu0
          %8520 = vmatprep.mubr.f32.mxu0 0.0
          %v8521 = vand.u32 %v7464, 4294901760
          %8522 = vmatmul.mubr.f32.gmra.mrb[0].mxu0 %v8521
          %v8523 = vpop.f32.mrb[0].mxu0
          %v8524 = vadd.f32 %v8362, %v8523
          %v8525 = vpop.f32.mrb[0].mxu0
          %8526 = vmatprep.mubr.f32.mxu0 0.0
          %v8527 = vand.u32 %v7467, 4294901760
          %8528 = vmatmul.mubr.f32.gmra.mrb[0].mxu0 %v8527
          %v8529 = vpop.f32.mrb[0].mxu0
          %v8530 = vadd.f32 %v8368, %v8529
          %v8531 = vpop.f32.mrb[0].mxu0
          %8532 = vmatprep.mubr.f32.mxu0 0.0
          %v8533 = vand.u32 %v7470, 4294901760
          %8534 = vmatmul.mubr.f32.gmra.mrb[0].mxu0 %v8533
          %v8535 = vpop.f32.mrb[0].mxu0
          %v8536 = vadd.f32 %v8374, %v8535
          %v8537 = vpop.f32.mrb[0].mxu0
          %8538 = vmatprep.mubr.f32.mxu0 0.0
          %v8539 = vand.u32 %v7473, 4294901760
          %8540 = vmatmul.mubr.f32.gmra.mrb[0].mxu0 %v8539
          %v8541 = vpop.f32.mrb[0].mxu0
          %v8542 = vadd.f32 %v8380, %v8541
          %v8543 = vpop.f32.mrb[0].mxu0
          %8544 = vmatprep.mubr.f32.mxu0 0.0
          %v8545 = vand.u32 %v7476, 4294901760
          %8546 = vmatmul.mubr.f32.gmra.mrb[0].mxu0 %v8545
          %v8547 = vpop.f32.mrb[0].mxu0
          %v8548 = vadd.f32 %v8386, %v8547
          %v8549 = vpop.f32.mrb[0].mxu0
          %8550 = vmatprep.mubr.f32.mxu0 0.0
          %v8551 = vand.u32 %v7479, 4294901760
          %8552 = vmatmul.mubr.f32.gmra.mrb[0].mxu0 %v8551
          %v8553 = vpop.f32.mrb[0].mxu0
          %v8554 = vadd.f32 %v8392, %v8553
          %v8555 = vpop.f32.mrb[0].mxu0
          %8556 = vmatprep.mubr.f32.mxu0 0.0
          %v8557 = vand.u32 %v7482, 4294901760
          %8558 = vmatmul.mubr.f32.gmra.mrb[0].mxu0 %v8557
          %v8559 = vpop.f32.mrb[0].mxu0
          %v8560 = vadd.f32 %v8398, %v8559
          %v8561 = vpop.f32.mrb[0].mxu0
          %8562 = vmatprep.mubr.f32.mxu0 0.0
          %v8563 = vand.u32 %v7485, 4294901760
          %8564 = vmatmul.mubr.f32.gmra.mrb[0].mxu0 %v8563
          %v8565 = vpop.f32.mrb[0].mxu0
          %v8566 = vadd.f32 %v8404, %v8565
          %v8567 = vpop.f32.mrb[0].mxu0
          %8568 = vmatprep.mubr.f32.mxu0 0.0
          %v8569 = vand.u32 %v7488, 4294901760
          %8570 = vmatmul.mubr.f32.gmra.mrb[0].mxu0 %v8569
          %v8571 = vpop.f32.mrb[0].mxu0
          %v8572 = vadd.f32 %v8410, %v8571
          %v8573 = vpop.f32.mrb[0].mxu0
          %8574 = vmatprep.mubr.f32.mxu0 0.0
          %v8575 = vand.u32 %v7491, 4294901760
          %8576 = vmatmul.mubr.f32.gmra.mrb[0].mxu0 %v8575
          %v8577 = vpop.f32.mrb[0].mxu0
          %v8578 = vadd.f32 %v8416, %v8577
          %v8579 = vpop.f32.mrb[0].mxu0
          %8580 = vmatprep.mubr.f32.mxu0 0.0
          %v8581 = vand.u32 %v7494, 4294901760
          %8582 = vmatmul.mubr.f32.gmra.mrb[0].mxu0 %v8581
          %v8583 = vpop.f32.mrb[0].mxu0
          %v8584 = vadd.f32 %v8422, %v8583
          %v8585 = vpop.f32.mrb[0].mxu0
          %8586 = vdwg.mxu0
          %s8587 = smul.u32 %s7401, 128
          %s8588 = scalar_lea.vmem %s376, %s8587 [#allocation11]
          %8589 = vst [vmem:[%s8588] sm:$0xff] %v8494
          %8590 = vst [vmem:[%s8588 + $0x8] sm:$0xff] %v8500
          %8591 = vst [vmem:[%s8588 + $0x10] sm:$0xff] %v8506
          %8592 = vst [vmem:[%s8588 + $0x18] sm:$0xff] %v8512
          %8593 = vst [vmem:[%s8588 + $0x20] sm:$0xff] %v8518
          %8594 = vst [vmem:[%s8588 + $0x28] sm:$0xff] %v8524
          %8595 = vst [vmem:[%s8588 + $0x30] sm:$0xff] %v8530
          %8596 = vst [vmem:[%s8588 + $0x38] sm:$0xff] %v8536
          %8597 = vst [vmem:[%s8588 + $0x40] sm:$0xff] %v8542
          %8598 = vst [vmem:[%s8588 + $0x48] sm:$0xff] %v8548
          %8599 = vst [vmem:[%s8588 + $0x50] sm:$0xff] %v8554
          %8600 = vst [vmem:[%s8588 + $0x58] sm:$0xff] %v8560
          %8601 = vst [vmem:[%s8588 + $0x60] sm:$0xff] %v8566
          %8602 = vst [vmem:[%s8588 + $0x68] sm:$0xff] %v8572
          %8603 = vst [vmem:[%s8588 + $0x70] sm:$0xff] %v8578
          %8604 = vst [vmem:[%s8588 + $0x78] sm:$0xff] %v8584
          %8605 = vmatprep.subr.mxu0 0.0
          %v8606 = vand.u32 %v7414, 4294901760
          %8607 = vmatpush1.msra.mxu0 %v8606
          %8608 = vmatprep.subr.mxu0 0.0
          %8609 = vmatpush1.msra.mxu0 0.0
          %8610 = vmatprep.subr.mxu0 0.0
          %8611 = vmatpush1.msra.mxu0 0.0
          %8612 = vmatprep.subr.mxu0 0.0
          %8613 = vmatpush1.msra.mxu0 0.0
          %8614 = vmatprep.subr.mxu0 0.0
          %8615 = vmatpush1.msra.mxu0 0.0
          %8616 = vmatprep.subr.mxu0 0.0
          %8617 = vmatpush1.msra.mxu0 0.0
          %8618 = vmatprep.subr.mxu0 0.0
          %8619 = vmatpush1.msra.mxu0 0.0
          %8620 = vmatprep.subr.mxu0 0.0
          %8621 = vmatpush1.msra.mxu0 0.0
          %8622 = vmatprep.subr.mxu0 0.0
          %8623 = vmatpush1.msra.mxu0 0.0
          %8624 = vmatprep.subr.mxu0 0.0
          %8625 = vmatpush1.msra.mxu0 0.0
          %8626 = vmatprep.subr.mxu0 0.0
          %8627 = vmatpush1.msra.mxu0 0.0
          %8628 = vmatprep.subr.mxu0 0.0
          %8629 = vmatpush1.msra.mxu0 0.0
          %8630 = vmatprep.subr.mxu0 0.0
          %8631 = vmatpush1.msra.mxu0 0.0
          %8632 = vmatprep.subr.mxu0 0.0
          %8633 = vmatpush1.msra.mxu0 0.0
          %8634 = vmatprep.subr.mxu0 0.0
          %8635 = vmatpush1.msra.mxu0 0.0
          %8636 = vmatprep.subr.mxu0 0.0
          %8637 = vmatpush1.msra.mxu0 0.0
          %8638 = vmatprep.subr.mxu0 0.0
          %8639 = vmatpush1.msra.mxu0 0.0
          %8640 = vmatprep.subr.mxu0 0.0
          %8641 = vmatpush1.msra.mxu0 0.0
          %8642 = vmatprep.subr.mxu0 0.0
          %8643 = vmatpush1.msra.mxu0 0.0
          %8644 = vmatprep.subr.mxu0 0.0
          %8645 = vmatpush1.msra.mxu0 0.0
          %8646 = vmatprep.subr.mxu0 0.0
          %8647 = vmatpush1.msra.mxu0 0.0
          %8648 = vmatprep.subr.mxu0 0.0
          %8649 = vmatpush1.msra.mxu0 0.0
          %8650 = vmatprep.subr.mxu0 0.0
          %8651 = vmatpush1.msra.mxu0 0.0
          %8652 = vmatprep.subr.mxu0 0.0
          %8653 = vmatpush1.msra.mxu0 0.0
          %8654 = vmatprep.subr.mxu0 0.0
          %8655 = vmatpush1.msra.mxu0 0.0
          %8656 = vmatprep.subr.mxu0 0.0
          %8657 = vmatpush1.msra.mxu0 0.0
          %8658 = vmatprep.subr.mxu0 0.0
          %8659 = vmatpush1.msra.mxu0 0.0
          %8660 = vmatprep.subr.mxu0 0.0
          %8661 = vmatpush1.msra.mxu0 0.0
          %8662 = vmatprep.subr.mxu0 0.0
          %8663 = vmatpush1.msra.mxu0 0.0
          %8664 = vmatprep.subr.mxu0 0.0
          %8665 = vmatpush1.msra.mxu0 0.0
          %8666 = vmatprep.subr.mxu0 0.0
          %8667 = vmatpush1.msra.mxu0 0.0
          %8668 = vmatprep.subr.mxu0 0.0
          %8669 = vmatpush1.msra.mxu0 0.0
          %8670 = vmatprep.mubr.f32.mxu0 0.0
          %v8671 = vand.u32 %v7449, 4294901760
          %v8672 = vsub.f32 %v7449, %v8671
          %v8673 = vand.u32 %v8672, 4294901760
          %v8674 = vsub.f32 %v8672, %v8673
          %v8675 = vand.u32 %v8674, 4294901760
          %8676 = vmatmul.mubr.f32.gmra.mrb[0].mxu0 %v8675
          %v8677 = vpop.f32.mrb[0].mxu0
          %v8678 = vadd.f32 0.0, %v8677
          %v8679 = vpop.f32.mrb[0].mxu0
          %8680 = vmatprep.mubr.f32.mxu0 0.0
          %v8681 = vand.u32 %v7452, 4294901760
          %v8682 = vsub.f32 %v7452, %v8681
          %v8683 = vand.u32 %v8682, 4294901760
          %v8684 = vsub.f32 %v8682, %v8683
          %v8685 = vand.u32 %v8684, 4294901760
          %8686 = vmatmul.mubr.f32.gmra.mrb[0].mxu0 %v8685
          %v8687 = vpop.f32.mrb[0].mxu0
          %v8688 = vadd.f32 0.0, %v8687
          %v8689 = vpop.f32.mrb[0].mxu0
          %8690 = vmatprep.mubr.f32.mxu0 0.0
          %v8691 = vand.u32 %v7455, 4294901760
          %v8692 = vsub.f32 %v7455, %v8691
          %v8693 = vand.u32 %v8692, 4294901760
          %v8694 = vsub.f32 %v8692, %v8693
          %v8695 = vand.u32 %v8694, 4294901760
          %8696 = vmatmul.mubr.f32.gmra.mrb[0].mxu0 %v8695
          %v8697 = vpop.f32.mrb[0].mxu0
          %v8698 = vadd.f32 0.0, %v8697
          %v8699 = vpop.f32.mrb[0].mxu0
          %8700 = vmatprep.mubr.f32.mxu0 0.0
          %v8701 = vand.u32 %v7458, 4294901760
          %v8702 = vsub.f32 %v7458, %v8701
          %v8703 = vand.u32 %v8702, 4294901760
          %v8704 = vsub.f32 %v8702, %v8703
          %v8705 = vand.u32 %v8704, 4294901760
          %8706 = vmatmul.mubr.f32.gmra.mrb[0].mxu0 %v8705
          %v8707 = vpop.f32.mrb[0].mxu0
          %v8708 = vadd.f32 0.0, %v8707
          %v8709 = vpop.f32.mrb[0].mxu0
          %8710 = vmatprep.mubr.f32.mxu0 0.0
          %v8711 = vand.u32 %v7461, 4294901760
          %v8712 = vsub.f32 %v7461, %v8711
          %v8713 = vand.u32 %v8712, 4294901760
          %v8714 = vsub.f32 %v8712, %v8713
          %v8715 = vand.u32 %v8714, 4294901760
          %8716 = vmatmul.mubr.f32.gmra.mrb[0].mxu0 %v8715
          %v8717 = vpop.f32.mrb[0].mxu0
          %v8718 = vadd.f32 0.0, %v8717
          %v8719 = vpop.f32.mrb[0].mxu0
          %8720 = vmatprep.mubr.f32.mxu0 0.0
          %v8721 = vand.u32 %v7464, 4294901760
          %v8722 = vsub.f32 %v7464, %v8721
          %v8723 = vand.u32 %v8722, 4294901760
          %v8724 = vsub.f32 %v8722, %v8723
          %v8725 = vand.u32 %v8724, 4294901760
          %8726 = vmatmul.mubr.f32.gmra.mrb[0].mxu0 %v8725
          %v8727 = vpop.f32.mrb[0].mxu0
          %v8728 = vadd.f32 0.0, %v8727
          %v8729 = vpop.f32.mrb[0].mxu0
          %8730 = vmatprep.mubr.f32.mxu0 0.0
          %v8731 = vand.u32 %v7467, 4294901760
          %v8732 = vsub.f32 %v7467, %v8731
          %v8733 = vand.u32 %v8732, 4294901760
          %v8734 = vsub.f32 %v8732, %v8733
          %v8735 = vand.u32 %v8734, 4294901760
          %8736 = vmatmul.mubr.f32.gmra.mrb[0].mxu0 %v8735
          %v8737 = vpop.f32.mrb[0].mxu0
          %v8738 = vadd.f32 0.0, %v8737
          %v8739 = vpop.f32.mrb[0].mxu0
          %8740 = vmatprep.mubr.f32.mxu0 0.0
          %v8741 = vand.u32 %v7470, 4294901760
          %v8742 = vsub.f32 %v7470, %v8741
          %v8743 = vand.u32 %v8742, 4294901760
          %v8744 = vsub.f32 %v8742, %v8743
          %v8745 = vand.u32 %v8744, 4294901760
          %8746 = vmatmul.mubr.f32.gmra.mrb[0].mxu0 %v8745
          %v8747 = vpop.f32.mrb[0].mxu0
          %v8748 = vadd.f32 0.0, %v8747
          %v8749 = vpop.f32.mrb[0].mxu0
          %8750 = vmatprep.mubr.f32.mxu0 0.0
          %v8751 = vand.u32 %v7473, 4294901760
          %v8752 = vsub.f32 %v7473, %v8751
          %v8753 = vand.u32 %v8752, 4294901760
          %v8754 = vsub.f32 %v8752, %v8753
          %v8755 = vand.u32 %v8754, 4294901760
          %8756 = vmatmul.mubr.f32.gmra.mrb[0].mxu0 %v8755
          %v8757 = vpop.f32.mrb[0].mxu0
          %v8758 = vadd.f32 0.0, %v8757
          %v8759 = vpop.f32.mrb[0].mxu0
          %8760 = vmatprep.mubr.f32.mxu0 0.0
          %v8761 = vand.u32 %v7476, 4294901760
          %v8762 = vsub.f32 %v7476, %v8761
          %v8763 = vand.u32 %v8762, 4294901760
          %v8764 = vsub.f32 %v8762, %v8763
          %v8765 = vand.u32 %v8764, 4294901760
          %8766 = vmatmul.mubr.f32.gmra.mrb[0].mxu0 %v8765
          %v8767 = vpop.f32.mrb[0].mxu0
          %v8768 = vadd.f32 0.0, %v8767
          %v8769 = vpop.f32.mrb[0].mxu0
          %8770 = vmatprep.mubr.f32.mxu0 0.0
          %v8771 = vand.u32 %v7479, 4294901760
          %v8772 = vsub.f32 %v7479, %v8771
          %v8773 = vand.u32 %v8772, 4294901760
          %v8774 = vsub.f32 %v8772, %v8773
          %v8775 = vand.u32 %v8774, 4294901760
          %8776 = vmatmul.mubr.f32.gmra.mrb[0].mxu0 %v8775
          %v8777 = vpop.f32.mrb[0].mxu0
          %v8778 = vadd.f32 0.0, %v8777
          %v8779 = vpop.f32.mrb[0].mxu0
          %8780 = vmatprep.mubr.f32.mxu0 0.0
          %v8781 = vand.u32 %v7482, 4294901760
          %v8782 = vsub.f32 %v7482, %v8781
          %v8783 = vand.u32 %v8782, 4294901760
          %v8784 = vsub.f32 %v8782, %v8783
          %v8785 = vand.u32 %v8784, 4294901760
          %8786 = vmatmul.mubr.f32.gmra.mrb[0].mxu0 %v8785
          %v8787 = vpop.f32.mrb[0].mxu0
          %v8788 = vadd.f32 0.0, %v8787
          %v8789 = vpop.f32.mrb[0].mxu0
          %8790 = vmatprep.mubr.f32.mxu0 0.0
          %v8791 = vand.u32 %v7485, 4294901760
          %v8792 = vsub.f32 %v7485, %v8791
          %v8793 = vand.u32 %v8792, 4294901760
          %v8794 = vsub.f32 %v8792, %v8793
          %v8795 = vand.u32 %v8794, 4294901760
          %8796 = vmatmul.mubr.f32.gmra.mrb[0].mxu0 %v8795
          %v8797 = vpop.f32.mrb[0].mxu0
          %v8798 = vadd.f32 0.0, %v8797
          %v8799 = vpop.f32.mrb[0].mxu0
          %8800 = vmatprep.mubr.f32.mxu0 0.0
          %v8801 = vand.u32 %v7488, 4294901760
          %v8802 = vsub.f32 %v7488, %v8801
          %v8803 = vand.u32 %v8802, 4294901760
          %v8804 = vsub.f32 %v8802, %v8803
          %v8805 = vand.u32 %v8804, 4294901760
          %8806 = vmatmul.mubr.f32.gmra.mrb[0].mxu0 %v8805
          %v8807 = vpop.f32.mrb[0].mxu0
          %v8808 = vadd.f32 0.0, %v8807
          %v8809 = vpop.f32.mrb[0].mxu0
          %8810 = vmatprep.mubr.f32.mxu0 0.0
          %v8811 = vand.u32 %v7491, 4294901760
          %v8812 = vsub.f32 %v7491, %v8811
          %v8813 = vand.u32 %v8812, 4294901760
          %v8814 = vsub.f32 %v8812, %v8813
          %v8815 = vand.u32 %v8814, 4294901760
          %8816 = vmatmul.mubr.f32.gmra.mrb[0].mxu0 %v8815
          %v8817 = vpop.f32.mrb[0].mxu0
          %v8818 = vadd.f32 0.0, %v8817
          %v8819 = vpop.f32.mrb[0].mxu0
          %8820 = vmatprep.mubr.f32.mxu0 0.0
          %v8821 = vand.u32 %v7494, 4294901760
          %v8822 = vsub.f32 %v7494, %v8821
          %v8823 = vand.u32 %v8822, 4294901760
          %v8824 = vsub.f32 %v8822, %v8823
          %v8825 = vand.u32 %v8824, 4294901760
          %8826 = vmatmul.mubr.f32.gmra.mrb[0].mxu0 %v8825
          %v8827 = vpop.f32.mrb[0].mxu0
          %v8828 = vadd.f32 0.0, %v8827
          %v8829 = vpop.f32.mrb[0].mxu0
          %8830 = vdwg.mxu0
          %8831 = vmatprep.subr.mxu0 0.0
          %v8832 = vand.u32 %v7414, 4294901760
          %v8833 = vsub.f32 %v7414, %v8832
          %v8834 = vand.u32 %v8833, 4294901760
          %v8835 = vsub.f32 %v8833, %v8834
          %v8836 = vand.u32 %v8835, 4294901760
          %8837 = vmatpush1.msra.mxu0 %v8836
          %8838 = vmatprep.subr.mxu0 0.0
          %8839 = vmatpush1.msra.mxu0 0.0
          %8840 = vmatprep.subr.mxu0 0.0
          %8841 = vmatpush1.msra.mxu0 0.0
          %8842 = vmatprep.subr.mxu0 0.0
          %8843 = vmatpush1.msra.mxu0 0.0
          %8844 = vmatprep.subr.mxu0 0.0
          %8845 = vmatpush1.msra.mxu0 0.0
          %8846 = vmatprep.subr.mxu0 0.0
          %8847 = vmatpush1.msra.mxu0 0.0
          %8848 = vmatprep.subr.mxu0 0.0
          %8849 = vmatpush1.msra.mxu0 0.0
          %8850 = vmatprep.subr.mxu0 0.0
          %8851 = vmatpush1.msra.mxu0 0.0
          %8852 = vmatprep.subr.mxu0 0.0
          %8853 = vmatpush1.msra.mxu0 0.0
          %8854 = vmatprep.subr.mxu0 0.0
          %8855 = vmatpush1.msra.mxu0 0.0
          %8856 = vmatprep.subr.mxu0 0.0
          %8857 = vmatpush1.msra.mxu0 0.0
          %8858 = vmatprep.subr.mxu0 0.0
          %8859 = vmatpush1.msra.mxu0 0.0
          %8860 = vmatprep.subr.mxu0 0.0
          %8861 = vmatpush1.msra.mxu0 0.0
          %8862 = vmatprep.subr.mxu0 0.0
          %8863 = vmatpush1.msra.mxu0 0.0
          %8864 = vmatprep.subr.mxu0 0.0
          %8865 = vmatpush1.msra.mxu0 0.0
          %8866 = vmatprep.subr.mxu0 0.0
          %8867 = vmatpush1.msra.mxu0 0.0
          %8868 = vmatprep.subr.mxu0 0.0
          %8869 = vmatpush1.msra.mxu0 0.0
          %8870 = vmatprep.subr.mxu0 0.0
          %8871 = vmatpush1.msra.mxu0 0.0
          %8872 = vmatprep.subr.mxu0 0.0
          %8873 = vmatpush1.msra.mxu0 0.0
          %8874 = vmatprep.subr.mxu0 0.0
          %8875 = vmatpush1.msra.mxu0 0.0
          %8876 = vmatprep.subr.mxu0 0.0
          %8877 = vmatpush1.msra.mxu0 0.0
          %8878 = vmatprep.subr.mxu0 0.0
          %8879 = vmatpush1.msra.mxu0 0.0
          %8880 = vmatprep.subr.mxu0 0.0
          %8881 = vmatpush1.msra.mxu0 0.0
          %8882 = vmatprep.subr.mxu0 0.0
          %8883 = vmatpush1.msra.mxu0 0.0
          %8884 = vmatprep.subr.mxu0 0.0
          %8885 = vmatpush1.msra.mxu0 0.0
          %8886 = vmatprep.subr.mxu0 0.0
          %8887 = vmatpush1.msra.mxu0 0.0
          %8888 = vmatprep.subr.mxu0 0.0
          %8889 = vmatpush1.msra.mxu0 0.0
          %8890 = vmatprep.subr.mxu0 0.0
          %8891 = vmatpush1.msra.mxu0 0.0
          %8892 = vmatprep.subr.mxu0 0.0
          %8893 = vmatpush1.msra.mxu0 0.0
          %8894 = vmatprep.subr.mxu0 0.0
          %8895 = vmatpush1.msra.mxu0 0.0
          %8896 = vmatprep.subr.mxu0 0.0
          %8897 = vmatpush1.msra.mxu0 0.0
          %8898 = vmatprep.subr.mxu0 0.0
          %8899 = vmatpush1.msra.mxu0 0.0
          %8900 = vmatprep.mubr.f32.mxu0 0.0
          %v8901 = vand.u32 %v7449, 4294901760
          %8902 = vmatmul.mubr.f32.gmra.mrb[0].mxu0 %v8901
          %v8903 = vpop.f32.mrb[0].mxu0
          %v8904 = vadd.f32 %v8678, %v8903
          %v8905 = vpop.f32.mrb[0].mxu0
          %8906 = vmatprep.mubr.f32.mxu0 0.0
          %v8907 = vand.u32 %v7452, 4294901760
          %8908 = vmatmul.mubr.f32.gmra.mrb[0].mxu0 %v8907
          %v8909 = vpop.f32.mrb[0].mxu0
          %v8910 = vadd.f32 %v8688, %v8909
          %v8911 = vpop.f32.mrb[0].mxu0
          %8912 = vmatprep.mubr.f32.mxu0 0.0
          %v8913 = vand.u32 %v7455, 4294901760
          %8914 = vmatmul.mubr.f32.gmra.mrb[0].mxu0 %v8913
          %v8915 = vpop.f32.mrb[0].mxu0
          %v8916 = vadd.f32 %v8698, %v8915
          %v8917 = vpop.f32.mrb[0].mxu0
          %8918 = vmatprep.mubr.f32.mxu0 0.0
          %v8919 = vand.u32 %v7458, 4294901760
          %8920 = vmatmul.mubr.f32.gmra.mrb[0].mxu0 %v8919
          %v8921 = vpop.f32.mrb[0].mxu0
          %v8922 = vadd.f32 %v8708, %v8921
          %v8923 = vpop.f32.mrb[0].mxu0
          %8924 = vmatprep.mubr.f32.mxu0 0.0
          %v8925 = vand.u32 %v7461, 4294901760
          %8926 = vmatmul.mubr.f32.gmra.mrb[0].mxu0 %v8925
          %v8927 = vpop.f32.mrb[0].mxu0
          %v8928 = vadd.f32 %v8718, %v8927
          %v8929 = vpop.f32.mrb[0].mxu0
          %8930 = vmatprep.mubr.f32.mxu0 0.0
          %v8931 = vand.u32 %v7464, 4294901760
          %8932 = vmatmul.mubr.f32.gmra.mrb[0].mxu0 %v8931
          %v8933 = vpop.f32.mrb[0].mxu0
          %v8934 = vadd.f32 %v8728, %v8933
          %v8935 = vpop.f32.mrb[0].mxu0
          %8936 = vmatprep.mubr.f32.mxu0 0.0
          %v8937 = vand.u32 %v7467, 4294901760
          %8938 = vmatmul.mubr.f32.gmra.mrb[0].mxu0 %v8937
          %v8939 = vpop.f32.mrb[0].mxu0
          %v8940 = vadd.f32 %v8738, %v8939
          %v8941 = vpop.f32.mrb[0].mxu0
          %8942 = vmatprep.mubr.f32.mxu0 0.0
          %v8943 = vand.u32 %v7470, 4294901760
          %8944 = vmatmul.mubr.f32.gmra.mrb[0].mxu0 %v8943
          %v8945 = vpop.f32.mrb[0].mxu0
          %v8946 = vadd.f32 %v8748, %v8945
          %v8947 = vpop.f32.mrb[0].mxu0
          %8948 = vmatprep.mubr.f32.mxu0 0.0
          %v8949 = vand.u32 %v7473, 4294901760
          %8950 = vmatmul.mubr.f32.gmra.mrb[0].mxu0 %v8949
          %v8951 = vpop.f32.mrb[0].mxu0
          %v8952 = vadd.f32 %v8758, %v8951
          %v8953 = vpop.f32.mrb[0].mxu0
          %8954 = vmatprep.mubr.f32.mxu0 0.0
          %v8955 = vand.u32 %v7476, 4294901760
          %8956 = vmatmul.mubr.f32.gmra.mrb[0].mxu0 %v8955
          %v8957 = vpop.f32.mrb[0].mxu0
          %v8958 = vadd.f32 %v8768, %v8957
          %v8959 = vpop.f32.mrb[0].mxu0
          %8960 = vmatprep.mubr.f32.mxu0 0.0
          %v8961 = vand.u32 %v7479, 4294901760
          %8962 = vmatmul.mubr.f32.gmra.mrb[0].mxu0 %v8961
          %v8963 = vpop.f32.mrb[0].mxu0
          %v8964 = vadd.f32 %v8778, %v8963
          %v8965 = vpop.f32.mrb[0].mxu0
          %8966 = vmatprep.mubr.f32.mxu0 0.0
          %v8967 = vand.u32 %v7482, 4294901760
          %8968 = vmatmul.mubr.f32.gmra.mrb[0].mxu0 %v8967
          %v8969 = vpop.f32.mrb[0].mxu0
          %v8970 = vadd.f32 %v8788, %v8969
          %v8971 = vpop.f32.mrb[0].mxu0
          %8972 = vmatprep.mubr.f32.mxu0 0.0
          %v8973 = vand.u32 %v7485, 4294901760
          %8974 = vmatmul.mubr.f32.gmra.mrb[0].mxu0 %v8973
          %v8975 = vpop.f32.mrb[0].mxu0
          %v8976 = vadd.f32 %v8798, %v8975
          %v8977 = vpop.f32.mrb[0].mxu0
          %8978 = vmatprep.mubr.f32.mxu0 0.0
          %v8979 = vand.u32 %v7488, 4294901760
          %8980 = vmatmul.mubr.f32.gmra.mrb[0].mxu0 %v8979
          %v8981 = vpop.f32.mrb[0].mxu0
          %v8982 = vadd.f32 %v8808, %v8981
          %v8983 = vpop.f32.mrb[0].mxu0
          %8984 = vmatprep.mubr.f32.mxu0 0.0
          %v8985 = vand.u32 %v7491, 4294901760
          %8986 = vmatmul.mubr.f32.gmra.mrb[0].mxu0 %v8985
          %v8987 = vpop.f32.mrb[0].mxu0
          %v8988 = vadd.f32 %v8818, %v8987
          %v8989 = vpop.f32.mrb[0].mxu0
          %8990 = vmatprep.mubr.f32.mxu0 0.0
          %v8991 = vand.u32 %v7494, 4294901760
          %8992 = vmatmul.mubr.f32.gmra.mrb[0].mxu0 %v8991
          %v8993 = vpop.f32.mrb[0].mxu0
          %v8994 = vadd.f32 %v8828, %v8993
          %v8995 = vpop.f32.mrb[0].mxu0
          %8996 = vdwg.mxu0
          %8997 = vmatprep.subr.mxu0 0.0
          %v8998 = vand.u32 %v7414, 4294901760
          %v8999 = vsub.f32 %v7414, %v8998
          %9000 = vmatpush1.msra.mxu0 %v8999
          %9001 = vmatprep.subr.mxu0 0.0
          %9002 = vmatpush1.msra.mxu0 0.0
          %9003 = vmatprep.subr.mxu0 0.0
          %9004 = vmatpush1.msra.mxu0 0.0
          %9005 = vmatprep.subr.mxu0 0.0
          %9006 = vmatpush1.msra.mxu0 0.0
          %9007 = vmatprep.subr.mxu0 0.0
          %9008 = vmatpush1.msra.mxu0 0.0
          %9009 = vmatprep.subr.mxu0 0.0
          %9010 = vmatpush1.msra.mxu0 0.0
          %9011 = vmatprep.subr.mxu0 0.0
          %9012 = vmatpush1.msra.mxu0 0.0
          %9013 = vmatprep.subr.mxu0 0.0
          %9014 = vmatpush1.msra.mxu0 0.0
          %9015 = vmatprep.subr.mxu0 0.0
          %9016 = vmatpush1.msra.mxu0 0.0
          %9017 = vmatprep.subr.mxu0 0.0
          %9018 = vmatpush1.msra.mxu0 0.0
          %9019 = vmatprep.subr.mxu0 0.0
          %9020 = vmatpush1.msra.mxu0 0.0
          %9021 = vmatprep.subr.mxu0 0.0
          %9022 = vmatpush1.msra.mxu0 0.0
          %9023 = vmatprep.subr.mxu0 0.0
          %9024 = vmatpush1.msra.mxu0 0.0
          %9025 = vmatprep.subr.mxu0 0.0
          %9026 = vmatpush1.msra.mxu0 0.0
          %9027 = vmatprep.subr.mxu0 0.0
          %9028 = vmatpush1.msra.mxu0 0.0
          %9029 = vmatprep.subr.mxu0 0.0
          %9030 = vmatpush1.msra.mxu0 0.0
          %9031 = vmatprep.subr.mxu0 0.0
          %9032 = vmatpush1.msra.mxu0 0.0
          %9033 = vmatprep.subr.mxu0 0.0
          %9034 = vmatpush1.msra.mxu0 0.0
          %9035 = vmatprep.subr.mxu0 0.0
          %9036 = vmatpush1.msra.mxu0 0.0
          %9037 = vmatprep.subr.mxu0 0.0
          %9038 = vmatpush1.msra.mxu0 0.0
          %9039 = vmatprep.subr.mxu0 0.0
          %9040 = vmatpush1.msra.mxu0 0.0
          %9041 = vmatprep.subr.mxu0 0.0
          %9042 = vmatpush1.msra.mxu0 0.0
          %9043 = vmatprep.subr.mxu0 0.0
          %9044 = vmatpush1.msra.mxu0 0.0
          %9045 = vmatprep.subr.mxu0 0.0
          %9046 = vmatpush1.msra.mxu0 0.0
          %9047 = vmatprep.subr.mxu0 0.0
          %9048 = vmatpush1.msra.mxu0 0.0
          %9049 = vmatprep.subr.mxu0 0.0
          %9050 = vmatpush1.msra.mxu0 0.0
          %9051 = vmatprep.subr.mxu0 0.0
          %9052 = vmatpush1.msra.mxu0 0.0
          %9053 = vmatprep.subr.mxu0 0.0
          %9054 = vmatpush1.msra.mxu0 0.0
          %9055 = vmatprep.subr.mxu0 0.0
          %9056 = vmatpush1.msra.mxu0 0.0
          %9057 = vmatprep.subr.mxu0 0.0
          %9058 = vmatpush1.msra.mxu0 0.0
          %9059 = vmatprep.subr.mxu0 0.0
          %9060 = vmatpush1.msra.mxu0 0.0
          %9061 = vmatprep.subr.mxu0 0.0
          %9062 = vmatpush1.msra.mxu0 0.0
          %9063 = vmatprep.mubr.f32.mxu0 0.0
          %v9064 = vand.u32 %v7449, 4294901760
          %v9065 = vsub.f32 %v7449, %v9064
          %9066 = vmatmul.mubr.f32.gmra.mrb[0].mxu0 %v9065
          %v9067 = vpop.f32.mrb[0].mxu0
          %v9068 = vadd.f32 %v8904, %v9067
          %v9069 = vpop.f32.mrb[0].mxu0
          %9070 = vmatprep.mubr.f32.mxu0 0.0
          %v9071 = vand.u32 %v7452, 4294901760
          %v9072 = vsub.f32 %v7452, %v9071
          %9073 = vmatmul.mubr.f32.gmra.mrb[0].mxu0 %v9072
          %v9074 = vpop.f32.mrb[0].mxu0
          %v9075 = vadd.f32 %v8910, %v9074
          %v9076 = vpop.f32.mrb[0].mxu0
          %9077 = vmatprep.mubr.f32.mxu0 0.0
          %v9078 = vand.u32 %v7455, 4294901760
          %v9079 = vsub.f32 %v7455, %v9078
          %9080 = vmatmul.mubr.f32.gmra.mrb[0].mxu0 %v9079
          %v9081 = vpop.f32.mrb[0].mxu0
          %v9082 = vadd.f32 %v8916, %v9081
          %v9083 = vpop.f32.mrb[0].mxu0
          %9084 = vmatprep.mubr.f32.mxu0 0.0
          %v9085 = vand.u32 %v7458, 4294901760
          %v9086 = vsub.f32 %v7458, %v9085
          %9087 = vmatmul.mubr.f32.gmra.mrb[0].mxu0 %v9086
          %v9088 = vpop.f32.mrb[0].mxu0
          %v9089 = vadd.f32 %v8922, %v9088
          %v9090 = vpop.f32.mrb[0].mxu0
          %9091 = vmatprep.mubr.f32.mxu0 0.0
          %v9092 = vand.u32 %v7461, 4294901760
          %v9093 = vsub.f32 %v7461, %v9092
          %9094 = vmatmul.mubr.f32.gmra.mrb[0].mxu0 %v9093
          %v9095 = vpop.f32.mrb[0].mxu0
          %v9096 = vadd.f32 %v8928, %v9095
          %v9097 = vpop.f32.mrb[0].mxu0
          %9098 = vmatprep.mubr.f32.mxu0 0.0
          %v9099 = vand.u32 %v7464, 4294901760
          %v9100 = vsub.f32 %v7464, %v9099
          %9101 = vmatmul.mubr.f32.gmra.mrb[0].mxu0 %v9100
          %v9102 = vpop.f32.mrb[0].mxu0
          %v9103 = vadd.f32 %v8934, %v9102
          %v9104 = vpop.f32.mrb[0].mxu0
          %9105 = vmatprep.mubr.f32.mxu0 0.0
          %v9106 = vand.u32 %v7467, 4294901760
          %v9107 = vsub.f32 %v7467, %v9106
          %9108 = vmatmul.mubr.f32.gmra.mrb[0].mxu0 %v9107
          %v9109 = vpop.f32.mrb[0].mxu0
          %v9110 = vadd.f32 %v8940, %v9109
          %v9111 = vpop.f32.mrb[0].mxu0
          %9112 = vmatprep.mubr.f32.mxu0 0.0
          %v9113 = vand.u32 %v7470, 4294901760
          %v9114 = vsub.f32 %v7470, %v9113
          %9115 = vmatmul.mubr.f32.gmra.mrb[0].mxu0 %v9114
          %v9116 = vpop.f32.mrb[0].mxu0
          %v9117 = vadd.f32 %v8946, %v9116
          %v9118 = vpop.f32.mrb[0].mxu0
          %9119 = vmatprep.mubr.f32.mxu0 0.0
          %v9120 = vand.u32 %v7473, 4294901760
          %v9121 = vsub.f32 %v7473, %v9120
          %9122 = vmatmul.mubr.f32.gmra.mrb[0].mxu0 %v9121
          %v9123 = vpop.f32.mrb[0].mxu0
          %v9124 = vadd.f32 %v8952, %v9123
          %v9125 = vpop.f32.mrb[0].mxu0
          %9126 = vmatprep.mubr.f32.mxu0 0.0
          %v9127 = vand.u32 %v7476, 4294901760
          %v9128 = vsub.f32 %v7476, %v9127
          %9129 = vmatmul.mubr.f32.gmra.mrb[0].mxu0 %v9128
          %v9130 = vpop.f32.mrb[0].mxu0
          %v9131 = vadd.f32 %v8958, %v9130
          %v9132 = vpop.f32.mrb[0].mxu0
          %9133 = vmatprep.mubr.f32.mxu0 0.0
          %v9134 = vand.u32 %v7479, 4294901760
          %v9135 = vsub.f32 %v7479, %v9134
          %9136 = vmatmul.mubr.f32.gmra.mrb[0].mxu0 %v9135
          %v9137 = vpop.f32.mrb[0].mxu0
          %v9138 = vadd.f32 %v8964, %v9137
          %v9139 = vpop.f32.mrb[0].mxu0
          %9140 = vmatprep.mubr.f32.mxu0 0.0
          %v9141 = vand.u32 %v7482, 4294901760
          %v9142 = vsub.f32 %v7482, %v9141
          %9143 = vmatmul.mubr.f32.gmra.mrb[0].mxu0 %v9142
          %v9144 = vpop.f32.mrb[0].mxu0
          %v9145 = vadd.f32 %v8970, %v9144
          %v9146 = vpop.f32.mrb[0].mxu0
          %9147 = vmatprep.mubr.f32.mxu0 0.0
          %v9148 = vand.u32 %v7485, 4294901760
          %v9149 = vsub.f32 %v7485, %v9148
          %9150 = vmatmul.mubr.f32.gmra.mrb[0].mxu0 %v9149
          %v9151 = vpop.f32.mrb[0].mxu0
          %v9152 = vadd.f32 %v8976, %v9151
          %v9153 = vpop.f32.mrb[0].mxu0
          %9154 = vmatprep.mubr.f32.mxu0 0.0
          %v9155 = vand.u32 %v7488, 4294901760
          %v9156 = vsub.f32 %v7488, %v9155
          %9157 = vmatmul.mubr.f32.gmra.mrb[0].mxu0 %v9156
          %v9158 = vpop.f32.mrb[0].mxu0
          %v9159 = vadd.f32 %v8982, %v9158
          %v9160 = vpop.f32.mrb[0].mxu0
          %9161 = vmatprep.mubr.f32.mxu0 0.0
          %v9162 = vand.u32 %v7491, 4294901760
          %v9163 = vsub.f32 %v7491, %v9162
          %9164 = vmatmul.mubr.f32.gmra.mrb[0].mxu0 %v9163
          %v9165 = vpop.f32.mrb[0].mxu0
          %v9166 = vadd.f32 %v8988, %v9165
          %v9167 = vpop.f32.mrb[0].mxu0
          %9168 = vmatprep.mubr.f32.mxu0 0.0
          %v9169 = vand.u32 %v7494, 4294901760
          %v9170 = vsub.f32 %v7494, %v9169
          %9171 = vmatmul.mubr.f32.gmra.mrb[0].mxu0 %v9170
          %v9172 = vpop.f32.mrb[0].mxu0
          %v9173 = vadd.f32 %v8994, %v9172
          %v9174 = vpop.f32.mrb[0].mxu0
          %9175 = vdwg.mxu0
          %9176 = vmatprep.subr.mxu0 0.0
          %v9177 = vand.u32 %v7414, 4294901760
          %9178 = vmatpush1.msra.mxu0 %v9177
          %9179 = vmatprep.subr.mxu0 0.0
          %9180 = vmatpush1.msra.mxu0 0.0
          %9181 = vmatprep.subr.mxu0 0.0
          %9182 = vmatpush1.msra.mxu0 0.0
          %9183 = vmatprep.subr.mxu0 0.0
          %9184 = vmatpush1.msra.mxu0 0.0
          %9185 = vmatprep.subr.mxu0 0.0
          %9186 = vmatpush1.msra.mxu0 0.0
          %9187 = vmatprep.subr.mxu0 0.0
          %9188 = vmatpush1.msra.mxu0 0.0
          %9189 = vmatprep.subr.mxu0 0.0
          %9190 = vmatpush1.msra.mxu0 0.0
          %9191 = vmatprep.subr.mxu0 0.0
          %9192 = vmatpush1.msra.mxu0 0.0
          %9193 = vmatprep.subr.mxu0 0.0
          %9194 = vmatpush1.msra.mxu0 0.0
          %9195 = vmatprep.subr.mxu0 0.0
          %9196 = vmatpush1.msra.mxu0 0.0
          %9197 = vmatprep.subr.mxu0 0.0
          %9198 = vmatpush1.msra.mxu0 0.0
          %9199 = vmatprep.subr.mxu0 0.0
          %9200 = vmatpush1.msra.mxu0 0.0
          %9201 = vmatprep.subr.mxu0 0.0
          %9202 = vmatpush1.msra.mxu0 0.0
          %9203 = vmatprep.subr.mxu0 0.0
          %9204 = vmatpush1.msra.mxu0 0.0
          %9205 = vmatprep.subr.mxu0 0.0
          %9206 = vmatpush1.msra.mxu0 0.0
          %9207 = vmatprep.subr.mxu0 0.0
          %9208 = vmatpush1.msra.mxu0 0.0
          %9209 = vmatprep.subr.mxu0 0.0
          %9210 = vmatpush1.msra.mxu0 0.0
          %9211 = vmatprep.subr.mxu0 0.0
          %9212 = vmatpush1.msra.mxu0 0.0
          %9213 = vmatprep.subr.mxu0 0.0
          %9214 = vmatpush1.msra.mxu0 0.0
          %9215 = vmatprep.subr.mxu0 0.0
          %9216 = vmatpush1.msra.mxu0 0.0
          %9217 = vmatprep.subr.mxu0 0.0
          %9218 = vmatpush1.msra.mxu0 0.0
          %9219 = vmatprep.subr.mxu0 0.0
          %9220 = vmatpush1.msra.mxu0 0.0
          %9221 = vmatprep.subr.mxu0 0.0
          %9222 = vmatpush1.msra.mxu0 0.0
          %9223 = vmatprep.subr.mxu0 0.0
          %9224 = vmatpush1.msra.mxu0 0.0
          %9225 = vmatprep.subr.mxu0 0.0
          %9226 = vmatpush1.msra.mxu0 0.0
          %9227 = vmatprep.subr.mxu0 0.0
          %9228 = vmatpush1.msra.mxu0 0.0
          %9229 = vmatprep.subr.mxu0 0.0
          %9230 = vmatpush1.msra.mxu0 0.0
          %9231 = vmatprep.subr.mxu0 0.0
          %9232 = vmatpush1.msra.mxu0 0.0
          %9233 = vmatprep.subr.mxu0 0.0
          %9234 = vmatpush1.msra.mxu0 0.0
          %9235 = vmatprep.subr.mxu0 0.0
          %9236 = vmatpush1.msra.mxu0 0.0
          %9237 = vmatprep.subr.mxu0 0.0
          %9238 = vmatpush1.msra.mxu0 0.0
          %9239 = vmatprep.subr.mxu0 0.0
          %9240 = vmatpush1.msra.mxu0 0.0
          %9241 = vmatprep.mubr.f32.mxu0 0.0
          %v9242 = vand.u32 %v7449, 4294901760
          %v9243 = vsub.f32 %v7449, %v9242
          %v9244 = vand.u32 %v9243, 4294901760
          %9245 = vmatmul.mubr.f32.gmra.mrb[0].mxu0 %v9244
          %v9246 = vpop.f32.mrb[0].mxu0
          %v9247 = vadd.f32 %v9068, %v9246
          %v9248 = vpop.f32.mrb[0].mxu0
          %9249 = vmatprep.mubr.f32.mxu0 0.0
          %v9250 = vand.u32 %v7452, 4294901760
          %v9251 = vsub.f32 %v7452, %v9250
          %v9252 = vand.u32 %v9251, 4294901760
          %9253 = vmatmul.mubr.f32.gmra.mrb[0].mxu0 %v9252
          %v9254 = vpop.f32.mrb[0].mxu0
          %v9255 = vadd.f32 %v9075, %v9254
          %v9256 = vpop.f32.mrb[0].mxu0
          %9257 = vmatprep.mubr.f32.mxu0 0.0
          %v9258 = vand.u32 %v7455, 4294901760
          %v9259 = vsub.f32 %v7455, %v9258
          %v9260 = vand.u32 %v9259, 4294901760
          %9261 = vmatmul.mubr.f32.gmra.mrb[0].mxu0 %v9260
          %v9262 = vpop.f32.mrb[0].mxu0
          %v9263 = vadd.f32 %v9082, %v9262
          %v9264 = vpop.f32.mrb[0].mxu0
          %9265 = vmatprep.mubr.f32.mxu0 0.0
          %v9266 = vand.u32 %v7458, 4294901760
          %v9267 = vsub.f32 %v7458, %v9266
          %v9268 = vand.u32 %v9267, 4294901760
          %9269 = vmatmul.mubr.f32.gmra.mrb[0].mxu0 %v9268
          %v9270 = vpop.f32.mrb[0].mxu0
          %v9271 = vadd.f32 %v9089, %v9270
          %v9272 = vpop.f32.mrb[0].mxu0
          %9273 = vmatprep.mubr.f32.mxu0 0.0
          %v9274 = vand.u32 %v7461, 4294901760
          %v9275 = vsub.f32 %v7461, %v9274
          %v9276 = vand.u32 %v9275, 4294901760
          %9277 = vmatmul.mubr.f32.gmra.mrb[0].mxu0 %v9276
          %v9278 = vpop.f32.mrb[0].mxu0
          %v9279 = vadd.f32 %v9096, %v9278
          %v9280 = vpop.f32.mrb[0].mxu0
          %9281 = vmatprep.mubr.f32.mxu0 0.0
          %v9282 = vand.u32 %v7464, 4294901760
          %v9283 = vsub.f32 %v7464, %v9282
          %v9284 = vand.u32 %v9283, 4294901760
          %9285 = vmatmul.mubr.f32.gmra.mrb[0].mxu0 %v9284
          %v9286 = vpop.f32.mrb[0].mxu0
          %v9287 = vadd.f32 %v9103, %v9286
          %v9288 = vpop.f32.mrb[0].mxu0
          %9289 = vmatprep.mubr.f32.mxu0 0.0
          %v9290 = vand.u32 %v7467, 4294901760
          %v9291 = vsub.f32 %v7467, %v9290
          %v9292 = vand.u32 %v9291, 4294901760
          %9293 = vmatmul.mubr.f32.gmra.mrb[0].mxu0 %v9292
          %v9294 = vpop.f32.mrb[0].mxu0
          %v9295 = vadd.f32 %v9110, %v9294
          %v9296 = vpop.f32.mrb[0].mxu0
          %9297 = vmatprep.mubr.f32.mxu0 0.0
          %v9298 = vand.u32 %v7470, 4294901760
          %v9299 = vsub.f32 %v7470, %v9298
          %v9300 = vand.u32 %v9299, 4294901760
          %9301 = vmatmul.mubr.f32.gmra.mrb[0].mxu0 %v9300
          %v9302 = vpop.f32.mrb[0].mxu0
          %v9303 = vadd.f32 %v9117, %v9302
          %v9304 = vpop.f32.mrb[0].mxu0
          %9305 = vmatprep.mubr.f32.mxu0 0.0
          %v9306 = vand.u32 %v7473, 4294901760
          %v9307 = vsub.f32 %v7473, %v9306
          %v9308 = vand.u32 %v9307, 4294901760
          %9309 = vmatmul.mubr.f32.gmra.mrb[0].mxu0 %v9308
          %v9310 = vpop.f32.mrb[0].mxu0
          %v9311 = vadd.f32 %v9124, %v9310
          %v9312 = vpop.f32.mrb[0].mxu0
          %9313 = vmatprep.mubr.f32.mxu0 0.0
          %v9314 = vand.u32 %v7476, 4294901760
          %v9315 = vsub.f32 %v7476, %v9314
          %v9316 = vand.u32 %v9315, 4294901760
          %9317 = vmatmul.mubr.f32.gmra.mrb[0].mxu0 %v9316
          %v9318 = vpop.f32.mrb[0].mxu0
          %v9319 = vadd.f32 %v9131, %v9318
          %v9320 = vpop.f32.mrb[0].mxu0
          %9321 = vmatprep.mubr.f32.mxu0 0.0
          %v9322 = vand.u32 %v7479, 4294901760
          %v9323 = vsub.f32 %v7479, %v9322
          %v9324 = vand.u32 %v9323, 4294901760
          %9325 = vmatmul.mubr.f32.gmra.mrb[0].mxu0 %v9324
          %v9326 = vpop.f32.mrb[0].mxu0
          %v9327 = vadd.f32 %v9138, %v9326
          %v9328 = vpop.f32.mrb[0].mxu0
          %9329 = vmatprep.mubr.f32.mxu0 0.0
          %v9330 = vand.u32 %v7482, 4294901760
          %v9331 = vsub.f32 %v7482, %v9330
          %v9332 = vand.u32 %v9331, 4294901760
          %9333 = vmatmul.mubr.f32.gmra.mrb[0].mxu0 %v9332
          %v9334 = vpop.f32.mrb[0].mxu0
          %v9335 = vadd.f32 %v9145, %v9334
          %v9336 = vpop.f32.mrb[0].mxu0
          %9337 = vmatprep.mubr.f32.mxu0 0.0
          %v9338 = vand.u32 %v7485, 4294901760
          %v9339 = vsub.f32 %v7485, %v9338
          %v9340 = vand.u32 %v9339, 4294901760
          %9341 = vmatmul.mubr.f32.gmra.mrb[0].mxu0 %v9340
          %v9342 = vpop.f32.mrb[0].mxu0
          %v9343 = vadd.f32 %v9152, %v9342
          %v9344 = vpop.f32.mrb[0].mxu0
          %9345 = vmatprep.mubr.f32.mxu0 0.0
          %v9346 = vand.u32 %v7488, 4294901760
          %v9347 = vsub.f32 %v7488, %v9346
          %v9348 = vand.u32 %v9347, 4294901760
          %9349 = vmatmul.mubr.f32.gmra.mrb[0].mxu0 %v9348
          %v9350 = vpop.f32.mrb[0].mxu0
          %v9351 = vadd.f32 %v9159, %v9350
          %v9352 = vpop.f32.mrb[0].mxu0
          %9353 = vmatprep.mubr.f32.mxu0 0.0
          %v9354 = vand.u32 %v7491, 4294901760
          %v9355 = vsub.f32 %v7491, %v9354
          %v9356 = vand.u32 %v9355, 4294901760
          %9357 = vmatmul.mubr.f32.gmra.mrb[0].mxu0 %v9356
          %v9358 = vpop.f32.mrb[0].mxu0
          %v9359 = vadd.f32 %v9166, %v9358
          %v9360 = vpop.f32.mrb[0].mxu0
          %9361 = vmatprep.mubr.f32.mxu0 0.0
          %v9362 = vand.u32 %v7494, 4294901760
          %v9363 = vsub.f32 %v7494, %v9362
          %v9364 = vand.u32 %v9363, 4294901760
          %9365 = vmatmul.mubr.f32.gmra.mrb[0].mxu0 %v9364
          %v9366 = vpop.f32.mrb[0].mxu0
          %v9367 = vadd.f32 %v9173, %v9366
          %v9368 = vpop.f32.mrb[0].mxu0
          %9369 = vdwg.mxu0
          %9370 = vmatprep.subr.mxu0 0.0
          %v9371 = vand.u32 %v7414, 4294901760
          %v9372 = vsub.f32 %v7414, %v9371
          %v9373 = vand.u32 %v9372, 4294901760
          %9374 = vmatpush1.msra.mxu0 %v9373
          %9375 = vmatprep.subr.mxu0 0.0
          %9376 = vmatpush1.msra.mxu0 0.0
          %9377 = vmatprep.subr.mxu0 0.0
          %9378 = vmatpush1.msra.mxu0 0.0
          %9379 = vmatprep.subr.mxu0 0.0
          %9380 = vmatpush1.msra.mxu0 0.0
          %9381 = vmatprep.subr.mxu0 0.0
          %9382 = vmatpush1.msra.mxu0 0.0
          %9383 = vmatprep.subr.mxu0 0.0
          %9384 = vmatpush1.msra.mxu0 0.0
          %9385 = vmatprep.subr.mxu0 0.0
          %9386 = vmatpush1.msra.mxu0 0.0
          %9387 = vmatprep.subr.mxu0 0.0
          %9388 = vmatpush1.msra.mxu0 0.0
          %9389 = vmatprep.subr.mxu0 0.0
          %9390 = vmatpush1.msra.mxu0 0.0
          %9391 = vmatprep.subr.mxu0 0.0
          %9392 = vmatpush1.msra.mxu0 0.0
          %9393 = vmatprep.subr.mxu0 0.0
          %9394 = vmatpush1.msra.mxu0 0.0
          %9395 = vmatprep.subr.mxu0 0.0
          %9396 = vmatpush1.msra.mxu0 0.0
          %9397 = vmatprep.subr.mxu0 0.0
          %9398 = vmatpush1.msra.mxu0 0.0
          %9399 = vmatprep.subr.mxu0 0.0
          %9400 = vmatpush1.msra.mxu0 0.0
          %9401 = vmatprep.subr.mxu0 0.0
          %9402 = vmatpush1.msra.mxu0 0.0
          %9403 = vmatprep.subr.mxu0 0.0
          %9404 = vmatpush1.msra.mxu0 0.0
          %9405 = vmatprep.subr.mxu0 0.0
          %9406 = vmatpush1.msra.mxu0 0.0
          %9407 = vmatprep.subr.mxu0 0.0
          %9408 = vmatpush1.msra.mxu0 0.0
          %9409 = vmatprep.subr.mxu0 0.0
          %9410 = vmatpush1.msra.mxu0 0.0
          %9411 = vmatprep.subr.mxu0 0.0
          %9412 = vmatpush1.msra.mxu0 0.0
          %9413 = vmatprep.subr.mxu0 0.0
          %9414 = vmatpush1.msra.mxu0 0.0
          %9415 = vmatprep.subr.mxu0 0.0
          %9416 = vmatpush1.msra.mxu0 0.0
          %9417 = vmatprep.subr.mxu0 0.0
          %9418 = vmatpush1.msra.mxu0 0.0
          %9419 = vmatprep.subr.mxu0 0.0
          %9420 = vmatpush1.msra.mxu0 0.0
          %9421 = vmatprep.subr.mxu0 0.0
          %9422 = vmatpush1.msra.mxu0 0.0
          %9423 = vmatprep.subr.mxu0 0.0
          %9424 = vmatpush1.msra.mxu0 0.0
          %9425 = vmatprep.subr.mxu0 0.0
          %9426 = vmatpush1.msra.mxu0 0.0
          %9427 = vmatprep.subr.mxu0 0.0
          %9428 = vmatpush1.msra.mxu0 0.0
          %9429 = vmatprep.subr.mxu0 0.0
          %9430 = vmatpush1.msra.mxu0 0.0
          %9431 = vmatprep.subr.mxu0 0.0
          %9432 = vmatpush1.msra.mxu0 0.0
          %9433 = vmatprep.subr.mxu0 0.0
          %9434 = vmatpush1.msra.mxu0 0.0
          %9435 = vmatprep.subr.mxu0 0.0
          %9436 = vmatpush1.msra.mxu0 0.0
          %9437 = vmatprep.mubr.f32.mxu0 0.0
          %v9438 = vand.u32 %v7449, 4294901760
          %9439 = vmatmul.mubr.f32.gmra.mrb[0].mxu0 %v9438
          %v9440 = vpop.f32.mrb[0].mxu0
          %v9441 = vadd.f32 %v9247, %v9440
          %v9442 = vpop.f32.mrb[0].mxu0
          %9443 = vmatprep.mubr.f32.mxu0 0.0
          %v9444 = vand.u32 %v7452, 4294901760
          %9445 = vmatmul.mubr.f32.gmra.mrb[0].mxu0 %v9444
          %v9446 = vpop.f32.mrb[0].mxu0
          %v9447 = vadd.f32 %v9255, %v9446
          %v9448 = vpop.f32.mrb[0].mxu0
          %9449 = vmatprep.mubr.f32.mxu0 0.0
          %v9450 = vand.u32 %v7455, 4294901760
          %9451 = vmatmul.mubr.f32.gmra.mrb[0].mxu0 %v9450
          %v9452 = vpop.f32.mrb[0].mxu0
          %v9453 = vadd.f32 %v9263, %v9452
          %v9454 = vpop.f32.mrb[0].mxu0
          %9455 = vmatprep.mubr.f32.mxu0 0.0
          %v9456 = vand.u32 %v7458, 4294901760
          %9457 = vmatmul.mubr.f32.gmra.mrb[0].mxu0 %v9456
          %v9458 = vpop.f32.mrb[0].mxu0
          %v9459 = vadd.f32 %v9271, %v9458
          %v9460 = vpop.f32.mrb[0].mxu0
          %9461 = vmatprep.mubr.f32.mxu0 0.0
          %v9462 = vand.u32 %v7461, 4294901760
          %9463 = vmatmul.mubr.f32.gmra.mrb[0].mxu0 %v9462
          %v9464 = vpop.f32.mrb[0].mxu0
          %v9465 = vadd.f32 %v9279, %v9464
          %v9466 = vpop.f32.mrb[0].mxu0
          %9467 = vmatprep.mubr.f32.mxu0 0.0
          %v9468 = vand.u32 %v7464, 4294901760
          %9469 = vmatmul.mubr.f32.gmra.mrb[0].mxu0 %v9468
          %v9470 = vpop.f32.mrb[0].mxu0
          %v9471 = vadd.f32 %v9287, %v9470
          %v9472 = vpop.f32.mrb[0].mxu0
          %9473 = vmatprep.mubr.f32.mxu0 0.0
          %v9474 = vand.u32 %v7467, 4294901760
          %9475 = vmatmul.mubr.f32.gmra.mrb[0].mxu0 %v9474
          %v9476 = vpop.f32.mrb[0].mxu0
          %v9477 = vadd.f32 %v9295, %v9476
          %v9478 = vpop.f32.mrb[0].mxu0
          %9479 = vmatprep.mubr.f32.mxu0 0.0
          %v9480 = vand.u32 %v7470, 4294901760
          %9481 = vmatmul.mubr.f32.gmra.mrb[0].mxu0 %v9480
          %v9482 = vpop.f32.mrb[0].mxu0
          %v9483 = vadd.f32 %v9303, %v9482
          %v9484 = vpop.f32.mrb[0].mxu0
          %9485 = vmatprep.mubr.f32.mxu0 0.0
          %v9486 = vand.u32 %v7473, 4294901760
          %9487 = vmatmul.mubr.f32.gmra.mrb[0].mxu0 %v9486
          %v9488 = vpop.f32.mrb[0].mxu0
          %v9489 = vadd.f32 %v9311, %v9488
          %v9490 = vpop.f32.mrb[0].mxu0
          %9491 = vmatprep.mubr.f32.mxu0 0.0
          %v9492 = vand.u32 %v7476, 4294901760
          %9493 = vmatmul.mubr.f32.gmra.mrb[0].mxu0 %v9492
          %v9494 = vpop.f32.mrb[0].mxu0
          %v9495 = vadd.f32 %v9319, %v9494
          %v9496 = vpop.f32.mrb[0].mxu0
          %9497 = vmatprep.mubr.f32.mxu0 0.0
          %v9498 = vand.u32 %v7479, 4294901760
          %9499 = vmatmul.mubr.f32.gmra.mrb[0].mxu0 %v9498
          %v9500 = vpop.f32.mrb[0].mxu0
          %v9501 = vadd.f32 %v9327, %v9500
          %v9502 = vpop.f32.mrb[0].mxu0
          %9503 = vmatprep.mubr.f32.mxu0 0.0
          %v9504 = vand.u32 %v7482, 4294901760
          %9505 = vmatmul.mubr.f32.gmra.mrb[0].mxu0 %v9504
          %v9506 = vpop.f32.mrb[0].mxu0
          %v9507 = vadd.f32 %v9335, %v9506
          %v9508 = vpop.f32.mrb[0].mxu0
          %9509 = vmatprep.mubr.f32.mxu0 0.0
          %v9510 = vand.u32 %v7485, 4294901760
          %9511 = vmatmul.mubr.f32.gmra.mrb[0].mxu0 %v9510
          %v9512 = vpop.f32.mrb[0].mxu0
          %v9513 = vadd.f32 %v9343, %v9512
          %v9514 = vpop.f32.mrb[0].mxu0
          %9515 = vmatprep.mubr.f32.mxu0 0.0
          %v9516 = vand.u32 %v7488, 4294901760
          %9517 = vmatmul.mubr.f32.gmra.mrb[0].mxu0 %v9516
          %v9518 = vpop.f32.mrb[0].mxu0
          %v9519 = vadd.f32 %v9351, %v9518
          %v9520 = vpop.f32.mrb[0].mxu0
          %9521 = vmatprep.mubr.f32.mxu0 0.0
          %v9522 = vand.u32 %v7491, 4294901760
          %9523 = vmatmul.mubr.f32.gmra.mrb[0].mxu0 %v9522
          %v9524 = vpop.f32.mrb[0].mxu0
          %v9525 = vadd.f32 %v9359, %v9524
          %v9526 = vpop.f32.mrb[0].mxu0
          %9527 = vmatprep.mubr.f32.mxu0 0.0
          %v9528 = vand.u32 %v7494, 4294901760
          %9529 = vmatmul.mubr.f32.gmra.mrb[0].mxu0 %v9528
          %v9530 = vpop.f32.mrb[0].mxu0
          %v9531 = vadd.f32 %v9367, %v9530
          %v9532 = vpop.f32.mrb[0].mxu0
          %9533 = vdwg.mxu0
          %9534 = vmatprep.subr.mxu0 0.0
          %v9535 = vand.u32 %v7414, 4294901760
          %9536 = vmatpush1.msra.mxu0 %v9535
          %9537 = vmatprep.subr.mxu0 0.0
          %9538 = vmatpush1.msra.mxu0 0.0
          %9539 = vmatprep.subr.mxu0 0.0
          %9540 = vmatpush1.msra.mxu0 0.0
          %9541 = vmatprep.subr.mxu0 0.0
          %9542 = vmatpush1.msra.mxu0 0.0
          %9543 = vmatprep.subr.mxu0 0.0
          %9544 = vmatpush1.msra.mxu0 0.0
          %9545 = vmatprep.subr.mxu0 0.0
          %9546 = vmatpush1.msra.mxu0 0.0
          %9547 = vmatprep.subr.mxu0 0.0
          %9548 = vmatpush1.msra.mxu0 0.0
          %9549 = vmatprep.subr.mxu0 0.0
          %9550 = vmatpush1.msra.mxu0 0.0
          %9551 = vmatprep.subr.mxu0 0.0
          %9552 = vmatpush1.msra.mxu0 0.0
          %9553 = vmatprep.subr.mxu0 0.0
          %9554 = vmatpush1.msra.mxu0 0.0
          %9555 = vmatprep.subr.mxu0 0.0
          %9556 = vmatpush1.msra.mxu0 0.0
          %9557 = vmatprep.subr.mxu0 0.0
          %9558 = vmatpush1.msra.mxu0 0.0
          %9559 = vmatprep.subr.mxu0 0.0
          %9560 = vmatpush1.msra.mxu0 0.0
          %9561 = vmatprep.subr.mxu0 0.0
          %9562 = vmatpush1.msra.mxu0 0.0
          %9563 = vmatprep.subr.mxu0 0.0
          %9564 = vmatpush1.msra.mxu0 0.0
          %9565 = vmatprep.subr.mxu0 0.0
          %9566 = vmatpush1.msra.mxu0 0.0
          %9567 = vmatprep.subr.mxu0 0.0
          %9568 = vmatpush1.msra.mxu0 0.0
          %9569 = vmatprep.subr.mxu0 0.0
          %9570 = vmatpush1.msra.mxu0 0.0
          %9571 = vmatprep.subr.mxu0 0.0
          %9572 = vmatpush1.msra.mxu0 0.0
          %9573 = vmatprep.subr.mxu0 0.0
          %9574 = vmatpush1.msra.mxu0 0.0
          %9575 = vmatprep.subr.mxu0 0.0
          %9576 = vmatpush1.msra.mxu0 0.0
          %9577 = vmatprep.subr.mxu0 0.0
          %9578 = vmatpush1.msra.mxu0 0.0
          %9579 = vmatprep.subr.mxu0 0.0
          %9580 = vmatpush1.msra.mxu0 0.0
          %9581 = vmatprep.subr.mxu0 0.0
          %9582 = vmatpush1.msra.mxu0 0.0
          %9583 = vmatprep.subr.mxu0 0.0
          %9584 = vmatpush1.msra.mxu0 0.0
          %9585 = vmatprep.subr.mxu0 0.0
          %9586 = vmatpush1.msra.mxu0 0.0
          %9587 = vmatprep.subr.mxu0 0.0
          %9588 = vmatpush1.msra.mxu0 0.0
          %9589 = vmatprep.subr.mxu0 0.0
          %9590 = vmatpush1.msra.mxu0 0.0
          %9591 = vmatprep.subr.mxu0 0.0
          %9592 = vmatpush1.msra.mxu0 0.0
          %9593 = vmatprep.subr.mxu0 0.0
          %9594 = vmatpush1.msra.mxu0 0.0
          %9595 = vmatprep.subr.mxu0 0.0
          %9596 = vmatpush1.msra.mxu0 0.0
          %9597 = vmatprep.subr.mxu0 0.0
          %9598 = vmatpush1.msra.mxu0 0.0
          %9599 = vmatprep.mubr.f32.mxu0 0.0
          %v9600 = vand.u32 %v7449, 4294901760
          %9601 = vmatmul.mubr.f32.gmra.mrb[0].mxu0 %v9600
          %v9602 = vpop.f32.mrb[0].mxu0
          %v9603 = vadd.f32 %v9441, %v9602
          %v9604 = vpop.f32.mrb[0].mxu0
          %9605 = vmatprep.mubr.f32.mxu0 0.0
          %v9606 = vand.u32 %v7452, 4294901760
          %9607 = vmatmul.mubr.f32.gmra.mrb[0].mxu0 %v9606
          %v9608 = vpop.f32.mrb[0].mxu0
          %v9609 = vadd.f32 %v9447, %v9608
          %v9610 = vpop.f32.mrb[0].mxu0
          %9611 = vmatprep.mubr.f32.mxu0 0.0
          %v9612 = vand.u32 %v7455, 4294901760
          %9613 = vmatmul.mubr.f32.gmra.mrb[0].mxu0 %v9612
          %v9614 = vpop.f32.mrb[0].mxu0
          %v9615 = vadd.f32 %v9453, %v9614
          %v9616 = vpop.f32.mrb[0].mxu0
          %9617 = vmatprep.mubr.f32.mxu0 0.0
          %v9618 = vand.u32 %v7458, 4294901760
          %9619 = vmatmul.mubr.f32.gmra.mrb[0].mxu0 %v9618
          %v9620 = vpop.f32.mrb[0].mxu0
          %v9621 = vadd.f32 %v9459, %v9620
          %v9622 = vpop.f32.mrb[0].mxu0
          %9623 = vmatprep.mubr.f32.mxu0 0.0
          %v9624 = vand.u32 %v7461, 4294901760
          %9625 = vmatmul.mubr.f32.gmra.mrb[0].mxu0 %v9624
          %v9626 = vpop.f32.mrb[0].mxu0
          %v9627 = vadd.f32 %v9465, %v9626
          %v9628 = vpop.f32.mrb[0].mxu0
          %9629 = vmatprep.mubr.f32.mxu0 0.0
          %v9630 = vand.u32 %v7464, 4294901760
          %9631 = vmatmul.mubr.f32.gmra.mrb[0].mxu0 %v9630
          %v9632 = vpop.f32.mrb[0].mxu0
          %v9633 = vadd.f32 %v9471, %v9632
          %v9634 = vpop.f32.mrb[0].mxu0
          %9635 = vmatprep.mubr.f32.mxu0 0.0
          %v9636 = vand.u32 %v7467, 4294901760
          %9637 = vmatmul.mubr.f32.gmra.mrb[0].mxu0 %v9636
          %v9638 = vpop.f32.mrb[0].mxu0
          %v9639 = vadd.f32 %v9477, %v9638
          %v9640 = vpop.f32.mrb[0].mxu0
          %9641 = vmatprep.mubr.f32.mxu0 0.0
          %v9642 = vand.u32 %v7470, 4294901760
          %9643 = vmatmul.mubr.f32.gmra.mrb[0].mxu0 %v9642
          %v9644 = vpop.f32.mrb[0].mxu0
          %v9645 = vadd.f32 %v9483, %v9644
          %v9646 = vpop.f32.mrb[0].mxu0
          %9647 = vmatprep.mubr.f32.mxu0 0.0
          %v9648 = vand.u32 %v7473, 4294901760
          %9649 = vmatmul.mubr.f32.gmra.mrb[0].mxu0 %v9648
          %v9650 = vpop.f32.mrb[0].mxu0
          %v9651 = vadd.f32 %v9489, %v9650
          %v9652 = vpop.f32.mrb[0].mxu0
          %9653 = vmatprep.mubr.f32.mxu0 0.0
          %v9654 = vand.u32 %v7476, 4294901760
          %9655 = vmatmul.mubr.f32.gmra.mrb[0].mxu0 %v9654
          %v9656 = vpop.f32.mrb[0].mxu0
          %v9657 = vadd.f32 %v9495, %v9656
          %v9658 = vpop.f32.mrb[0].mxu0
          %9659 = vmatprep.mubr.f32.mxu0 0.0
          %v9660 = vand.u32 %v7479, 4294901760
          %9661 = vmatmul.mubr.f32.gmra.mrb[0].mxu0 %v9660
          %v9662 = vpop.f32.mrb[0].mxu0
          %v9663 = vadd.f32 %v9501, %v9662
          %v9664 = vpop.f32.mrb[0].mxu0
          %9665 = vmatprep.mubr.f32.mxu0 0.0
          %v9666 = vand.u32 %v7482, 4294901760
          %9667 = vmatmul.mubr.f32.gmra.mrb[0].mxu0 %v9666
          %v9668 = vpop.f32.mrb[0].mxu0
          %v9669 = vadd.f32 %v9507, %v9668
          %v9670 = vpop.f32.mrb[0].mxu0
          %9671 = vmatprep.mubr.f32.mxu0 0.0
          %v9672 = vand.u32 %v7485, 4294901760
          %9673 = vmatmul.mubr.f32.gmra.mrb[0].mxu0 %v9672
          %v9674 = vpop.f32.mrb[0].mxu0
          %v9675 = vadd.f32 %v9513, %v9674
          %v9676 = vpop.f32.mrb[0].mxu0
          %9677 = vmatprep.mubr.f32.mxu0 0.0
          %v9678 = vand.u32 %v7488, 4294901760
          %9679 = vmatmul.mubr.f32.gmra.mrb[0].mxu0 %v9678
          %v9680 = vpop.f32.mrb[0].mxu0
          %v9681 = vadd.f32 %v9519, %v9680
          %v9682 = vpop.f32.mrb[0].mxu0
          %9683 = vmatprep.mubr.f32.mxu0 0.0
          %v9684 = vand.u32 %v7491, 4294901760
          %9685 = vmatmul.mubr.f32.gmra.mrb[0].mxu0 %v9684
          %v9686 = vpop.f32.mrb[0].mxu0
          %v9687 = vadd.f32 %v9525, %v9686
          %v9688 = vpop.f32.mrb[0].mxu0
          %9689 = vmatprep.mubr.f32.mxu0 0.0
          %v9690 = vand.u32 %v7494, 4294901760
          %9691 = vmatmul.mubr.f32.gmra.mrb[0].mxu0 %v9690
          %v9692 = vpop.f32.mrb[0].mxu0
          %v9693 = vadd.f32 %v9531, %v9692
          %v9694 = vpop.f32.mrb[0].mxu0
          %9695 = vdwg.mxu0
          %s9696 = scalar_lea.vmem %s409, %s8587
          %vm9697 = vcmask 23552
          %9698 = vst.msk [vmem:[%s9696] sm:$0xff] %vm9697, %v9603
          %9699 = vst.msk [vmem:[%s9696 + $0x8] sm:$0xff] %vm9697, %v9609
          %9700 = vst.msk [vmem:[%s9696 + $0x10] sm:$0xff] %vm9697, %v9615
          %9701 = vst.msk [vmem:[%s9696 + $0x18] sm:$0xff] %vm9697, %v9621
          %9702 = vst.msk [vmem:[%s9696 + $0x20] sm:$0xff] %vm9697, %v9627
          %9703 = vst.msk [vmem:[%s9696 + $0x28] sm:$0xff] %vm9697, %v9633
          %9704 = vst.msk [vmem:[%s9696 + $0x30] sm:$0xff] %vm9697, %v9639
          %9705 = vst.msk [vmem:[%s9696 + $0x38] sm:$0xff] %vm9697, %v9645
          %9706 = vst.msk [vmem:[%s9696 + $0x40] sm:$0xff] %vm9697, %v9651
          %9707 = vst.msk [vmem:[%s9696 + $0x48] sm:$0xff] %vm9697, %v9657
          %9708 = vst.msk [vmem:[%s9696 + $0x50] sm:$0xff] %vm9697, %v9663
          %9709 = vst.msk [vmem:[%s9696 + $0x58] sm:$0xff] %vm9697, %v9669
          %9710 = vst.msk [vmem:[%s9696 + $0x60] sm:$0xff] %vm9697, %v9675
          %9711 = vst.msk [vmem:[%s9696 + $0x68] sm:$0xff] %vm9697, %v9681
          %9712 = vst.msk [vmem:[%s9696 + $0x70] sm:$0xff] %vm9697, %v9687
          %9713 = vst.msk [vmem:[%s9696 + $0x78] sm:$0xff] %vm9697, %v9693
          %s9714 = scalar_lea.vmem %s401, %s7412
          %9715 = vst [vmem:[%s9714] sm:$0x1f] %v7411
        $region65: #{tpu_custom_call.1} parent=43 // loop_footer
          %s7405 = sadd.s32 1, %s7401
        $region66: #{tpu_custom_call.1} parent=43 // loop_footer_branch
          %7400 = sbr.rel target = $region62
        $region67: #{tpu_custom_call.1} parent=43 // loop_exit
          _
        %s9716 = smul.u32 32, %s26
        %p9717 = scmp.lt.s32.totalorder %s9716, 63
        %s9718 = scalar_select %p9717, %s9716, 63
        %s9719 = smul.addr %s9718, 8
        %s9720 = scalar_lea.vmem %s6, %s9719
        %s9721 = sand.u32 %s196, 1
        %s9722 = scalar_lea.sflag [#allocation5], %s9721
        %s9723 = sand.u32 %s196, 1
        %s9724 = smul.addr %s9723, 4096
        %s9725 = scalar_lea.vmem [#allocation11], %s9724
        %s9726 = smul.u32 32, %s26
        %p9727 = scmp.lt.s32.totalorder %s9726, 63
        %s9728 = scalar_select %p9727, %s9726, 63
        %s9729 = smul.addr %s9728, 16
        %s9730 = smul.addr %s9729, 8
        %s9731 = scalar_lea.vmem %s8, %s9730
        // Predicated region
        $region68: #{tpu_custom_call.1} parent=43 // pred_check
          %p9732 = pneg %p180
        $region69: #{tpu_custom_call.1} parent=43 // pred_check_branch
          %9734 = sbr.rel (%p9732) target = $region71
        $region70: #{tpu_custom_call.1} parent=43 // pred_region
          %s9735 = smul.u32 32, %s26
        $region71: #{tpu_custom_call.1} parent=43 // pred_fallthru
          _
        // Predicated region
        $region72: #{tpu_custom_call.1} parent=43 // pred_check
          %p9736 = pneg %p206
        $region73: #{tpu_custom_call.1} parent=43 // pred_check_branch
          %9738 = sbr.rel (%p9736) target = $region75
        $region74: #{tpu_custom_call.1} parent=43 // pred_region
          %s9739 = smul.u32 32, %s26
          %s9741 = ssub.s32 65536, 65536
          %9742 = vsyncadd %s9722, %s9741
          %s9743 = smul.addr %s9739, 16
          %s9744 = smul.addr %s9743, 128
          %s9745 = scalar_lea.hbm %s7, %s9744
          %s9746 = sshll.u32 %s9725, 4
          %s9747 = int_to_ptr.vmem [resolvable:$true] %s9746
          %9752 = dma.vmem_to_hbm [thread:$0]  %s9747, 65536, %s9745, %s9722, 128, 128, 8
        $region75: #{tpu_custom_call.1} parent=43 // pred_fallthru
          _
        // Predicated region
        $region76: #{tpu_custom_call.1} parent=43 // pred_check
          %p9753 = pneg %p232
        $region77: #{tpu_custom_call.1} parent=43 // pred_check_branch
          %9755 = sbr.rel (%p9753) target = $region79
        $region78: #{tpu_custom_call.1} parent=43 // pred_region
          %s9756 = smul.u32 32, %s26
        $region79: #{tpu_custom_call.1} parent=43 // pred_fallthru
          _
      $region44: #{tpu_custom_call.1} parent=5 // pred_fallthru
        _
      %p9757 = scmp.le.s32.totalorder 2, %s21
      // Predicated region
      $region80: #{tpu_custom_call.1} parent=5 // pred_check
        %p9758 = pneg %p9757
      $region81: #{tpu_custom_call.1} parent=5 // pred_check_branch
        %9760 = sbr.rel (%p9758) target = $region83
      $region82: #{tpu_custom_call.1} parent=5 // pred_region
        %s9761 = ssub.s32 %s21, 2
        // Predicated region
        $region84: #{tpu_custom_call.1} parent=82 // pred_check
          %p9762 = pneg %p186
        $region85: #{tpu_custom_call.1} parent=82 // pred_check_branch
          %9764 = sbr.rel (%p9762) target = $region87
        $region86: #{tpu_custom_call.1} parent=82 // pred_region
          %s9765 = smul.u32 32, %s27
          %p9766 = scmp.lt.s32.totalorder %s9765, 63
          %s9767 = scalar_select %p9766, %s9765, 63
          %s9768 = smul.addr %s9767, 8
          %s9769 = scalar_lea.vmem %s6, %s9768
        $region87: #{tpu_custom_call.1} parent=82 // pred_fallthru
          _
        // Predicated region
        $region88: #{tpu_custom_call.1} parent=82 // pred_check
          %p9770 = pneg %p212
        $region89: #{tpu_custom_call.1} parent=82 // pred_check_branch
          %9772 = sbr.rel (%p9770) target = $region91
        $region90: #{tpu_custom_call.1} parent=82 // pred_region
          %s9773 = sand.u32 %s197, 1
          %s9774 = scalar_lea.sflag [#allocation5], %s9773
          %s9775 = sand.u32 %s197, 1
          %s9776 = smul.addr %s9775, 4096
          %s9777 = scalar_lea.vmem [#allocation11], %s9776
          %9778 = dma.done %s9774, 65536
        $region91: #{tpu_custom_call.1} parent=82 // pred_fallthru
          _
        // Predicated region
        $region92: #{tpu_custom_call.1} parent=82 // pred_check
          %p9779 = pneg %p238
        $region93: #{tpu_custom_call.1} parent=82 // pred_check_branch
          %9781 = sbr.rel (%p9779) target = $region95
        $region94: #{tpu_custom_call.1} parent=82 // pred_region
          %s9782 = smul.u32 32, %s27
          %p9783 = scmp.lt.s32.totalorder %s9782, 63
          %s9784 = scalar_select %p9783, %s9782, 63
          %s9785 = smul.addr %s9784, 16
          %s9786 = smul.addr %s9785, 8
          %s9787 = scalar_lea.vmem %s8, %s9786
        $region95: #{tpu_custom_call.1} parent=82 // pred_fallthru
          _
      $region83: #{tpu_custom_call.1} parent=5 // pred_fallthru
        _
    $region6: #{tpu_custom_call.1} parent=1 // loop_footer
      %s25 = sadd.s32 1, %s21
    $region7: #{tpu_custom_call.1} parent=1 // loop_footer_branch
      %20 = sbr.rel target = $region3
    $region8: #{tpu_custom_call.1} parent=1 // loop_exit
      _
    %9788 = vsyncpa [#allocation4], 1
    %s9789 = scalar_lea.sflag [#allocation4], 1
    %9790 = vsyncpa %s9789, 1
    %9791 = vsyncpa [#allocation7], 1
    %9792 = vsyncpa [#allocation10], 1
    %9793 = vsyncpa [#allocation5], 1
    %s9794 = scalar_lea.sflag [#allocation5], 1
    %9795 = vsyncpa %s9794, 1

</llo_original>
